<compile_context>
chip_gen: v6e
topology: v6e:2x2x1
jax: 0.10.0
libtpu: 0.0.40
codegen_flags: <defaults>
</compile_context>

<pallas_src>
import math
from functools import partial

import jax
import jax.numpy as jnp
from jax.experimental import pallas as pl
from jax.experimental.pallas import tpu as pltpu

LEAKY_ALPHA = 0.2
IMAGE_CHANNELS = 3
_EPS = 1e-5                     # StyleConv2D.eps in the reference module
_MXU_DTYPE = jnp.bfloat16       # MXU operand dtype (accumulation stays f32)


# ----------------------------------------------------------------------------
# Pallas kernel: style-modulated KxK conv, fused demod + bias + LeakyReLU
# ----------------------------------------------------------------------------
def _modconv_kernel(x_ref, w_ref, s_ref, d_ref, b_ref, out_ref, xpad_ref, *,
                    H, W, K, TH, apply_act, alpha):
    """Grid = (B, H // TH).

    x_ref:    (1, H, W, Cin)     full (unpadded) sample; resident across row tiles
    w_ref:    (K*K, Cin, Cout)   shared bf16 weight; resident across the whole grid
    s_ref:    (1, 1, Cin)        per-sample style modulation scale
    d_ref:    (1, 1, Cout)       per-sample demodulation scale (ones if demod off)
    b_ref:    (1, Cout)          shared bias
    out_ref:  (1, TH, W, Cout)   output row tile
    xpad_ref: (H+2p, W+2p, Cin)  bf16 scratch: zero-padded, style-modulated input
    """
    pad = (K - 1) // 2
    r = pl.program_id(1)
    Cin = x_ref.shape[-1]
    Cout = out_ref.shape[-1]

    # Build the zero-padded, style-modulated input once per sample (first row tile).
    @pl.when(r == 0)
    def _():
        if pad > 0:
            xpad_ref[...] = jnp.zeros_like(xpad_ref)
        xs = x_ref[0] * s_ref[...]                               # (H, W, Cin)
        xpad_ref[pad:pad + H, pad:pad + W, :] = xs.astype(xpad_ref.dtype)

    row0 = pl.multiple_of(r * TH, TH)

    acc = jnp.zeros((TH * W, Cout), jnp.float32)
    for ky in range(K):
        for kx in range(K):
            patch = xpad_ref[pl.ds(row0 + ky, TH), kx:kx + W, :]  # (TH, W, Cin) bf16
            acc = acc + jnp.dot(patch.reshape(TH * W, Cin),
                                w_ref[ky * K + kx],
                                preferred_element_type=jnp.float32)

    acc = acc * d_ref[0] + b_ref[...]                             # demod + bias
    if apply_act:
        acc = jnp.where(acc >= 0, acc, alpha * acc)               # LeakyReLU(0.2)
    out_ref[0] = acc.reshape(TH, W, Cout).astype(out_ref.dtype)


def modconv_pallas(x, w_flat, s, d, bias, *, K, apply_act, row_tile=None):
    """x: (B,H,W,Cin) f32; w_flat: (K*K,Cin,Cout) bf16; s: (B,1,Cin); d: (B,1,Cout)."""
    B, H, W, Cin = x.shape
    Cout = w_flat.shape[-1]
    pad = (K - 1) // 2

    # Row tiling: many grid steps for pipelining + bounded per-step output.
    if row_tile is None:
        row_tile = H
        for cand in (64, 32, 16, 8):           # biggest divisor <= 64 that splits H
            if H % cand == 0 and H > cand:
                row_tile = cand
                break
    TH = row_tile
    assert H % TH == 0
    R = H // TH

    kern = partial(_modconv_kernel, H=H, W=W, K=K, TH=TH,
                   apply_act=apply_act, alpha=LEAKY_ALPHA)
    return pl.pallas_call(
        kern,
        out_shape=jax.ShapeDtypeStruct((B, H, W, Cout), jnp.float32),
        grid=(B, R),
        in_specs=[
            pl.BlockSpec((1, H, W, Cin), lambda b, r: (b, 0, 0, 0)),
            pl.BlockSpec((K * K, Cin, Cout), lambda b, r: (0, 0, 0)),
            pl.BlockSpec((1, 1, Cin), lambda b, r: (b, 0, 0)),
            pl.BlockSpec((1, 1, Cout), lambda b, r: (b, 0, 0)),
            pl.BlockSpec((1, Cout), lambda b, r: (0, 0)),
        ],
        out_specs=pl.BlockSpec((1, TH, W, Cout), lambda b, r: (b, r, 0, 0)),
        scratch_shapes=[pltpu.VMEM((H + 2 * pad, W + 2 * pad, Cin), _MXU_DTYPE)],
        compiler_params=pltpu.CompilerParams(
            dimension_semantics=("parallel", "arbitrary"),
            vmem_limit_bytes=32 * 1024 * 1024),
    )(x, w_flat, s, d, bias)


# ----------------------------------------------------------------------------
# Pallas kernel: fused nearest-2x upsample + normalized 3x3 binomial blur
# ----------------------------------------------------------------------------
def _upblur_kernel(x_ref, out_ref, pad_ref, *, H, W):
    """Upsample-then-blur is separable; per axis it reduces to
         even output k: 0.25*x[k-1] + 0.75*x[k]   (edge clamped)
         odd  output k: 0.75*x[k]   + 0.25*x[k+1]
    which reproduces kornia filter2D(blur, normalized=True, border='reflect') on
    the nearest-2x upsampled image. Output is written column-parity interleaved
    as (2H, W, 2C); the wrapper's row-major reshape to (2H, 2W, C) is free.
    """
    x = x_ref[0].astype(jnp.float32)                          # (H, W, C)
    C = x.shape[-1]

    # rows
    xp = jnp.concatenate([x[:1], x[:H - 1]], axis=0)          # x[i-1] clamped
    xn = jnp.concatenate([x[1:], x[H - 1:]], axis=0)          # x[i+1] clamped
    r_even = 0.25 * xp + 0.75 * x
    r_odd = 0.75 * x + 0.25 * xn
    rows = jnp.stack([r_even, r_odd], axis=1).reshape(2 * H, W, C)   # interleave rows

    # columns: clamped shifts via a column-padded VMEM scratch
    pad_ref[:, 1:W + 1, :] = rows
    pad_ref[:, 0:1, :] = rows[:, 0:1, :]
    pad_ref[:, W + 1:W + 2, :] = rows[:, W - 1:W, :]
    left = pad_ref[:, 0:W, :]
    right = pad_ref[:, 2:W + 2, :]
    c_even = 0.25 * left + 0.75 * rows
    c_odd = 0.75 * rows + 0.25 * right

    out_ref[0, :, :, 0:C] = c_even.astype(out_ref.dtype)      # even output columns
    out_ref[0, :, :, C:2 * C] = c_odd.astype(out_ref.dtype)   # odd output columns


def upsample2x_blur(x):
    """nearest-2x upsample + Blur() (kornia filter2D, normalized, reflect), fused."""
    # TODO(synk): stg1cl.UpSamplingBlock assumed to be nearest-neighbour 2x.
    B, H, W, C = x.shape
    kern = partial(_upblur_kernel, H=H, W=W)
    out = pl.pallas_call(
        kern,
        out_shape=jax.ShapeDtypeStruct((B, 2 * H, W, 2 * C), jnp.float32),
        grid=(B,),
        in_specs=[pl.BlockSpec((1, H, W, C), lambda b: (b, 0, 0, 0))],
        out_specs=pl.BlockSpec((1, 2 * H, W, 2 * C), lambda b: (b, 0, 0, 0)),
        scratch_shapes=[pltpu.VMEM((2 * H, W + 2, C), jnp.float32)],
        compiler_params=pltpu.CompilerParams(dimension_semantics=("parallel",)),
    )(x)
    # (B, 2H, W, 2, C) row-major == (B, 2H, 2W, C) row-major -> free reshape.
    return out.reshape(B, 2 * H, 2 * W, C)


# ----------------------------------------------------------------------------
# StyleConv2D forward (glue + Pallas conv)
# ----------------------------------------------------------------------------
def style_conv2d(x, style, weight, mod_w, bias_vec, *,
                 demodulate=True, upsample=False, apply_act=True):
    """x: (B,H,W,Cin) NHWC; weight: (Cout,Cin,K,K); mod_w: (Cin, style_dim).

    Matches PyTorch StyleConv2D: style = EqualLinear(style)+1 (zero bias), weight
    modulation / demodulation (folded into input/output scaling), per-sample
    grouped conv with 'same' padding (calc_pool2d_pad assumed 'same', stride 1).
    """
    B = x.shape[0]
    Cout, Cin, K, _ = weight.shape

    s = style @ mod_w.T + 1.0                                  # (B, Cin)

    if demodulate:
        wsq = jnp.sum(weight * weight, axis=(2, 3))            # (Cout, Cin)
        d = jax.lax.rsqrt((s * s) @ wsq.T + _EPS)              # (B, Cout)
    else:
        # PyTorch modulates the input instead; scaling commutes with upsample/blur.
        d = jnp.ones((B, Cout), jnp.float32)

    if upsample:
        x = upsample2x_blur(x)

    # shared weight: (Cout,Cin,K,K) -> (K*K, Cin, Cout), bf16 for the MXU
    w_flat = jnp.transpose(weight, (2, 3, 1, 0)).reshape(K * K, Cin, Cout)
    w_flat = w_flat.astype(_MXU_DTYPE)

    return modconv_pallas(
        x, w_flat,
        s.reshape(B, 1, Cin).astype(jnp.float32),
        d.reshape(B, 1, Cout).astype(jnp.float32),
        bias_vec.reshape(1, Cout).astype(jnp.float32),
        K=K, apply_act=apply_act)


# ----------------------------------------------------------------------------
# StyleUpSkipBlock forward
# ----------------------------------------------------------------------------
def style_up_skip_block(x_nchw, style, params, prev_rgb_nchw=None):
    """Returns (out_ft_map, out_rgb), both NCHW (PyTorch convention)."""
    x = jnp.transpose(x_nchw, (0, 2, 3, 1))                    # NCHW -> NHWC

    # TODO(synk): stg1cl.Scale_B noise injection not implemented (forward uses noise=None).
    out = style_conv2d(x, style, params["conv1"]["weight"], params["conv1"]["mod_w"],
                       params["b1"], demodulate=True, upsample=False, apply_act=True)
    out = style_conv2d(out, style, params["conv2"]["weight"], params["conv2"]["mod_w"],
                       params["b2"], demodulate=True, upsample=True, apply_act=True)
    out = style_conv2d(out, style, params["conv3"]["weight"], params["conv3"]["mod_w"],
                       params["b3"], demodulate=True, upsample=False, apply_act=True)

    rgb = style_conv2d(out, style, params["to_rgb"]["weight"], params["to_rgb"]["mod_w"],
                       jnp.zeros((IMAGE_CHANNELS,), jnp.float32),
                       demodulate=False, upsample=False, apply_act=False)

    if prev_rgb_nchw is not None:
        p = jnp.transpose(prev_rgb_nchw, (0, 2, 3, 1))
        rgb = rgb + upsample2x_blur(p)                         # upsample_prev: 2x + blur

    out_nchw = jnp.transpose(out, (0, 3, 1, 2))
    rgb_nchw = jnp.transpose(rgb, (0, 3, 1, 2))
    return out_nchw, rgb_nchw


# ----------------------------------------------------------------------------
# Deterministic parameter init (shapes follow the PyTorch __init__)
# ----------------------------------------------------------------------------
def init_params(key, in_channels, out_channels, style_dim):
    ks = jax.random.split(key, 8)

    def kaiming(k, shape, fan_in):
        return jax.random.normal(k, shape, jnp.float32) * math.sqrt(2.0 / fan_in)

    params = {
        "conv1": {
            "weight": kaiming(ks[0], (out_channels, in_channels, 3, 3), in_channels * 9),
            "mod_w": kaiming(ks[1], (in_channels, style_dim), style_dim),
        },
        "conv2": {
            "weight": kaiming(ks[2], (out_channels, out_channels, 3, 3), out_channels * 9),
            "mod_w": kaiming(ks[3], (out_channels, style_dim), style_dim),
        },
        "conv3": {
            "weight": kaiming(ks[4], (out_channels, out_channels, 3, 3), out_channels * 9),
            "mod_w": kaiming(ks[5], (out_channels, style_dim), style_dim),
        },
        "to_rgb": {
            "weight": kaiming(ks[6], (IMAGE_CHANNELS, out_channels, 1, 1), out_channels),
            "mod_w": kaiming(ks[7], (out_channels, style_dim), style_dim),
        },
        # EqualLinear biases are zero-init -> folded into the "+1.0"
        "b1": jnp.zeros((out_channels,), jnp.float32),
        "b2": jnp.zeros((out_channels,), jnp.float32),
        "b3": jnp.zeros((out_channels,), jnp.float32),
    }
    return params


# ----------------------------------------------------------------------------
if __name__ == "__main__":
    B, Cin, Cout, S, STYLE_DIM = 2, 4, 8, 8, 16   # input_size=8 -> output_size=16

    key = jax.random.PRNGKey(0)
    kx, ks, kp = jax.random.split(key, 3)
    x = jax.random.normal(kx, (B, Cin, S, S), jnp.float32)
    style = jax.random.normal(ks, (B, STYLE_DIM), jnp.float32)
    params = init_params(kp, Cin, Cout, STYLE_DIM)

    fwd = jax.jit(lambda x_, s_: style_up_skip_block(x_, s_, params))
    out_ft, out_rgb = fwd(x, style)
    jax.block_until_ready((out_ft, out_rgb))

    assert out_ft.shape == (B, Cout, 2 * S, 2 * S), out_ft.shape
    assert out_rgb.shape == (B, IMAGE_CHANNELS, 2 * S, 2 * S), out_rgb.shape
    assert bool(jnp.all(jnp.isfinite(out_ft))) and bool(jnp.all(jnp.isfinite(out_rgb)))
    print("KERNEL_OK")
</pallas_src>

<mosaic_0001>
module attributes {stable_mosaic.version = 11 : i64} {
  func.func @_upblur_kernel(%arg0: i32, %arg1: memref<1x8x8x8xf32, #tpu.memory_space<vmem>>, %arg2: memref<1x16x8x16xf32, #tpu.memory_space<vmem>>, %arg3: memref<16x10x8xf32, #tpu.memory_space<vmem>>) attributes {dimension_semantics = [#tpu.dimension_semantics<parallel>], iteration_bounds = array<i64: 2>, scalar_prefetch = 0 : i64, scratch_operands = 1 : i64, tpu.core_type = #tpu.core_type<tc>, window_params = [{transform_indices = @transform_0, window_bounds = array<i64: 1, 8, 8, 8>}, {transform_indices = @transform_1, window_bounds = array<i64: 1, 16, 8, 16>}]} {
    %c0 = arith.constant 0 : index
    %c0_0 = arith.constant 0 : index
    %c0_1 = arith.constant 0 : index
    %c0_2 = arith.constant 0 : index
    %0 = vector.load %arg1[%c0, %c0_0, %c0_1, %c0_2] : memref<1x8x8x8xf32, #tpu.memory_space<vmem>>, vector<1x8x8x8xf32>
    %1 = vector.shape_cast %0 : vector<1x8x8x8xf32> to vector<8x8x8xf32>
    %2 = vector.extract_strided_slice %1 {offsets = [0, 0, 0], sizes = [1, 8, 8], strides = [1, 1, 1]} : vector<8x8x8xf32> to vector<1x8x8xf32>
    %3 = vector.extract_strided_slice %1 {offsets = [0, 0, 0], sizes = [7, 8, 8], strides = [1, 1, 1]} : vector<8x8x8xf32> to vector<7x8x8xf32>
    %4 = tpu.concatenate %2, %3 in 0 : vector<1x8x8xf32>, vector<7x8x8xf32> -> vector<8x8x8xf32>
    %5 = vector.extract_strided_slice %1 {offsets = [1, 0, 0], sizes = [7, 8, 8], strides = [1, 1, 1]} : vector<8x8x8xf32> to vector<7x8x8xf32>
    %6 = vector.extract_strided_slice %1 {offsets = [7, 0, 0], sizes = [1, 8, 8], strides = [1, 1, 1]} : vector<8x8x8xf32> to vector<1x8x8xf32>
    %7 = tpu.concatenate %5, %6 in 0 : vector<7x8x8xf32>, vector<1x8x8xf32> -> vector<8x8x8xf32>
    %cst = arith.constant 2.500000e-01 : f32
    %8 = vector.broadcast %cst : f32 to vector<8x8x8xf32>
    %9 = arith.mulf %8, %4 : vector<8x8x8xf32>
    %cst_3 = arith.constant 7.500000e-01 : f32
    %10 = vector.broadcast %cst_3 : f32 to vector<8x8x8xf32>
    %11 = arith.mulf %10, %1 : vector<8x8x8xf32>
    %12 = arith.addf %9, %11 : vector<8x8x8xf32>
    %cst_4 = arith.constant 7.500000e-01 : f32
    %13 = vector.broadcast %cst_4 : f32 to vector<8x8x8xf32>
    %14 = arith.mulf %13, %1 : vector<8x8x8xf32>
    %cst_5 = arith.constant 2.500000e-01 : f32
    %15 = vector.broadcast %cst_5 : f32 to vector<8x8x8xf32>
    %16 = arith.mulf %15, %7 : vector<8x8x8xf32>
    %17 = arith.addf %14, %16 : vector<8x8x8xf32>
    %18 = vector.shape_cast %12 : vector<8x8x8xf32> to vector<8x1x8x8xf32>
    %19 = vector.shape_cast %17 : vector<8x8x8xf32> to vector<8x1x8x8xf32>
    %20 = tpu.concatenate %18, %19 in 1 : vector<8x1x8x8xf32>, vector<8x1x8x8xf32> -> vector<8x2x8x8xf32>
    %21 = vector.shape_cast %20 : vector<8x2x8x8xf32> to vector<16x8x8xf32>
    %c0_6 = arith.constant 0 : index
    %c1 = arith.constant 1 : index
    %c0_7 = arith.constant 0 : index
    %22 = vector.load %arg3[%c0_6, %c1, %c0_7] : memref<16x10x8xf32, #tpu.memory_space<vmem>>, vector<16x8x8xf32>
    tpu.vector_store %arg3[%c0_6, %c1, %c0_7], %21 {strides = array<i32>} : memref<16x10x8xf32, #tpu.memory_space<vmem>>, vector<16x8x8xf32>,
    %23 = vector.extract_strided_slice %21 {offsets = [0, 0, 0], sizes = [16, 1, 8], strides = [1, 1, 1]} : vector<16x8x8xf32> to vector<16x1x8xf32>
    %c0_8 = arith.constant 0 : index
    %c0_9 = arith.constant 0 : index
    %c0_10 = arith.constant 0 : index
    %24 = vector.load %arg3[%c0_8, %c0_9, %c0_10] : memref<16x10x8xf32, #tpu.memory_space<vmem>>, vector<16x1x8xf32>
    tpu.vector_store %arg3[%c0_8, %c0_9, %c0_10], %23 {strides = array<i32>} : memref<16x10x8xf32, #tpu.memory_space<vmem>>, vector<16x1x8xf32>,
    %25 = vector.extract_strided_slice %21 {offsets = [0, 7, 0], sizes = [16, 1, 8], strides = [1, 1, 1]} : vector<16x8x8xf32> to vector<16x1x8xf32>
    %c0_11 = arith.constant 0 : index
    %c9 = arith.constant 9 : index
    %c0_12 = arith.constant 0 : index
    %26 = vector.load %arg3[%c0_11, %c9, %c0_12] : memref<16x10x8xf32, #tpu.memory_space<vmem>>, vector<16x1x8xf32>
    tpu.vector_store %arg3[%c0_11, %c9, %c0_12], %25 {strides = array<i32>} : memref<16x10x8xf32, #tpu.memory_space<vmem>>, vector<16x1x8xf32>,
    %c0_13 = arith.constant 0 : index
    %c0_14 = arith.constant 0 : index
    %c0_15 = arith.constant 0 : index
    %27 = vector.load %arg3[%c0_13, %c0_14, %c0_15] : memref<16x10x8xf32, #tpu.memory_space<vmem>>, vector<16x8x8xf32>
    %c0_16 = arith.constant 0 : index
    %c2 = arith.constant 2 : index
    %c0_17 = arith.constant 0 : index
    %28 = vector.load %arg3[%c0_16, %c2, %c0_17] : memref<16x10x8xf32, #tpu.memory_space<vmem>>, vector<16x8x8xf32>
    %cst_18 = arith.constant 2.500000e-01 : f32
    %29 = vector.broadcast %cst_18 : f32 to vector<16x8x8xf32>
    %30 = arith.mulf %29, %27 : vector<16x8x8xf32>
    %cst_19 = arith.constant 7.500000e-01 : f32
    %31 = vector.broadcast %cst_19 : f32 to vector<16x8x8xf32>
    %32 = arith.mulf %31, %21 : vector<16x8x8xf32>
    %33 = arith.addf %30, %32 : vector<16x8x8xf32>
    %cst_20 = arith.constant 7.500000e-01 : f32
    %34 = vector.broadcast %cst_20 : f32 to vector<16x8x8xf32>
    %35 = arith.mulf %34, %21 : vector<16x8x8xf32>
    %cst_21 = arith.constant 2.500000e-01 : f32
    %36 = vector.broadcast %cst_21 : f32 to vector<16x8x8xf32>
    %37 = arith.mulf %36, %28 : vector<16x8x8xf32>
    %38 = arith.addf %35, %37 : vector<16x8x8xf32>
    %c0_22 = arith.constant 0 : index
    %c0_23 = arith.constant 0 : index
    %c0_24 = arith.constant 0 : index
    %c0_25 = arith.constant 0 : index
    %39 = vector.load %arg2[%c0_22, %c0_23, %c0_24, %c0_25] : memref<1x16x8x16xf32, #tpu.memory_space<vmem>>, vector<1x16x8x8xf32>
    %40 = vector.shape_cast %39 : vector<1x16x8x8xf32> to vector<16x8x8xf32>
    %41 = vector.shape_cast %33 : vector<16x8x8xf32> to vector<1x16x8x8xf32>
    tpu.vector_store %arg2[%c0_22, %c0_23, %c0_24, %c0_25], %41 {strides = array<i32>} : memref<1x16x8x16xf32, #tpu.memory_space<vmem>>, vector<1x16x8x8xf32>,
    %c0_26 = arith.constant 0 : index
    %c0_27 = arith.constant 0 : index
    %c0_28 = arith.constant 0 : index
    %c8 = arith.constant 8 : index
    %42 = vector.load %arg2[%c0_26, %c0_27, %c0_28, %c8] : memref<1x16x8x16xf32, #tpu.memory_space<vmem>>, vector<1x16x8x8xf32>
    %43 = vector.shape_cast %42 : vector<1x16x8x8xf32> to vector<16x8x8xf32>
    %44 = vector.shape_cast %38 : vector<16x8x8xf32> to vector<1x16x8x8xf32>
    tpu.vector_store %arg2[%c0_26, %c0_27, %c0_28, %c8], %44 {strides = array<i32>} : memref<1x16x8x16xf32, #tpu.memory_space<vmem>>, vector<1x16x8x8xf32>,
    return
  }
  func.func @transform_0(%arg0: i32) -> (i32, i32, i32, i32) {
    %c0_i32 = arith.constant 0 : i32
    %c0_i32_0 = arith.constant 0 : i32
    %c0_i32_1 = arith.constant 0 : i32
    %c0_i32_2 = arith.constant 0 : i32
    return %arg0, %c0_i32, %c0_i32_0, %c0_i32_1 : i32, i32, i32, i32
  }
  func.func @transform_1(%arg0: i32) -> (i32, i32, i32, i32) {
    %c0_i32 = arith.constant 0 : i32
    %c0_i32_0 = arith.constant 0 : i32
    %c0_i32_1 = arith.constant 0 : i32
    %c0_i32_2 = arith.constant 0 : i32
    return %arg0, %c0_i32, %c0_i32_0, %c0_i32_1 : i32, i32, i32, i32
  }
}

module attributes {stable_mosaic.version = 11 : i64} {
  func.func @_modconv_kernel(%arg0: i32, %arg1: i32, %arg2: memref<1x8x8x4xf32, #tpu.memory_space<vmem>>, %arg3: memref<9x4x8xbf16, #tpu.memory_space<vmem>>, %arg4: memref<1x1x4xf32, #tpu.memory_space<vmem>>, %arg5: memref<1x1x8xf32, #tpu.memory_space<vmem>>, %arg6: memref<1x8xf32, #tpu.memory_space<vmem>>, %arg7: memref<1x8x8x8xf32, #tpu.memory_space<vmem>>, %arg8: memref<10x10x4xbf16, #tpu.memory_space<vmem>>) attributes {dimension_semantics = [#tpu.dimension_semantics<parallel>, #tpu.dimension_semantics<arbitrary>], iteration_bounds = array<i64: 2, 1>, scalar_prefetch = 0 : i64, scratch_operands = 1 : i64, tpu.core_type = #tpu.core_type<tc>, window_params = [{transform_indices = @transform_0, window_bounds = array<i64: 1, 8, 8, 4>}, {pipeline_mode = #tpu.pipeline_mode<synchronous>, transform_indices = @transform_1, window_bounds = array<i64: 9, 4, 8>}, {transform_indices = @transform_2, window_bounds = array<i64: 1, 1, 4>}, {transform_indices = @transform_3, window_bounds = array<i64: 1, 1, 8>}, {pipeline_mode = #tpu.pipeline_mode<synchronous>, transform_indices = @transform_4, window_bounds = array<i64: 1, 8>}, {transform_indices = @transform_5, window_bounds = array<i64: 1, 8, 8, 8>}]} {
    %c0_i32 = arith.constant 0 : i32
    %0 = arith.cmpi eq, %arg1, %c0_i32 : i32
    %1 = arith.extui %0 : i1 to i32
    %c0_i32_0 = arith.constant 0 : i32
    %2 = arith.cmpi ne, %1, %c0_i32_0 : i32
    scf.if %2 {
      %cst_64 = arith.constant 0.000000e+00 : bf16
      %94 = vector.broadcast %cst_64 : bf16 to vector<10x10x4xbf16>
      %c0_65 = arith.constant 0 : index
      %c0_66 = arith.constant 0 : index
      %c0_67 = arith.constant 0 : index
      %95 = vector.load %arg8[%c0_65, %c0_66, %c0_67] : memref<10x10x4xbf16, #tpu.memory_space<vmem>>, vector<10x10x4xbf16>
      tpu.vector_store %arg8[%c0_65, %c0_66, %c0_67], %94 {strides = array<i32>} : memref<10x10x4xbf16, #tpu.memory_space<vmem>>, vector<10x10x4xbf16>,
      %c0_68 = arith.constant 0 : index
      %c0_69 = arith.constant 0 : index
      %c0_70 = arith.constant 0 : index
      %c0_71 = arith.constant 0 : index
      %96 = vector.load %arg2[%c0_68, %c0_69, %c0_70, %c0_71] : memref<1x8x8x4xf32, #tpu.memory_space<vmem>>, vector<1x8x8x4xf32>
      %97 = vector.shape_cast %96 : vector<1x8x8x4xf32> to vector<8x8x4xf32>
      %c0_72 = arith.constant 0 : index
      %c0_73 = arith.constant 0 : index
      %c0_74 = arith.constant 0 : index
      %98 = vector.load %arg4[%c0_72, %c0_73, %c0_74] : memref<1x1x4xf32, #tpu.memory_space<vmem>>, vector<1x1x4xf32>
      %99 = vector.broadcast %98 : vector<1x1x4xf32> to vector<8x8x4xf32>
      %100 = arith.mulf %97, %99 : vector<8x8x4xf32>
      %101 = arith.truncf %100 : vector<8x8x4xf32> to vector<8x8x4xbf16>
      %c1_75 = arith.constant 1 : index
      %c1_76 = arith.constant 1 : index
      %c0_77 = arith.constant 0 : index
      %102 = vector.load %arg8[%c1_75, %c1_76, %c0_77] : memref<10x10x4xbf16, #tpu.memory_space<vmem>>, vector<8x8x4xbf16>
      tpu.vector_store %arg8[%c1_75, %c1_76, %c0_77], %101 {strides = array<i32>} : memref<10x10x4xbf16, #tpu.memory_space<vmem>>, vector<8x8x4xbf16>,
    } else {
    }
    %c8_i32 = arith.constant 8 : i32
    %3 = arith.muli %arg1, %c8_i32 : i32
    %4 = tpu.assume_multiple %3, 8 : i32
    %cst = arith.constant 0.000000e+00 : f32
    %5 = vector.broadcast %cst : f32 to vector<64x8xf32>
    %c0_i32_1 = arith.constant 0 : i32
    %6 = arith.addi %4, %c0_i32_1 : i32
    %7 = arith.index_cast %6 : i32 to index
    %c0 = arith.constant 0 : index
    %c0_2 = arith.constant 0 : index
    %8 = vector.load %arg8[%7, %c0, %c0_2] : memref<10x10x4xbf16, #tpu.memory_space<vmem>>, vector<8x8x4xbf16>
    %9 = vector.shape_cast %8 : vector<8x8x4xbf16> to vector<64x4xbf16>
    %c0_3 = arith.constant 0 : index
    %c0_4 = arith.constant 0 : index
    %c0_5 = arith.constant 0 : index
    %10 = vector.load %arg3[%c0_3, %c0_4, %c0_5] : memref<9x4x8xbf16, #tpu.memory_space<vmem>>, vector<1x4x8xbf16>
    %11 = vector.shape_cast %10 : vector<1x4x8xbf16> to vector<4x8xbf16>
    %cst_6 = arith.constant dense<0.000000e+00> : vector<64x8xf32>
    %12 = tpu.matmul %9, %11, %cst_6 {dimension_numbers = #tpu.dot_dimension_numbers<[1], [0], [0], [1], [0, 0, 1, 1], [], []>} : vector<64x4xbf16>, vector<4x8xbf16>, vector<64x8xf32> -> vector<64x8xf32>
    %13 = arith.addf %5, %12 : vector<64x8xf32>
    %c0_i32_7 = arith.constant 0 : i32
    %14 = arith.addi %4, %c0_i32_7 : i32
    %15 = arith.index_cast %14 : i32 to index
    %c1 = arith.constant 1 : index
    %c0_8 = arith.constant 0 : index
    %16 = vector.load %arg8[%15, %c1, %c0_8] : memref<10x10x4xbf16, #tpu.memory_space<vmem>>, vector<8x8x4xbf16>
    %17 = vector.shape_cast %16 : vector<8x8x4xbf16> to vector<64x4xbf16>
    %c1_9 = arith.constant 1 : index
    %c0_10 = arith.constant 0 : index
    %c0_11 = arith.constant 0 : index
    %18 = vector.load %arg3[%c1_9, %c0_10, %c0_11] : memref<9x4x8xbf16, #tpu.memory_space<vmem>>, vector<1x4x8xbf16>
    %19 = vector.shape_cast %18 : vector<1x4x8xbf16> to vector<4x8xbf16>
    %cst_12 = arith.constant dense<0.000000e+00> : vector<64x8xf32>
    %20 = tpu.matmul %17, %19, %cst_12 {dimension_numbers = #tpu.dot_dimension_numbers<[1], [0], [0], [1], [0, 0, 1, 1], [], []>} : vector<64x4xbf16>, vector<4x8xbf16>, vector<64x8xf32> -> vector<64x8xf32>
    %21 = arith.addf %13, %20 : vector<64x8xf32>
    %c0_i32_13 = arith.constant 0 : i32
    %22 = arith.addi %4, %c0_i32_13 : i32
    %23 = arith.index_cast %22 : i32 to index
    %c2 = arith.constant 2 : index
    %c0_14 = arith.constant 0 : index
    %24 = vector.load %arg8[%23, %c2, %c0_14] : memref<10x10x4xbf16, #tpu.memory_space<vmem>>, vector<8x8x4xbf16>
    %25 = vector.shape_cast %24 : vector<8x8x4xbf16> to vector<64x4xbf16>
    %c2_15 = arith.constant 2 : index
    %c0_16 = arith.constant 0 : index
    %c0_17 = arith.constant 0 : index
    %26 = vector.load %arg3[%c2_15, %c0_16, %c0_17] : memref<9x4x8xbf16, #tpu.memory_space<vmem>>, vector<1x4x8xbf16>
    %27 = vector.shape_cast %26 : vector<1x4x8xbf16> to vector<4x8xbf16>
    %cst_18 = arith.constant dense<0.000000e+00> : vector<64x8xf32>
    %28 = tpu.matmul %25, %27, %cst_18 {dimension_numbers = #tpu.dot_dimension_numbers<[1], [0], [0], [1], [0, 0, 1, 1], [], []>} : vector<64x4xbf16>, vector<4x8xbf16>, vector<64x8xf32> -> vector<64x8xf32>
    %29 = arith.addf %21, %28 : vector<64x8xf32>
    %c1_i32 = arith.constant 1 : i32
    %30 = arith.addi %4, %c1_i32 : i32
    %31 = arith.index_cast %30 : i32 to index
    %c0_19 = arith.constant 0 : index
    %c0_20 = arith.constant 0 : index
    %32 = vector.load %arg8[%31, %c0_19, %c0_20] : memref<10x10x4xbf16, #tpu.memory_space<vmem>>, vector<8x8x4xbf16>
    %33 = vector.shape_cast %32 : vector<8x8x4xbf16> to vector<64x4xbf16>
    %c3 = arith.constant 3 : index
    %c0_21 = arith.constant 0 : index
    %c0_22 = arith.constant 0 : index
    %34 = vector.load %arg3[%c3, %c0_21, %c0_22] : memref<9x4x8xbf16, #tpu.memory_space<vmem>>, vector<1x4x8xbf16>
    %35 = vector.shape_cast %34 : vector<1x4x8xbf16> to vector<4x8xbf16>
    %cst_23 = arith.constant dense<0.000000e+00> : vector<64x8xf32>
    %36 = tpu.matmul %33, %35, %cst_23 {dimension_numbers = #tpu.dot_dimension_numbers<[1], [0], [0], [1], [0, 0, 1, 1], [], []>} : vector<64x4xbf16>, vector<4x8xbf16>, vector<64x8xf32> -> vector<64x8xf32>
    %37 = arith.addf %29, %36 : vector<64x8xf32>
    %c1_i32_24 = arith.constant 1 : i32
    %38 = arith.addi %4, %c1_i32_24 : i32
    %39 = arith.index_cast %38 : i32 to index
    %c1_25 = arith.constant 1 : index
    %c0_26 = arith.constant 0 : index
    %40 = vector.load %arg8[%39, %c1_25, %c0_26] : memref<10x10x4xbf16, #tpu.memory_space<vmem>>, vector<8x8x4xbf16>
    %41 = vector.shape_cast %40 : vector<8x8x4xbf16> to vector<64x4xbf16>
    %c4 = arith.constant 4 : index
    %c0_27 = arith.constant 0 : index
    %c0_28 = arith.constant 0 : index
    %42 = vector.load %arg3[%c4, %c0_27, %c0_28] : memref<9x4x8xbf16, #tpu.memory_space<vmem>>, vector<1x4x8xbf16>
    %43 = vector.shape_cast %42 : vector<1x4x8xbf16> to vector<4x8xbf16>
    %cst_29 = arith.constant dense<0.000000e+00> : vector<64x8xf32>
    %44 = tpu.matmul %41, %43, %cst_29 {dimension_numbers = #tpu.dot_dimension_numbers<[1], [0], [0], [1], [0, 0, 1, 1], [], []>} : vector<64x4xbf16>, vector<4x8xbf16>, vector<64x8xf32> -> vector<64x8xf32>
    %45 = arith.addf %37, %44 : vector<64x8xf32>
    %c1_i32_30 = arith.constant 1 : i32
    %46 = arith.addi %4, %c1_i32_30 : i32
    %47 = arith.index_cast %46 : i32 to index
    %c2_31 = arith.constant 2 : index
    %c0_32 = arith.constant 0 : index
    %48 = vector.load %arg8[%47, %c2_31, %c0_32] : memref<10x10x4xbf16, #tpu.memory_space<vmem>>, vector<8x8x4xbf16>
    %49 = vector.shape_cast %48 : vector<8x8x4xbf16> to vector<64x4xbf16>
    %c5 = arith.constant 5 : index
    %c0_33 = arith.constant 0 : index
    %c0_34 = arith.constant 0 : index
    %50 = vector.load %arg3[%c5, %c0_33, %c0_34] : memref<9x4x8xbf16, #tpu.memory_space<vmem>>, vector<1x4x8xbf16>
    %51 = vector.shape_cast %50 : vector<1x4x8xbf16> to vector<4x8xbf16>
    %cst_35 = arith.constant dense<0.000000e+00> : vector<64x8xf32>
    %52 = tpu.matmul %49, %51, %cst_35 {dimension_numbers = #tpu.dot_dimension_numbers<[1], [0], [0], [1], [0, 0, 1, 1], [], []>} : vector<64x4xbf16>, vector<4x8xbf16>, vector<64x8xf32> -> vector<64x8xf32>
    %53 = arith.addf %45, %52 : vector<64x8xf32>
    %c2_i32 = arith.constant 2 : i32
    %54 = arith.addi %4, %c2_i32 : i32
    %55 = arith.index_cast %54 : i32 to index
    %c0_36 = arith.constant 0 : index
    %c0_37 = arith.constant 0 : index
    %56 = vector.load %arg8[%55, %c0_36, %c0_37] : memref<10x10x4xbf16, #tpu.memory_space<vmem>>, vector<8x8x4xbf16>
    %57 = vector.shape_cast %56 : vector<8x8x4xbf16> to vector<64x4xbf16>
    %c6 = arith.constant 6 : index
    %c0_38 = arith.constant 0 : index
    %c0_39 = arith.constant 0 : index
    %58 = vector.load %arg3[%c6, %c0_38, %c0_39] : memref<9x4x8xbf16, #tpu.memory_space<vmem>>, vector<1x4x8xbf16>
    %59 = vector.shape_cast %58 : vector<1x4x8xbf16> to vector<4x8xbf16>
    %cst_40 = arith.constant dense<0.000000e+00> : vector<64x8xf32>
    %60 = tpu.matmul %57, %59, %cst_40 {dimension_numbers = #tpu.dot_dimension_numbers<[1], [0], [0], [1], [0, 0, 1, 1], [], []>} : vector<64x4xbf16>, vector<4x8xbf16>, vector<64x8xf32> -> vector<64x8xf32>
    %61 = arith.addf %53, %60 : vector<64x8xf32>
    %c2_i32_41 = arith.constant 2 : i32
    %62 = arith.addi %4, %c2_i32_41 : i32
    %63 = arith.index_cast %62 : i32 to index
    %c1_42 = arith.constant 1 : index
    %c0_43 = arith.constant 0 : index
    %64 = vector.load %arg8[%63, %c1_42, %c0_43] : memref<10x10x4xbf16, #tpu.memory_space<vmem>>, vector<8x8x4xbf16>
    %65 = vector.shape_cast %64 : vector<8x8x4xbf16> to vector<64x4xbf16>
    %c7 = arith.constant 7 : index
    %c0_44 = arith.constant 0 : index
    %c0_45 = arith.constant 0 : index
    %66 = vector.load %arg3[%c7, %c0_44, %c0_45] : memref<9x4x8xbf16, #tpu.memory_space<vmem>>, vector<1x4x8xbf16>
    %67 = vector.shape_cast %66 : vector<1x4x8xbf16> to vector<4x8xbf16>
    %cst_46 = arith.constant dense<0.000000e+00> : vector<64x8xf32>
    %68 = tpu.matmul %65, %67, %cst_46 {dimension_numbers = #tpu.dot_dimension_numbers<[1], [0], [0], [1], [0, 0, 1, 1], [], []>} : vector<64x4xbf16>, vector<4x8xbf16>, vector<64x8xf32> -> vector<64x8xf32>
    %69 = arith.addf %61, %68 : vector<64x8xf32>
    %c2_i32_47 = arith.constant 2 : i32
    %70 = arith.addi %4, %c2_i32_47 : i32
    %71 = arith.index_cast %70 : i32 to index
    %c2_48 = arith.constant 2 : index
    %c0_49 = arith.constant 0 : index
    %72 = vector.load %arg8[%71, %c2_48, %c0_49] : memref<10x10x4xbf16, #tpu.memory_space<vmem>>, vector<8x8x4xbf16>
    %73 = vector.shape_cast %72 : vector<8x8x4xbf16> to vector<64x4xbf16>
    %c8 = arith.constant 8 : index
    %c0_50 = arith.constant 0 : index
    %c0_51 = arith.constant 0 : index
    %74 = vector.load %arg3[%c8, %c0_50, %c0_51] : memref<9x4x8xbf16, #tpu.memory_space<vmem>>, vector<1x4x8xbf16>
    %75 = vector.shape_cast %74 : vector<1x4x8xbf16> to vector<4x8xbf16>
    %cst_52 = arith.constant dense<0.000000e+00> : vector<64x8xf32>
    %76 = tpu.matmul %73, %75, %cst_52 {dimension_numbers = #tpu.dot_dimension_numbers<[1], [0], [0], [1], [0, 0, 1, 1], [], []>} : vector<64x4xbf16>, vector<4x8xbf16>, vector<64x8xf32> -> vector<64x8xf32>
    %77 = arith.addf %69, %76 : vector<64x8xf32>
    %c0_53 = arith.constant 0 : index
    %c0_54 = arith.constant 0 : index
    %c0_55 = arith.constant 0 : index
    %78 = vector.load %arg5[%c0_53, %c0_54, %c0_55] : memref<1x1x8xf32, #tpu.memory_space<vmem>>, vector<1x1x8xf32>
    %79 = vector.shape_cast %78 : vector<1x1x8xf32> to vector<1x8xf32>
    %80 = vector.broadcast %79 : vector<1x8xf32> to vector<64x8xf32>
    %81 = arith.mulf %77, %80 : vector<64x8xf32>
    %c0_56 = arith.constant 0 : index
    %c0_57 = arith.constant 0 : index
    %82 = vector.load %arg6[%c0_56, %c0_57] : memref<1x8xf32, #tpu.memory_space<vmem>>, vector<1x8xf32>
    %83 = vector.broadcast %82 : vector<1x8xf32> to vector<64x8xf32>
    %84 = arith.addf %81, %83 : vector<64x8xf32>
    %cst_58 = arith.constant 0.000000e+00 : f32
    %85 = vector.broadcast %cst_58 : f32 to vector<64x8xf32>
    %86 = arith.cmpf oge, %84, %85 : vector<64x8xf32>
    %cst_59 = arith.constant 2.000000e-01 : f32
    %87 = vector.broadcast %cst_59 : f32 to vector<64x8xf32>
    %88 = arith.mulf %87, %84 : vector<64x8xf32>
    %89 = arith.select %86, %84, %88 : vector<64x8xi1>, vector<64x8xf32>
    %90 = vector.shape_cast %89 : vector<64x8xf32> to vector<8x8x8xf32>
    %c0_60 = arith.constant 0 : index
    %c0_61 = arith.constant 0 : index
    %c0_62 = arith.constant 0 : index
    %c0_63 = arith.constant 0 : index
    %91 = vector.load %arg7[%c0_60, %c0_61, %c0_62, %c0_63] : memref<1x8x8x8xf32, #tpu.memory_space<vmem>>, vector<1x8x8x8xf32>
    %92 = vector.shape_cast %91 : vector<1x8x8x8xf32> to vector<8x8x8xf32>
    %93 = vector.shape_cast %90 : vector<8x8x8xf32> to vector<1x8x8x8xf32>
    tpu.vector_store %arg7[%c0_60, %c0_61, %c0_62, %c0_63], %93 {strides = array<i32>} : memref<1x8x8x8xf32, #tpu.memory_space<vmem>>, vector<1x8x8x8xf32>,
    return
  }
  func.func @transform_0(%arg0: i32, %arg1: i32) -> (i32, i32, i32, i32) {
    %c0_i32 = arith.constant 0 : i32
    %c0_i32_0 = arith.constant 0 : i32
    %c0_i32_1 = arith.constant 0 : i32
    %c0_i32_2 = arith.constant 0 : i32
    return %arg0, %c0_i32, %c0_i32_0, %c0_i32_1 : i32, i32, i32, i32
  }
  func.func @transform_1(%arg0: i32, %arg1: i32) -> (i32, i32, i32) {
    %c0_i32 = arith.constant 0 : i32
    %c0_i32_0 = arith.constant 0 : i32
    %c0_i32_1 = arith.constant 0 : i32
    %c0_i32_2 = arith.constant 0 : i32
    return %c0_i32, %c0_i32_0, %c0_i32_1 : i32, i32, i32
  }
  func.func @transform_2(%arg0: i32, %arg1: i32) -> (i32, i32, i32) {
    %c0_i32 = arith.constant 0 : i32
    %c0_i32_0 = arith.constant 0 : i32
    %c0_i32_1 = arith.constant 0 : i32
    return %arg0, %c0_i32, %c0_i32_0 : i32, i32, i32
  }
  func.func @transform_3(%arg0: i32, %arg1: i32) -> (i32, i32, i32) {
    %c0_i32 = arith.constant 0 : i32
    %c0_i32_0 = arith.constant 0 : i32
    %c0_i32_1 = arith.constant 0 : i32
    return %arg0, %c0_i32, %c0_i32_0 : i32, i32, i32
  }
  func.func @transform_4(%arg0: i32, %arg1: i32) -> (i32, i32) {
    %c0_i32 = arith.constant 0 : i32
    %c0_i32_0 = arith.constant 0 : i32
    %c0_i32_1 = arith.constant 0 : i32
    return %c0_i32, %c0_i32_0 : i32, i32
  }
  func.func @transform_5(%arg0: i32, %arg1: i32) -> (i32, i32, i32, i32) {
    %c0_i32 = arith.constant 0 : i32
    %c0_i32_0 = arith.constant 0 : i32
    %c0_i32_1 = arith.constant 0 : i32
    return %arg0, %arg1, %c0_i32, %c0_i32_0 : i32, i32, i32, i32
  }
}

module attributes {stable_mosaic.version = 11 : i64} {
  func.func @_modconv_kernel(%arg0: i32, %arg1: i32, %arg2: memref<1x16x16x8xf32, #tpu.memory_space<vmem>>, %arg3: memref<9x8x8xbf16, #tpu.memory_space<vmem>>, %arg4: memref<1x1x8xf32, #tpu.memory_space<vmem>>, %arg5: memref<1x1x8xf32, #tpu.memory_space<vmem>>, %arg6: memref<1x8xf32, #tpu.memory_space<vmem>>, %arg7: memref<1x8x16x8xf32, #tpu.memory_space<vmem>>, %arg8: memref<18x18x8xbf16, #tpu.memory_space<vmem>>) attributes {dimension_semantics = [#tpu.dimension_semantics<parallel>, #tpu.dimension_semantics<arbitrary>], iteration_bounds = array<i64: 2, 2>, scalar_prefetch = 0 : i64, scratch_operands = 1 : i64, tpu.core_type = #tpu.core_type<tc>, window_params = [{transform_indices = @transform_0, window_bounds = array<i64: 1, 16, 16, 8>}, {pipeline_mode = #tpu.pipeline_mode<synchronous>, transform_indices = @transform_1, window_bounds = array<i64: 9, 8, 8>}, {transform_indices = @transform_2, window_bounds = array<i64: 1, 1, 8>}, {transform_indices = @transform_3, window_bounds = array<i64: 1, 1, 8>}, {pipeline_mode = #tpu.pipeline_mode<synchronous>, transform_indices = @transform_4, window_bounds = array<i64: 1, 8>}, {transform_indices = @transform_5, window_bounds = array<i64: 1, 8, 16, 8>}]} {
    %c0_i32 = arith.constant 0 : i32
    %0 = arith.cmpi eq, %arg1, %c0_i32 : i32
    %1 = arith.extui %0 : i1 to i32
    %c0_i32_0 = arith.constant 0 : i32
    %2 = arith.cmpi ne, %1, %c0_i32_0 : i32
    scf.if %2 {
      %cst_64 = arith.constant 0.000000e+00 : bf16
      %94 = vector.broadcast %cst_64 : bf16 to vector<18x18x8xbf16>
      %c0_65 = arith.constant 0 : index
      %c0_66 = arith.constant 0 : index
      %c0_67 = arith.constant 0 : index
      %95 = vector.load %arg8[%c0_65, %c0_66, %c0_67] : memref<18x18x8xbf16, #tpu.memory_space<vmem>>, vector<18x18x8xbf16>
      tpu.vector_store %arg8[%c0_65, %c0_66, %c0_67], %94 {strides = array<i32>} : memref<18x18x8xbf16, #tpu.memory_space<vmem>>, vector<18x18x8xbf16>,
      %c0_68 = arith.constant 0 : index
      %c0_69 = arith.constant 0 : index
      %c0_70 = arith.constant 0 : index
      %c0_71 = arith.constant 0 : index
      %96 = vector.load %arg2[%c0_68, %c0_69, %c0_70, %c0_71] : memref<1x16x16x8xf32, #tpu.memory_space<vmem>>, vector<1x16x16x8xf32>
      %97 = vector.shape_cast %96 : vector<1x16x16x8xf32> to vector<16x16x8xf32>
      %c0_72 = arith.constant 0 : index
      %c0_73 = arith.constant 0 : index
      %c0_74 = arith.constant 0 : index
      %98 = vector.load %arg4[%c0_72, %c0_73, %c0_74] : memref<1x1x8xf32, #tpu.memory_space<vmem>>, vector<1x1x8xf32>
      %99 = vector.broadcast %98 : vector<1x1x8xf32> to vector<16x16x8xf32>
      %100 = arith.mulf %97, %99 : vector<16x16x8xf32>
      %101 = arith.truncf %100 : vector<16x16x8xf32> to vector<16x16x8xbf16>
      %c1_75 = arith.constant 1 : index
      %c1_76 = arith.constant 1 : index
      %c0_77 = arith.constant 0 : index
      %102 = vector.load %arg8[%c1_75, %c1_76, %c0_77] : memref<18x18x8xbf16, #tpu.memory_space<vmem>>, vector<16x16x8xbf16>
      tpu.vector_store %arg8[%c1_75, %c1_76, %c0_77], %101 {strides = array<i32>} : memref<18x18x8xbf16, #tpu.memory_space<vmem>>, vector<16x16x8xbf16>,
    } else {
    }
    %c8_i32 = arith.constant 8 : i32
    %3 = arith.muli %arg1, %c8_i32 : i32
    %4 = tpu.assume_multiple %3, 8 : i32
    %cst = arith.constant 0.000000e+00 : f32
    %5 = vector.broadcast %cst : f32 to vector<128x8xf32>
    %c0_i32_1 = arith.constant 0 : i32
    %6 = arith.addi %4, %c0_i32_1 : i32
    %7 = arith.index_cast %6 : i32 to index
    %c0 = arith.constant 0 : index
    %c0_2 = arith.constant 0 : index
    %8 = vector.load %arg8[%7, %c0, %c0_2] : memref<18x18x8xbf16, #tpu.memory_space<vmem>>, vector<8x16x8xbf16>
    %9 = vector.shape_cast %8 : vector<8x16x8xbf16> to vector<128x8xbf16>
    %c0_3 = arith.constant 0 : index
    %c0_4 = arith.constant 0 : index
    %c0_5 = arith.constant 0 : index
    %10 = vector.load %arg3[%c0_3, %c0_4, %c0_5] : memref<9x8x8xbf16, #tpu.memory_space<vmem>>, vector<1x8x8xbf16>
    %11 = vector.shape_cast %10 : vector<1x8x8xbf16> to vector<8x8xbf16>
    %cst_6 = arith.constant dense<0.000000e+00> : vector<128x8xf32>
    %12 = tpu.matmul %9, %11, %cst_6 {dimension_numbers = #tpu.dot_dimension_numbers<[1], [0], [0], [1], [0, 0, 1, 1], [], []>} : vector<128x8xbf16>, vector<8x8xbf16>, vector<128x8xf32> -> vector<128x8xf32>
    %13 = arith.addf %5, %12 : vector<128x8xf32>
    %c0_i32_7 = arith.constant 0 : i32
    %14 = arith.addi %4, %c0_i32_7 : i32
    %15 = arith.index_cast %14 : i32 to index
    %c1 = arith.constant 1 : index
    %c0_8 = arith.constant 0 : index
    %16 = vector.load %arg8[%15, %c1, %c0_8] : memref<18x18x8xbf16, #tpu.memory_space<vmem>>, vector<8x16x8xbf16>
    %17 = vector.shape_cast %16 : vector<8x16x8xbf16> to vector<128x8xbf16>
    %c1_9 = arith.constant 1 : index
    %c0_10 = arith.constant 0 : index
    %c0_11 = arith.constant 0 : index
    %18 = vector.load %arg3[%c1_9, %c0_10, %c0_11] : memref<9x8x8xbf16, #tpu.memory_space<vmem>>, vector<1x8x8xbf16>
    %19 = vector.shape_cast %18 : vector<1x8x8xbf16> to vector<8x8xbf16>
    %cst_12 = arith.constant dense<0.000000e+00> : vector<128x8xf32>
    %20 = tpu.matmul %17, %19, %cst_12 {dimension_numbers = #tpu.dot_dimension_numbers<[1], [0], [0], [1], [0, 0, 1, 1], [], []>} : vector<128x8xbf16>, vector<8x8xbf16>, vector<128x8xf32> -> vector<128x8xf32>
    %21 = arith.addf %13, %20 : vector<128x8xf32>
    %c0_i32_13 = arith.constant 0 : i32
    %22 = arith.addi %4, %c0_i32_13 : i32
    %23 = arith.index_cast %22 : i32 to index
    %c2 = arith.constant 2 : index
    %c0_14 = arith.constant 0 : index
    %24 = vector.load %arg8[%23, %c2, %c0_14] : memref<18x18x8xbf16, #tpu.memory_space<vmem>>, vector<8x16x8xbf16>
    %25 = vector.shape_cast %24 : vector<8x16x8xbf16> to vector<128x8xbf16>
    %c2_15 = arith.constant 2 : index
    %c0_16 = arith.constant 0 : index
    %c0_17 = arith.constant 0 : index
    %26 = vector.load %arg3[%c2_15, %c0_16, %c0_17] : memref<9x8x8xbf16, #tpu.memory_space<vmem>>, vector<1x8x8xbf16>
    %27 = vector.shape_cast %26 : vector<1x8x8xbf16> to vector<8x8xbf16>
    %cst_18 = arith.constant dense<0.000000e+00> : vector<128x8xf32>
    %28 = tpu.matmul %25, %27, %cst_18 {dimension_numbers = #tpu.dot_dimension_numbers<[1], [0], [0], [1], [0, 0, 1, 1], [], []>} : vector<128x8xbf16>, vector<8x8xbf16>, vector<128x8xf32> -> vector<128x8xf32>
    %29 = arith.addf %21, %28 : vector<128x8xf32>
    %c1_i32 = arith.constant 1 : i32
    %30 = arith.addi %4, %c1_i32 : i32
    %31 = arith.index_cast %30 : i32 to index
    %c0_19 = arith.constant 0 : index
    %c0_20 = arith.constant 0 : index
    %32 = vector.load %arg8[%31, %c0_19, %c0_20] : memref<18x18x8xbf16, #tpu.memory_space<vmem>>, vector<8x16x8xbf16>
    %33 = vector.shape_cast %32 : vector<8x16x8xbf16> to vector<128x8xbf16>
    %c3 = arith.constant 3 : index
    %c0_21 = arith.constant 0 : index
    %c0_22 = arith.constant 0 : index
    %34 = vector.load %arg3[%c3, %c0_21, %c0_22] : memref<9x8x8xbf16, #tpu.memory_space<vmem>>, vector<1x8x8xbf16>
    %35 = vector.shape_cast %34 : vector<1x8x8xbf16> to vector<8x8xbf16>
    %cst_23 = arith.constant dense<0.000000e+00> : vector<128x8xf32>
    %36 = tpu.matmul %33, %35, %cst_23 {dimension_numbers = #tpu.dot_dimension_numbers<[1], [0], [0], [1], [0, 0, 1, 1], [], []>} : vector<128x8xbf16>, vector<8x8xbf16>, vector<128x8xf32> -> vector<128x8xf32>
    %37 = arith.addf %29, %36 : vector<128x8xf32>
    %c1_i32_24 = arith.constant 1 : i32
    %38 = arith.addi %4, %c1_i32_24 : i32
    %39 = arith.index_cast %38 : i32 to index
    %c1_25 = arith.constant 1 : index
    %c0_26 = arith.constant 0 : index
    %40 = vector.load %arg8[%39, %c1_25, %c0_26] : memref<18x18x8xbf16, #tpu.memory_space<vmem>>, vector<8x16x8xbf16>
    %41 = vector.shape_cast %40 : vector<8x16x8xbf16> to vector<128x8xbf16>
    %c4 = arith.constant 4 : index
    %c0_27 = arith.constant 0 : index
    %c0_28 = arith.constant 0 : index
    %42 = vector.load %arg3[%c4, %c0_27, %c0_28] : memref<9x8x8xbf16, #tpu.memory_space<vmem>>, vector<1x8x8xbf16>
    %43 = vector.shape_cast %42 : vector<1x8x8xbf16> to vector<8x8xbf16>
    %cst_29 = arith.constant dense<0.000000e+00> : vector<128x8xf32>
    %44 = tpu.matmul %41, %43, %cst_29 {dimension_numbers = #tpu.dot_dimension_numbers<[1], [0], [0], [1], [0, 0, 1, 1], [], []>} : vector<128x8xbf16>, vector<8x8xbf16>, vector<128x8xf32> -> vector<128x8xf32>
    %45 = arith.addf %37, %44 : vector<128x8xf32>
    %c1_i32_30 = arith.constant 1 : i32
    %46 = arith.addi %4, %c1_i32_30 : i32
    %47 = arith.index_cast %46 : i32 to index
    %c2_31 = arith.constant 2 : index
    %c0_32 = arith.constant 0 : index
    %48 = vector.load %arg8[%47, %c2_31, %c0_32] : memref<18x18x8xbf16, #tpu.memory_space<vmem>>, vector<8x16x8xbf16>
    %49 = vector.shape_cast %48 : vector<8x16x8xbf16> to vector<128x8xbf16>
    %c5 = arith.constant 5 : index
    %c0_33 = arith.constant 0 : index
    %c0_34 = arith.constant 0 : index
    %50 = vector.load %arg3[%c5, %c0_33, %c0_34] : memref<9x8x8xbf16, #tpu.memory_space<vmem>>, vector<1x8x8xbf16>
    %51 = vector.shape_cast %50 : vector<1x8x8xbf16> to vector<8x8xbf16>
    %cst_35 = arith.constant dense<0.000000e+00> : vector<128x8xf32>
    %52 = tpu.matmul %49, %51, %cst_35 {dimension_numbers = #tpu.dot_dimension_numbers<[1], [0], [0], [1], [0, 0, 1, 1], [], []>} : vector<128x8xbf16>, vector<8x8xbf16>, vector<128x8xf32> -> vector<128x8xf32>
    %53 = arith.addf %45, %52 : vector<128x8xf32>
    %c2_i32 = arith.constant 2 : i32
    %54 = arith.addi %4, %c2_i32 : i32
    %55 = arith.index_cast %54 : i32 to index
    %c0_36 = arith.constant 0 : index
    %c0_37 = arith.constant 0 : index
    %56 = vector.load %arg8[%55, %c0_36, %c0_37] : memref<18x18x8xbf16, #tpu.memory_space<vmem>>, vector<8x16x8xbf16>
    %57 = vector.shape_cast %56 : vector<8x16x8xbf16> to vector<128x8xbf16>
    %c6 = arith.constant 6 : index
    %c0_38 = arith.constant 0 : index
    %c0_39 = arith.constant 0 : index
    %58 = vector.load %arg3[%c6, %c0_38, %c0_39] : memref<9x8x8xbf16, #tpu.memory_space<vmem>>, vector<1x8x8xbf16>
    %59 = vector.shape_cast %58 : vector<1x8x8xbf16> to vector<8x8xbf16>
    %cst_40 = arith.constant dense<0.000000e+00> : vector<128x8xf32>
    %60 = tpu.matmul %57, %59, %cst_40 {dimension_numbers = #tpu.dot_dimension_numbers<[1], [0], [0], [1], [0, 0, 1, 1], [], []>} : vector<128x8xbf16>, vector<8x8xbf16>, vector<128x8xf32> -> vector<128x8xf32>
    %61 = arith.addf %53, %60 : vector<128x8xf32>
    %c2_i32_41 = arith.constant 2 : i32
    %62 = arith.addi %4, %c2_i32_41 : i32
    %63 = arith.index_cast %62 : i32 to index
    %c1_42 = arith.constant 1 : index
    %c0_43 = arith.constant 0 : index
    %64 = vector.load %arg8[%63, %c1_42, %c0_43] : memref<18x18x8xbf16, #tpu.memory_space<vmem>>, vector<8x16x8xbf16>
    %65 = vector.shape_cast %64 : vector<8x16x8xbf16> to vector<128x8xbf16>
    %c7 = arith.constant 7 : index
    %c0_44 = arith.constant 0 : index
    %c0_45 = arith.constant 0 : index
    %66 = vector.load %arg3[%c7, %c0_44, %c0_45] : memref<9x8x8xbf16, #tpu.memory_space<vmem>>, vector<1x8x8xbf16>
    %67 = vector.shape_cast %66 : vector<1x8x8xbf16> to vector<8x8xbf16>
    %cst_46 = arith.constant dense<0.000000e+00> : vector<128x8xf32>
    %68 = tpu.matmul %65, %67, %cst_46 {dimension_numbers = #tpu.dot_dimension_numbers<[1], [0], [0], [1], [0, 0, 1, 1], [], []>} : vector<128x8xbf16>, vector<8x8xbf16>, vector<128x8xf32> -> vector<128x8xf32>
    %69 = arith.addf %61, %68 : vector<128x8xf32>
    %c2_i32_47 = arith.constant 2 : i32
    %70 = arith.addi %4, %c2_i32_47 : i32
    %71 = arith.index_cast %70 : i32 to index
    %c2_48 = arith.constant 2 : index
    %c0_49 = arith.constant 0 : index
    %72 = vector.load %arg8[%71, %c2_48, %c0_49] : memref<18x18x8xbf16, #tpu.memory_space<vmem>>, vector<8x16x8xbf16>
    %73 = vector.shape_cast %72 : vector<8x16x8xbf16> to vector<128x8xbf16>
    %c8 = arith.constant 8 : index
    %c0_50 = arith.constant 0 : index
    %c0_51 = arith.constant 0 : index
    %74 = vector.load %arg3[%c8, %c0_50, %c0_51] : memref<9x8x8xbf16, #tpu.memory_space<vmem>>, vector<1x8x8xbf16>
    %75 = vector.shape_cast %74 : vector<1x8x8xbf16> to vector<8x8xbf16>
    %cst_52 = arith.constant dense<0.000000e+00> : vector<128x8xf32>
    %76 = tpu.matmul %73, %75, %cst_52 {dimension_numbers = #tpu.dot_dimension_numbers<[1], [0], [0], [1], [0, 0, 1, 1], [], []>} : vector<128x8xbf16>, vector<8x8xbf16>, vector<128x8xf32> -> vector<128x8xf32>
    %77 = arith.addf %69, %76 : vector<128x8xf32>
    %c0_53 = arith.constant 0 : index
    %c0_54 = arith.constant 0 : index
    %c0_55 = arith.constant 0 : index
    %78 = vector.load %arg5[%c0_53, %c0_54, %c0_55] : memref<1x1x8xf32, #tpu.memory_space<vmem>>, vector<1x1x8xf32>
    %79 = vector.shape_cast %78 : vector<1x1x8xf32> to vector<1x8xf32>
    %80 = vector.broadcast %79 : vector<1x8xf32> to vector<128x8xf32>
    %81 = arith.mulf %77, %80 : vector<128x8xf32>
    %c0_56 = arith.constant 0 : index
    %c0_57 = arith.constant 0 : index
    %82 = vector.load %arg6[%c0_56, %c0_57] : memref<1x8xf32, #tpu.memory_space<vmem>>, vector<1x8xf32>
    %83 = vector.broadcast %82 : vector<1x8xf32> to vector<128x8xf32>
    %84 = arith.addf %81, %83 : vector<128x8xf32>
    %cst_58 = arith.constant 0.000000e+00 : f32
    %85 = vector.broadcast %cst_58 : f32 to vector<128x8xf32>
    %86 = arith.cmpf oge, %84, %85 : vector<128x8xf32>
    %cst_59 = arith.constant 2.000000e-01 : f32
    %87 = vector.broadcast %cst_59 : f32 to vector<128x8xf32>
    %88 = arith.mulf %87, %84 : vector<128x8xf32>
    %89 = arith.select %86, %84, %88 : vector<128x8xi1>, vector<128x8xf32>
    %90 = vector.shape_cast %89 : vector<128x8xf32> to vector<8x16x8xf32>
    %c0_60 = arith.constant 0 : index
    %c0_61 = arith.constant 0 : index
    %c0_62 = arith.constant 0 : index
    %c0_63 = arith.constant 0 : index
    %91 = vector.load %arg7[%c0_60, %c0_61, %c0_62, %c0_63] : memref<1x8x16x8xf32, #tpu.memory_space<vmem>>, vector<1x8x16x8xf32>
    %92 = vector.shape_cast %91 : vector<1x8x16x8xf32> to vector<8x16x8xf32>
    %93 = vector.shape_cast %90 : vector<8x16x8xf32> to vector<1x8x16x8xf32>
    tpu.vector_store %arg7[%c0_60, %c0_61, %c0_62, %c0_63], %93 {strides = array<i32>} : memref<1x8x16x8xf32, #tpu.memory_space<vmem>>, vector<1x8x16x8xf32>,
    return
  }
  func.func @transform_0(%arg0: i32, %arg1: i32) -> (i32, i32, i32, i32) {
    %c0_i32 = arith.constant 0 : i32
    %c0_i32_0 = arith.constant 0 : i32
    %c0_i32_1 = arith.constant 0 : i32
    %c0_i32_2 = arith.constant 0 : i32
    return %arg0, %c0_i32, %c0_i32_0, %c0_i32_1 : i32, i32, i32, i32
  }
  func.func @transform_1(%arg0: i32, %arg1: i32) -> (i32, i32, i32) {
    %c0_i32 = arith.constant 0 : i32
    %c0_i32_0 = arith.constant 0 : i32
    %c0_i32_1 = arith.constant 0 : i32
    %c0_i32_2 = arith.constant 0 : i32
    return %c0_i32, %c0_i32_0, %c0_i32_1 : i32, i32, i32
  }
  func.func @transform_2(%arg0: i32, %arg1: i32) -> (i32, i32, i32) {
    %c0_i32 = arith.constant 0 : i32
    %c0_i32_0 = arith.constant 0 : i32
    %c0_i32_1 = arith.constant 0 : i32
    return %arg0, %c0_i32, %c0_i32_0 : i32, i32, i32
  }
  func.func @transform_3(%arg0: i32, %arg1: i32) -> (i32, i32, i32) {
    %c0_i32 = arith.constant 0 : i32
    %c0_i32_0 = arith.constant 0 : i32
    %c0_i32_1 = arith.constant 0 : i32
    return %arg0, %c0_i32, %c0_i32_0 : i32, i32, i32
  }
  func.func @transform_4(%arg0: i32, %arg1: i32) -> (i32, i32) {
    %c0_i32 = arith.constant 0 : i32
    %c0_i32_0 = arith.constant 0 : i32
    %c0_i32_1 = arith.constant 0 : i32
    return %c0_i32, %c0_i32_0 : i32, i32
  }
  func.func @transform_5(%arg0: i32, %arg1: i32) -> (i32, i32, i32, i32) {
    %c0_i32 = arith.constant 0 : i32
    %c0_i32_0 = arith.constant 0 : i32
    %c0_i32_1 = arith.constant 0 : i32
    return %arg0, %arg1, %c0_i32, %c0_i32_0 : i32, i32, i32, i32
  }
}

module attributes {stable_mosaic.version = 11 : i64} {
  func.func @_modconv_kernel(%arg0: i32, %arg1: i32, %arg2: memref<1x16x16x8xf32, #tpu.memory_space<vmem>>, %arg3: memref<1x8x3xbf16, #tpu.memory_space<vmem>>, %arg4: memref<1x1x8xf32, #tpu.memory_space<vmem>>, %arg5: memref<1x1x3xf32, #tpu.memory_space<vmem>>, %arg6: memref<1x3xf32, #tpu.memory_space<vmem>>, %arg7: memref<1x8x16x3xf32, #tpu.memory_space<vmem>>, %arg8: memref<16x16x8xbf16, #tpu.memory_space<vmem>>) attributes {dimension_semantics = [#tpu.dimension_semantics<parallel>, #tpu.dimension_semantics<arbitrary>], iteration_bounds = array<i64: 2, 2>, scalar_prefetch = 0 : i64, scratch_operands = 1 : i64, tpu.core_type = #tpu.core_type<tc>, window_params = [{transform_indices = @transform_0, window_bounds = array<i64: 1, 16, 16, 8>}, {pipeline_mode = #tpu.pipeline_mode<synchronous>, transform_indices = @transform_1, window_bounds = array<i64: 1, 8, 3>}, {transform_indices = @transform_2, window_bounds = array<i64: 1, 1, 8>}, {transform_indices = @transform_3, window_bounds = array<i64: 1, 1, 3>}, {pipeline_mode = #tpu.pipeline_mode<synchronous>, transform_indices = @transform_4, window_bounds = array<i64: 1, 3>}, {transform_indices = @transform_5, window_bounds = array<i64: 1, 8, 16, 3>}]} {
    %c0_i32 = arith.constant 0 : i32
    %0 = arith.cmpi eq, %arg1, %c0_i32 : i32
    %1 = arith.extui %0 : i1 to i32
    %c0_i32_0 = arith.constant 0 : i32
    %2 = arith.cmpi ne, %1, %c0_i32_0 : i32
    scf.if %2 {
      %c0_16 = arith.constant 0 : index
      %c0_17 = arith.constant 0 : index
      %c0_18 = arith.constant 0 : index
      %c0_19 = arith.constant 0 : index
      %25 = vector.load %arg2[%c0_16, %c0_17, %c0_18, %c0_19] : memref<1x16x16x8xf32, #tpu.memory_space<vmem>>, vector<1x16x16x8xf32>
      %26 = vector.shape_cast %25 : vector<1x16x16x8xf32> to vector<16x16x8xf32>
      %c0_20 = arith.constant 0 : index
      %c0_21 = arith.constant 0 : index
      %c0_22 = arith.constant 0 : index
      %27 = vector.load %arg4[%c0_20, %c0_21, %c0_22] : memref<1x1x8xf32, #tpu.memory_space<vmem>>, vector<1x1x8xf32>
      %28 = vector.broadcast %27 : vector<1x1x8xf32> to vector<16x16x8xf32>
      %29 = arith.mulf %26, %28 : vector<16x16x8xf32>
      %30 = arith.truncf %29 : vector<16x16x8xf32> to vector<16x16x8xbf16>
      %c0_23 = arith.constant 0 : index
      %c0_24 = arith.constant 0 : index
      %c0_25 = arith.constant 0 : index
      %31 = vector.load %arg8[%c0_23, %c0_24, %c0_25] : memref<16x16x8xbf16, #tpu.memory_space<vmem>>, vector<16x16x8xbf16>
      tpu.vector_store %arg8[%c0_23, %c0_24, %c0_25], %30 {strides = array<i32>} : memref<16x16x8xbf16, #tpu.memory_space<vmem>>, vector<16x16x8xbf16>,
    } else {
    }
    %c8_i32 = arith.constant 8 : i32
    %3 = arith.muli %arg1, %c8_i32 : i32
    %4 = tpu.assume_multiple %3, 8 : i32
    %cst = arith.constant 0.000000e+00 : f32
    %5 = vector.broadcast %cst : f32 to vector<128x3xf32>
    %c0_i32_1 = arith.constant 0 : i32
    %6 = arith.addi %4, %c0_i32_1 : i32
    %7 = arith.index_cast %6 : i32 to index
    %c0 = arith.constant 0 : index
    %c0_2 = arith.constant 0 : index
    %8 = vector.load %arg8[%7, %c0, %c0_2] : memref<16x16x8xbf16, #tpu.memory_space<vmem>>, vector<8x16x8xbf16>
    %9 = vector.shape_cast %8 : vector<8x16x8xbf16> to vector<128x8xbf16>
    %c0_3 = arith.constant 0 : index
    %c0_4 = arith.constant 0 : index
    %c0_5 = arith.constant 0 : index
    %10 = vector.load %arg3[%c0_3, %c0_4, %c0_5] : memref<1x8x3xbf16, #tpu.memory_space<vmem>>, vector<1x8x3xbf16>
    %11 = vector.shape_cast %10 : vector<1x8x3xbf16> to vector<8x3xbf16>
    %cst_6 = arith.constant dense<0.000000e+00> : vector<128x3xf32>
    %12 = tpu.matmul %9, %11, %cst_6 {dimension_numbers = #tpu.dot_dimension_numbers<[1], [0], [0], [1], [0, 0, 1, 1], [], []>} : vector<128x8xbf16>, vector<8x3xbf16>, vector<128x3xf32> -> vector<128x3xf32>
    %13 = arith.addf %5, %12 : vector<128x3xf32>
    %c0_7 = arith.constant 0 : index
    %c0_8 = arith.constant 0 : index
    %c0_9 = arith.constant 0 : index
    %14 = vector.load %arg5[%c0_7, %c0_8, %c0_9] : memref<1x1x3xf32, #tpu.memory_space<vmem>>, vector<1x1x3xf32>
    %15 = vector.shape_cast %14 : vector<1x1x3xf32> to vector<1x3xf32>
    %16 = vector.broadcast %15 : vector<1x3xf32> to vector<128x3xf32>
    %17 = arith.mulf %13, %16 : vector<128x3xf32>
    %c0_10 = arith.constant 0 : index
    %c0_11 = arith.constant 0 : index
    %18 = vector.load %arg6[%c0_10, %c0_11] : memref<1x3xf32, #tpu.memory_space<vmem>>, vector<1x3xf32>
    %19 = vector.broadcast %18 : vector<1x3xf32> to vector<128x3xf32>
    %20 = arith.addf %17, %19 : vector<128x3xf32>
    %21 = vector.shape_cast %20 : vector<128x3xf32> to vector<8x16x3xf32>
    %c0_12 = arith.constant 0 : index
    %c0_13 = arith.constant 0 : index
    %c0_14 = arith.constant 0 : index
    %c0_15 = arith.constant 0 : index
    %22 = vector.load %arg7[%c0_12, %c0_13, %c0_14, %c0_15] : memref<1x8x16x3xf32, #tpu.memory_space<vmem>>, vector<1x8x16x3xf32>
    %23 = vector.shape_cast %22 : vector<1x8x16x3xf32> to vector<8x16x3xf32>
    %24 = vector.shape_cast %21 : vector<8x16x3xf32> to vector<1x8x16x3xf32>
    tpu.vector_store %arg7[%c0_12, %c0_13, %c0_14, %c0_15], %24 {strides = array<i32>} : memref<1x8x16x3xf32, #tpu.memory_space<vmem>>, vector<1x8x16x3xf32>,
    return
  }
  func.func @transform_0(%arg0: i32, %arg1: i32) -> (i32, i32, i32, i32) {
    %c0_i32 = arith.constant 0 : i32
    %c0_i32_0 = arith.constant 0 : i32
    %c0_i32_1 = arith.constant 0 : i32
    %c0_i32_2 = arith.constant 0 : i32
    return %arg0, %c0_i32, %c0_i32_0, %c0_i32_1 : i32, i32, i32, i32
  }
  func.func @transform_1(%arg0: i32, %arg1: i32) -> (i32, i32, i32) {
    %c0_i32 = arith.constant 0 : i32
    %c0_i32_0 = arith.constant 0 : i32
    %c0_i32_1 = arith.constant 0 : i32
    %c0_i32_2 = arith.constant 0 : i32
    return %c0_i32, %c0_i32_0, %c0_i32_1 : i32, i32, i32
  }
  func.func @transform_2(%arg0: i32, %arg1: i32) -> (i32, i32, i32) {
    %c0_i32 = arith.constant 0 : i32
    %c0_i32_0 = arith.constant 0 : i32
    %c0_i32_1 = arith.constant 0 : i32
    return %arg0, %c0_i32, %c0_i32_0 : i32, i32, i32
  }
  func.func @transform_3(%arg0: i32, %arg1: i32) -> (i32, i32, i32) {
    %c0_i32 = arith.constant 0 : i32
    %c0_i32_0 = arith.constant 0 : i32
    %c0_i32_1 = arith.constant 0 : i32
    return %arg0, %c0_i32, %c0_i32_0 : i32, i32, i32
  }
  func.func @transform_4(%arg0: i32, %arg1: i32) -> (i32, i32) {
    %c0_i32 = arith.constant 0 : i32
    %c0_i32_0 = arith.constant 0 : i32
    %c0_i32_1 = arith.constant 0 : i32
    return %c0_i32, %c0_i32_0 : i32, i32
  }
  func.func @transform_5(%arg0: i32, %arg1: i32) -> (i32, i32, i32, i32) {
    %c0_i32 = arith.constant 0 : i32
    %c0_i32_0 = arith.constant 0 : i32
    %c0_i32_1 = arith.constant 0 : i32
    return %arg0, %arg1, %c0_i32, %c0_i32_0 : i32, i32, i32, i32
  }
}

</mosaic_0001>

<llo_original>
// kernel: _lambda_.6
$region0: #{_lambda_.6}
  #allocation0 [shape = 'u32[]', space=smem, size = 0x4, offset = 0x4, fixed_abs, tag = 'smem constant byte address 0x4 - core index']
  #allocation1 [shape = 'u32[144,128]{1,0:T(1,128)}', space=vmem, size = 0x12000, scoped, tag = 'internal scratch']
  #allocation2 [shape = 'f32[16,10,8]{2,1,0:T(8,128)}', space=vmem, size = 0x20000, scoped, tag = 'scratch operand']
  %s0 = inlined_call_operand.vmem [shape: f32[2,8,8,8], index: 0, kind: input, shape index: {}]
  %s1 = inlined_call_operand.vmem [shape: f32[2,16,8,16], index: 1, kind: output, shape index: {}]
  %s2 = sld [smem:[#allocation0]]
  $region37: #{_lambda_.6} parent=0
    _
  %s4 = ssub.s32 1, %s2
  %s5 = scalar_select 0, %s4, %s2
  loop: start=0, step=1, limit=4
  $region2: #{_lambda_.6} parent=0 // loop_pre_header
    _
  $region3: #{_lambda_.6} parent=0 // loop_header
    %s7 = sphi 0, %s11
    %p8 = scmp.ge.s32.totalorder %s7, 4
    %s17 = sphi 0, %s19
    %s20 = sphi 0, %s17
    %s21 = sphi 0, %s20
    %s37 = sphi 0, %s21
    %s43 = sphi 0, %s45
    %s46 = sphi 0, %s43
    %s47 = sphi 0, %s46
    %s63 = sphi 0, %s47
  $region4: #{_lambda_.6} parent=0 // loop_header_branch
    %10 = sbr.rel (%p8) target = $region8
  $region5: #{_lambda_.6} parent=0 // loop_body
    %s12 = ssub.s32 %s7, 1
    %s13 = ssub.s32 %s7, 2
    %s14 = sadd.s32 %s7, 1
    %s15 = ssub.s32 %s7, %s14
    %p16 = scmp.eq.s32.totalorder %s15, 0
    %s18 = sadd.s32 %s17, 1
    %s19 = scalar_select %p16, %s17, %s18
    %p22 = pneg %p16
    %p23 = scmp.eq.s32.totalorder %s7, 1
    %p24 = por %p22, %p23
    %p25 = scmp.ne.s32.totalorder %s17, %s20
    %p26 = scmp.eq.s32.totalorder %s7, 0
    %p27 = por %p25, %p26
    %p28 = scmp.ne.s32.totalorder %s17, %s20
    %p29 = scmp.eq.s32.totalorder %s12, 1
    %p30 = por %p28, %p29
    %p31 = scmp.ne.s32.totalorder %s20, %s21
    %p32 = scmp.eq.s32.totalorder %s12, 0
    %p33 = por %p31, %p32
    %p34 = scmp.ne.s32.totalorder %s20, %s21
    %p35 = scmp.eq.s32.totalorder %s13, 1
    %p36 = por %p34, %p35
    %p38 = scmp.ne.s32.totalorder %s21, %s37
    %p39 = scmp.eq.s32.totalorder %s13, 0
    %p40 = por %p38, %p39
    %s41 = ssub.s32 %s7, %s14
    %p42 = scmp.eq.s32.totalorder %s41, 0
    %s44 = sadd.s32 %s43, 1
    %s45 = scalar_select %p42, %s43, %s44
    %p48 = pneg %p42
    %p49 = scmp.eq.s32.totalorder %s7, 1
    %p50 = por %p48, %p49
    %p51 = scmp.ne.s32.totalorder %s43, %s46
    %p52 = scmp.eq.s32.totalorder %s7, 0
    %p53 = por %p51, %p52
    %p54 = scmp.ne.s32.totalorder %s43, %s46
    %p55 = scmp.eq.s32.totalorder %s12, 1
    %p56 = por %p54, %p55
    %p57 = scmp.ne.s32.totalorder %s46, %s47
    %p58 = scmp.eq.s32.totalorder %s12, 0
    %p59 = por %p57, %p58
    %p60 = scmp.ne.s32.totalorder %s46, %s47
    %p61 = scmp.eq.s32.totalorder %s13, 1
    %p62 = por %p60, %p61
    %p64 = scmp.ne.s32.totalorder %s47, %s63
    %p65 = scmp.eq.s32.totalorder %s13, 0
    %p66 = por %p64, %p65
    %p67 = scmp.le.s32.totalorder 1, %s7
    %p68 = scmp.lt.s32.totalorder %s7, 3
    %p69 = pnand %p67, %p68
    %p70 = pneg %p69
    // Predicated region
    $region9: #{_lambda_.6} parent=5 // pred_check
      _
    $region10: #{_lambda_.6} parent=5 // pred_check_branch
      %72 = sbr.rel (%p69) target = $region12
    $region11: #{_lambda_.6} parent=5 // pred_region
      %s73 = ssub.s32 %s7, 1
    $region12: #{_lambda_.6} parent=5 // pred_fallthru
      _
    %p74 = scmp.lt.s32.totalorder %s7, 2
    // Predicated region
    $region13: #{_lambda_.6} parent=5 // pred_check
      %p75 = pneg %p74
    $region14: #{_lambda_.6} parent=5 // pred_check_branch
      %77 = sbr.rel (%p75) target = $region16
    $region15: #{_lambda_.6} parent=5 // pred_region
      // Predicated region
      $region17: #{_lambda_.6} parent=15 // pred_check
        %p78 = pneg %p27
      $region18: #{_lambda_.6} parent=15 // pred_check_branch
        %80 = sbr.rel (%p78) target = $region20
      $region19: #{_lambda_.6} parent=15 // pred_region
        %p81 = scmp.lt.s32.totalorder %s7, 1
        %s82 = scalar_select %p81, %s7, 1
        %s83 = smul.addr %s82, 8
        %s84 = smul.addr %s83, 8
        %s85 = scalar_lea.vmem %s0, %s84
      $region20: #{_lambda_.6} parent=15 // pred_fallthru
        _
    $region16: #{_lambda_.6} parent=5 // pred_fallthru
      _
    %p86 = scmp.le.s32.totalorder 1, %s7
    %p87 = scmp.lt.s32.totalorder %s7, 3
    %p88 = pnand %p86, %p87
    %p89 = pneg %p88
    // Predicated region
    $region21: #{_lambda_.6} parent=5 // pred_check
      _
    $region22: #{_lambda_.6} parent=5 // pred_check_branch
      %91 = sbr.rel (%p88) target = $region24
    $region23: #{_lambda_.6} parent=5 // pred_region
      %s92 = ssub.s32 %s7, 1
      %p93 = scmp.lt.s32.totalorder %s12, 1
      %s94 = scalar_select %p93, %s12, 1
      %s95 = smul.addr %s94, 8
      %s96 = smul.addr %s95, 8
      %s97 = scalar_lea.vmem %s0, %s96
      %p98 = pneg %p33
      %p99 = pneg %p30
      %p100 = pneg %p59
      %p101 = pneg %p56
      %p102 = scmp.lt.s32.totalorder %s12, 1
      %s103 = scalar_select %p102, %s12, 1
      %s104 = smul.addr %s103, 16
      %s105 = smul.addr %s104, 8
      %s106 = scalar_lea.vmem %s1, %s105
      %p107 = scmp.lt.s32.totalorder %s12, 1
      %s108 = scalar_select %p107, %s12, 1
      %s109 = smul.addr %s108, 8
      %s110 = smul.addr %s109, 8
      %s111 = scalar_lea.vmem %s0, %s110
      %p112 = scmp.lt.s32.totalorder %s12, 1
      %s113 = scalar_select %p112, %s12, 1
      %s114 = smul.addr %s113, 16
      %s115 = smul.addr %s114, 8
      %s116 = scalar_lea.vmem %s1, %s115
      %v117 = vld [vmem:[%s111] sm:$0xff]
      %v118 = vld [vmem:[%s111 + $0x8] sm:$0xff]
      %v119 = vld [vmem:[%s111 + $0x10] sm:$0xff]
      %v120 = vld [vmem:[%s111 + $0x18] sm:$0xff]
      %v121 = vld [vmem:[%s111 + $0x20] sm:$0xff]
      %v122 = vld [vmem:[%s111 + $0x28] sm:$0xff]
      %v123 = vld [vmem:[%s111 + $0x30] sm:$0xff]
      %v124 = vld [vmem:[%s111 + $0x38] sm:$0xff]
      %v125 = vmul.f32 %v117, 0.25
      %v126 = vmul.f32 %v118, 0.25
      %v127 = vmul.f32 %v119, 0.25
      %v128 = vmul.f32 %v120, 0.25
      %v129 = vmul.f32 %v121, 0.25
      %v130 = vmul.f32 %v122, 0.25
      %v131 = vmul.f32 %v123, 0.25
      %v132 = vmul.f32 %v117, 0.75
      %v133 = vmul.f32 %v118, 0.75
      %v134 = vmul.f32 %v119, 0.75
      %v135 = vmul.f32 %v120, 0.75
      %v136 = vmul.f32 %v121, 0.75
      %v137 = vmul.f32 %v122, 0.75
      %v138 = vmul.f32 %v123, 0.75
      %v139 = vmul.f32 %v124, 0.75
      %v140 = vadd.f32 %v125, %v132
      %v141 = vadd.f32 %v125, %v133
      %v142 = vadd.f32 %v126, %v134
      %v143 = vadd.f32 %v127, %v135
      %v144 = vadd.f32 %v128, %v136
      %v145 = vadd.f32 %v129, %v137
      %v146 = vadd.f32 %v130, %v138
      %v147 = vadd.f32 %v131, %v139
      %v148 = vmul.f32 %v124, 0.25
      %v149 = vadd.f32 %v132, %v126
      %v150 = vadd.f32 %v133, %v127
      %v151 = vadd.f32 %v134, %v128
      %v152 = vadd.f32 %v135, %v129
      %v153 = vadd.f32 %v136, %v130
      %v154 = vadd.f32 %v137, %v131
      %v155 = vadd.f32 %v138, %v148
      %v156 = vadd.f32 %v139, %v148
      %vm157 = vcmask 64512
      %158 = vst.msk [vmem:[#allocation2 + $0x1] sm:$0xff] %vm157, %v140
      %159 = vst.msk [vmem:[#allocation2 + $0x11] sm:$0xff] %vm157, %v149
      %160 = vst.msk [vmem:[#allocation2 + $0x21] sm:$0xff] %vm157, %v141
      %161 = vst.msk [vmem:[#allocation2 + $0x31] sm:$0xff] %vm157, %v150
      %162 = vst.msk [vmem:[#allocation2 + $0x41] sm:$0xff] %vm157, %v142
      %163 = vst.msk [vmem:[#allocation2 + $0x51] sm:$0xff] %vm157, %v151
      %164 = vst.msk [vmem:[#allocation2 + $0x61] sm:$0xff] %vm157, %v143
      %165 = vst.msk [vmem:[#allocation2 + $0x71] sm:$0xff] %vm157, %v152
      %166 = vst.msk [vmem:[#allocation2 + $0x81] sm:$0xff] %vm157, %v144
      %167 = vst.msk [vmem:[#allocation2 + $0x91] sm:$0xff] %vm157, %v153
      %168 = vst.msk [vmem:[#allocation2 + $0xa1] sm:$0xff] %vm157, %v145
      %169 = vst.msk [vmem:[#allocation2 + $0xb1] sm:$0xff] %vm157, %v154
      %170 = vst.msk [vmem:[#allocation2 + $0xc1] sm:$0xff] %vm157, %v146
      %171 = vst.msk [vmem:[#allocation2 + $0xd1] sm:$0xff] %vm157, %v155
      %172 = vst.msk [vmem:[#allocation2 + $0xe1] sm:$0xff] %vm157, %v147
      %173 = vst.msk [vmem:[#allocation2 + $0xf1] sm:$0xff] %vm157, %v156
      %vm174 = vcmask 57344
      %175 = vst.msk [vmem:[#allocation2] sm:$0x1] %vm174, %v140
      %176 = vst.msk [vmem:[#allocation2 + $0x10] sm:$0x1] %vm174, %v149
      %177 = vst.msk [vmem:[#allocation2 + $0x20] sm:$0x1] %vm174, %v141
      %178 = vst.msk [vmem:[#allocation2 + $0x30] sm:$0x1] %vm174, %v150
      %179 = vst.msk [vmem:[#allocation2 + $0x40] sm:$0x1] %vm174, %v142
      %180 = vst.msk [vmem:[#allocation2 + $0x50] sm:$0x1] %vm174, %v151
      %181 = vst.msk [vmem:[#allocation2 + $0x60] sm:$0x1] %vm174, %v143
      %182 = vst.msk [vmem:[#allocation2 + $0x70] sm:$0x1] %vm174, %v152
      %183 = vst.msk [vmem:[#allocation2 + $0x80] sm:$0x1] %vm174, %v144
      %184 = vst.msk [vmem:[#allocation2 + $0x90] sm:$0x1] %vm174, %v153
      %185 = vst.msk [vmem:[#allocation2 + $0xa0] sm:$0x1] %vm174, %v145
      %186 = vst.msk [vmem:[#allocation2 + $0xb0] sm:$0x1] %vm174, %v154
      %187 = vst.msk [vmem:[#allocation2 + $0xc0] sm:$0x1] %vm174, %v146
      %188 = vst.msk [vmem:[#allocation2 + $0xd0] sm:$0x1] %vm174, %v155
      %189 = vst.msk [vmem:[#allocation2 + $0xe0] sm:$0x1] %vm174, %v147
      %190 = vst.msk [vmem:[#allocation2 + $0xf0] sm:$0x1] %vm174, %v156
      %vm191 = vcmask 64519
      %192 = vst.msk [vmem:[#allocation2 + $0x2] sm:$0x80] %vm191, %v140
      %193 = vst.msk [vmem:[#allocation2 + $0x12] sm:$0x80] %vm191, %v149
      %194 = vst.msk [vmem:[#allocation2 + $0x22] sm:$0x80] %vm191, %v141
      %195 = vst.msk [vmem:[#allocation2 + $0x32] sm:$0x80] %vm191, %v150
      %196 = vst.msk [vmem:[#allocation2 + $0x42] sm:$0x80] %vm191, %v142
      %197 = vst.msk [vmem:[#allocation2 + $0x52] sm:$0x80] %vm191, %v151
      %198 = vst.msk [vmem:[#allocation2 + $0x62] sm:$0x80] %vm191, %v143
      %199 = vst.msk [vmem:[#allocation2 + $0x72] sm:$0x80] %vm191, %v152
      %200 = vst.msk [vmem:[#allocation2 + $0x82] sm:$0x80] %vm191, %v144
      %201 = vst.msk [vmem:[#allocation2 + $0x92] sm:$0x80] %vm191, %v153
      %202 = vst.msk [vmem:[#allocation2 + $0xa2] sm:$0x80] %vm191, %v145
      %203 = vst.msk [vmem:[#allocation2 + $0xb2] sm:$0x80] %vm191, %v154
      %204 = vst.msk [vmem:[#allocation2 + $0xc2] sm:$0x80] %vm191, %v146
      %205 = vst.msk [vmem:[#allocation2 + $0xd2] sm:$0x80] %vm191, %v155
      %206 = vst.msk [vmem:[#allocation2 + $0xe2] sm:$0x80] %vm191, %v147
      %207 = vst.msk [vmem:[#allocation2 + $0xf2] sm:$0x80] %vm191, %v156
      %v208 = vld [vmem:[#allocation2] sm:$0xff]
      %v209 = vld [vmem:[#allocation2 + $0x10] sm:$0xff]
      %v210 = vld [vmem:[#allocation2 + $0x20] sm:$0xff]
      %v211 = vld [vmem:[#allocation2 + $0x30] sm:$0xff]
      %v212 = vld [vmem:[#allocation2 + $0x40] sm:$0xff]
      %v213 = vld [vmem:[#allocation2 + $0x50] sm:$0xff]
      %v214 = vld [vmem:[#allocation2 + $0x60] sm:$0xff]
      %v215 = vld [vmem:[#allocation2 + $0x70] sm:$0xff]
      %v216 = vld [vmem:[#allocation2 + $0x80] sm:$0xff]
      %v217 = vld [vmem:[#allocation2 + $0x90] sm:$0xff]
      %v218 = vld [vmem:[#allocation2 + $0xa0] sm:$0xff]
      %v219 = vld [vmem:[#allocation2 + $0xb0] sm:$0xff]
      %v220 = vld [vmem:[#allocation2 + $0xc0] sm:$0xff]
      %v221 = vld [vmem:[#allocation2 + $0xd0] sm:$0xff]
      %v222 = vld [vmem:[#allocation2 + $0xe0] sm:$0xff]
      %v223 = vld [vmem:[#allocation2 + $0xf0] sm:$0xff]
      %v224 = vld [vmem:[#allocation2 + $0x2] sm:$0xff]
      %v225 = vld [vmem:[#allocation2 + $0x12] sm:$0xff]
      %v226 = vld [vmem:[#allocation2 + $0x22] sm:$0xff]
      %v227 = vld [vmem:[#allocation2 + $0x32] sm:$0xff]
      %v228 = vld [vmem:[#allocation2 + $0x42] sm:$0xff]
      %v229 = vld [vmem:[#allocation2 + $0x52] sm:$0xff]
      %v230 = vld [vmem:[#allocation2 + $0x62] sm:$0xff]
      %v231 = vld [vmem:[#allocation2 + $0x72] sm:$0xff]
      %v232 = vld [vmem:[#allocation2 + $0x82] sm:$0xff]
      %v233 = vld [vmem:[#allocation2 + $0x92] sm:$0xff]
      %v234 = vld [vmem:[#allocation2 + $0xa2] sm:$0xff]
      %v235 = vld [vmem:[#allocation2 + $0xb2] sm:$0xff]
      %v236 = vld [vmem:[#allocation2 + $0xc2] sm:$0xff]
      %v237 = vld [vmem:[#allocation2 + $0xd2] sm:$0xff]
      %v238 = vld [vmem:[#allocation2 + $0xe2] sm:$0xff]
      %v239 = vld [vmem:[#allocation2 + $0xf2] sm:$0xff]
      %v240 = vmul.f32 %v208, 0.25
      %v241 = vmul.f32 %v209, 0.25
      %v242 = vmul.f32 %v210, 0.25
      %v243 = vmul.f32 %v211, 0.25
      %v244 = vmul.f32 %v212, 0.25
      %v245 = vmul.f32 %v213, 0.25
      %v246 = vmul.f32 %v214, 0.25
      %v247 = vmul.f32 %v215, 0.25
      %v248 = vmul.f32 %v216, 0.25
      %v249 = vmul.f32 %v217, 0.25
      %v250 = vmul.f32 %v218, 0.25
      %v251 = vmul.f32 %v219, 0.25
      %v252 = vmul.f32 %v220, 0.25
      %v253 = vmul.f32 %v221, 0.25
      %v254 = vmul.f32 %v222, 0.25
      %v255 = vmul.f32 %v223, 0.25
      %v256 = vmul.f32 %v140, 0.75
      %v257 = vmul.f32 %v149, 0.75
      %v258 = vmul.f32 %v141, 0.75
      %v259 = vmul.f32 %v150, 0.75
      %v260 = vmul.f32 %v142, 0.75
      %v261 = vmul.f32 %v151, 0.75
      %v262 = vmul.f32 %v143, 0.75
      %v263 = vmul.f32 %v152, 0.75
      %v264 = vmul.f32 %v144, 0.75
      %v265 = vmul.f32 %v153, 0.75
      %v266 = vmul.f32 %v145, 0.75
      %v267 = vmul.f32 %v154, 0.75
      %v268 = vmul.f32 %v146, 0.75
      %v269 = vmul.f32 %v155, 0.75
      %v270 = vmul.f32 %v147, 0.75
      %v271 = vmul.f32 %v156, 0.75
      %v272 = vadd.f32 %v240, %v256
      %v273 = vadd.f32 %v241, %v257
      %v274 = vadd.f32 %v242, %v258
      %v275 = vadd.f32 %v243, %v259
      %v276 = vadd.f32 %v244, %v260
      %v277 = vadd.f32 %v245, %v261
      %v278 = vadd.f32 %v246, %v262
      %v279 = vadd.f32 %v247, %v263
      %v280 = vadd.f32 %v248, %v264
      %v281 = vadd.f32 %v249, %v265
      %v282 = vadd.f32 %v250, %v266
      %v283 = vadd.f32 %v251, %v267
      %v284 = vadd.f32 %v252, %v268
      %v285 = vadd.f32 %v253, %v269
      %v286 = vadd.f32 %v254, %v270
      %v287 = vadd.f32 %v255, %v271
      %v288 = vmul.f32 %v224, 0.25
      %v289 = vmul.f32 %v225, 0.25
      %v290 = vmul.f32 %v226, 0.25
      %v291 = vmul.f32 %v227, 0.25
      %v292 = vmul.f32 %v228, 0.25
      %v293 = vmul.f32 %v229, 0.25
      %v294 = vmul.f32 %v230, 0.25
      %v295 = vmul.f32 %v231, 0.25
      %v296 = vmul.f32 %v232, 0.25
      %v297 = vmul.f32 %v233, 0.25
      %v298 = vmul.f32 %v234, 0.25
      %v299 = vmul.f32 %v235, 0.25
      %v300 = vmul.f32 %v236, 0.25
      %v301 = vmul.f32 %v237, 0.25
      %v302 = vmul.f32 %v238, 0.25
      %v303 = vmul.f32 %v239, 0.25
      %v304 = vadd.f32 %v256, %v288
      %v305 = vadd.f32 %v257, %v289
      %v306 = vadd.f32 %v258, %v290
      %v307 = vadd.f32 %v259, %v291
      %v308 = vadd.f32 %v260, %v292
      %v309 = vadd.f32 %v261, %v293
      %v310 = vadd.f32 %v262, %v294
      %v311 = vadd.f32 %v263, %v295
      %v312 = vadd.f32 %v264, %v296
      %v313 = vadd.f32 %v265, %v297
      %v314 = vadd.f32 %v266, %v298
      %v315 = vadd.f32 %v267, %v299
      %v316 = vadd.f32 %v268, %v300
      %v317 = vadd.f32 %v269, %v301
      %v318 = vadd.f32 %v270, %v302
      %v319 = vadd.f32 %v271, %v303
      %320 = vst.msk [vmem:[%s116] sm:$0xff] %vm157, %v272
      %321 = vst.msk [vmem:[%s116 + $0x8] sm:$0xff] %vm157, %v273
      %322 = vst.msk [vmem:[%s116 + $0x10] sm:$0xff] %vm157, %v274
      %323 = vst.msk [vmem:[%s116 + $0x18] sm:$0xff] %vm157, %v275
      %324 = vst.msk [vmem:[%s116 + $0x20] sm:$0xff] %vm157, %v276
      %325 = vst.msk [vmem:[%s116 + $0x28] sm:$0xff] %vm157, %v277
      %326 = vst.msk [vmem:[%s116 + $0x30] sm:$0xff] %vm157, %v278
      %327 = vst.msk [vmem:[%s116 + $0x38] sm:$0xff] %vm157, %v279
      %328 = vst.msk [vmem:[%s116 + $0x40] sm:$0xff] %vm157, %v280
      %329 = vst.msk [vmem:[%s116 + $0x48] sm:$0xff] %vm157, %v281
      %330 = vst.msk [vmem:[%s116 + $0x50] sm:$0xff] %vm157, %v282
      %331 = vst.msk [vmem:[%s116 + $0x58] sm:$0xff] %vm157, %v283
      %332 = vst.msk [vmem:[%s116 + $0x60] sm:$0xff] %vm157, %v284
      %333 = vst.msk [vmem:[%s116 + $0x68] sm:$0xff] %vm157, %v285
      %334 = vst.msk [vmem:[%s116 + $0x70] sm:$0xff] %vm157, %v286
      %335 = vst.msk [vmem:[%s116 + $0x78] sm:$0xff] %vm157, %v287
      %352 = vrot.lane.b32.xlu0 %v304, 8
      %v353 = vpop.permute.xlu0 %352
      %354 = vrot.lane.b32.xlu0 %v305, 8
      %v355 = vpop.permute.xlu0 %354
      %356 = vrot.lane.b32.xlu0 %v306, 8
      %v357 = vpop.permute.xlu0 %356
      %358 = vrot.lane.b32.xlu0 %v307, 8
      %v359 = vpop.permute.xlu0 %358
      %360 = vrot.lane.b32.xlu0 %v308, 8
      %v361 = vpop.permute.xlu0 %360
      %362 = vrot.lane.b32.xlu0 %v309, 8
      %v363 = vpop.permute.xlu0 %362
      %364 = vrot.lane.b32.xlu0 %v310, 8
      %v365 = vpop.permute.xlu0 %364
      %366 = vrot.lane.b32.xlu0 %v311, 8
      %v367 = vpop.permute.xlu0 %366
      %368 = vrot.lane.b32.xlu0 %v312, 8
      %v369 = vpop.permute.xlu0 %368
      %370 = vrot.lane.b32.xlu0 %v313, 8
      %v371 = vpop.permute.xlu0 %370
      %372 = vrot.lane.b32.xlu0 %v314, 8
      %v373 = vpop.permute.xlu0 %372
      %374 = vrot.lane.b32.xlu0 %v315, 8
      %v375 = vpop.permute.xlu0 %374
      %376 = vrot.lane.b32.xlu0 %v316, 8
      %v377 = vpop.permute.xlu0 %376
      %378 = vrot.lane.b32.xlu0 %v317, 8
      %v379 = vpop.permute.xlu0 %378
      %380 = vrot.lane.b32.xlu0 %v318, 8
      %v381 = vpop.permute.xlu0 %380
      %382 = vrot.lane.b32.xlu0 %v319, 8
      %v383 = vpop.permute.xlu0 %382
      %vm400 = vcmask 130112
      %401 = vst.msk [vmem:[%s116] sm:$0xff] %vm400, %v353
      %402 = vst.msk [vmem:[%s116 + $0x8] sm:$0xff] %vm400, %v355
      %403 = vst.msk [vmem:[%s116 + $0x10] sm:$0xff] %vm400, %v357
      %404 = vst.msk [vmem:[%s116 + $0x18] sm:$0xff] %vm400, %v359
      %405 = vst.msk [vmem:[%s116 + $0x20] sm:$0xff] %vm400, %v361
      %406 = vst.msk [vmem:[%s116 + $0x28] sm:$0xff] %vm400, %v363
      %407 = vst.msk [vmem:[%s116 + $0x30] sm:$0xff] %vm400, %v365
      %408 = vst.msk [vmem:[%s116 + $0x38] sm:$0xff] %vm400, %v367
      %409 = vst.msk [vmem:[%s116 + $0x40] sm:$0xff] %vm400, %v369
      %410 = vst.msk [vmem:[%s116 + $0x48] sm:$0xff] %vm400, %v371
      %411 = vst.msk [vmem:[%s116 + $0x50] sm:$0xff] %vm400, %v373
      %412 = vst.msk [vmem:[%s116 + $0x58] sm:$0xff] %vm400, %v375
      %413 = vst.msk [vmem:[%s116 + $0x60] sm:$0xff] %vm400, %v377
      %414 = vst.msk [vmem:[%s116 + $0x68] sm:$0xff] %vm400, %v379
      %415 = vst.msk [vmem:[%s116 + $0x70] sm:$0xff] %vm400, %v381
      %416 = vst.msk [vmem:[%s116 + $0x78] sm:$0xff] %vm400, %v383
      %p417 = scmp.lt.s32.totalorder %s12, 1
      %s418 = scalar_select %p417, %s12, 1
      %s419 = smul.addr %s418, 16
      %s420 = smul.addr %s419, 8
      %s421 = scalar_lea.vmem %s1, %s420
      // Predicated region
      $region25: #{_lambda_.6} parent=23 // pred_check
        %p422 = pneg %p56
      $region26: #{_lambda_.6} parent=23 // pred_check_branch
        %424 = sbr.rel (%p422) target = $region28
      $region27: #{_lambda_.6} parent=23 // pred_region
        _
      $region28: #{_lambda_.6} parent=23 // pred_fallthru
        _
    $region24: #{_lambda_.6} parent=5 // pred_fallthru
      _
    %p425 = scmp.le.s32.totalorder 2, %s7
    // Predicated region
    $region29: #{_lambda_.6} parent=5 // pred_check
      %p426 = pneg %p425
    $region30: #{_lambda_.6} parent=5 // pred_check_branch
      %428 = sbr.rel (%p426) target = $region32
    $region31: #{_lambda_.6} parent=5 // pred_region
      %s429 = ssub.s32 %s7, 2
      // Predicated region
      $region33: #{_lambda_.6} parent=31 // pred_check
        %p430 = pneg %p62
      $region34: #{_lambda_.6} parent=31 // pred_check_branch
        %432 = sbr.rel (%p430) target = $region36
      $region35: #{_lambda_.6} parent=31 // pred_region
        %p433 = scmp.lt.s32.totalorder %s13, 1
        %s434 = scalar_select %p433, %s13, 1
        %s435 = smul.addr %s434, 16
        %s436 = smul.addr %s435, 8
        %s437 = scalar_lea.vmem %s1, %s436
      $region36: #{_lambda_.6} parent=31 // pred_fallthru
        _
    $region32: #{_lambda_.6} parent=5 // pred_fallthru
      _
  $region6: #{_lambda_.6} parent=0 // loop_footer
    %s11 = sadd.s32 1, %s7
  $region7: #{_lambda_.6} parent=0 // loop_footer_branch
    %6 = sbr.rel target = $region3
  $region8: #{_lambda_.6} parent=0 // loop_exit
    _

// kernel: _lambda_.9
$region0: #{_lambda_.9}
  #allocation0 [shape = 'u32[]', space=smem, size = 0x4, offset = 0x4, fixed_abs, tag = 'smem constant byte address 0x4 - core index']
  #allocation1 [shape = 'u32[144,128]{1,0:T(1,128)}', space=vmem, size = 0x12000, scoped, tag = 'internal scratch']
  #allocation2 [shape = 'bf16[16,16,8]{2,1,0:T(8,128)(2,1)}', space=vmem, size = 0x10000, scoped, tag = 'scratch operand']
  %s0 = inlined_call_operand.vmem [shape: f32[2,16,16,8], index: 0, kind: input, shape index: {}]
  %s1 = inlined_call_operand.vmem [shape: bf16[1,8,3], index: 1, kind: input, shape index: {}]
  %s2 = inlined_call_operand.vmem [shape: f32[2,1,8], index: 2, kind: input, shape index: {}]
  %s3 = inlined_call_operand.vmem [shape: f32[2,1,3], index: 3, kind: input, shape index: {}]
  %s4 = inlined_call_operand.vmem [shape: f32[1,3], index: 4, kind: input, shape index: {}]
  %s5 = inlined_call_operand.vmem [shape: f32[2,16,16,3], index: 5, kind: output, shape index: {}]
  %s6 = sld [smem:[#allocation0]]
  $region57: #{_lambda_.9} parent=0
    _
  %s8 = ssub.s32 1, %s6
  %s9 = scalar_select 0, %s8, %s6
  loop: start=0, step=1, limit=6
  $region2: #{_lambda_.9} parent=0 // loop_pre_header
    _
  $region3: #{_lambda_.9} parent=0 // loop_header
    %s11 = sphi 0, %s15
    %p12 = scmp.ge.s32.totalorder %s11, 6
    %s18 = sphi 0, %s30
    %s19 = sphi 0, %s26
    %s20 = sphi 0, %s18
    %s21 = sphi 0, %s19
    %s22 = sphi 0, %s20
    %s23 = sphi 0, %s21
    %s33 = sphi 0, %s35
    %s36 = sphi 0, %s33
    %s37 = sphi 0, %s36
    %s53 = sphi 0, %s37
    %s57 = sphi 0, %s57
    %s59 = sphi 0, %s57
    %s60 = sphi 0, %s59
    %s74 = sphi 0, %s60
    %s80 = sphi 0, %s82
    %s83 = sphi 0, %s80
    %s84 = sphi 0, %s83
    %s100 = sphi 0, %s84
    %s106 = sphi 0, %s108
    %s109 = sphi 0, %s106
    %s110 = sphi 0, %s109
    %s126 = sphi 0, %s110
    %s130 = sphi 0, %s130
    %s132 = sphi 0, %s130
    %s133 = sphi 0, %s132
    %s147 = sphi 0, %s133
    %s155 = sphi 0, %s157
    %s158 = sphi 0, %s155
    %s159 = sphi 0, %s158
    %s175 = sphi 0, %s159
  $region4: #{_lambda_.9} parent=0 // loop_header_branch
    %14 = sbr.rel (%p12) target = $region8
  $region5: #{_lambda_.9} parent=0 // loop_body
    %s16 = ssub.s32 %s11, 1
    %s17 = ssub.s32 %s11, 2
    %s24 = sadd.s32 1, %s19
    %p25 = scmp.ge.s32.totalorder %s24, 2
    %s26 = scalar_select %p25, 0, %s24
    %s27 = sadd.s32 1, %s18
    %s28 = scalar_select %p25, %s27, %s18
    %p29 = scmp.ge.s32.totalorder %s28, 2
    %s30 = scalar_select %p29, 0, %s28
    %s31 = ssub.s32 %s18, %s30
    %p32 = scmp.eq.s32.totalorder %s31, 0
    %s34 = sadd.s32 %s33, 1
    %s35 = scalar_select %p32, %s33, %s34
    %p38 = pneg %p32
    %p39 = scmp.eq.s32.totalorder %s11, 3
    %p40 = por %p38, %p39
    %p41 = scmp.ne.s32.totalorder %s33, %s36
    %p42 = scmp.eq.s32.totalorder %s11, 0
    %p43 = por %p41, %p42
    %p44 = scmp.ne.s32.totalorder %s33, %s36
    %p45 = scmp.eq.s32.totalorder %s16, 3
    %p46 = por %p44, %p45
    %p47 = scmp.ne.s32.totalorder %s36, %s37
    %p48 = scmp.eq.s32.totalorder %s16, 0
    %p49 = por %p47, %p48
    %p50 = scmp.ne.s32.totalorder %s36, %s37
    %p51 = scmp.eq.s32.totalorder %s17, 3
    %p52 = por %p50, %p51
    %p54 = scmp.ne.s32.totalorder %s37, %s53
    %p55 = scmp.eq.s32.totalorder %s17, 0
    %p56 = por %p54, %p55
    %s58 = sadd.s32 %s57, 1
    %p61 = scmp.eq.s32.totalorder %s11, 3
    %p62 = scmp.ne.s32.totalorder %s57, %s59
    %p63 = scmp.eq.s32.totalorder %s11, 0
    %p64 = por %p62, %p63
    %p65 = scmp.ne.s32.totalorder %s57, %s59
    %p66 = scmp.eq.s32.totalorder %s16, 3
    %p67 = por %p65, %p66
    %p68 = scmp.ne.s32.totalorder %s59, %s60
    %p69 = scmp.eq.s32.totalorder %s16, 0
    %p70 = por %p68, %p69
    %p71 = scmp.ne.s32.totalorder %s59, %s60
    %p72 = scmp.eq.s32.totalorder %s17, 3
    %p73 = por %p71, %p72
    %p75 = scmp.ne.s32.totalorder %s60, %s74
    %p76 = scmp.eq.s32.totalorder %s17, 0
    %p77 = por %p75, %p76
    %s78 = ssub.s32 %s18, %s30
    %p79 = scmp.eq.s32.totalorder %s78, 0
    %s81 = sadd.s32 %s80, 1
    %s82 = scalar_select %p79, %s80, %s81
    %p85 = pneg %p79
    %p86 = scmp.eq.s32.totalorder %s11, 3
    %p87 = por %p85, %p86
    %p88 = scmp.ne.s32.totalorder %s80, %s83
    %p89 = scmp.eq.s32.totalorder %s11, 0
    %p90 = por %p88, %p89
    %p91 = scmp.ne.s32.totalorder %s80, %s83
    %p92 = scmp.eq.s32.totalorder %s16, 3
    %p93 = por %p91, %p92
    %p94 = scmp.ne.s32.totalorder %s83, %s84
    %p95 = scmp.eq.s32.totalorder %s16, 0
    %p96 = por %p94, %p95
    %p97 = scmp.ne.s32.totalorder %s83, %s84
    %p98 = scmp.eq.s32.totalorder %s17, 3
    %p99 = por %p97, %p98
    %p101 = scmp.ne.s32.totalorder %s84, %s100
    %p102 = scmp.eq.s32.totalorder %s17, 0
    %p103 = por %p101, %p102
    %s104 = ssub.s32 %s18, %s30
    %p105 = scmp.eq.s32.totalorder %s104, 0
    %s107 = sadd.s32 %s106, 1
    %s108 = scalar_select %p105, %s106, %s107
    %p111 = pneg %p105
    %p112 = scmp.eq.s32.totalorder %s11, 3
    %p113 = por %p111, %p112
    %p114 = scmp.ne.s32.totalorder %s106, %s109
    %p115 = scmp.eq.s32.totalorder %s11, 0
    %p116 = por %p114, %p115
    %p117 = scmp.ne.s32.totalorder %s106, %s109
    %p118 = scmp.eq.s32.totalorder %s16, 3
    %p119 = por %p117, %p118
    %p120 = scmp.ne.s32.totalorder %s109, %s110
    %p121 = scmp.eq.s32.totalorder %s16, 0
    %p122 = por %p120, %p121
    %p123 = scmp.ne.s32.totalorder %s109, %s110
    %p124 = scmp.eq.s32.totalorder %s17, 3
    %p125 = por %p123, %p124
    %p127 = scmp.ne.s32.totalorder %s110, %s126
    %p128 = scmp.eq.s32.totalorder %s17, 0
    %p129 = por %p127, %p128
    %s131 = sadd.s32 %s130, 1
    %p134 = scmp.eq.s32.totalorder %s11, 3
    %p135 = scmp.ne.s32.totalorder %s130, %s132
    %p136 = scmp.eq.s32.totalorder %s11, 0
    %p137 = por %p135, %p136
    %p138 = scmp.ne.s32.totalorder %s130, %s132
    %p139 = scmp.eq.s32.totalorder %s16, 3
    %p140 = por %p138, %p139
    %p141 = scmp.ne.s32.totalorder %s132, %s133
    %p142 = scmp.eq.s32.totalorder %s16, 0
    %p143 = por %p141, %p142
    %p144 = scmp.ne.s32.totalorder %s132, %s133
    %p145 = scmp.eq.s32.totalorder %s17, 3
    %p146 = por %p144, %p145
    %p148 = scmp.ne.s32.totalorder %s133, %s147
    %p149 = scmp.eq.s32.totalorder %s17, 0
    %p150 = por %p148, %p149
    %s151 = ssub.s32 %s18, %s30
    %s152 = ssub.s32 %s19, %s26
    %s153 = sor.u32 %s151, %s152
    %p154 = scmp.eq.s32.totalorder %s153, 0
    %s156 = sadd.s32 %s155, 1
    %s157 = scalar_select %p154, %s155, %s156
    %p160 = pneg %p154
    %p161 = scmp.eq.s32.totalorder %s11, 3
    %p162 = por %p160, %p161
    %p163 = scmp.ne.s32.totalorder %s155, %s158
    %p164 = scmp.eq.s32.totalorder %s11, 0
    %p165 = por %p163, %p164
    %p166 = scmp.ne.s32.totalorder %s155, %s158
    %p167 = scmp.eq.s32.totalorder %s16, 3
    %p168 = por %p166, %p167
    %p169 = scmp.ne.s32.totalorder %s158, %s159
    %p170 = scmp.eq.s32.totalorder %s16, 0
    %p171 = por %p169, %p170
    %p172 = scmp.ne.s32.totalorder %s158, %s159
    %p173 = scmp.eq.s32.totalorder %s17, 3
    %p174 = por %p172, %p173
    %p176 = scmp.ne.s32.totalorder %s159, %s175
    %p177 = scmp.eq.s32.totalorder %s17, 0
    %p178 = por %p176, %p177
    %p179 = scmp.le.s32.totalorder 1, %s11
    %p180 = scmp.lt.s32.totalorder %s11, 5
    %p181 = pnand %p179, %p180
    %p182 = pneg %p181
    // Predicated region
    $region9: #{_lambda_.9} parent=5 // pred_check
      _
    $region10: #{_lambda_.9} parent=5 // pred_check_branch
      %184 = sbr.rel (%p181) target = $region12
    $region11: #{_lambda_.9} parent=5 // pred_region
      %s185 = ssub.s32 %s11, 1
      // Predicated region
      $region13: #{_lambda_.9} parent=11 // pred_check
        %p186 = pneg %p70
      $region14: #{_lambda_.9} parent=11 // pred_check_branch
        %188 = sbr.rel (%p186) target = $region16
      $region15: #{_lambda_.9} parent=11 // pred_region
        _
      $region16: #{_lambda_.9} parent=11 // pred_fallthru
        _
      // Predicated region
      $region17: #{_lambda_.9} parent=11 // pred_check
        %p189 = pneg %p143
      $region18: #{_lambda_.9} parent=11 // pred_check_branch
        %191 = sbr.rel (%p189) target = $region20
      $region19: #{_lambda_.9} parent=11 // pred_region
        _
      $region20: #{_lambda_.9} parent=11 // pred_fallthru
        _
    $region12: #{_lambda_.9} parent=5 // pred_fallthru
      _
    %p192 = scmp.lt.s32.totalorder %s11, 4
    // Predicated region
    $region21: #{_lambda_.9} parent=5 // pred_check
      %p193 = pneg %p192
    $region22: #{_lambda_.9} parent=5 // pred_check_branch
      %195 = sbr.rel (%p193) target = $region24
    $region23: #{_lambda_.9} parent=5 // pred_region
      // Predicated region
      $region25: #{_lambda_.9} parent=23 // pred_check
        %p196 = pneg %p43
      $region26: #{_lambda_.9} parent=23 // pred_check_branch
        %198 = sbr.rel (%p196) target = $region28
      $region27: #{_lambda_.9} parent=23 // pred_region
        %p199 = scmp.lt.s32.totalorder %s18, 1
        %s200 = scalar_select %p199, %s18, 1
        %s201 = smul.addr %s200, 32
        %s202 = smul.addr %s201, 8
        %s203 = scalar_lea.vmem %s0, %s202
      $region28: #{_lambda_.9} parent=23 // pred_fallthru
        _
      // Predicated region
      $region29: #{_lambda_.9} parent=23 // pred_check
        %p204 = pneg %p90
      $region30: #{_lambda_.9} parent=23 // pred_check_branch
        %206 = sbr.rel (%p204) target = $region32
      $region31: #{_lambda_.9} parent=23 // pred_region
        %p207 = scmp.lt.s32.totalorder %s18, 1
        %s208 = scalar_select %p207, %s18, 1
        %s209 = scalar_lea.vmem %s2, %s208
      $region32: #{_lambda_.9} parent=23 // pred_fallthru
        _
      // Predicated region
      $region33: #{_lambda_.9} parent=23 // pred_check
        %p210 = pneg %p116
      $region34: #{_lambda_.9} parent=23 // pred_check_branch
        %212 = sbr.rel (%p210) target = $region36
      $region35: #{_lambda_.9} parent=23 // pred_region
        %p213 = scmp.lt.s32.totalorder %s18, 1
        %s214 = scalar_select %p213, %s18, 1
        %s215 = scalar_lea.vmem %s3, %s214
      $region36: #{_lambda_.9} parent=23 // pred_fallthru
        _
    $region24: #{_lambda_.9} parent=5 // pred_fallthru
      _
    %p216 = scmp.le.s32.totalorder 1, %s11
    %p217 = scmp.lt.s32.totalorder %s11, 5
    %p218 = pnand %p216, %p217
    %p219 = pneg %p218
    // Predicated region
    $region37: #{_lambda_.9} parent=5 // pred_check
      _
    $region38: #{_lambda_.9} parent=5 // pred_check_branch
      %221 = sbr.rel (%p218) target = $region40
    $region39: #{_lambda_.9} parent=5 // pred_region
      %s222 = ssub.s32 %s11, 1
      %p223 = scmp.lt.s32.totalorder %s20, 1
      %s224 = scalar_select %p223, %s20, 1
      %s225 = smul.addr %s224, 32
      %s226 = smul.addr %s225, 8
      %s227 = scalar_lea.vmem %s0, %s226
      %p228 = pneg %p49
      %p229 = pneg %p46
      %p230 = pneg %p70
      %p231 = pneg %p67
      %p232 = scmp.lt.s32.totalorder %s20, 1
      %s233 = scalar_select %p232, %s20, 1
      %s234 = scalar_lea.vmem %s2, %s233
      %p235 = pneg %p96
      %p236 = pneg %p93
      %p237 = scmp.lt.s32.totalorder %s20, 1
      %s238 = scalar_select %p237, %s20, 1
      %s239 = scalar_lea.vmem %s3, %s238
      %p240 = pneg %p122
      %p241 = pneg %p119
      %p242 = pneg %p143
      %p243 = pneg %p140
      %p244 = pneg %p171
      %p245 = pneg %p168
      %s246 = smul.u32 8, %s21
      %p247 = scmp.lt.s32.totalorder %s20, 1
      %s248 = scalar_select %p247, %s20, 1
      %p249 = scmp.lt.s32.totalorder %s246, 15
      %s250 = scalar_select %p249, %s246, 15
      %s251 = smul.addr %s250, 2
      %s252 = smul.addr %s248, 32
      %s253 = sadd.s32 %s251, %s252
      %s254 = smul.addr %s253, 8
      %s255 = scalar_lea.vmem %s5, %s254
      %p256 = scmp.lt.s32.totalorder %s20, 1
      %s257 = scalar_select %p256, %s20, 1
      %s258 = smul.addr %s257, 32
      %s259 = smul.addr %s258, 8
      %s260 = scalar_lea.vmem %s0, %s259
      %p261 = scmp.lt.s32.totalorder %s20, 1
      %s262 = scalar_select %p261, %s20, 1
      %s263 = scalar_lea.vmem %s2, %s262
      %p264 = scmp.lt.s32.totalorder %s20, 1
      %s265 = scalar_select %p264, %s20, 1
      %s266 = scalar_lea.vmem %s3, %s265
      %s267 = smul.u32 8, %s21
      %p268 = scmp.lt.s32.totalorder %s20, 1
      %s269 = scalar_select %p268, %s20, 1
      %p270 = scmp.lt.s32.totalorder %s267, 15
      %s271 = scalar_select %p270, %s267, 15
      %s272 = smul.addr %s271, 2
      %s273 = smul.addr %s269, 32
      %s274 = sadd.s32 %s272, %s273
      %s275 = smul.addr %s274, 8
      %s276 = scalar_lea.vmem %s5, %s275
      %s277 = smul.u32 8, %s21
      %p279 = scmp.eq.s32.totalorder %s21, 0
      // Predicated region
      $region41: #{_lambda_.9} parent=39 // pred_check
        %p280 = pneg %p279
      $region42: #{_lambda_.9} parent=39 // pred_check_branch
        %282 = sbr.rel (%p280) target = $region44
      $region43: #{_lambda_.9} parent=39 // pred_region
        %v283 = vld [vmem:[%s260] sm:$0xff]
        %v284 = vld [vmem:[%s260 + $0x8] sm:$0xff]
        %v285 = vld [vmem:[%s260 + $0x10] sm:$0xff]
        %v286 = vld [vmem:[%s260 + $0x18] sm:$0xff]
        %v287 = vld [vmem:[%s260 + $0x20] sm:$0xff]
        %v288 = vld [vmem:[%s260 + $0x28] sm:$0xff]
        %v289 = vld [vmem:[%s260 + $0x30] sm:$0xff]
        %v290 = vld [vmem:[%s260 + $0x38] sm:$0xff]
        %v291 = vld [vmem:[%s260 + $0x40] sm:$0xff]
        %v292 = vld [vmem:[%s260 + $0x48] sm:$0xff]
        %v293 = vld [vmem:[%s260 + $0x50] sm:$0xff]
        %v294 = vld [vmem:[%s260 + $0x58] sm:$0xff]
        %v295 = vld [vmem:[%s260 + $0x60] sm:$0xff]
        %v296 = vld [vmem:[%s260 + $0x68] sm:$0xff]
        %v297 = vld [vmem:[%s260 + $0x70] sm:$0xff]
        %v298 = vld [vmem:[%s260 + $0x78] sm:$0xff]
        %v299 = vld [vmem:[%s260 + $0x80] sm:$0xff]
        %v300 = vld [vmem:[%s260 + $0x88] sm:$0xff]
        %v301 = vld [vmem:[%s260 + $0x90] sm:$0xff]
        %v302 = vld [vmem:[%s260 + $0x98] sm:$0xff]
        %v303 = vld [vmem:[%s260 + $0xa0] sm:$0xff]
        %v304 = vld [vmem:[%s260 + $0xa8] sm:$0xff]
        %v305 = vld [vmem:[%s260 + $0xb0] sm:$0xff]
        %v306 = vld [vmem:[%s260 + $0xb8] sm:$0xff]
        %v307 = vld [vmem:[%s260 + $0xc0] sm:$0xff]
        %v308 = vld [vmem:[%s260 + $0xc8] sm:$0xff]
        %v309 = vld [vmem:[%s260 + $0xd0] sm:$0xff]
        %v310 = vld [vmem:[%s260 + $0xd8] sm:$0xff]
        %v311 = vld [vmem:[%s260 + $0xe0] sm:$0xff]
        %v312 = vld [vmem:[%s260 + $0xe8] sm:$0xff]
        %v313 = vld [vmem:[%s260 + $0xf0] sm:$0xff]
        %v314 = vld [vmem:[%s260 + $0xf8] sm:$0xff]
        %v315 = vld [vmem:[%s263] sm:$0x1]
        %v317 = vlaneseq
        %v318 = vshrl.u32 %v317, 7
        %v319 = vsub.s32 0, %v318
        %v320 = vrot.slane %v315, %v319
        %v322 = vmul.f32 %v283, %v320
        %v323 = vmul.f32 %v284, %v320
        %v324 = vmul.f32 %v285, %v320
        %v325 = vmul.f32 %v286, %v320
        %v326 = vmul.f32 %v287, %v320
        %v327 = vmul.f32 %v288, %v320
        %v328 = vmul.f32 %v289, %v320
        %v329 = vmul.f32 %v290, %v320
        %v330 = vmul.f32 %v291, %v320
        %v331 = vmul.f32 %v292, %v320
        %v332 = vmul.f32 %v293, %v320
        %v333 = vmul.f32 %v294, %v320
        %v334 = vmul.f32 %v295, %v320
        %v335 = vmul.f32 %v296, %v320
        %v336 = vmul.f32 %v297, %v320
        %v337 = vmul.f32 %v298, %v320
        %v338 = vmul.f32 %v299, %v320
        %v339 = vmul.f32 %v300, %v320
        %v340 = vmul.f32 %v301, %v320
        %v341 = vmul.f32 %v302, %v320
        %v342 = vmul.f32 %v303, %v320
        %v343 = vmul.f32 %v304, %v320
        %v344 = vmul.f32 %v305, %v320
        %v345 = vmul.f32 %v306, %v320
        %v346 = vmul.f32 %v307, %v320
        %v347 = vmul.f32 %v308, %v320
        %v348 = vmul.f32 %v309, %v320
        %v349 = vmul.f32 %v310, %v320
        %v350 = vmul.f32 %v311, %v320
        %v351 = vmul.f32 %v312, %v320
        %v352 = vmul.f32 %v313, %v320
        %v353 = vmul.f32 %v314, %v320
        %v354 = vpack.c.bf16 %v323, %v322
        %v355 = vpack.c.bf16 %v325, %v324
        %v356 = vpack.c.bf16 %v327, %v326
        %v357 = vpack.c.bf16 %v329, %v328
        %v358 = vpack.c.bf16 %v331, %v330
        %v359 = vpack.c.bf16 %v333, %v332
        %v360 = vpack.c.bf16 %v335, %v334
        %v361 = vpack.c.bf16 %v337, %v336
        %v362 = vpack.c.bf16 %v339, %v338
        %v363 = vpack.c.bf16 %v341, %v340
        %v364 = vpack.c.bf16 %v343, %v342
        %v365 = vpack.c.bf16 %v345, %v344
        %v366 = vpack.c.bf16 %v347, %v346
        %v367 = vpack.c.bf16 %v349, %v348
        %v368 = vpack.c.bf16 %v351, %v350
        %v369 = vpack.c.bf16 %v353, %v352
        %v386 = vunpack.c.l.b16 %v354
        %v387 = vunpack.c.h.b16 %v354
        %v388 = vunpack.c.l.b16 %v355
        %v389 = vunpack.c.h.b16 %v355
        %v390 = vunpack.c.l.b16 %v356
        %v391 = vunpack.c.h.b16 %v356
        %v392 = vunpack.c.l.b16 %v357
        %v393 = vunpack.c.h.b16 %v357
        %v394 = vunpack.c.l.b16 %v358
        %v395 = vunpack.c.h.b16 %v358
        %v396 = vunpack.c.l.b16 %v359
        %v397 = vunpack.c.h.b16 %v359
        %v398 = vunpack.c.l.b16 %v360
        %v399 = vunpack.c.h.b16 %v360
        %v400 = vunpack.c.l.b16 %v361
        %v401 = vunpack.c.h.b16 %v361
        %v402 = vunpack.c.l.b16 %v362
        %v403 = vunpack.c.h.b16 %v362
        %v404 = vunpack.c.l.b16 %v363
        %v405 = vunpack.c.h.b16 %v363
        %v406 = vunpack.c.l.b16 %v364
        %v407 = vunpack.c.h.b16 %v364
        %v408 = vunpack.c.l.b16 %v365
        %v409 = vunpack.c.h.b16 %v365
        %v410 = vunpack.c.l.b16 %v366
        %v411 = vunpack.c.h.b16 %v366
        %v412 = vunpack.c.l.b16 %v367
        %v413 = vunpack.c.h.b16 %v367
        %v414 = vunpack.c.l.b16 %v368
        %v415 = vunpack.c.h.b16 %v368
        %v416 = vunpack.c.l.b16 %v369
        %v417 = vunpack.c.h.b16 %v369
        %v418 = vpack.c.b16 %v386, %v386
        %v419 = vpack.c.b16 %v387, %v387
        %v420 = vpack.c.b16 %v388, %v388
        %v421 = vpack.c.b16 %v389, %v389
        %v422 = vpack.c.b16 %v390, %v390
        %v423 = vpack.c.b16 %v391, %v391
        %v424 = vpack.c.b16 %v392, %v392
        %v425 = vpack.c.b16 %v393, %v393
        %v426 = vpack.c.b16 %v394, %v394
        %v427 = vpack.c.b16 %v395, %v395
        %v428 = vpack.c.b16 %v396, %v396
        %v429 = vpack.c.b16 %v397, %v397
        %v430 = vpack.c.b16 %v398, %v398
        %v431 = vpack.c.b16 %v399, %v399
        %v432 = vpack.c.b16 %v400, %v400
        %v433 = vpack.c.b16 %v401, %v401
        %v434 = vpack.c.b16 %v402, %v402
        %v435 = vpack.c.b16 %v403, %v403
        %v436 = vpack.c.b16 %v404, %v404
        %v437 = vpack.c.b16 %v405, %v405
        %v438 = vpack.c.b16 %v406, %v406
        %v439 = vpack.c.b16 %v407, %v407
        %v440 = vpack.c.b16 %v408, %v408
        %v441 = vpack.c.b16 %v409, %v409
        %v442 = vpack.c.b16 %v410, %v410
        %v443 = vpack.c.b16 %v411, %v411
        %v444 = vpack.c.b16 %v412, %v412
        %v445 = vpack.c.b16 %v413, %v413
        %v446 = vpack.c.b16 %v414, %v414
        %v447 = vpack.c.b16 %v415, %v415
        %v448 = vpack.c.b16 %v416, %v416
        %v449 = vpack.c.b16 %v417, %v417
        %vm482 = vcmask 60416
        %483 = vst.msk [vmem:[#allocation2] sm:$0xf] %vm482, %v418
        %484 = vst.msk [vmem:[#allocation2 + $0x4] sm:$0xf] %vm482, %v419
        %485 = vst.msk [vmem:[#allocation2 + $0x8] sm:$0xf] %vm482, %v420
        %486 = vst.msk [vmem:[#allocation2 + $0xc] sm:$0xf] %vm482, %v421
        %487 = vst.msk [vmem:[#allocation2 + $0x10] sm:$0xf] %vm482, %v422
        %488 = vst.msk [vmem:[#allocation2 + $0x14] sm:$0xf] %vm482, %v423
        %489 = vst.msk [vmem:[#allocation2 + $0x18] sm:$0xf] %vm482, %v424
        %490 = vst.msk [vmem:[#allocation2 + $0x1c] sm:$0xf] %vm482, %v425
        %491 = vst.msk [vmem:[#allocation2 + $0x20] sm:$0xf] %vm482, %v426
        %492 = vst.msk [vmem:[#allocation2 + $0x24] sm:$0xf] %vm482, %v427
        %493 = vst.msk [vmem:[#allocation2 + $0x28] sm:$0xf] %vm482, %v428
        %494 = vst.msk [vmem:[#allocation2 + $0x2c] sm:$0xf] %vm482, %v429
        %495 = vst.msk [vmem:[#allocation2 + $0x30] sm:$0xf] %vm482, %v430
        %496 = vst.msk [vmem:[#allocation2 + $0x34] sm:$0xf] %vm482, %v431
        %497 = vst.msk [vmem:[#allocation2 + $0x38] sm:$0xf] %vm482, %v432
        %498 = vst.msk [vmem:[#allocation2 + $0x3c] sm:$0xf] %vm482, %v433
        %499 = vst.msk [vmem:[#allocation2 + $0x40] sm:$0xf] %vm482, %v434
        %500 = vst.msk [vmem:[#allocation2 + $0x44] sm:$0xf] %vm482, %v435
        %501 = vst.msk [vmem:[#allocation2 + $0x48] sm:$0xf] %vm482, %v436
        %502 = vst.msk [vmem:[#allocation2 + $0x4c] sm:$0xf] %vm482, %v437
        %503 = vst.msk [vmem:[#allocation2 + $0x50] sm:$0xf] %vm482, %v438
        %504 = vst.msk [vmem:[#allocation2 + $0x54] sm:$0xf] %vm482, %v439
        %505 = vst.msk [vmem:[#allocation2 + $0x58] sm:$0xf] %vm482, %v440
        %506 = vst.msk [vmem:[#allocation2 + $0x5c] sm:$0xf] %vm482, %v441
        %507 = vst.msk [vmem:[#allocation2 + $0x60] sm:$0xf] %vm482, %v442
        %508 = vst.msk [vmem:[#allocation2 + $0x64] sm:$0xf] %vm482, %v443
        %509 = vst.msk [vmem:[#allocation2 + $0x68] sm:$0xf] %vm482, %v444
        %510 = vst.msk [vmem:[#allocation2 + $0x6c] sm:$0xf] %vm482, %v445
        %511 = vst.msk [vmem:[#allocation2 + $0x70] sm:$0xf] %vm482, %v446
        %512 = vst.msk [vmem:[#allocation2 + $0x74] sm:$0xf] %vm482, %v447
        %513 = vst.msk [vmem:[#allocation2 + $0x78] sm:$0xf] %vm482, %v448
        %514 = vst.msk [vmem:[#allocation2 + $0x7c] sm:$0xf] %vm482, %v449
      $region44: #{_lambda_.9} parent=39 // pred_fallthru
        _
      %s515 = smul.u32 %s21, 8
      %s516 = smul.u32 %s515, 2
      %s517 = smul.addr %s516, 4
      %s518 = scalar_lea.vmem [#allocation2], %s517
      %v519 = vld [vmem:[%s518] sm:$0xf]
      %v520 = vld [vmem:[%s518 + $0x4] sm:$0xf]
      %v521 = vld [vmem:[%s518 + $0x8] sm:$0xf]
      %v522 = vld [vmem:[%s518 + $0xc] sm:$0xf]
      %v523 = vld [vmem:[%s518 + $0x10] sm:$0xf]
      %v524 = vld [vmem:[%s518 + $0x14] sm:$0xf]
      %v525 = vld [vmem:[%s518 + $0x18] sm:$0xf]
      %v526 = vld [vmem:[%s518 + $0x1c] sm:$0xf]
      %v527 = vld [vmem:[%s518 + $0x20] sm:$0xf]
      %v528 = vld [vmem:[%s518 + $0x24] sm:$0xf]
      %v529 = vld [vmem:[%s518 + $0x28] sm:$0xf]
      %v530 = vld [vmem:[%s518 + $0x2c] sm:$0xf]
      %v531 = vld [vmem:[%s518 + $0x30] sm:$0xf]
      %v532 = vld [vmem:[%s518 + $0x34] sm:$0xf]
      %v533 = vld [vmem:[%s518 + $0x38] sm:$0xf]
      %v534 = vld [vmem:[%s518 + $0x3c] sm:$0xf]
      %v535 = vld [vmem:[%s1] sm:$0xf]
      %v552 = vunpack.c.l.b16 %v519
      %v553 = vunpack.c.l.b16 %v520
      %v554 = vunpack.c.l.b16 %v521
      %v555 = vunpack.c.l.b16 %v522
      %v556 = vunpack.c.l.b16 %v523
      %v557 = vunpack.c.l.b16 %v524
      %v558 = vunpack.c.l.b16 %v525
      %v559 = vunpack.c.l.b16 %v526
      %v560 = vunpack.c.l.b16 %v527
      %v561 = vunpack.c.l.b16 %v528
      %v562 = vunpack.c.l.b16 %v529
      %v563 = vunpack.c.l.b16 %v530
      %v564 = vunpack.c.l.b16 %v531
      %v565 = vunpack.c.l.b16 %v532
      %v566 = vunpack.c.l.b16 %v533
      %v567 = vunpack.c.l.b16 %v534
      %v568 = vpack.c.b16 %v553, %v552
      %v569 = vpack.c.b16 %v555, %v554
      %v570 = vpack.c.b16 %v557, %v556
      %v571 = vpack.c.b16 %v559, %v558
      %v572 = vpack.c.b16 %v561, %v560
      %v573 = vpack.c.b16 %v563, %v562
      %v574 = vpack.c.b16 %v565, %v564
      %v575 = vpack.c.b16 %v567, %v566
      %vm576 = vcmask 64512
      %v578 = vsel %vm576, %v568, 0
      %v581 = vsel %vm576, %v569, 0
      %v584 = vsel %vm576, %v570, 0
      %v587 = vsel %vm576, %v571, 0
      %v590 = vsel %vm576, %v572, 0
      %v593 = vsel %vm576, %v573, 0
      %v596 = vsel %vm576, %v574, 0
      %v599 = vsel %vm576, %v575, 0
      %vm601 = vcmask 1043456
      %v603 = vsel %vm601, %v535, 0
      %605 = vmatprep.subr.bf16.mxu0 0
      %606 = vmatpush1.bf16.msra.mxu0 0
      %607 = vmatprep.subr.bf16.mxu0 0
      %608 = vmatpush1.bf16.msra.mxu0 0
      %609 = vmatprep.subr.bf16.mxu0 0
      %610 = vmatpush1.bf16.msra.mxu0 0
      %611 = vmatprep.subr.bf16.mxu0 0
      %612 = vmatpush1.bf16.msra.mxu0 0
      %613 = vmatprep.subr.bf16.mxu0 0
      %614 = vmatpush1.bf16.msra.mxu0 0
      %615 = vmatprep.subr.bf16.mxu0 0
      %616 = vmatpush1.bf16.msra.mxu0 0
      %617 = vmatprep.subr.bf16.mxu0 0
      %618 = vmatpush1.bf16.msra.mxu0 0
      %619 = vmatprep.subr.bf16.mxu0 0
      %620 = vmatpush1.bf16.msra.mxu0 %v603
      %621 = vmatprep.subr.bf16.mxu0 0
      %622 = vmatpush2.bf16.msra.mxu0 0
      %623 = vmatprep.subr.bf16.mxu0 0
      %624 = vmatpush2.bf16.msra.mxu0 0
      %625 = vmatprep.subr.bf16.mxu0 0
      %626 = vmatpush2.bf16.msra.mxu0 0
      %627 = vmatprep.subr.bf16.mxu0 0
      %628 = vmatpush2.bf16.msra.mxu0 0
      %629 = vmatprep.subr.bf16.mxu0 0
      %630 = vmatpush2.bf16.msra.mxu0 0
      %631 = vmatprep.subr.bf16.mxu0 0
      %632 = vmatpush2.bf16.msra.mxu0 0
      %633 = vmatprep.subr.bf16.mxu0 0
      %634 = vmatpush2.bf16.msra.mxu0 0
      %635 = vmatprep.subr.bf16.mxu0 0
      %636 = vmatpush2.bf16.msra.mxu0 0
      %637 = vmatprep.mubr.bf16.mxu0 0
      %638 = vmatmul.mubr.bf16.gmra.mxu0 %v578
      %v639 = vpop.f32.mrf.mxu0
      %v640 = vadd.f32 0.0, %v639
      %v641 = vpop.f32.mrf.mxu0
      %v642 = vpop.f32.mrf.mxu0
      %v643 = vadd.f32 0.0, %v642
      %v644 = vpop.f32.mrf.mxu0
      %645 = vmatprep.mubr.bf16.mxu0 0
      %646 = vmatmul.mubr.bf16.gmra.mxu0 %v581
      %v647 = vpop.f32.mrf.mxu0
      %v648 = vadd.f32 0.0, %v647
      %v649 = vpop.f32.mrf.mxu0
      %v650 = vpop.f32.mrf.mxu0
      %v651 = vadd.f32 0.0, %v650
      %v652 = vpop.f32.mrf.mxu0
      %653 = vmatprep.mubr.bf16.mxu0 0
      %654 = vmatmul.mubr.bf16.gmra.mxu0 %v584
      %v655 = vpop.f32.mrf.mxu0
      %v656 = vadd.f32 0.0, %v655
      %v657 = vpop.f32.mrf.mxu0
      %v658 = vpop.f32.mrf.mxu0
      %v659 = vadd.f32 0.0, %v658
      %v660 = vpop.f32.mrf.mxu0
      %661 = vmatprep.mubr.bf16.mxu0 0
      %662 = vmatmul.mubr.bf16.gmra.mxu0 %v587
      %v663 = vpop.f32.mrf.mxu0
      %v664 = vadd.f32 0.0, %v663
      %v665 = vpop.f32.mrf.mxu0
      %v666 = vpop.f32.mrf.mxu0
      %v667 = vadd.f32 0.0, %v666
      %v668 = vpop.f32.mrf.mxu0
      %669 = vmatprep.mubr.bf16.mxu0 0
      %670 = vmatmul.mubr.bf16.gmra.mxu0 %v590
      %v671 = vpop.f32.mrf.mxu0
      %v672 = vadd.f32 0.0, %v671
      %v673 = vpop.f32.mrf.mxu0
      %v674 = vpop.f32.mrf.mxu0
      %v675 = vadd.f32 0.0, %v674
      %v676 = vpop.f32.mrf.mxu0
      %677 = vmatprep.mubr.bf16.mxu0 0
      %678 = vmatmul.mubr.bf16.gmra.mxu0 %v593
      %v679 = vpop.f32.mrf.mxu0
      %v680 = vadd.f32 0.0, %v679
      %v681 = vpop.f32.mrf.mxu0
      %v682 = vpop.f32.mrf.mxu0
      %v683 = vadd.f32 0.0, %v682
      %v684 = vpop.f32.mrf.mxu0
      %685 = vmatprep.mubr.bf16.mxu0 0
      %686 = vmatmul.mubr.bf16.gmra.mxu0 %v596
      %v687 = vpop.f32.mrf.mxu0
      %v688 = vadd.f32 0.0, %v687
      %v689 = vpop.f32.mrf.mxu0
      %v690 = vpop.f32.mrf.mxu0
      %v691 = vadd.f32 0.0, %v690
      %v692 = vpop.f32.mrf.mxu0
      %693 = vmatprep.mubr.bf16.mxu0 0
      %694 = vmatmul.mubr.bf16.gmra.mxu0 %v599
      %v695 = vpop.f32.mrf.mxu0
      %v696 = vadd.f32 0.0, %v695
      %v697 = vpop.f32.mrf.mxu0
      %v698 = vpop.f32.mrf.mxu0
      %v699 = vadd.f32 0.0, %v698
      %v700 = vpop.f32.mrf.mxu0
      %701 = vdwg.mxu0
      %v702 = vld [vmem:[%s266] sm:$0x1]
      %v704 = vlaneseq
      %v705 = vshrl.u32 %v704, 7
      %v706 = vsub.s32 0, %v705
      %v707 = vrot.slane %v702, %v706
      %v709 = vmul.f32 %v640, %v707
      %v710 = vmul.f32 %v643, %v707
      %v711 = vmul.f32 %v648, %v707
      %v712 = vmul.f32 %v651, %v707
      %v713 = vmul.f32 %v656, %v707
      %v714 = vmul.f32 %v659, %v707
      %v715 = vmul.f32 %v664, %v707
      %v716 = vmul.f32 %v667, %v707
      %v717 = vmul.f32 %v672, %v707
      %v718 = vmul.f32 %v675, %v707
      %v719 = vmul.f32 %v680, %v707
      %v720 = vmul.f32 %v683, %v707
      %v721 = vmul.f32 %v688, %v707
      %v722 = vmul.f32 %v691, %v707
      %v723 = vmul.f32 %v696, %v707
      %v724 = vmul.f32 %v699, %v707
      %v725 = vld [vmem:[%s4] sm:$0x1]
      %v727 = vlaneseq
      %v728 = vshrl.u32 %v727, 7
      %v729 = vsub.s32 0, %v728
      %v730 = vrot.slane %v725, %v729
      %v732 = vadd.f32 %v709, %v730
      %v733 = vadd.f32 %v710, %v730
      %v734 = vadd.f32 %v711, %v730
      %v735 = vadd.f32 %v712, %v730
      %v736 = vadd.f32 %v713, %v730
      %v737 = vadd.f32 %v714, %v730
      %v738 = vadd.f32 %v715, %v730
      %v739 = vadd.f32 %v716, %v730
      %v740 = vadd.f32 %v717, %v730
      %v741 = vadd.f32 %v718, %v730
      %v742 = vadd.f32 %v719, %v730
      %v743 = vadd.f32 %v720, %v730
      %v744 = vadd.f32 %v721, %v730
      %v745 = vadd.f32 %v722, %v730
      %v746 = vadd.f32 %v723, %v730
      %v747 = vadd.f32 %v724, %v730
      %vm748 = vcmask 23552
      %749 = vst.msk [vmem:[%s276] sm:$0xff] %vm748, %v732
      %750 = vst.msk [vmem:[%s276 + $0x8] sm:$0xff] %vm748, %v733
      %751 = vst.msk [vmem:[%s276 + $0x10] sm:$0xff] %vm748, %v734
      %752 = vst.msk [vmem:[%s276 + $0x18] sm:$0xff] %vm748, %v735
      %753 = vst.msk [vmem:[%s276 + $0x20] sm:$0xff] %vm748, %v736
      %754 = vst.msk [vmem:[%s276 + $0x28] sm:$0xff] %vm748, %v737
      %755 = vst.msk [vmem:[%s276 + $0x30] sm:$0xff] %vm748, %v738
      %756 = vst.msk [vmem:[%s276 + $0x38] sm:$0xff] %vm748, %v739
      %757 = vst.msk [vmem:[%s276 + $0x40] sm:$0xff] %vm748, %v740
      %758 = vst.msk [vmem:[%s276 + $0x48] sm:$0xff] %vm748, %v741
      %759 = vst.msk [vmem:[%s276 + $0x50] sm:$0xff] %vm748, %v742
      %760 = vst.msk [vmem:[%s276 + $0x58] sm:$0xff] %vm748, %v743
      %761 = vst.msk [vmem:[%s276 + $0x60] sm:$0xff] %vm748, %v744
      %762 = vst.msk [vmem:[%s276 + $0x68] sm:$0xff] %vm748, %v745
      %763 = vst.msk [vmem:[%s276 + $0x70] sm:$0xff] %vm748, %v746
      %764 = vst.msk [vmem:[%s276 + $0x78] sm:$0xff] %vm748, %v747
      %s765 = smul.u32 8, %s21
      %p766 = scmp.lt.s32.totalorder %s20, 1
      %s767 = scalar_select %p766, %s20, 1
      %p768 = scmp.lt.s32.totalorder %s765, 15
      %s769 = scalar_select %p768, %s765, 15
      %s770 = smul.addr %s769, 2
      %s771 = smul.addr %s767, 32
      %s772 = sadd.s32 %s770, %s771
      %s773 = smul.addr %s772, 8
      %s774 = scalar_lea.vmem %s5, %s773
      // Predicated region
      $region45: #{_lambda_.9} parent=39 // pred_check
        %p775 = pneg %p168
      $region46: #{_lambda_.9} parent=39 // pred_check_branch
        %777 = sbr.rel (%p775) target = $region48
      $region47: #{_lambda_.9} parent=39 // pred_region
        %s778 = smul.u32 8, %s21
      $region48: #{_lambda_.9} parent=39 // pred_fallthru
        _
    $region40: #{_lambda_.9} parent=5 // pred_fallthru
      _
    %p779 = scmp.le.s32.totalorder 2, %s11
    // Predicated region
    $region49: #{_lambda_.9} parent=5 // pred_check
      %p780 = pneg %p779
    $region50: #{_lambda_.9} parent=5 // pred_check_branch
      %782 = sbr.rel (%p780) target = $region52
    $region51: #{_lambda_.9} parent=5 // pred_region
      %s783 = ssub.s32 %s11, 2
      // Predicated region
      $region53: #{_lambda_.9} parent=51 // pred_check
        %p784 = pneg %p174
      $region54: #{_lambda_.9} parent=51 // pred_check_branch
        %786 = sbr.rel (%p784) target = $region56
      $region55: #{_lambda_.9} parent=51 // pred_region
        %s787 = smul.u32 8, %s23
        %p788 = scmp.lt.s32.totalorder %s22, 1
        %s789 = scalar_select %p788, %s22, 1
        %p790 = scmp.lt.s32.totalorder %s787, 15
        %s791 = scalar_select %p790, %s787, 15
        %s792 = smul.addr %s791, 2
        %s793 = smul.addr %s789, 32
        %s794 = sadd.s32 %s792, %s793
        %s795 = smul.addr %s794, 8
        %s796 = scalar_lea.vmem %s5, %s795
      $region56: #{_lambda_.9} parent=51 // pred_fallthru
        _
    $region52: #{_lambda_.9} parent=5 // pred_fallthru
      _
  $region6: #{_lambda_.9} parent=0 // loop_footer
    %s15 = sadd.s32 1, %s11
  $region7: #{_lambda_.9} parent=0 // loop_footer_branch
    %10 = sbr.rel target = $region3
  $region8: #{_lambda_.9} parent=0 // loop_exit
    _

// kernel: _lambda_.5
$region0: #{_lambda_.5}
  #allocation0 [shape = 'u32[]', space=smem, size = 0x4, offset = 0x4, fixed_abs, tag = 'smem constant byte address 0x4 - core index']
  #allocation1 [shape = 'u32[144,128]{1,0:T(1,128)}', space=vmem, size = 0x12000, scoped, tag = 'internal scratch']
  #allocation2 [shape = 'bf16[10,10,4]{2,1,0:T(8,128)(2,1)}', space=vmem, size = 0xa000, scoped, tag = 'scratch operand']
  %s0 = inlined_call_operand.vmem [shape: f32[2,8,8,4], index: 0, kind: input, shape index: {}]
  %s1 = inlined_call_operand.vmem [shape: bf16[9,4,8], index: 1, kind: input, shape index: {}]
  %s2 = inlined_call_operand.vmem [shape: f32[2,1,4], index: 2, kind: input, shape index: {}]
  %s3 = inlined_call_operand.vmem [shape: f32[2,1,8], index: 3, kind: input, shape index: {}]
  %s4 = inlined_call_operand.vmem [shape: f32[1,8], index: 4, kind: input, shape index: {}]
  %s5 = inlined_call_operand.vmem [shape: f32[2,8,8,8], index: 5, kind: output, shape index: {}]
  %s6 = sld [smem:[#allocation0]]
  $region57: #{_lambda_.5} parent=0
    _
  %s8 = ssub.s32 1, %s6
  %s9 = scalar_select 0, %s8, %s6
  loop: start=0, step=1, limit=4
  $region2: #{_lambda_.5} parent=0 // loop_pre_header
    _
  $region3: #{_lambda_.5} parent=0 // loop_header
    %s11 = sphi 0, %s15
    %p12 = scmp.ge.s32.totalorder %s11, 4
    %s18 = sphi 0, %s30
    %s19 = sphi 0, %s26
    %s20 = sphi 0, %s18
    %s21 = sphi 0, %s19
    %s22 = sphi 0, %s20
    %s23 = sphi 0, %s21
    %s33 = sphi 0, %s35
    %s36 = sphi 0, %s33
    %s37 = sphi 0, %s36
    %s53 = sphi 0, %s37
    %s57 = sphi 0, %s57
    %s59 = sphi 0, %s57
    %s60 = sphi 0, %s59
    %s74 = sphi 0, %s60
    %s80 = sphi 0, %s82
    %s83 = sphi 0, %s80
    %s84 = sphi 0, %s83
    %s100 = sphi 0, %s84
    %s106 = sphi 0, %s108
    %s109 = sphi 0, %s106
    %s110 = sphi 0, %s109
    %s126 = sphi 0, %s110
    %s130 = sphi 0, %s130
    %s132 = sphi 0, %s130
    %s133 = sphi 0, %s132
    %s147 = sphi 0, %s133
    %s155 = sphi 0, %s157
    %s158 = sphi 0, %s155
    %s159 = sphi 0, %s158
    %s175 = sphi 0, %s159
  $region4: #{_lambda_.5} parent=0 // loop_header_branch
    %14 = sbr.rel (%p12) target = $region8
  $region5: #{_lambda_.5} parent=0 // loop_body
    %s16 = ssub.s32 %s11, 1
    %s17 = ssub.s32 %s11, 2
    %s24 = sadd.s32 1, %s19
    %p25 = scmp.ge.s32.totalorder %s24, 1
    %s26 = scalar_select %p25, 0, %s24
    %s27 = sadd.s32 1, %s18
    %s28 = scalar_select %p25, %s27, %s18
    %p29 = scmp.ge.s32.totalorder %s28, 2
    %s30 = scalar_select %p29, 0, %s28
    %s31 = ssub.s32 %s18, %s30
    %p32 = scmp.eq.s32.totalorder %s31, 0
    %s34 = sadd.s32 %s33, 1
    %s35 = scalar_select %p32, %s33, %s34
    %p38 = pneg %p32
    %p39 = scmp.eq.s32.totalorder %s11, 1
    %p40 = por %p38, %p39
    %p41 = scmp.ne.s32.totalorder %s33, %s36
    %p42 = scmp.eq.s32.totalorder %s11, 0
    %p43 = por %p41, %p42
    %p44 = scmp.ne.s32.totalorder %s33, %s36
    %p45 = scmp.eq.s32.totalorder %s16, 1
    %p46 = por %p44, %p45
    %p47 = scmp.ne.s32.totalorder %s36, %s37
    %p48 = scmp.eq.s32.totalorder %s16, 0
    %p49 = por %p47, %p48
    %p50 = scmp.ne.s32.totalorder %s36, %s37
    %p51 = scmp.eq.s32.totalorder %s17, 1
    %p52 = por %p50, %p51
    %p54 = scmp.ne.s32.totalorder %s37, %s53
    %p55 = scmp.eq.s32.totalorder %s17, 0
    %p56 = por %p54, %p55
    %s58 = sadd.s32 %s57, 1
    %p61 = scmp.eq.s32.totalorder %s11, 1
    %p62 = scmp.ne.s32.totalorder %s57, %s59
    %p63 = scmp.eq.s32.totalorder %s11, 0
    %p64 = por %p62, %p63
    %p65 = scmp.ne.s32.totalorder %s57, %s59
    %p66 = scmp.eq.s32.totalorder %s16, 1
    %p67 = por %p65, %p66
    %p68 = scmp.ne.s32.totalorder %s59, %s60
    %p69 = scmp.eq.s32.totalorder %s16, 0
    %p70 = por %p68, %p69
    %p71 = scmp.ne.s32.totalorder %s59, %s60
    %p72 = scmp.eq.s32.totalorder %s17, 1
    %p73 = por %p71, %p72
    %p75 = scmp.ne.s32.totalorder %s60, %s74
    %p76 = scmp.eq.s32.totalorder %s17, 0
    %p77 = por %p75, %p76
    %s78 = ssub.s32 %s18, %s30
    %p79 = scmp.eq.s32.totalorder %s78, 0
    %s81 = sadd.s32 %s80, 1
    %s82 = scalar_select %p79, %s80, %s81
    %p85 = pneg %p79
    %p86 = scmp.eq.s32.totalorder %s11, 1
    %p87 = por %p85, %p86
    %p88 = scmp.ne.s32.totalorder %s80, %s83
    %p89 = scmp.eq.s32.totalorder %s11, 0
    %p90 = por %p88, %p89
    %p91 = scmp.ne.s32.totalorder %s80, %s83
    %p92 = scmp.eq.s32.totalorder %s16, 1
    %p93 = por %p91, %p92
    %p94 = scmp.ne.s32.totalorder %s83, %s84
    %p95 = scmp.eq.s32.totalorder %s16, 0
    %p96 = por %p94, %p95
    %p97 = scmp.ne.s32.totalorder %s83, %s84
    %p98 = scmp.eq.s32.totalorder %s17, 1
    %p99 = por %p97, %p98
    %p101 = scmp.ne.s32.totalorder %s84, %s100
    %p102 = scmp.eq.s32.totalorder %s17, 0
    %p103 = por %p101, %p102
    %s104 = ssub.s32 %s18, %s30
    %p105 = scmp.eq.s32.totalorder %s104, 0
    %s107 = sadd.s32 %s106, 1
    %s108 = scalar_select %p105, %s106, %s107
    %p111 = pneg %p105
    %p112 = scmp.eq.s32.totalorder %s11, 1
    %p113 = por %p111, %p112
    %p114 = scmp.ne.s32.totalorder %s106, %s109
    %p115 = scmp.eq.s32.totalorder %s11, 0
    %p116 = por %p114, %p115
    %p117 = scmp.ne.s32.totalorder %s106, %s109
    %p118 = scmp.eq.s32.totalorder %s16, 1
    %p119 = por %p117, %p118
    %p120 = scmp.ne.s32.totalorder %s109, %s110
    %p121 = scmp.eq.s32.totalorder %s16, 0
    %p122 = por %p120, %p121
    %p123 = scmp.ne.s32.totalorder %s109, %s110
    %p124 = scmp.eq.s32.totalorder %s17, 1
    %p125 = por %p123, %p124
    %p127 = scmp.ne.s32.totalorder %s110, %s126
    %p128 = scmp.eq.s32.totalorder %s17, 0
    %p129 = por %p127, %p128
    %s131 = sadd.s32 %s130, 1
    %p134 = scmp.eq.s32.totalorder %s11, 1
    %p135 = scmp.ne.s32.totalorder %s130, %s132
    %p136 = scmp.eq.s32.totalorder %s11, 0
    %p137 = por %p135, %p136
    %p138 = scmp.ne.s32.totalorder %s130, %s132
    %p139 = scmp.eq.s32.totalorder %s16, 1
    %p140 = por %p138, %p139
    %p141 = scmp.ne.s32.totalorder %s132, %s133
    %p142 = scmp.eq.s32.totalorder %s16, 0
    %p143 = por %p141, %p142
    %p144 = scmp.ne.s32.totalorder %s132, %s133
    %p145 = scmp.eq.s32.totalorder %s17, 1
    %p146 = por %p144, %p145
    %p148 = scmp.ne.s32.totalorder %s133, %s147
    %p149 = scmp.eq.s32.totalorder %s17, 0
    %p150 = por %p148, %p149
    %s151 = ssub.s32 %s18, %s30
    %s152 = ssub.s32 %s19, %s26
    %s153 = sor.u32 %s151, %s152
    %p154 = scmp.eq.s32.totalorder %s153, 0
    %s156 = sadd.s32 %s155, 1
    %s157 = scalar_select %p154, %s155, %s156
    %p160 = pneg %p154
    %p161 = scmp.eq.s32.totalorder %s11, 1
    %p162 = por %p160, %p161
    %p163 = scmp.ne.s32.totalorder %s155, %s158
    %p164 = scmp.eq.s32.totalorder %s11, 0
    %p165 = por %p163, %p164
    %p166 = scmp.ne.s32.totalorder %s155, %s158
    %p167 = scmp.eq.s32.totalorder %s16, 1
    %p168 = por %p166, %p167
    %p169 = scmp.ne.s32.totalorder %s158, %s159
    %p170 = scmp.eq.s32.totalorder %s16, 0
    %p171 = por %p169, %p170
    %p172 = scmp.ne.s32.totalorder %s158, %s159
    %p173 = scmp.eq.s32.totalorder %s17, 1
    %p174 = por %p172, %p173
    %p176 = scmp.ne.s32.totalorder %s159, %s175
    %p177 = scmp.eq.s32.totalorder %s17, 0
    %p178 = por %p176, %p177
    %p179 = scmp.le.s32.totalorder 1, %s11
    %p180 = scmp.lt.s32.totalorder %s11, 3
    %p181 = pnand %p179, %p180
    %p182 = pneg %p181
    // Predicated region
    $region9: #{_lambda_.5} parent=5 // pred_check
      _
    $region10: #{_lambda_.5} parent=5 // pred_check_branch
      %184 = sbr.rel (%p181) target = $region12
    $region11: #{_lambda_.5} parent=5 // pred_region
      %s185 = ssub.s32 %s11, 1
      // Predicated region
      $region13: #{_lambda_.5} parent=11 // pred_check
        %p186 = pneg %p70
      $region14: #{_lambda_.5} parent=11 // pred_check_branch
        %188 = sbr.rel (%p186) target = $region16
      $region15: #{_lambda_.5} parent=11 // pred_region
        _
      $region16: #{_lambda_.5} parent=11 // pred_fallthru
        _
      // Predicated region
      $region17: #{_lambda_.5} parent=11 // pred_check
        %p189 = pneg %p143
      $region18: #{_lambda_.5} parent=11 // pred_check_branch
        %191 = sbr.rel (%p189) target = $region20
      $region19: #{_lambda_.5} parent=11 // pred_region
        _
      $region20: #{_lambda_.5} parent=11 // pred_fallthru
        _
    $region12: #{_lambda_.5} parent=5 // pred_fallthru
      _
    %p192 = scmp.lt.s32.totalorder %s11, 2
    // Predicated region
    $region21: #{_lambda_.5} parent=5 // pred_check
      %p193 = pneg %p192
    $region22: #{_lambda_.5} parent=5 // pred_check_branch
      %195 = sbr.rel (%p193) target = $region24
    $region23: #{_lambda_.5} parent=5 // pred_region
      // Predicated region
      $region25: #{_lambda_.5} parent=23 // pred_check
        %p196 = pneg %p43
      $region26: #{_lambda_.5} parent=23 // pred_check_branch
        %198 = sbr.rel (%p196) target = $region28
      $region27: #{_lambda_.5} parent=23 // pred_region
        %p199 = scmp.lt.s32.totalorder %s18, 1
        %s200 = scalar_select %p199, %s18, 1
        %s201 = smul.addr %s200, 8
        %s202 = smul.addr %s201, 8
        %s203 = scalar_lea.vmem %s0, %s202
      $region28: #{_lambda_.5} parent=23 // pred_fallthru
        _
      // Predicated region
      $region29: #{_lambda_.5} parent=23 // pred_check
        %p204 = pneg %p90
      $region30: #{_lambda_.5} parent=23 // pred_check_branch
        %206 = sbr.rel (%p204) target = $region32
      $region31: #{_lambda_.5} parent=23 // pred_region
        %p207 = scmp.lt.s32.totalorder %s18, 1
        %s208 = scalar_select %p207, %s18, 1
        %s209 = scalar_lea.vmem %s2, %s208
      $region32: #{_lambda_.5} parent=23 // pred_fallthru
        _
      // Predicated region
      $region33: #{_lambda_.5} parent=23 // pred_check
        %p210 = pneg %p116
      $region34: #{_lambda_.5} parent=23 // pred_check_branch
        %212 = sbr.rel (%p210) target = $region36
      $region35: #{_lambda_.5} parent=23 // pred_region
        %p213 = scmp.lt.s32.totalorder %s18, 1
        %s214 = scalar_select %p213, %s18, 1
        %s215 = scalar_lea.vmem %s3, %s214
      $region36: #{_lambda_.5} parent=23 // pred_fallthru
        _
    $region24: #{_lambda_.5} parent=5 // pred_fallthru
      _
    %p216 = scmp.le.s32.totalorder 1, %s11
    %p217 = scmp.lt.s32.totalorder %s11, 3
    %p218 = pnand %p216, %p217
    %p219 = pneg %p218
    // Predicated region
    $region37: #{_lambda_.5} parent=5 // pred_check
      _
    $region38: #{_lambda_.5} parent=5 // pred_check_branch
      %221 = sbr.rel (%p218) target = $region40
    $region39: #{_lambda_.5} parent=5 // pred_region
      %s222 = ssub.s32 %s11, 1
      %p223 = scmp.lt.s32.totalorder %s20, 1
      %s224 = scalar_select %p223, %s20, 1
      %s225 = smul.addr %s224, 8
      %s226 = smul.addr %s225, 8
      %s227 = scalar_lea.vmem %s0, %s226
      %p228 = pneg %p49
      %p229 = pneg %p46
      %p230 = pneg %p70
      %p231 = pneg %p67
      %p232 = scmp.lt.s32.totalorder %s20, 1
      %s233 = scalar_select %p232, %s20, 1
      %s234 = scalar_lea.vmem %s2, %s233
      %p235 = pneg %p96
      %p236 = pneg %p93
      %p237 = scmp.lt.s32.totalorder %s20, 1
      %s238 = scalar_select %p237, %s20, 1
      %s239 = scalar_lea.vmem %s3, %s238
      %p240 = pneg %p122
      %p241 = pneg %p119
      %p242 = pneg %p143
      %p243 = pneg %p140
      %p244 = pneg %p171
      %p245 = pneg %p168
      %s246 = smul.u32 8, %s21
      %p247 = scmp.lt.s32.totalorder %s20, 1
      %s248 = scalar_select %p247, %s20, 1
      %p249 = scmp.lt.s32.totalorder %s246, 7
      %s250 = scalar_select %p249, %s246, 7
      %s251 = smul.addr %s248, 8
      %s252 = sadd.s32 %s250, %s251
      %s253 = smul.addr %s252, 8
      %s254 = scalar_lea.vmem %s5, %s253
      %p255 = scmp.lt.s32.totalorder %s20, 1
      %s256 = scalar_select %p255, %s20, 1
      %s257 = smul.addr %s256, 8
      %s258 = smul.addr %s257, 8
      %s259 = scalar_lea.vmem %s0, %s258
      %p260 = scmp.lt.s32.totalorder %s20, 1
      %s261 = scalar_select %p260, %s20, 1
      %s262 = scalar_lea.vmem %s2, %s261
      %p263 = scmp.lt.s32.totalorder %s20, 1
      %s264 = scalar_select %p263, %s20, 1
      %s265 = scalar_lea.vmem %s3, %s264
      %s266 = smul.u32 8, %s21
      %p267 = scmp.lt.s32.totalorder %s20, 1
      %s268 = scalar_select %p267, %s20, 1
      %p269 = scmp.lt.s32.totalorder %s266, 7
      %s270 = scalar_select %p269, %s266, 7
      %s271 = smul.addr %s268, 8
      %s272 = sadd.s32 %s270, %s271
      %s273 = smul.addr %s272, 8
      %s274 = scalar_lea.vmem %s5, %s273
      %s275 = smul.u32 8, %s21
      %p277 = scmp.eq.s32.totalorder %s21, 0
      // Predicated region
      $region41: #{_lambda_.5} parent=39 // pred_check
        %p278 = pneg %p277
      $region42: #{_lambda_.5} parent=39 // pred_check_branch
        %280 = sbr.rel (%p278) target = $region44
      $region43: #{_lambda_.5} parent=39 // pred_region
        %vm281 = vcmask 27648
        %282 = vst.msk [vmem:[#allocation2] sm:$0xf] %vm281, 0
        %vm283 = vcmask 24576
        %284 = vst.msk [vmem:[#allocation2 + $0x4] sm:$0x1] %vm283, 0
        %285 = vst.msk [vmem:[#allocation2 + $0x8] sm:$0xf] %vm281, 0
        %286 = vst.msk [vmem:[#allocation2 + $0xc] sm:$0x1] %vm283, 0
        %287 = vst.msk [vmem:[#allocation2 + $0x10] sm:$0xf] %vm281, 0
        %288 = vst.msk [vmem:[#allocation2 + $0x14] sm:$0x1] %vm283, 0
        %289 = vst.msk [vmem:[#allocation2 + $0x18] sm:$0xf] %vm281, 0
        %290 = vst.msk [vmem:[#allocation2 + $0x1c] sm:$0x1] %vm283, 0
        %291 = vst.msk [vmem:[#allocation2 + $0x20] sm:$0xf] %vm281, 0
        %292 = vst.msk [vmem:[#allocation2 + $0x24] sm:$0x1] %vm283, 0
        %293 = vst.msk [vmem:[#allocation2 + $0x28] sm:$0xf] %vm281, 0
        %294 = vst.msk [vmem:[#allocation2 + $0x2c] sm:$0x1] %vm283, 0
        %295 = vst.msk [vmem:[#allocation2 + $0x30] sm:$0xf] %vm281, 0
        %296 = vst.msk [vmem:[#allocation2 + $0x34] sm:$0x1] %vm283, 0
        %297 = vst.msk [vmem:[#allocation2 + $0x38] sm:$0xf] %vm281, 0
        %298 = vst.msk [vmem:[#allocation2 + $0x3c] sm:$0x1] %vm283, 0
        %299 = vst.msk [vmem:[#allocation2 + $0x40] sm:$0xf] %vm281, 0
        %300 = vst.msk [vmem:[#allocation2 + $0x44] sm:$0x1] %vm283, 0
        %301 = vst.msk [vmem:[#allocation2 + $0x48] sm:$0xf] %vm281, 0
        %302 = vst.msk [vmem:[#allocation2 + $0x4c] sm:$0x1] %vm283, 0
        %v303 = vld [vmem:[%s259] sm:$0xff]
        %v304 = vld [vmem:[%s259 + $0x8] sm:$0xff]
        %v305 = vld [vmem:[%s259 + $0x10] sm:$0xff]
        %v306 = vld [vmem:[%s259 + $0x18] sm:$0xff]
        %v307 = vld [vmem:[%s259 + $0x20] sm:$0xff]
        %v308 = vld [vmem:[%s259 + $0x28] sm:$0xff]
        %v309 = vld [vmem:[%s259 + $0x30] sm:$0xff]
        %v310 = vld [vmem:[%s259 + $0x38] sm:$0xff]
        %v311 = vld [vmem:[%s262] sm:$0x1]
        %v313 = vlaneseq
        %v314 = vshrl.u32 %v313, 7
        %v315 = vsub.s32 0, %v314
        %v316 = vrot.slane %v311, %v315
        %v318 = vmul.f32 %v303, %v316
        %v319 = vmul.f32 %v304, %v316
        %v320 = vmul.f32 %v305, %v316
        %v321 = vmul.f32 %v306, %v316
        %v322 = vmul.f32 %v307, %v316
        %v323 = vmul.f32 %v308, %v316
        %v324 = vmul.f32 %v309, %v316
        %v325 = vmul.f32 %v310, %v316
        %v326 = vpack.c.bf16 %v318, %v318
        %v327 = vpack.c.bf16 %v319, %v319
        %v328 = vpack.c.bf16 %v320, %v320
        %v329 = vpack.c.bf16 %v321, %v321
        %v330 = vpack.c.bf16 %v322, %v322
        %v331 = vpack.c.bf16 %v323, %v323
        %v332 = vpack.c.bf16 %v324, %v324
        %v333 = vpack.c.bf16 %v325, %v325
        %v342 = vunpack.c.l.b16 %v326
        %v343 = vunpack.c.l.b16 %v327
        %v344 = vunpack.c.l.b16 %v328
        %v345 = vunpack.c.l.b16 %v329
        %v346 = vunpack.c.l.b16 %v330
        %v347 = vunpack.c.l.b16 %v331
        %v348 = vunpack.c.l.b16 %v332
        %v349 = vunpack.c.l.b16 %v333
        %v350 = vpack.c.b16 %v342, %v342
        %v351 = vpack.c.b16 %v343, %v343
        %v352 = vpack.c.b16 %v344, %v344
        %v353 = vpack.c.b16 %v345, %v345
        %v354 = vpack.c.b16 %v346, %v346
        %v355 = vpack.c.b16 %v347, %v347
        %v356 = vpack.c.b16 %v348, %v348
        %v357 = vpack.c.b16 %v349, %v349
        %v359 = vshrl.u32 %v350, 16
        %v361 = vrot.slane %v359, 7
        %v362 = vshll.u32 %v350, 16
        %v364 = vor.u32 %v361, %v362
        %v365 = vrot.slane %v361, 4
        %v367 = vshrl.u32 %v351, 16
        %v369 = vrot.slane %v367, 7
        %v370 = vshll.u32 %v351, 16
        %v372 = vor.u32 %v369, %v370
        %v373 = vrot.slane %v369, 4
        %v375 = vshrl.u32 %v352, 16
        %v377 = vrot.slane %v375, 7
        %v378 = vshll.u32 %v352, 16
        %v380 = vor.u32 %v377, %v378
        %v381 = vrot.slane %v377, 4
        %v383 = vshrl.u32 %v353, 16
        %v385 = vrot.slane %v383, 7
        %v386 = vshll.u32 %v353, 16
        %v388 = vor.u32 %v385, %v386
        %v389 = vrot.slane %v385, 4
        %v391 = vshrl.u32 %v354, 16
        %v393 = vrot.slane %v391, 7
        %v394 = vshll.u32 %v354, 16
        %v396 = vor.u32 %v393, %v394
        %v397 = vrot.slane %v393, 4
        %v399 = vshrl.u32 %v355, 16
        %v401 = vrot.slane %v399, 7
        %v402 = vshll.u32 %v355, 16
        %v404 = vor.u32 %v401, %v402
        %v405 = vrot.slane %v401, 4
        %v407 = vshrl.u32 %v356, 16
        %v409 = vrot.slane %v407, 7
        %v410 = vshll.u32 %v356, 16
        %v412 = vor.u32 %v409, %v410
        %v413 = vrot.slane %v409, 4
        %v415 = vshrl.u32 %v357, 16
        %v417 = vrot.slane %v415, 7
        %v418 = vshll.u32 %v357, 16
        %v420 = vor.u32 %v417, %v418
        %v421 = vrot.slane %v417, 4
        %s438 = scalar_lea.vmem [#allocation2], 8
        %vm439 = vcmask 27648
        %vm440 = vsmask.f32 7938
        %vm441 = vmand %vm439, %vm440
        %v442 = vld [vmem:[%s438] sm:$0xf]
        %v443 = vsel %vm441, %v364, %v442
        %444 = vst [vmem:[%s438] sm:$0xf] %v443
        %vm445 = vcmask 24576
        %vm446 = vsmask.f32 256
        %vm447 = vmand %vm445, %vm446
        %v448 = vld [vmem:[%s438 + $0x4] sm:$0x1]
        %v449 = vsel %vm447, %v365, %v448
        %450 = vst [vmem:[%s438 + $0x4] sm:$0x1] %v449
        %v451 = vld [vmem:[%s438 + $0x8] sm:$0xf]
        %v452 = vsel %vm441, %v372, %v451
        %453 = vst [vmem:[%s438 + $0x8] sm:$0xf] %v452
        %v454 = vld [vmem:[%s438 + $0xc] sm:$0x1]
        %v455 = vsel %vm447, %v373, %v454
        %456 = vst [vmem:[%s438 + $0xc] sm:$0x1] %v455
        %v457 = vld [vmem:[%s438 + $0x10] sm:$0xf]
        %v458 = vsel %vm441, %v380, %v457
        %459 = vst [vmem:[%s438 + $0x10] sm:$0xf] %v458
        %v460 = vld [vmem:[%s438 + $0x14] sm:$0x1]
        %v461 = vsel %vm447, %v381, %v460
        %462 = vst [vmem:[%s438 + $0x14] sm:$0x1] %v461
        %v463 = vld [vmem:[%s438 + $0x18] sm:$0xf]
        %v464 = vsel %vm441, %v388, %v463
        %465 = vst [vmem:[%s438 + $0x18] sm:$0xf] %v464
        %v466 = vld [vmem:[%s438 + $0x1c] sm:$0x1]
        %v467 = vsel %vm447, %v389, %v466
        %468 = vst [vmem:[%s438 + $0x1c] sm:$0x1] %v467
        %v469 = vld [vmem:[%s438 + $0x20] sm:$0xf]
        %v470 = vsel %vm441, %v396, %v469
        %471 = vst [vmem:[%s438 + $0x20] sm:$0xf] %v470
        %v472 = vld [vmem:[%s438 + $0x24] sm:$0x1]
        %v473 = vsel %vm447, %v397, %v472
        %474 = vst [vmem:[%s438 + $0x24] sm:$0x1] %v473
        %v475 = vld [vmem:[%s438 + $0x28] sm:$0xf]
        %v476 = vsel %vm441, %v404, %v475
        %477 = vst [vmem:[%s438 + $0x28] sm:$0xf] %v476
        %v478 = vld [vmem:[%s438 + $0x2c] sm:$0x1]
        %v479 = vsel %vm447, %v405, %v478
        %480 = vst [vmem:[%s438 + $0x2c] sm:$0x1] %v479
        %v481 = vld [vmem:[%s438 + $0x30] sm:$0xf]
        %v482 = vsel %vm441, %v412, %v481
        %483 = vst [vmem:[%s438 + $0x30] sm:$0xf] %v482
        %v484 = vld [vmem:[%s438 + $0x34] sm:$0x1]
        %v485 = vsel %vm447, %v413, %v484
        %486 = vst [vmem:[%s438 + $0x34] sm:$0x1] %v485
        %v487 = vld [vmem:[%s438 + $0x38] sm:$0xf]
        %v488 = vsel %vm441, %v420, %v487
        %489 = vst [vmem:[%s438 + $0x38] sm:$0xf] %v488
        %v490 = vld [vmem:[%s438 + $0x3c] sm:$0x1]
        %v491 = vsel %vm447, %v421, %v490
        %492 = vst [vmem:[%s438 + $0x3c] sm:$0x1] %v491
      $region44: #{_lambda_.5} parent=39 // pred_fallthru
        _
      %s493 = smul.u32 %s21, 8
      %s494 = smul.u32 %s493, 2
      %s495 = smul.addr %s494, 4
      %s496 = scalar_lea.vmem [#allocation2], %s495
      %v497 = vld [vmem:[%s496] sm:$0xf]
      %v498 = vld [vmem:[%s496 + $0x8] sm:$0xf]
      %v499 = vld [vmem:[%s496 + $0x10] sm:$0xf]
      %v500 = vld [vmem:[%s496 + $0x18] sm:$0xf]
      %v501 = vld [vmem:[%s496 + $0x20] sm:$0xf]
      %v502 = vld [vmem:[%s496 + $0x28] sm:$0xf]
      %v503 = vld [vmem:[%s496 + $0x30] sm:$0xf]
      %v504 = vld [vmem:[%s496 + $0x38] sm:$0xf]
      %v505 = vld [vmem:[%s1] sm:$0x3]
      %v506 = vld [vmem:[%s496 + $0x4] sm:$0x1]
      %v507 = vld [vmem:[%s496 + $0xc] sm:$0x1]
      %v508 = vld [vmem:[%s496 + $0x14] sm:$0x1]
      %v509 = vld [vmem:[%s496 + $0x1c] sm:$0x1]
      %v510 = vld [vmem:[%s496 + $0x24] sm:$0x1]
      %v511 = vld [vmem:[%s496 + $0x2c] sm:$0x1]
      %v512 = vld [vmem:[%s496 + $0x34] sm:$0x1]
      %v513 = vld [vmem:[%s496 + $0x3c] sm:$0x1]
      %vm514 = vsmask.f32 3328
      %vm515 = vsmask.f32 7440
      %vm516 = vmor %vm514, %vm515
      %v518 = vshrl.u32 %v497, 16
      %v520 = vrot.slane %v518, 4
      %v521 = vshll.u32 %v497, 16
      %v523 = vrot.slane %v521, 5
      %v524 = vor.u32 %v520, %v523
      %v525 = vrot.slane %v524, 4
      %v527 = vshll.u32 %v506, 16
      %v529 = vrot.slane %v527, 5
      %v530 = vsel %vm516, %v525, %v529
      %v532 = vshrl.u32 %v498, 16
      %v534 = vrot.slane %v532, 4
      %v535 = vshll.u32 %v498, 16
      %v537 = vrot.slane %v535, 5
      %v538 = vor.u32 %v534, %v537
      %v539 = vrot.slane %v538, 4
      %v541 = vshll.u32 %v507, 16
      %v543 = vrot.slane %v541, 5
      %v544 = vsel %vm516, %v539, %v543
      %v546 = vshrl.u32 %v499, 16
      %v548 = vrot.slane %v546, 4
      %v549 = vshll.u32 %v499, 16
      %v551 = vrot.slane %v549, 5
      %v552 = vor.u32 %v548, %v551
      %v553 = vrot.slane %v552, 4
      %v555 = vshll.u32 %v508, 16
      %v557 = vrot.slane %v555, 5
      %v558 = vsel %vm516, %v553, %v557
      %v560 = vshrl.u32 %v500, 16
      %v562 = vrot.slane %v560, 4
      %v563 = vshll.u32 %v500, 16
      %v565 = vrot.slane %v563, 5
      %v566 = vor.u32 %v562, %v565
      %v567 = vrot.slane %v566, 4
      %v569 = vshll.u32 %v509, 16
      %v571 = vrot.slane %v569, 5
      %v572 = vsel %vm516, %v567, %v571
      %v574 = vshrl.u32 %v501, 16
      %v576 = vrot.slane %v574, 4
      %v577 = vshll.u32 %v501, 16
      %v579 = vrot.slane %v577, 5
      %v580 = vor.u32 %v576, %v579
      %v581 = vrot.slane %v580, 4
      %v583 = vshll.u32 %v510, 16
      %v585 = vrot.slane %v583, 5
      %v586 = vsel %vm516, %v581, %v585
      %v588 = vshrl.u32 %v502, 16
      %v590 = vrot.slane %v588, 4
      %v591 = vshll.u32 %v502, 16
      %v593 = vrot.slane %v591, 5
      %v594 = vor.u32 %v590, %v593
      %v595 = vrot.slane %v594, 4
      %v597 = vshll.u32 %v511, 16
      %v599 = vrot.slane %v597, 5
      %v600 = vsel %vm516, %v595, %v599
      %v602 = vshrl.u32 %v503, 16
      %v604 = vrot.slane %v602, 4
      %v605 = vshll.u32 %v503, 16
      %v607 = vrot.slane %v605, 5
      %v608 = vor.u32 %v604, %v607
      %v609 = vrot.slane %v608, 4
      %v611 = vshll.u32 %v512, 16
      %v613 = vrot.slane %v611, 5
      %v614 = vsel %vm516, %v609, %v613
      %v616 = vshrl.u32 %v504, 16
      %v618 = vrot.slane %v616, 4
      %v619 = vshll.u32 %v504, 16
      %v621 = vrot.slane %v619, 5
      %v622 = vor.u32 %v618, %v621
      %v623 = vrot.slane %v622, 4
      %v625 = vshll.u32 %v513, 16
      %v627 = vrot.slane %v625, 5
      %v628 = vsel %vm516, %v623, %v627
      %s629 = scalar_lea.vmem %s1, 2
      %v630 = vld [vmem:[%s629] sm:$0x3]
      %v631 = vunpack.c.l.b16 %v530
      %v632 = vunpack.c.l.b16 %v544
      %v633 = vunpack.c.l.b16 %v558
      %v634 = vunpack.c.l.b16 %v572
      %v635 = vunpack.c.l.b16 %v586
      %v636 = vunpack.c.l.b16 %v600
      %v637 = vunpack.c.l.b16 %v614
      %v638 = vunpack.c.l.b16 %v628
      %v639 = vpack.c.b16 %v632, %v631
      %v640 = vpack.c.b16 %v634, %v633
      %v641 = vpack.c.b16 %v636, %v635
      %v642 = vpack.c.b16 %v638, %v637
      %vm643 = vcmask 31744
      %v645 = vsel %vm643, %v639, 0
      %v648 = vsel %vm643, %v640, 0
      %v651 = vsel %vm643, %v641, 0
      %v654 = vsel %vm643, %v642, 0
      %vm656 = vcmask 1041408
      %v658 = vsel %vm656, %v630, 0
      %660 = vmatprep.subr.bf16.mxu0 0
      %661 = vmatpush1.bf16.msra.mxu0 0
      %662 = vmatprep.subr.bf16.mxu0 0
      %663 = vmatpush1.bf16.msra.mxu0 0
      %664 = vmatprep.subr.bf16.mxu0 0
      %665 = vmatpush1.bf16.msra.mxu0 0
      %666 = vmatprep.subr.bf16.mxu0 0
      %667 = vmatpush1.bf16.msra.mxu0 0
      %668 = vmatprep.subr.bf16.mxu0 0
      %669 = vmatpush1.bf16.msra.mxu0 0
      %670 = vmatprep.subr.bf16.mxu0 0
      %671 = vmatpush1.bf16.msra.mxu0 0
      %672 = vmatprep.subr.bf16.mxu0 0
      %673 = vmatpush1.bf16.msra.mxu0 0
      %674 = vmatprep.subr.bf16.mxu0 0
      %675 = vmatpush1.bf16.msra.mxu0 %v658
      %676 = vmatprep.subr.bf16.mxu0 0
      %677 = vmatpush2.bf16.msra.mxu0 0
      %678 = vmatprep.subr.bf16.mxu0 0
      %679 = vmatpush2.bf16.msra.mxu0 0
      %680 = vmatprep.subr.bf16.mxu0 0
      %681 = vmatpush2.bf16.msra.mxu0 0
      %682 = vmatprep.subr.bf16.mxu0 0
      %683 = vmatpush2.bf16.msra.mxu0 0
      %684 = vmatprep.subr.bf16.mxu0 0
      %685 = vmatpush2.bf16.msra.mxu0 0
      %686 = vmatprep.subr.bf16.mxu0 0
      %687 = vmatpush2.bf16.msra.mxu0 0
      %688 = vmatprep.subr.bf16.mxu0 0
      %689 = vmatpush2.bf16.msra.mxu0 0
      %690 = vmatprep.subr.bf16.mxu0 0
      %691 = vmatpush2.bf16.msra.mxu0 0
      %692 = vmatprep.mubr.bf16.mxu0 0
      %693 = vmatmul.mubr.bf16.gmra.mxu0 %v645
      %v694 = vpop.f32.mrf.mxu0
      %v695 = vadd.f32 0.0, %v694
      %v696 = vpop.f32.mrf.mxu0
      %v697 = vpop.f32.mrf.mxu0
      %v698 = vadd.f32 0.0, %v697
      %v699 = vpop.f32.mrf.mxu0
      %700 = vmatprep.mubr.bf16.mxu0 0
      %701 = vmatmul.mubr.bf16.gmra.mxu0 %v648
      %v702 = vpop.f32.mrf.mxu0
      %v703 = vadd.f32 0.0, %v702
      %v704 = vpop.f32.mrf.mxu0
      %v705 = vpop.f32.mrf.mxu0
      %v706 = vadd.f32 0.0, %v705
      %v707 = vpop.f32.mrf.mxu0
      %708 = vmatprep.mubr.bf16.mxu0 0
      %709 = vmatmul.mubr.bf16.gmra.mxu0 %v651
      %v710 = vpop.f32.mrf.mxu0
      %v711 = vadd.f32 0.0, %v710
      %v712 = vpop.f32.mrf.mxu0
      %v713 = vpop.f32.mrf.mxu0
      %v714 = vadd.f32 0.0, %v713
      %v715 = vpop.f32.mrf.mxu0
      %716 = vmatprep.mubr.bf16.mxu0 0
      %717 = vmatmul.mubr.bf16.gmra.mxu0 %v654
      %v718 = vpop.f32.mrf.mxu0
      %v719 = vadd.f32 0.0, %v718
      %v720 = vpop.f32.mrf.mxu0
      %v721 = vpop.f32.mrf.mxu0
      %v722 = vadd.f32 0.0, %v721
      %v723 = vpop.f32.mrf.mxu0
      %724 = vdwg.mxu0
      %v733 = vunpack.c.l.b16 %v497
      %v734 = vunpack.c.l.b16 %v498
      %v735 = vunpack.c.l.b16 %v499
      %v736 = vunpack.c.l.b16 %v500
      %v737 = vunpack.c.l.b16 %v501
      %v738 = vunpack.c.l.b16 %v502
      %v739 = vunpack.c.l.b16 %v503
      %v740 = vunpack.c.l.b16 %v504
      %v741 = vpack.c.b16 %v734, %v733
      %v742 = vpack.c.b16 %v736, %v735
      %v743 = vpack.c.b16 %v738, %v737
      %v744 = vpack.c.b16 %v740, %v739
      %v746 = vsel %vm643, %v741, 0
      %v749 = vsel %vm643, %v742, 0
      %v752 = vsel %vm643, %v743, 0
      %v755 = vsel %vm643, %v744, 0
      %v758 = vsel %vm656, %v505, 0
      %760 = vmatprep.subr.bf16.mxu0 0
      %761 = vmatpush1.bf16.msra.mxu0 0
      %762 = vmatprep.subr.bf16.mxu0 0
      %763 = vmatpush1.bf16.msra.mxu0 0
      %764 = vmatprep.subr.bf16.mxu0 0
      %765 = vmatpush1.bf16.msra.mxu0 0
      %766 = vmatprep.subr.bf16.mxu0 0
      %767 = vmatpush1.bf16.msra.mxu0 0
      %768 = vmatprep.subr.bf16.mxu0 0
      %769 = vmatpush1.bf16.msra.mxu0 0
      %770 = vmatprep.subr.bf16.mxu0 0
      %771 = vmatpush1.bf16.msra.mxu0 0
      %772 = vmatprep.subr.bf16.mxu0 0
      %773 = vmatpush1.bf16.msra.mxu0 0
      %774 = vmatprep.subr.bf16.mxu0 0
      %775 = vmatpush1.bf16.msra.mxu0 %v758
      %776 = vmatprep.subr.bf16.mxu0 0
      %777 = vmatpush2.bf16.msra.mxu0 0
      %778 = vmatprep.subr.bf16.mxu0 0
      %779 = vmatpush2.bf16.msra.mxu0 0
      %780 = vmatprep.subr.bf16.mxu0 0
      %781 = vmatpush2.bf16.msra.mxu0 0
      %782 = vmatprep.subr.bf16.mxu0 0
      %783 = vmatpush2.bf16.msra.mxu0 0
      %784 = vmatprep.subr.bf16.mxu0 0
      %785 = vmatpush2.bf16.msra.mxu0 0
      %786 = vmatprep.subr.bf16.mxu0 0
      %787 = vmatpush2.bf16.msra.mxu0 0
      %788 = vmatprep.subr.bf16.mxu0 0
      %789 = vmatpush2.bf16.msra.mxu0 0
      %790 = vmatprep.subr.bf16.mxu0 0
      %791 = vmatpush2.bf16.msra.mxu0 0
      %792 = vmatprep.mubr.bf16.mxu0 0
      %793 = vmatmul.mubr.bf16.gmra.mxu0 %v746
      %v794 = vpop.f32.mrf.mxu0
      %v795 = vadd.f32 %v695, %v794
      %v796 = vpop.f32.mrf.mxu0
      %v797 = vpop.f32.mrf.mxu0
      %v798 = vadd.f32 %v698, %v797
      %v799 = vpop.f32.mrf.mxu0
      %800 = vmatprep.mubr.bf16.mxu0 0
      %801 = vmatmul.mubr.bf16.gmra.mxu0 %v749
      %v802 = vpop.f32.mrf.mxu0
      %v803 = vadd.f32 %v703, %v802
      %v804 = vpop.f32.mrf.mxu0
      %v805 = vpop.f32.mrf.mxu0
      %v806 = vadd.f32 %v706, %v805
      %v807 = vpop.f32.mrf.mxu0
      %808 = vmatprep.mubr.bf16.mxu0 0
      %809 = vmatmul.mubr.bf16.gmra.mxu0 %v752
      %v810 = vpop.f32.mrf.mxu0
      %v811 = vadd.f32 %v711, %v810
      %v812 = vpop.f32.mrf.mxu0
      %v813 = vpop.f32.mrf.mxu0
      %v814 = vadd.f32 %v714, %v813
      %v815 = vpop.f32.mrf.mxu0
      %816 = vmatprep.mubr.bf16.mxu0 0
      %817 = vmatmul.mubr.bf16.gmra.mxu0 %v755
      %v818 = vpop.f32.mrf.mxu0
      %v819 = vadd.f32 %v719, %v818
      %v820 = vpop.f32.mrf.mxu0
      %v821 = vpop.f32.mrf.mxu0
      %v822 = vadd.f32 %v722, %v821
      %v823 = vpop.f32.mrf.mxu0
      %824 = vdwg.mxu0
      %v825 = vld [vmem:[%s496] sm:$0xe]
      %v826 = vld [vmem:[%s496 + $0x8] sm:$0xe]
      %v827 = vld [vmem:[%s496 + $0x10] sm:$0xe]
      %v828 = vld [vmem:[%s496 + $0x18] sm:$0xe]
      %v829 = vld [vmem:[%s496 + $0x20] sm:$0xe]
      %v830 = vld [vmem:[%s496 + $0x28] sm:$0xe]
      %v831 = vld [vmem:[%s496 + $0x30] sm:$0xe]
      %v832 = vld [vmem:[%s496 + $0x38] sm:$0xe]
      %vm849 = vcmask 1042432
      %vm850 = vcmask 1046532
      %vm851 = vmor %vm849, %vm850
      %v852 = vrot.slane %v825, 5
      %v853 = vrot.slane %v852, 4
      %v854 = vrot.slane %v506, 5
      %v855 = vsel %vm851, %v853, %v854
      %v856 = vrot.slane %v826, 5
      %v857 = vrot.slane %v856, 4
      %v858 = vrot.slane %v507, 5
      %v859 = vsel %vm851, %v857, %v858
      %v860 = vrot.slane %v827, 5
      %v861 = vrot.slane %v860, 4
      %v862 = vrot.slane %v508, 5
      %v863 = vsel %vm851, %v861, %v862
      %v864 = vrot.slane %v828, 5
      %v865 = vrot.slane %v864, 4
      %v866 = vrot.slane %v509, 5
      %v867 = vsel %vm851, %v865, %v866
      %v868 = vrot.slane %v829, 5
      %v869 = vrot.slane %v868, 4
      %v870 = vrot.slane %v510, 5
      %v871 = vsel %vm851, %v869, %v870
      %v872 = vrot.slane %v830, 5
      %v873 = vrot.slane %v872, 4
      %v874 = vrot.slane %v511, 5
      %v875 = vsel %vm851, %v873, %v874
      %v876 = vrot.slane %v831, 5
      %v877 = vrot.slane %v876, 4
      %v878 = vrot.slane %v512, 5
      %v879 = vsel %vm851, %v877, %v878
      %v880 = vrot.slane %v832, 5
      %v881 = vrot.slane %v880, 4
      %v882 = vrot.slane %v513, 5
      %v883 = vsel %vm851, %v881, %v882
      %s884 = scalar_lea.vmem %s1, 4
      %v885 = vld [vmem:[%s884] sm:$0x3]
      %v886 = vunpack.c.l.b16 %v855
      %v887 = vunpack.c.l.b16 %v859
      %v888 = vunpack.c.l.b16 %v863
      %v889 = vunpack.c.l.b16 %v867
      %v890 = vunpack.c.l.b16 %v871
      %v891 = vunpack.c.l.b16 %v875
      %v892 = vunpack.c.l.b16 %v879
      %v893 = vunpack.c.l.b16 %v883
      %v894 = vpack.c.b16 %v887, %v886
      %v895 = vpack.c.b16 %v889, %v888
      %v896 = vpack.c.b16 %v891, %v890
      %v897 = vpack.c.b16 %v893, %v892
      %v899 = vsel %vm643, %v894, 0
      %v902 = vsel %vm643, %v895, 0
      %v905 = vsel %vm643, %v896, 0
      %v908 = vsel %vm643, %v897, 0
      %v911 = vsel %vm656, %v885, 0
      %913 = vmatprep.subr.bf16.mxu0 0
      %914 = vmatpush1.bf16.msra.mxu0 0
      %915 = vmatprep.subr.bf16.mxu0 0
      %916 = vmatpush1.bf16.msra.mxu0 0
      %917 = vmatprep.subr.bf16.mxu0 0
      %918 = vmatpush1.bf16.msra.mxu0 0
      %919 = vmatprep.subr.bf16.mxu0 0
      %920 = vmatpush1.bf16.msra.mxu0 0
      %921 = vmatprep.subr.bf16.mxu0 0
      %922 = vmatpush1.bf16.msra.mxu0 0
      %923 = vmatprep.subr.bf16.mxu0 0
      %924 = vmatpush1.bf16.msra.mxu0 0
      %925 = vmatprep.subr.bf16.mxu0 0
      %926 = vmatpush1.bf16.msra.mxu0 0
      %927 = vmatprep.subr.bf16.mxu0 0
      %928 = vmatpush1.bf16.msra.mxu0 %v911
      %929 = vmatprep.subr.bf16.mxu0 0
      %930 = vmatpush2.bf16.msra.mxu0 0
      %931 = vmatprep.subr.bf16.mxu0 0
      %932 = vmatpush2.bf16.msra.mxu0 0
      %933 = vmatprep.subr.bf16.mxu0 0
      %934 = vmatpush2.bf16.msra.mxu0 0
      %935 = vmatprep.subr.bf16.mxu0 0
      %936 = vmatpush2.bf16.msra.mxu0 0
      %937 = vmatprep.subr.bf16.mxu0 0
      %938 = vmatpush2.bf16.msra.mxu0 0
      %939 = vmatprep.subr.bf16.mxu0 0
      %940 = vmatpush2.bf16.msra.mxu0 0
      %941 = vmatprep.subr.bf16.mxu0 0
      %942 = vmatpush2.bf16.msra.mxu0 0
      %943 = vmatprep.subr.bf16.mxu0 0
      %944 = vmatpush2.bf16.msra.mxu0 0
      %945 = vmatprep.mubr.bf16.mxu0 0
      %946 = vmatmul.mubr.bf16.gmra.mxu0 %v899
      %v947 = vpop.f32.mrf.mxu0
      %v948 = vadd.f32 0.0, %v947
      %v949 = vpop.f32.mrf.mxu0
      %v950 = vpop.f32.mrf.mxu0
      %v951 = vadd.f32 0.0, %v950
      %v952 = vpop.f32.mrf.mxu0
      %953 = vmatprep.mubr.bf16.mxu0 0
      %954 = vmatmul.mubr.bf16.gmra.mxu0 %v902
      %v955 = vpop.f32.mrf.mxu0
      %v956 = vadd.f32 0.0, %v955
      %v957 = vpop.f32.mrf.mxu0
      %v958 = vpop.f32.mrf.mxu0
      %v959 = vadd.f32 0.0, %v958
      %v960 = vpop.f32.mrf.mxu0
      %961 = vmatprep.mubr.bf16.mxu0 0
      %962 = vmatmul.mubr.bf16.gmra.mxu0 %v905
      %v963 = vpop.f32.mrf.mxu0
      %v964 = vadd.f32 0.0, %v963
      %v965 = vpop.f32.mrf.mxu0
      %v966 = vpop.f32.mrf.mxu0
      %v967 = vadd.f32 0.0, %v966
      %v968 = vpop.f32.mrf.mxu0
      %969 = vmatprep.mubr.bf16.mxu0 0
      %970 = vmatmul.mubr.bf16.gmra.mxu0 %v908
      %v971 = vpop.f32.mrf.mxu0
      %v972 = vadd.f32 0.0, %v971
      %v973 = vpop.f32.mrf.mxu0
      %v974 = vpop.f32.mrf.mxu0
      %v975 = vadd.f32 0.0, %v974
      %v976 = vpop.f32.mrf.mxu0
      %977 = vdwg.mxu0
      %v978 = vadd.f32 %v795, %v948
      %v979 = vadd.f32 %v798, %v951
      %v980 = vadd.f32 %v803, %v956
      %v981 = vadd.f32 %v806, %v959
      %v982 = vadd.f32 %v811, %v964
      %v983 = vadd.f32 %v814, %v967
      %v984 = vadd.f32 %v819, %v972
      %v985 = vadd.f32 %v822, %v975
      %s986 = sadd.s32 %s493, 1
      %s987 = smul.u32 %s986, 2
      %s988 = smul.addr %s987, 4
      %s989 = scalar_lea.vmem [#allocation2], %s988
      %v990 = vld [vmem:[%s989] sm:$0xf]
      %v991 = vld [vmem:[%s989 + $0x8] sm:$0xf]
      %v992 = vld [vmem:[%s989 + $0x10] sm:$0xf]
      %v993 = vld [vmem:[%s989 + $0x18] sm:$0xf]
      %v994 = vld [vmem:[%s989 + $0x20] sm:$0xf]
      %v995 = vld [vmem:[%s989 + $0x28] sm:$0xf]
      %v996 = vld [vmem:[%s989 + $0x30] sm:$0xf]
      %v997 = vld [vmem:[%s989 + $0x38] sm:$0xf]
      %s998 = scalar_lea.vmem %s1, 6
      %v999 = vld [vmem:[%s998] sm:$0x3]
      %v1008 = vunpack.c.l.b16 %v990
      %v1009 = vunpack.c.l.b16 %v991
      %v1010 = vunpack.c.l.b16 %v992
      %v1011 = vunpack.c.l.b16 %v993
      %v1012 = vunpack.c.l.b16 %v994
      %v1013 = vunpack.c.l.b16 %v995
      %v1014 = vunpack.c.l.b16 %v996
      %v1015 = vunpack.c.l.b16 %v997
      %v1016 = vpack.c.b16 %v1009, %v1008
      %v1017 = vpack.c.b16 %v1011, %v1010
      %v1018 = vpack.c.b16 %v1013, %v1012
      %v1019 = vpack.c.b16 %v1015, %v1014
      %v1021 = vsel %vm643, %v1016, 0
      %v1024 = vsel %vm643, %v1017, 0
      %v1027 = vsel %vm643, %v1018, 0
      %v1030 = vsel %vm643, %v1019, 0
      %v1033 = vsel %vm656, %v999, 0
      %1035 = vmatprep.subr.bf16.mxu0 0
      %1036 = vmatpush1.bf16.msra.mxu0 0
      %1037 = vmatprep.subr.bf16.mxu0 0
      %1038 = vmatpush1.bf16.msra.mxu0 0
      %1039 = vmatprep.subr.bf16.mxu0 0
      %1040 = vmatpush1.bf16.msra.mxu0 0
      %1041 = vmatprep.subr.bf16.mxu0 0
      %1042 = vmatpush1.bf16.msra.mxu0 0
      %1043 = vmatprep.subr.bf16.mxu0 0
      %1044 = vmatpush1.bf16.msra.mxu0 0
      %1045 = vmatprep.subr.bf16.mxu0 0
      %1046 = vmatpush1.bf16.msra.mxu0 0
      %1047 = vmatprep.subr.bf16.mxu0 0
      %1048 = vmatpush1.bf16.msra.mxu0 0
      %1049 = vmatprep.subr.bf16.mxu0 0
      %1050 = vmatpush1.bf16.msra.mxu0 %v1033
      %1051 = vmatprep.subr.bf16.mxu0 0
      %1052 = vmatpush2.bf16.msra.mxu0 0
      %1053 = vmatprep.subr.bf16.mxu0 0
      %1054 = vmatpush2.bf16.msra.mxu0 0
      %1055 = vmatprep.subr.bf16.mxu0 0
      %1056 = vmatpush2.bf16.msra.mxu0 0
      %1057 = vmatprep.subr.bf16.mxu0 0
      %1058 = vmatpush2.bf16.msra.mxu0 0
      %1059 = vmatprep.subr.bf16.mxu0 0
      %1060 = vmatpush2.bf16.msra.mxu0 0
      %1061 = vmatprep.subr.bf16.mxu0 0
      %1062 = vmatpush2.bf16.msra.mxu0 0
      %1063 = vmatprep.subr.bf16.mxu0 0
      %1064 = vmatpush2.bf16.msra.mxu0 0
      %1065 = vmatprep.subr.bf16.mxu0 0
      %1066 = vmatpush2.bf16.msra.mxu0 0
      %1067 = vmatprep.mubr.bf16.mxu0 0
      %1068 = vmatmul.mubr.bf16.gmra.mxu0 %v1021
      %v1069 = vpop.f32.mrf.mxu0
      %v1070 = vadd.f32 0.0, %v1069
      %v1071 = vpop.f32.mrf.mxu0
      %v1072 = vpop.f32.mrf.mxu0
      %v1073 = vadd.f32 0.0, %v1072
      %v1074 = vpop.f32.mrf.mxu0
      %1075 = vmatprep.mubr.bf16.mxu0 0
      %1076 = vmatmul.mubr.bf16.gmra.mxu0 %v1024
      %v1077 = vpop.f32.mrf.mxu0
      %v1078 = vadd.f32 0.0, %v1077
      %v1079 = vpop.f32.mrf.mxu0
      %v1080 = vpop.f32.mrf.mxu0
      %v1081 = vadd.f32 0.0, %v1080
      %v1082 = vpop.f32.mrf.mxu0
      %1083 = vmatprep.mubr.bf16.mxu0 0
      %1084 = vmatmul.mubr.bf16.gmra.mxu0 %v1027
      %v1085 = vpop.f32.mrf.mxu0
      %v1086 = vadd.f32 0.0, %v1085
      %v1087 = vpop.f32.mrf.mxu0
      %v1088 = vpop.f32.mrf.mxu0
      %v1089 = vadd.f32 0.0, %v1088
      %v1090 = vpop.f32.mrf.mxu0
      %1091 = vmatprep.mubr.bf16.mxu0 0
      %1092 = vmatmul.mubr.bf16.gmra.mxu0 %v1030
      %v1093 = vpop.f32.mrf.mxu0
      %v1094 = vadd.f32 0.0, %v1093
      %v1095 = vpop.f32.mrf.mxu0
      %v1096 = vpop.f32.mrf.mxu0
      %v1097 = vadd.f32 0.0, %v1096
      %v1098 = vpop.f32.mrf.mxu0
      %1099 = vdwg.mxu0
      %v1100 = vadd.f32 %v978, %v1070
      %v1101 = vadd.f32 %v979, %v1073
      %v1102 = vadd.f32 %v980, %v1078
      %v1103 = vadd.f32 %v981, %v1081
      %v1104 = vadd.f32 %v982, %v1086
      %v1105 = vadd.f32 %v983, %v1089
      %v1106 = vadd.f32 %v984, %v1094
      %v1107 = vadd.f32 %v985, %v1097
      %v1108 = vld [vmem:[%s989] sm:$0xf]
      %v1109 = vld [vmem:[%s989 + $0x4] sm:$0x1]
      %v1110 = vld [vmem:[%s989 + $0x8] sm:$0xf]
      %v1111 = vld [vmem:[%s989 + $0xc] sm:$0x1]
      %v1112 = vld [vmem:[%s989 + $0x10] sm:$0xf]
      %v1113 = vld [vmem:[%s989 + $0x14] sm:$0x1]
      %v1114 = vld [vmem:[%s989 + $0x18] sm:$0xf]
      %v1115 = vld [vmem:[%s989 + $0x1c] sm:$0x1]
      %v1116 = vld [vmem:[%s989 + $0x20] sm:$0xf]
      %v1117 = vld [vmem:[%s989 + $0x24] sm:$0x1]
      %v1118 = vld [vmem:[%s989 + $0x28] sm:$0xf]
      %v1119 = vld [vmem:[%s989 + $0x2c] sm:$0x1]
      %v1120 = vld [vmem:[%s989 + $0x30] sm:$0xf]
      %v1121 = vld [vmem:[%s989 + $0x34] sm:$0x1]
      %v1122 = vld [vmem:[%s989 + $0x38] sm:$0xf]
      %v1123 = vld [vmem:[%s989 + $0x3c] sm:$0x1]
      %v1125 = vshrl.u32 %v1108, 16
      %v1127 = vrot.slane %v1125, 4
      %v1128 = vshll.u32 %v1108, 16
      %v1130 = vrot.slane %v1128, 5
      %v1131 = vor.u32 %v1127, %v1130
      %v1132 = vrot.slane %v1131, 4
      %v1134 = vshll.u32 %v1109, 16
      %v1136 = vrot.slane %v1134, 5
      %v1137 = vsel %vm516, %v1132, %v1136
      %v1139 = vshrl.u32 %v1110, 16
      %v1141 = vrot.slane %v1139, 4
      %v1142 = vshll.u32 %v1110, 16
      %v1144 = vrot.slane %v1142, 5
      %v1145 = vor.u32 %v1141, %v1144
      %v1146 = vrot.slane %v1145, 4
      %v1148 = vshll.u32 %v1111, 16
      %v1150 = vrot.slane %v1148, 5
      %v1151 = vsel %vm516, %v1146, %v1150
      %v1153 = vshrl.u32 %v1112, 16
      %v1155 = vrot.slane %v1153, 4
      %v1156 = vshll.u32 %v1112, 16
      %v1158 = vrot.slane %v1156, 5
      %v1159 = vor.u32 %v1155, %v1158
      %v1160 = vrot.slane %v1159, 4
      %v1162 = vshll.u32 %v1113, 16
      %v1164 = vrot.slane %v1162, 5
      %v1165 = vsel %vm516, %v1160, %v1164
      %v1167 = vshrl.u32 %v1114, 16
      %v1169 = vrot.slane %v1167, 4
      %v1170 = vshll.u32 %v1114, 16
      %v1172 = vrot.slane %v1170, 5
      %v1173 = vor.u32 %v1169, %v1172
      %v1174 = vrot.slane %v1173, 4
      %v1176 = vshll.u32 %v1115, 16
      %v1178 = vrot.slane %v1176, 5
      %v1179 = vsel %vm516, %v1174, %v1178
      %v1181 = vshrl.u32 %v1116, 16
      %v1183 = vrot.slane %v1181, 4
      %v1184 = vshll.u32 %v1116, 16
      %v1186 = vrot.slane %v1184, 5
      %v1187 = vor.u32 %v1183, %v1186
      %v1188 = vrot.slane %v1187, 4
      %v1190 = vshll.u32 %v1117, 16
      %v1192 = vrot.slane %v1190, 5
      %v1193 = vsel %vm516, %v1188, %v1192
      %v1195 = vshrl.u32 %v1118, 16
      %v1197 = vrot.slane %v1195, 4
      %v1198 = vshll.u32 %v1118, 16
      %v1200 = vrot.slane %v1198, 5
      %v1201 = vor.u32 %v1197, %v1200
      %v1202 = vrot.slane %v1201, 4
      %v1204 = vshll.u32 %v1119, 16
      %v1206 = vrot.slane %v1204, 5
      %v1207 = vsel %vm516, %v1202, %v1206
      %v1209 = vshrl.u32 %v1120, 16
      %v1211 = vrot.slane %v1209, 4
      %v1212 = vshll.u32 %v1120, 16
      %v1214 = vrot.slane %v1212, 5
      %v1215 = vor.u32 %v1211, %v1214
      %v1216 = vrot.slane %v1215, 4
      %v1218 = vshll.u32 %v1121, 16
      %v1220 = vrot.slane %v1218, 5
      %v1221 = vsel %vm516, %v1216, %v1220
      %v1223 = vshrl.u32 %v1122, 16
      %v1225 = vrot.slane %v1223, 4
      %v1226 = vshll.u32 %v1122, 16
      %v1228 = vrot.slane %v1226, 5
      %v1229 = vor.u32 %v1225, %v1228
      %v1230 = vrot.slane %v1229, 4
      %v1232 = vshll.u32 %v1123, 16
      %v1234 = vrot.slane %v1232, 5
      %v1235 = vsel %vm516, %v1230, %v1234
      %s1236 = scalar_lea.vmem %s1, 8
      %v1237 = vld [vmem:[%s1236] sm:$0x3]
      %v1238 = vunpack.c.l.b16 %v1137
      %v1239 = vunpack.c.l.b16 %v1151
      %v1240 = vunpack.c.l.b16 %v1165
      %v1241 = vunpack.c.l.b16 %v1179
      %v1242 = vunpack.c.l.b16 %v1193
      %v1243 = vunpack.c.l.b16 %v1207
      %v1244 = vunpack.c.l.b16 %v1221
      %v1245 = vunpack.c.l.b16 %v1235
      %v1246 = vpack.c.b16 %v1239, %v1238
      %v1247 = vpack.c.b16 %v1241, %v1240
      %v1248 = vpack.c.b16 %v1243, %v1242
      %v1249 = vpack.c.b16 %v1245, %v1244
      %v1251 = vsel %vm643, %v1246, 0
      %v1254 = vsel %vm643, %v1247, 0
      %v1257 = vsel %vm643, %v1248, 0
      %v1260 = vsel %vm643, %v1249, 0
      %v1263 = vsel %vm656, %v1237, 0
      %1265 = vmatprep.subr.bf16.mxu0 0
      %1266 = vmatpush1.bf16.msra.mxu0 0
      %1267 = vmatprep.subr.bf16.mxu0 0
      %1268 = vmatpush1.bf16.msra.mxu0 0
      %1269 = vmatprep.subr.bf16.mxu0 0
      %1270 = vmatpush1.bf16.msra.mxu0 0
      %1271 = vmatprep.subr.bf16.mxu0 0
      %1272 = vmatpush1.bf16.msra.mxu0 0
      %1273 = vmatprep.subr.bf16.mxu0 0
      %1274 = vmatpush1.bf16.msra.mxu0 0
      %1275 = vmatprep.subr.bf16.mxu0 0
      %1276 = vmatpush1.bf16.msra.mxu0 0
      %1277 = vmatprep.subr.bf16.mxu0 0
      %1278 = vmatpush1.bf16.msra.mxu0 0
      %1279 = vmatprep.subr.bf16.mxu0 0
      %1280 = vmatpush1.bf16.msra.mxu0 %v1263
      %1281 = vmatprep.subr.bf16.mxu0 0
      %1282 = vmatpush2.bf16.msra.mxu0 0
      %1283 = vmatprep.subr.bf16.mxu0 0
      %1284 = vmatpush2.bf16.msra.mxu0 0
      %1285 = vmatprep.subr.bf16.mxu0 0
      %1286 = vmatpush2.bf16.msra.mxu0 0
      %1287 = vmatprep.subr.bf16.mxu0 0
      %1288 = vmatpush2.bf16.msra.mxu0 0
      %1289 = vmatprep.subr.bf16.mxu0 0
      %1290 = vmatpush2.bf16.msra.mxu0 0
      %1291 = vmatprep.subr.bf16.mxu0 0
      %1292 = vmatpush2.bf16.msra.mxu0 0
      %1293 = vmatprep.subr.bf16.mxu0 0
      %1294 = vmatpush2.bf16.msra.mxu0 0
      %1295 = vmatprep.subr.bf16.mxu0 0
      %1296 = vmatpush2.bf16.msra.mxu0 0
      %1297 = vmatprep.mubr.bf16.mxu0 0
      %1298 = vmatmul.mubr.bf16.gmra.mxu0 %v1251
      %v1299 = vpop.f32.mrf.mxu0
      %v1300 = vadd.f32 0.0, %v1299
      %v1301 = vpop.f32.mrf.mxu0
      %v1302 = vpop.f32.mrf.mxu0
      %v1303 = vadd.f32 0.0, %v1302
      %v1304 = vpop.f32.mrf.mxu0
      %1305 = vmatprep.mubr.bf16.mxu0 0
      %1306 = vmatmul.mubr.bf16.gmra.mxu0 %v1254
      %v1307 = vpop.f32.mrf.mxu0
      %v1308 = vadd.f32 0.0, %v1307
      %v1309 = vpop.f32.mrf.mxu0
      %v1310 = vpop.f32.mrf.mxu0
      %v1311 = vadd.f32 0.0, %v1310
      %v1312 = vpop.f32.mrf.mxu0
      %1313 = vmatprep.mubr.bf16.mxu0 0
      %1314 = vmatmul.mubr.bf16.gmra.mxu0 %v1257
      %v1315 = vpop.f32.mrf.mxu0
      %v1316 = vadd.f32 0.0, %v1315
      %v1317 = vpop.f32.mrf.mxu0
      %v1318 = vpop.f32.mrf.mxu0
      %v1319 = vadd.f32 0.0, %v1318
      %v1320 = vpop.f32.mrf.mxu0
      %1321 = vmatprep.mubr.bf16.mxu0 0
      %1322 = vmatmul.mubr.bf16.gmra.mxu0 %v1260
      %v1323 = vpop.f32.mrf.mxu0
      %v1324 = vadd.f32 0.0, %v1323
      %v1325 = vpop.f32.mrf.mxu0
      %v1326 = vpop.f32.mrf.mxu0
      %v1327 = vadd.f32 0.0, %v1326
      %v1328 = vpop.f32.mrf.mxu0
      %1329 = vdwg.mxu0
      %v1330 = vadd.f32 %v1100, %v1300
      %v1331 = vadd.f32 %v1101, %v1303
      %v1332 = vadd.f32 %v1102, %v1308
      %v1333 = vadd.f32 %v1103, %v1311
      %v1334 = vadd.f32 %v1104, %v1316
      %v1335 = vadd.f32 %v1105, %v1319
      %v1336 = vadd.f32 %v1106, %v1324
      %v1337 = vadd.f32 %v1107, %v1327
      %v1338 = vld [vmem:[%s989] sm:$0xe]
      %v1339 = vld [vmem:[%s989 + $0x8] sm:$0xe]
      %v1340 = vld [vmem:[%s989 + $0x10] sm:$0xe]
      %v1341 = vld [vmem:[%s989 + $0x18] sm:$0xe]
      %v1342 = vld [vmem:[%s989 + $0x20] sm:$0xe]
      %v1343 = vld [vmem:[%s989 + $0x28] sm:$0xe]
      %v1344 = vld [vmem:[%s989 + $0x30] sm:$0xe]
      %v1345 = vld [vmem:[%s989 + $0x38] sm:$0xe]
      %v1362 = vrot.slane %v1338, 5
      %v1363 = vrot.slane %v1362, 4
      %v1364 = vrot.slane %v1109, 5
      %v1365 = vsel %vm851, %v1363, %v1364
      %v1366 = vrot.slane %v1339, 5
      %v1367 = vrot.slane %v1366, 4
      %v1368 = vrot.slane %v1111, 5
      %v1369 = vsel %vm851, %v1367, %v1368
      %v1370 = vrot.slane %v1340, 5
      %v1371 = vrot.slane %v1370, 4
      %v1372 = vrot.slane %v1113, 5
      %v1373 = vsel %vm851, %v1371, %v1372
      %v1374 = vrot.slane %v1341, 5
      %v1375 = vrot.slane %v1374, 4
      %v1376 = vrot.slane %v1115, 5
      %v1377 = vsel %vm851, %v1375, %v1376
      %v1378 = vrot.slane %v1342, 5
      %v1379 = vrot.slane %v1378, 4
      %v1380 = vrot.slane %v1117, 5
      %v1381 = vsel %vm851, %v1379, %v1380
      %v1382 = vrot.slane %v1343, 5
      %v1383 = vrot.slane %v1382, 4
      %v1384 = vrot.slane %v1119, 5
      %v1385 = vsel %vm851, %v1383, %v1384
      %v1386 = vrot.slane %v1344, 5
      %v1387 = vrot.slane %v1386, 4
      %v1388 = vrot.slane %v1121, 5
      %v1389 = vsel %vm851, %v1387, %v1388
      %v1390 = vrot.slane %v1345, 5
      %v1391 = vrot.slane %v1390, 4
      %v1392 = vrot.slane %v1123, 5
      %v1393 = vsel %vm851, %v1391, %v1392
      %s1394 = scalar_lea.vmem %s1, 10
      %v1395 = vld [vmem:[%s1394] sm:$0x3]
      %v1396 = vunpack.c.l.b16 %v1365
      %v1397 = vunpack.c.l.b16 %v1369
      %v1398 = vunpack.c.l.b16 %v1373
      %v1399 = vunpack.c.l.b16 %v1377
      %v1400 = vunpack.c.l.b16 %v1381
      %v1401 = vunpack.c.l.b16 %v1385
      %v1402 = vunpack.c.l.b16 %v1389
      %v1403 = vunpack.c.l.b16 %v1393
      %v1404 = vpack.c.b16 %v1397, %v1396
      %v1405 = vpack.c.b16 %v1399, %v1398
      %v1406 = vpack.c.b16 %v1401, %v1400
      %v1407 = vpack.c.b16 %v1403, %v1402
      %v1409 = vsel %vm643, %v1404, 0
      %v1412 = vsel %vm643, %v1405, 0
      %v1415 = vsel %vm643, %v1406, 0
      %v1418 = vsel %vm643, %v1407, 0
      %v1421 = vsel %vm656, %v1395, 0
      %1423 = vmatprep.subr.bf16.mxu0 0
      %1424 = vmatpush1.bf16.msra.mxu0 0
      %1425 = vmatprep.subr.bf16.mxu0 0
      %1426 = vmatpush1.bf16.msra.mxu0 0
      %1427 = vmatprep.subr.bf16.mxu0 0
      %1428 = vmatpush1.bf16.msra.mxu0 0
      %1429 = vmatprep.subr.bf16.mxu0 0
      %1430 = vmatpush1.bf16.msra.mxu0 0
      %1431 = vmatprep.subr.bf16.mxu0 0
      %1432 = vmatpush1.bf16.msra.mxu0 0
      %1433 = vmatprep.subr.bf16.mxu0 0
      %1434 = vmatpush1.bf16.msra.mxu0 0
      %1435 = vmatprep.subr.bf16.mxu0 0
      %1436 = vmatpush1.bf16.msra.mxu0 0
      %1437 = vmatprep.subr.bf16.mxu0 0
      %1438 = vmatpush1.bf16.msra.mxu0 %v1421
      %1439 = vmatprep.subr.bf16.mxu0 0
      %1440 = vmatpush2.bf16.msra.mxu0 0
      %1441 = vmatprep.subr.bf16.mxu0 0
      %1442 = vmatpush2.bf16.msra.mxu0 0
      %1443 = vmatprep.subr.bf16.mxu0 0
      %1444 = vmatpush2.bf16.msra.mxu0 0
      %1445 = vmatprep.subr.bf16.mxu0 0
      %1446 = vmatpush2.bf16.msra.mxu0 0
      %1447 = vmatprep.subr.bf16.mxu0 0
      %1448 = vmatpush2.bf16.msra.mxu0 0
      %1449 = vmatprep.subr.bf16.mxu0 0
      %1450 = vmatpush2.bf16.msra.mxu0 0
      %1451 = vmatprep.subr.bf16.mxu0 0
      %1452 = vmatpush2.bf16.msra.mxu0 0
      %1453 = vmatprep.subr.bf16.mxu0 0
      %1454 = vmatpush2.bf16.msra.mxu0 0
      %1455 = vmatprep.mubr.bf16.mxu0 0
      %1456 = vmatmul.mubr.bf16.gmra.mxu0 %v1409
      %v1457 = vpop.f32.mrf.mxu0
      %v1458 = vadd.f32 0.0, %v1457
      %v1459 = vpop.f32.mrf.mxu0
      %v1460 = vpop.f32.mrf.mxu0
      %v1461 = vadd.f32 0.0, %v1460
      %v1462 = vpop.f32.mrf.mxu0
      %1463 = vmatprep.mubr.bf16.mxu0 0
      %1464 = vmatmul.mubr.bf16.gmra.mxu0 %v1412
      %v1465 = vpop.f32.mrf.mxu0
      %v1466 = vadd.f32 0.0, %v1465
      %v1467 = vpop.f32.mrf.mxu0
      %v1468 = vpop.f32.mrf.mxu0
      %v1469 = vadd.f32 0.0, %v1468
      %v1470 = vpop.f32.mrf.mxu0
      %1471 = vmatprep.mubr.bf16.mxu0 0
      %1472 = vmatmul.mubr.bf16.gmra.mxu0 %v1415
      %v1473 = vpop.f32.mrf.mxu0
      %v1474 = vadd.f32 0.0, %v1473
      %v1475 = vpop.f32.mrf.mxu0
      %v1476 = vpop.f32.mrf.mxu0
      %v1477 = vadd.f32 0.0, %v1476
      %v1478 = vpop.f32.mrf.mxu0
      %1479 = vmatprep.mubr.bf16.mxu0 0
      %1480 = vmatmul.mubr.bf16.gmra.mxu0 %v1418
      %v1481 = vpop.f32.mrf.mxu0
      %v1482 = vadd.f32 0.0, %v1481
      %v1483 = vpop.f32.mrf.mxu0
      %v1484 = vpop.f32.mrf.mxu0
      %v1485 = vadd.f32 0.0, %v1484
      %v1486 = vpop.f32.mrf.mxu0
      %1487 = vdwg.mxu0
      %v1488 = vadd.f32 %v1330, %v1458
      %v1489 = vadd.f32 %v1331, %v1461
      %v1490 = vadd.f32 %v1332, %v1466
      %v1491 = vadd.f32 %v1333, %v1469
      %v1492 = vadd.f32 %v1334, %v1474
      %v1493 = vadd.f32 %v1335, %v1477
      %v1494 = vadd.f32 %v1336, %v1482
      %v1495 = vadd.f32 %v1337, %v1485
      %s1496 = sadd.s32 %s493, 2
      %s1497 = smul.u32 %s1496, 2
      %s1498 = smul.addr %s1497, 4
      %s1499 = scalar_lea.vmem [#allocation2], %s1498
      %v1500 = vld [vmem:[%s1499] sm:$0xf]
      %v1501 = vld [vmem:[%s1499 + $0x8] sm:$0xf]
      %v1502 = vld [vmem:[%s1499 + $0x10] sm:$0xf]
      %v1503 = vld [vmem:[%s1499 + $0x18] sm:$0xf]
      %v1504 = vld [vmem:[%s1499 + $0x20] sm:$0xf]
      %v1505 = vld [vmem:[%s1499 + $0x28] sm:$0xf]
      %v1506 = vld [vmem:[%s1499 + $0x30] sm:$0xf]
      %v1507 = vld [vmem:[%s1499 + $0x38] sm:$0xf]
      %s1508 = scalar_lea.vmem %s1, 12
      %v1509 = vld [vmem:[%s1508] sm:$0x3]
      %v1518 = vunpack.c.l.b16 %v1500
      %v1519 = vunpack.c.l.b16 %v1501
      %v1520 = vunpack.c.l.b16 %v1502
      %v1521 = vunpack.c.l.b16 %v1503
      %v1522 = vunpack.c.l.b16 %v1504
      %v1523 = vunpack.c.l.b16 %v1505
      %v1524 = vunpack.c.l.b16 %v1506
      %v1525 = vunpack.c.l.b16 %v1507
      %v1526 = vpack.c.b16 %v1519, %v1518
      %v1527 = vpack.c.b16 %v1521, %v1520
      %v1528 = vpack.c.b16 %v1523, %v1522
      %v1529 = vpack.c.b16 %v1525, %v1524
      %v1531 = vsel %vm643, %v1526, 0
      %v1534 = vsel %vm643, %v1527, 0
      %v1537 = vsel %vm643, %v1528, 0
      %v1540 = vsel %vm643, %v1529, 0
      %v1543 = vsel %vm656, %v1509, 0
      %1545 = vmatprep.subr.bf16.mxu0 0
      %1546 = vmatpush1.bf16.msra.mxu0 0
      %1547 = vmatprep.subr.bf16.mxu0 0
      %1548 = vmatpush1.bf16.msra.mxu0 0
      %1549 = vmatprep.subr.bf16.mxu0 0
      %1550 = vmatpush1.bf16.msra.mxu0 0
      %1551 = vmatprep.subr.bf16.mxu0 0
      %1552 = vmatpush1.bf16.msra.mxu0 0
      %1553 = vmatprep.subr.bf16.mxu0 0
      %1554 = vmatpush1.bf16.msra.mxu0 0
      %1555 = vmatprep.subr.bf16.mxu0 0
      %1556 = vmatpush1.bf16.msra.mxu0 0
      %1557 = vmatprep.subr.bf16.mxu0 0
      %1558 = vmatpush1.bf16.msra.mxu0 0
      %1559 = vmatprep.subr.bf16.mxu0 0
      %1560 = vmatpush1.bf16.msra.mxu0 %v1543
      %1561 = vmatprep.subr.bf16.mxu0 0
      %1562 = vmatpush2.bf16.msra.mxu0 0
      %1563 = vmatprep.subr.bf16.mxu0 0
      %1564 = vmatpush2.bf16.msra.mxu0 0
      %1565 = vmatprep.subr.bf16.mxu0 0
      %1566 = vmatpush2.bf16.msra.mxu0 0
      %1567 = vmatprep.subr.bf16.mxu0 0
      %1568 = vmatpush2.bf16.msra.mxu0 0
      %1569 = vmatprep.subr.bf16.mxu0 0
      %1570 = vmatpush2.bf16.msra.mxu0 0
      %1571 = vmatprep.subr.bf16.mxu0 0
      %1572 = vmatpush2.bf16.msra.mxu0 0
      %1573 = vmatprep.subr.bf16.mxu0 0
      %1574 = vmatpush2.bf16.msra.mxu0 0
      %1575 = vmatprep.subr.bf16.mxu0 0
      %1576 = vmatpush2.bf16.msra.mxu0 0
      %1577 = vmatprep.mubr.bf16.mxu0 0
      %1578 = vmatmul.mubr.bf16.gmra.mxu0 %v1531
      %v1579 = vpop.f32.mrf.mxu0
      %v1580 = vadd.f32 0.0, %v1579
      %v1581 = vpop.f32.mrf.mxu0
      %v1582 = vpop.f32.mrf.mxu0
      %v1583 = vadd.f32 0.0, %v1582
      %v1584 = vpop.f32.mrf.mxu0
      %1585 = vmatprep.mubr.bf16.mxu0 0
      %1586 = vmatmul.mubr.bf16.gmra.mxu0 %v1534
      %v1587 = vpop.f32.mrf.mxu0
      %v1588 = vadd.f32 0.0, %v1587
      %v1589 = vpop.f32.mrf.mxu0
      %v1590 = vpop.f32.mrf.mxu0
      %v1591 = vadd.f32 0.0, %v1590
      %v1592 = vpop.f32.mrf.mxu0
      %1593 = vmatprep.mubr.bf16.mxu0 0
      %1594 = vmatmul.mubr.bf16.gmra.mxu0 %v1537
      %v1595 = vpop.f32.mrf.mxu0
      %v1596 = vadd.f32 0.0, %v1595
      %v1597 = vpop.f32.mrf.mxu0
      %v1598 = vpop.f32.mrf.mxu0
      %v1599 = vadd.f32 0.0, %v1598
      %v1600 = vpop.f32.mrf.mxu0
      %1601 = vmatprep.mubr.bf16.mxu0 0
      %1602 = vmatmul.mubr.bf16.gmra.mxu0 %v1540
      %v1603 = vpop.f32.mrf.mxu0
      %v1604 = vadd.f32 0.0, %v1603
      %v1605 = vpop.f32.mrf.mxu0
      %v1606 = vpop.f32.mrf.mxu0
      %v1607 = vadd.f32 0.0, %v1606
      %v1608 = vpop.f32.mrf.mxu0
      %1609 = vdwg.mxu0
      %v1610 = vadd.f32 %v1488, %v1580
      %v1611 = vadd.f32 %v1489, %v1583
      %v1612 = vadd.f32 %v1490, %v1588
      %v1613 = vadd.f32 %v1491, %v1591
      %v1614 = vadd.f32 %v1492, %v1596
      %v1615 = vadd.f32 %v1493, %v1599
      %v1616 = vadd.f32 %v1494, %v1604
      %v1617 = vadd.f32 %v1495, %v1607
      %v1618 = vld [vmem:[%s1499] sm:$0xf]
      %v1619 = vld [vmem:[%s1499 + $0x4] sm:$0x1]
      %v1620 = vld [vmem:[%s1499 + $0x8] sm:$0xf]
      %v1621 = vld [vmem:[%s1499 + $0xc] sm:$0x1]
      %v1622 = vld [vmem:[%s1499 + $0x10] sm:$0xf]
      %v1623 = vld [vmem:[%s1499 + $0x14] sm:$0x1]
      %v1624 = vld [vmem:[%s1499 + $0x18] sm:$0xf]
      %v1625 = vld [vmem:[%s1499 + $0x1c] sm:$0x1]
      %v1626 = vld [vmem:[%s1499 + $0x20] sm:$0xf]
      %v1627 = vld [vmem:[%s1499 + $0x24] sm:$0x1]
      %v1628 = vld [vmem:[%s1499 + $0x28] sm:$0xf]
      %v1629 = vld [vmem:[%s1499 + $0x2c] sm:$0x1]
      %v1630 = vld [vmem:[%s1499 + $0x30] sm:$0xf]
      %v1631 = vld [vmem:[%s1499 + $0x34] sm:$0x1]
      %v1632 = vld [vmem:[%s1499 + $0x38] sm:$0xf]
      %v1633 = vld [vmem:[%s1499 + $0x3c] sm:$0x1]
      %v1635 = vshrl.u32 %v1618, 16
      %v1637 = vrot.slane %v1635, 4
      %v1638 = vshll.u32 %v1618, 16
      %v1640 = vrot.slane %v1638, 5
      %v1641 = vor.u32 %v1637, %v1640
      %v1642 = vrot.slane %v1641, 4
      %v1644 = vshll.u32 %v1619, 16
      %v1646 = vrot.slane %v1644, 5
      %v1647 = vsel %vm516, %v1642, %v1646
      %v1649 = vshrl.u32 %v1620, 16
      %v1651 = vrot.slane %v1649, 4
      %v1652 = vshll.u32 %v1620, 16
      %v1654 = vrot.slane %v1652, 5
      %v1655 = vor.u32 %v1651, %v1654
      %v1656 = vrot.slane %v1655, 4
      %v1658 = vshll.u32 %v1621, 16
      %v1660 = vrot.slane %v1658, 5
      %v1661 = vsel %vm516, %v1656, %v1660
      %v1663 = vshrl.u32 %v1622, 16
      %v1665 = vrot.slane %v1663, 4
      %v1666 = vshll.u32 %v1622, 16
      %v1668 = vrot.slane %v1666, 5
      %v1669 = vor.u32 %v1665, %v1668
      %v1670 = vrot.slane %v1669, 4
      %v1672 = vshll.u32 %v1623, 16
      %v1674 = vrot.slane %v1672, 5
      %v1675 = vsel %vm516, %v1670, %v1674
      %v1677 = vshrl.u32 %v1624, 16
      %v1679 = vrot.slane %v1677, 4
      %v1680 = vshll.u32 %v1624, 16
      %v1682 = vrot.slane %v1680, 5
      %v1683 = vor.u32 %v1679, %v1682
      %v1684 = vrot.slane %v1683, 4
      %v1686 = vshll.u32 %v1625, 16
      %v1688 = vrot.slane %v1686, 5
      %v1689 = vsel %vm516, %v1684, %v1688
      %v1691 = vshrl.u32 %v1626, 16
      %v1693 = vrot.slane %v1691, 4
      %v1694 = vshll.u32 %v1626, 16
      %v1696 = vrot.slane %v1694, 5
      %v1697 = vor.u32 %v1693, %v1696
      %v1698 = vrot.slane %v1697, 4
      %v1700 = vshll.u32 %v1627, 16
      %v1702 = vrot.slane %v1700, 5
      %v1703 = vsel %vm516, %v1698, %v1702
      %v1705 = vshrl.u32 %v1628, 16
      %v1707 = vrot.slane %v1705, 4
      %v1708 = vshll.u32 %v1628, 16
      %v1710 = vrot.slane %v1708, 5
      %v1711 = vor.u32 %v1707, %v1710
      %v1712 = vrot.slane %v1711, 4
      %v1714 = vshll.u32 %v1629, 16
      %v1716 = vrot.slane %v1714, 5
      %v1717 = vsel %vm516, %v1712, %v1716
      %v1719 = vshrl.u32 %v1630, 16
      %v1721 = vrot.slane %v1719, 4
      %v1722 = vshll.u32 %v1630, 16
      %v1724 = vrot.slane %v1722, 5
      %v1725 = vor.u32 %v1721, %v1724
      %v1726 = vrot.slane %v1725, 4
      %v1728 = vshll.u32 %v1631, 16
      %v1730 = vrot.slane %v1728, 5
      %v1731 = vsel %vm516, %v1726, %v1730
      %v1733 = vshrl.u32 %v1632, 16
      %v1735 = vrot.slane %v1733, 4
      %v1736 = vshll.u32 %v1632, 16
      %v1738 = vrot.slane %v1736, 5
      %v1739 = vor.u32 %v1735, %v1738
      %v1740 = vrot.slane %v1739, 4
      %v1742 = vshll.u32 %v1633, 16
      %v1744 = vrot.slane %v1742, 5
      %v1745 = vsel %vm516, %v1740, %v1744
      %s1746 = scalar_lea.vmem %s1, 14
      %v1747 = vld [vmem:[%s1746] sm:$0x3]
      %v1748 = vunpack.c.l.b16 %v1647
      %v1749 = vunpack.c.l.b16 %v1661
      %v1750 = vunpack.c.l.b16 %v1675
      %v1751 = vunpack.c.l.b16 %v1689
      %v1752 = vunpack.c.l.b16 %v1703
      %v1753 = vunpack.c.l.b16 %v1717
      %v1754 = vunpack.c.l.b16 %v1731
      %v1755 = vunpack.c.l.b16 %v1745
      %v1756 = vpack.c.b16 %v1749, %v1748
      %v1757 = vpack.c.b16 %v1751, %v1750
      %v1758 = vpack.c.b16 %v1753, %v1752
      %v1759 = vpack.c.b16 %v1755, %v1754
      %v1761 = vsel %vm643, %v1756, 0
      %v1764 = vsel %vm643, %v1757, 0
      %v1767 = vsel %vm643, %v1758, 0
      %v1770 = vsel %vm643, %v1759, 0
      %v1773 = vsel %vm656, %v1747, 0
      %1775 = vmatprep.subr.bf16.mxu0 0
      %1776 = vmatpush1.bf16.msra.mxu0 0
      %1777 = vmatprep.subr.bf16.mxu0 0
      %1778 = vmatpush1.bf16.msra.mxu0 0
      %1779 = vmatprep.subr.bf16.mxu0 0
      %1780 = vmatpush1.bf16.msra.mxu0 0
      %1781 = vmatprep.subr.bf16.mxu0 0
      %1782 = vmatpush1.bf16.msra.mxu0 0
      %1783 = vmatprep.subr.bf16.mxu0 0
      %1784 = vmatpush1.bf16.msra.mxu0 0
      %1785 = vmatprep.subr.bf16.mxu0 0
      %1786 = vmatpush1.bf16.msra.mxu0 0
      %1787 = vmatprep.subr.bf16.mxu0 0
      %1788 = vmatpush1.bf16.msra.mxu0 0
      %1789 = vmatprep.subr.bf16.mxu0 0
      %1790 = vmatpush1.bf16.msra.mxu0 %v1773
      %1791 = vmatprep.subr.bf16.mxu0 0
      %1792 = vmatpush2.bf16.msra.mxu0 0
      %1793 = vmatprep.subr.bf16.mxu0 0
      %1794 = vmatpush2.bf16.msra.mxu0 0
      %1795 = vmatprep.subr.bf16.mxu0 0
      %1796 = vmatpush2.bf16.msra.mxu0 0
      %1797 = vmatprep.subr.bf16.mxu0 0
      %1798 = vmatpush2.bf16.msra.mxu0 0
      %1799 = vmatprep.subr.bf16.mxu0 0
      %1800 = vmatpush2.bf16.msra.mxu0 0
      %1801 = vmatprep.subr.bf16.mxu0 0
      %1802 = vmatpush2.bf16.msra.mxu0 0
      %1803 = vmatprep.subr.bf16.mxu0 0
      %1804 = vmatpush2.bf16.msra.mxu0 0
      %1805 = vmatprep.subr.bf16.mxu0 0
      %1806 = vmatpush2.bf16.msra.mxu0 0
      %1807 = vmatprep.mubr.bf16.mxu0 0
      %1808 = vmatmul.mubr.bf16.gmra.mxu0 %v1761
      %v1809 = vpop.f32.mrf.mxu0
      %v1810 = vadd.f32 0.0, %v1809
      %v1811 = vpop.f32.mrf.mxu0
      %v1812 = vpop.f32.mrf.mxu0
      %v1813 = vadd.f32 0.0, %v1812
      %v1814 = vpop.f32.mrf.mxu0
      %1815 = vmatprep.mubr.bf16.mxu0 0
      %1816 = vmatmul.mubr.bf16.gmra.mxu0 %v1764
      %v1817 = vpop.f32.mrf.mxu0
      %v1818 = vadd.f32 0.0, %v1817
      %v1819 = vpop.f32.mrf.mxu0
      %v1820 = vpop.f32.mrf.mxu0
      %v1821 = vadd.f32 0.0, %v1820
      %v1822 = vpop.f32.mrf.mxu0
      %1823 = vmatprep.mubr.bf16.mxu0 0
      %1824 = vmatmul.mubr.bf16.gmra.mxu0 %v1767
      %v1825 = vpop.f32.mrf.mxu0
      %v1826 = vadd.f32 0.0, %v1825
      %v1827 = vpop.f32.mrf.mxu0
      %v1828 = vpop.f32.mrf.mxu0
      %v1829 = vadd.f32 0.0, %v1828
      %v1830 = vpop.f32.mrf.mxu0
      %1831 = vmatprep.mubr.bf16.mxu0 0
      %1832 = vmatmul.mubr.bf16.gmra.mxu0 %v1770
      %v1833 = vpop.f32.mrf.mxu0
      %v1834 = vadd.f32 0.0, %v1833
      %v1835 = vpop.f32.mrf.mxu0
      %v1836 = vpop.f32.mrf.mxu0
      %v1837 = vadd.f32 0.0, %v1836
      %v1838 = vpop.f32.mrf.mxu0
      %1839 = vdwg.mxu0
      %v1840 = vadd.f32 %v1610, %v1810
      %v1841 = vadd.f32 %v1611, %v1813
      %v1842 = vadd.f32 %v1612, %v1818
      %v1843 = vadd.f32 %v1613, %v1821
      %v1844 = vadd.f32 %v1614, %v1826
      %v1845 = vadd.f32 %v1615, %v1829
      %v1846 = vadd.f32 %v1616, %v1834
      %v1847 = vadd.f32 %v1617, %v1837
      %v1848 = vld [vmem:[%s1499] sm:$0xe]
      %v1849 = vld [vmem:[%s1499 + $0x8] sm:$0xe]
      %v1850 = vld [vmem:[%s1499 + $0x10] sm:$0xe]
      %v1851 = vld [vmem:[%s1499 + $0x18] sm:$0xe]
      %v1852 = vld [vmem:[%s1499 + $0x20] sm:$0xe]
      %v1853 = vld [vmem:[%s1499 + $0x28] sm:$0xe]
      %v1854 = vld [vmem:[%s1499 + $0x30] sm:$0xe]
      %v1855 = vld [vmem:[%s1499 + $0x38] sm:$0xe]
      %v1872 = vrot.slane %v1848, 5
      %v1873 = vrot.slane %v1872, 4
      %v1874 = vrot.slane %v1619, 5
      %v1875 = vsel %vm851, %v1873, %v1874
      %v1876 = vrot.slane %v1849, 5
      %v1877 = vrot.slane %v1876, 4
      %v1878 = vrot.slane %v1621, 5
      %v1879 = vsel %vm851, %v1877, %v1878
      %v1880 = vrot.slane %v1850, 5
      %v1881 = vrot.slane %v1880, 4
      %v1882 = vrot.slane %v1623, 5
      %v1883 = vsel %vm851, %v1881, %v1882
      %v1884 = vrot.slane %v1851, 5
      %v1885 = vrot.slane %v1884, 4
      %v1886 = vrot.slane %v1625, 5
      %v1887 = vsel %vm851, %v1885, %v1886
      %v1888 = vrot.slane %v1852, 5
      %v1889 = vrot.slane %v1888, 4
      %v1890 = vrot.slane %v1627, 5
      %v1891 = vsel %vm851, %v1889, %v1890
      %v1892 = vrot.slane %v1853, 5
      %v1893 = vrot.slane %v1892, 4
      %v1894 = vrot.slane %v1629, 5
      %v1895 = vsel %vm851, %v1893, %v1894
      %v1896 = vrot.slane %v1854, 5
      %v1897 = vrot.slane %v1896, 4
      %v1898 = vrot.slane %v1631, 5
      %v1899 = vsel %vm851, %v1897, %v1898
      %v1900 = vrot.slane %v1855, 5
      %v1901 = vrot.slane %v1900, 4
      %v1902 = vrot.slane %v1633, 5
      %v1903 = vsel %vm851, %v1901, %v1902
      %s1904 = scalar_lea.vmem %s1, 16
      %v1905 = vld [vmem:[%s1904] sm:$0x3]
      %v1906 = vunpack.c.l.b16 %v1875
      %v1907 = vunpack.c.l.b16 %v1879
      %v1908 = vunpack.c.l.b16 %v1883
      %v1909 = vunpack.c.l.b16 %v1887
      %v1910 = vunpack.c.l.b16 %v1891
      %v1911 = vunpack.c.l.b16 %v1895
      %v1912 = vunpack.c.l.b16 %v1899
      %v1913 = vunpack.c.l.b16 %v1903
      %v1914 = vpack.c.b16 %v1907, %v1906
      %v1915 = vpack.c.b16 %v1909, %v1908
      %v1916 = vpack.c.b16 %v1911, %v1910
      %v1917 = vpack.c.b16 %v1913, %v1912
      %v1919 = vsel %vm643, %v1914, 0
      %v1922 = vsel %vm643, %v1915, 0
      %v1925 = vsel %vm643, %v1916, 0
      %v1928 = vsel %vm643, %v1917, 0
      %v1931 = vsel %vm656, %v1905, 0
      %1933 = vmatprep.subr.bf16.mxu0 0
      %1934 = vmatpush1.bf16.msra.mxu0 0
      %1935 = vmatprep.subr.bf16.mxu0 0
      %1936 = vmatpush1.bf16.msra.mxu0 0
      %1937 = vmatprep.subr.bf16.mxu0 0
      %1938 = vmatpush1.bf16.msra.mxu0 0
      %1939 = vmatprep.subr.bf16.mxu0 0
      %1940 = vmatpush1.bf16.msra.mxu0 0
      %1941 = vmatprep.subr.bf16.mxu0 0
      %1942 = vmatpush1.bf16.msra.mxu0 0
      %1943 = vmatprep.subr.bf16.mxu0 0
      %1944 = vmatpush1.bf16.msra.mxu0 0
      %1945 = vmatprep.subr.bf16.mxu0 0
      %1946 = vmatpush1.bf16.msra.mxu0 0
      %1947 = vmatprep.subr.bf16.mxu0 0
      %1948 = vmatpush1.bf16.msra.mxu0 %v1931
      %1949 = vmatprep.subr.bf16.mxu0 0
      %1950 = vmatpush2.bf16.msra.mxu0 0
      %1951 = vmatprep.subr.bf16.mxu0 0
      %1952 = vmatpush2.bf16.msra.mxu0 0
      %1953 = vmatprep.subr.bf16.mxu0 0
      %1954 = vmatpush2.bf16.msra.mxu0 0
      %1955 = vmatprep.subr.bf16.mxu0 0
      %1956 = vmatpush2.bf16.msra.mxu0 0
      %1957 = vmatprep.subr.bf16.mxu0 0
      %1958 = vmatpush2.bf16.msra.mxu0 0
      %1959 = vmatprep.subr.bf16.mxu0 0
      %1960 = vmatpush2.bf16.msra.mxu0 0
      %1961 = vmatprep.subr.bf16.mxu0 0
      %1962 = vmatpush2.bf16.msra.mxu0 0
      %1963 = vmatprep.subr.bf16.mxu0 0
      %1964 = vmatpush2.bf16.msra.mxu0 0
      %1965 = vmatprep.mubr.bf16.mxu0 0
      %1966 = vmatmul.mubr.bf16.gmra.mxu0 %v1919
      %v1967 = vpop.f32.mrf.mxu0
      %v1968 = vadd.f32 0.0, %v1967
      %v1969 = vpop.f32.mrf.mxu0
      %v1970 = vpop.f32.mrf.mxu0
      %v1971 = vadd.f32 0.0, %v1970
      %v1972 = vpop.f32.mrf.mxu0
      %1973 = vmatprep.mubr.bf16.mxu0 0
      %1974 = vmatmul.mubr.bf16.gmra.mxu0 %v1922
      %v1975 = vpop.f32.mrf.mxu0
      %v1976 = vadd.f32 0.0, %v1975
      %v1977 = vpop.f32.mrf.mxu0
      %v1978 = vpop.f32.mrf.mxu0
      %v1979 = vadd.f32 0.0, %v1978
      %v1980 = vpop.f32.mrf.mxu0
      %1981 = vmatprep.mubr.bf16.mxu0 0
      %1982 = vmatmul.mubr.bf16.gmra.mxu0 %v1925
      %v1983 = vpop.f32.mrf.mxu0
      %v1984 = vadd.f32 0.0, %v1983
      %v1985 = vpop.f32.mrf.mxu0
      %v1986 = vpop.f32.mrf.mxu0
      %v1987 = vadd.f32 0.0, %v1986
      %v1988 = vpop.f32.mrf.mxu0
      %1989 = vmatprep.mubr.bf16.mxu0 0
      %1990 = vmatmul.mubr.bf16.gmra.mxu0 %v1928
      %v1991 = vpop.f32.mrf.mxu0
      %v1992 = vadd.f32 0.0, %v1991
      %v1993 = vpop.f32.mrf.mxu0
      %v1994 = vpop.f32.mrf.mxu0
      %v1995 = vadd.f32 0.0, %v1994
      %v1996 = vpop.f32.mrf.mxu0
      %1997 = vdwg.mxu0
      %v1998 = vadd.f32 %v1840, %v1968
      %v1999 = vadd.f32 %v1841, %v1971
      %v2000 = vadd.f32 %v1842, %v1976
      %v2001 = vadd.f32 %v1843, %v1979
      %v2002 = vadd.f32 %v1844, %v1984
      %v2003 = vadd.f32 %v1845, %v1987
      %v2004 = vadd.f32 %v1846, %v1992
      %v2005 = vadd.f32 %v1847, %v1995
      %v2006 = vld [vmem:[%s265] sm:$0x1]
      %v2008 = vlaneseq
      %v2009 = vshrl.u32 %v2008, 7
      %v2010 = vsub.s32 0, %v2009
      %v2011 = vrot.slane %v2006, %v2010
      %v2013 = vmul.f32 %v1998, %v2011
      %v2014 = vmul.f32 %v1999, %v2011
      %v2015 = vmul.f32 %v2000, %v2011
      %v2016 = vmul.f32 %v2001, %v2011
      %v2017 = vmul.f32 %v2002, %v2011
      %v2018 = vmul.f32 %v2003, %v2011
      %v2019 = vmul.f32 %v2004, %v2011
      %v2020 = vmul.f32 %v2005, %v2011
      %v2021 = vld [vmem:[%s4] sm:$0x1]
      %v2023 = vlaneseq
      %v2024 = vshrl.u32 %v2023, 7
      %v2025 = vsub.s32 0, %v2024
      %v2026 = vrot.slane %v2021, %v2025
      %v2028 = vadd.f32 %v2013, %v2026
      %v2029 = vadd.f32 %v2014, %v2026
      %v2030 = vadd.f32 %v2015, %v2026
      %v2031 = vadd.f32 %v2016, %v2026
      %v2032 = vadd.f32 %v2017, %v2026
      %v2033 = vadd.f32 %v2018, %v2026
      %v2034 = vadd.f32 %v2019, %v2026
      %v2035 = vadd.f32 %v2020, %v2026
      %vm2036 = vcmp.ge.f32.partialorder %v2028, 0.0
      %vm2037 = vcmp.ge.f32.partialorder %v2029, 0.0
      %vm2038 = vcmp.ge.f32.partialorder %v2030, 0.0
      %vm2039 = vcmp.ge.f32.partialorder %v2031, 0.0
      %vm2040 = vcmp.ge.f32.partialorder %v2032, 0.0
      %vm2041 = vcmp.ge.f32.partialorder %v2033, 0.0
      %vm2042 = vcmp.ge.f32.partialorder %v2034, 0.0
      %vm2043 = vcmp.ge.f32.partialorder %v2035, 0.0
      %v2044 = vmul.f32 %v2028, 0.2
      %v2045 = vmul.f32 %v2029, 0.2
      %v2046 = vmul.f32 %v2030, 0.2
      %v2047 = vmul.f32 %v2031, 0.2
      %v2048 = vmul.f32 %v2032, 0.2
      %v2049 = vmul.f32 %v2033, 0.2
      %v2050 = vmul.f32 %v2034, 0.2
      %v2051 = vmul.f32 %v2035, 0.2
      %v2052 = vsel %vm2036, %v2028, %v2044
      %v2053 = vsel %vm2037, %v2029, %v2045
      %v2054 = vsel %vm2038, %v2030, %v2046
      %v2055 = vsel %vm2039, %v2031, %v2047
      %v2056 = vsel %vm2040, %v2032, %v2048
      %v2057 = vsel %vm2041, %v2033, %v2049
      %v2058 = vsel %vm2042, %v2034, %v2050
      %v2059 = vsel %vm2043, %v2035, %v2051
      %vm2060 = vcmask 64512
      %2061 = vst.msk [vmem:[%s274] sm:$0xff] %vm2060, %v2052
      %2062 = vst.msk [vmem:[%s274 + $0x8] sm:$0xff] %vm2060, %v2053
      %2063 = vst.msk [vmem:[%s274 + $0x10] sm:$0xff] %vm2060, %v2054
      %2064 = vst.msk [vmem:[%s274 + $0x18] sm:$0xff] %vm2060, %v2055
      %2065 = vst.msk [vmem:[%s274 + $0x20] sm:$0xff] %vm2060, %v2056
      %2066 = vst.msk [vmem:[%s274 + $0x28] sm:$0xff] %vm2060, %v2057
      %2067 = vst.msk [vmem:[%s274 + $0x30] sm:$0xff] %vm2060, %v2058
      %2068 = vst.msk [vmem:[%s274 + $0x38] sm:$0xff] %vm2060, %v2059
      %s2069 = smul.u32 8, %s21
      %p2070 = scmp.lt.s32.totalorder %s20, 1
      %s2071 = scalar_select %p2070, %s20, 1
      %p2072 = scmp.lt.s32.totalorder %s2069, 7
      %s2073 = scalar_select %p2072, %s2069, 7
      %s2074 = smul.addr %s2071, 8
      %s2075 = sadd.s32 %s2073, %s2074
      %s2076 = smul.addr %s2075, 8
      %s2077 = scalar_lea.vmem %s5, %s2076
      // Predicated region
      $region45: #{_lambda_.5} parent=39 // pred_check
        %p2078 = pneg %p168
      $region46: #{_lambda_.5} parent=39 // pred_check_branch
        %2080 = sbr.rel (%p2078) target = $region48
      $region47: #{_lambda_.5} parent=39 // pred_region
        %s2081 = smul.u32 8, %s21
      $region48: #{_lambda_.5} parent=39 // pred_fallthru
        _
    $region40: #{_lambda_.5} parent=5 // pred_fallthru
      _
    %p2082 = scmp.le.s32.totalorder 2, %s11
    // Predicated region
    $region49: #{_lambda_.5} parent=5 // pred_check
      %p2083 = pneg %p2082
    $region50: #{_lambda_.5} parent=5 // pred_check_branch
      %2085 = sbr.rel (%p2083) target = $region52
    $region51: #{_lambda_.5} parent=5 // pred_region
      %s2086 = ssub.s32 %s11, 2
      // Predicated region
      $region53: #{_lambda_.5} parent=51 // pred_check
        %p2087 = pneg %p174
      $region54: #{_lambda_.5} parent=51 // pred_check_branch
        %2089 = sbr.rel (%p2087) target = $region56
      $region55: #{_lambda_.5} parent=51 // pred_region
        %s2090 = smul.u32 8, %s23
        %p2091 = scmp.lt.s32.totalorder %s22, 1
        %s2092 = scalar_select %p2091, %s22, 1
        %p2093 = scmp.lt.s32.totalorder %s2090, 7
        %s2094 = scalar_select %p2093, %s2090, 7
        %s2095 = smul.addr %s2092, 8
        %s2096 = sadd.s32 %s2094, %s2095
        %s2097 = smul.addr %s2096, 8
        %s2098 = scalar_lea.vmem %s5, %s2097
      $region56: #{_lambda_.5} parent=51 // pred_fallthru
        _
    $region52: #{_lambda_.5} parent=5 // pred_fallthru
      _
  $region6: #{_lambda_.5} parent=0 // loop_footer
    %s15 = sadd.s32 1, %s11
  $region7: #{_lambda_.5} parent=0 // loop_footer_branch
    %10 = sbr.rel target = $region3
  $region8: #{_lambda_.5} parent=0 // loop_exit
    _

// kernel: _lambda_.7
$region0: #{_lambda_.7}
  #allocation0 [shape = 'u32[]', space=smem, size = 0x4, offset = 0x4, fixed_abs, tag = 'smem constant byte address 0x4 - core index']
  #allocation1 [shape = 'u32[144,128]{1,0:T(1,128)}', space=vmem, size = 0x12000, scoped, tag = 'internal scratch']
  #allocation2 [shape = 'bf16[18,18,8]{2,1,0:T(8,128)(2,1)}', space=vmem, size = 0x1b000, scoped, tag = 'scratch operand']
  %s0 = inlined_call_operand.vmem [shape: f32[2,16,16,8], index: 0, kind: input, shape index: {}]
  %s1 = inlined_call_operand.vmem [shape: bf16[9,8,8], index: 1, kind: input, shape index: {}]
  %s2 = inlined_call_operand.vmem [shape: f32[2,1,8], index: 2, kind: input, shape index: {}]
  %s3 = inlined_call_operand.vmem [shape: f32[2,1,8], index: 3, kind: input, shape index: {}]
  %s4 = inlined_call_operand.vmem [shape: f32[1,8], index: 4, kind: input, shape index: {}]
  %s5 = inlined_call_operand.vmem [shape: f32[2,16,16,8], index: 5, kind: output, shape index: {}]
  %s6 = sld [smem:[#allocation0]]
  $region57: #{_lambda_.7} parent=0
    _
  %s8 = ssub.s32 1, %s6
  %s9 = scalar_select 0, %s8, %s6
  loop: start=0, step=1, limit=6
  $region2: #{_lambda_.7} parent=0 // loop_pre_header
    _
  $region3: #{_lambda_.7} parent=0 // loop_header
    %s11 = sphi 0, %s15
    %p12 = scmp.ge.s32.totalorder %s11, 6
    %s18 = sphi 0, %s30
    %s19 = sphi 0, %s26
    %s20 = sphi 0, %s18
    %s21 = sphi 0, %s19
    %s22 = sphi 0, %s20
    %s23 = sphi 0, %s21
    %s33 = sphi 0, %s35
    %s36 = sphi 0, %s33
    %s37 = sphi 0, %s36
    %s53 = sphi 0, %s37
    %s57 = sphi 0, %s57
    %s59 = sphi 0, %s57
    %s60 = sphi 0, %s59
    %s74 = sphi 0, %s60
    %s80 = sphi 0, %s82
    %s83 = sphi 0, %s80
    %s84 = sphi 0, %s83
    %s100 = sphi 0, %s84
    %s106 = sphi 0, %s108
    %s109 = sphi 0, %s106
    %s110 = sphi 0, %s109
    %s126 = sphi 0, %s110
    %s130 = sphi 0, %s130
    %s132 = sphi 0, %s130
    %s133 = sphi 0, %s132
    %s147 = sphi 0, %s133
    %s155 = sphi 0, %s157
    %s158 = sphi 0, %s155
    %s159 = sphi 0, %s158
    %s175 = sphi 0, %s159
  $region4: #{_lambda_.7} parent=0 // loop_header_branch
    %14 = sbr.rel (%p12) target = $region8
  $region5: #{_lambda_.7} parent=0 // loop_body
    %s16 = ssub.s32 %s11, 1
    %s17 = ssub.s32 %s11, 2
    %s24 = sadd.s32 1, %s19
    %p25 = scmp.ge.s32.totalorder %s24, 2
    %s26 = scalar_select %p25, 0, %s24
    %s27 = sadd.s32 1, %s18
    %s28 = scalar_select %p25, %s27, %s18
    %p29 = scmp.ge.s32.totalorder %s28, 2
    %s30 = scalar_select %p29, 0, %s28
    %s31 = ssub.s32 %s18, %s30
    %p32 = scmp.eq.s32.totalorder %s31, 0
    %s34 = sadd.s32 %s33, 1
    %s35 = scalar_select %p32, %s33, %s34
    %p38 = pneg %p32
    %p39 = scmp.eq.s32.totalorder %s11, 3
    %p40 = por %p38, %p39
    %p41 = scmp.ne.s32.totalorder %s33, %s36
    %p42 = scmp.eq.s32.totalorder %s11, 0
    %p43 = por %p41, %p42
    %p44 = scmp.ne.s32.totalorder %s33, %s36
    %p45 = scmp.eq.s32.totalorder %s16, 3
    %p46 = por %p44, %p45
    %p47 = scmp.ne.s32.totalorder %s36, %s37
    %p48 = scmp.eq.s32.totalorder %s16, 0
    %p49 = por %p47, %p48
    %p50 = scmp.ne.s32.totalorder %s36, %s37
    %p51 = scmp.eq.s32.totalorder %s17, 3
    %p52 = por %p50, %p51
    %p54 = scmp.ne.s32.totalorder %s37, %s53
    %p55 = scmp.eq.s32.totalorder %s17, 0
    %p56 = por %p54, %p55
    %s58 = sadd.s32 %s57, 1
    %p61 = scmp.eq.s32.totalorder %s11, 3
    %p62 = scmp.ne.s32.totalorder %s57, %s59
    %p63 = scmp.eq.s32.totalorder %s11, 0
    %p64 = por %p62, %p63
    %p65 = scmp.ne.s32.totalorder %s57, %s59
    %p66 = scmp.eq.s32.totalorder %s16, 3
    %p67 = por %p65, %p66
    %p68 = scmp.ne.s32.totalorder %s59, %s60
    %p69 = scmp.eq.s32.totalorder %s16, 0
    %p70 = por %p68, %p69
    %p71 = scmp.ne.s32.totalorder %s59, %s60
    %p72 = scmp.eq.s32.totalorder %s17, 3
    %p73 = por %p71, %p72
    %p75 = scmp.ne.s32.totalorder %s60, %s74
    %p76 = scmp.eq.s32.totalorder %s17, 0
    %p77 = por %p75, %p76
    %s78 = ssub.s32 %s18, %s30
    %p79 = scmp.eq.s32.totalorder %s78, 0
    %s81 = sadd.s32 %s80, 1
    %s82 = scalar_select %p79, %s80, %s81
    %p85 = pneg %p79
    %p86 = scmp.eq.s32.totalorder %s11, 3
    %p87 = por %p85, %p86
    %p88 = scmp.ne.s32.totalorder %s80, %s83
    %p89 = scmp.eq.s32.totalorder %s11, 0
    %p90 = por %p88, %p89
    %p91 = scmp.ne.s32.totalorder %s80, %s83
    %p92 = scmp.eq.s32.totalorder %s16, 3
    %p93 = por %p91, %p92
    %p94 = scmp.ne.s32.totalorder %s83, %s84
    %p95 = scmp.eq.s32.totalorder %s16, 0
    %p96 = por %p94, %p95
    %p97 = scmp.ne.s32.totalorder %s83, %s84
    %p98 = scmp.eq.s32.totalorder %s17, 3
    %p99 = por %p97, %p98
    %p101 = scmp.ne.s32.totalorder %s84, %s100
    %p102 = scmp.eq.s32.totalorder %s17, 0
    %p103 = por %p101, %p102
    %s104 = ssub.s32 %s18, %s30
    %p105 = scmp.eq.s32.totalorder %s104, 0
    %s107 = sadd.s32 %s106, 1
    %s108 = scalar_select %p105, %s106, %s107
    %p111 = pneg %p105
    %p112 = scmp.eq.s32.totalorder %s11, 3
    %p113 = por %p111, %p112
    %p114 = scmp.ne.s32.totalorder %s106, %s109
    %p115 = scmp.eq.s32.totalorder %s11, 0
    %p116 = por %p114, %p115
    %p117 = scmp.ne.s32.totalorder %s106, %s109
    %p118 = scmp.eq.s32.totalorder %s16, 3
    %p119 = por %p117, %p118
    %p120 = scmp.ne.s32.totalorder %s109, %s110
    %p121 = scmp.eq.s32.totalorder %s16, 0
    %p122 = por %p120, %p121
    %p123 = scmp.ne.s32.totalorder %s109, %s110
    %p124 = scmp.eq.s32.totalorder %s17, 3
    %p125 = por %p123, %p124
    %p127 = scmp.ne.s32.totalorder %s110, %s126
    %p128 = scmp.eq.s32.totalorder %s17, 0
    %p129 = por %p127, %p128
    %s131 = sadd.s32 %s130, 1
    %p134 = scmp.eq.s32.totalorder %s11, 3
    %p135 = scmp.ne.s32.totalorder %s130, %s132
    %p136 = scmp.eq.s32.totalorder %s11, 0
    %p137 = por %p135, %p136
    %p138 = scmp.ne.s32.totalorder %s130, %s132
    %p139 = scmp.eq.s32.totalorder %s16, 3
    %p140 = por %p138, %p139
    %p141 = scmp.ne.s32.totalorder %s132, %s133
    %p142 = scmp.eq.s32.totalorder %s16, 0
    %p143 = por %p141, %p142
    %p144 = scmp.ne.s32.totalorder %s132, %s133
    %p145 = scmp.eq.s32.totalorder %s17, 3
    %p146 = por %p144, %p145
    %p148 = scmp.ne.s32.totalorder %s133, %s147
    %p149 = scmp.eq.s32.totalorder %s17, 0
    %p150 = por %p148, %p149
    %s151 = ssub.s32 %s18, %s30
    %s152 = ssub.s32 %s19, %s26
    %s153 = sor.u32 %s151, %s152
    %p154 = scmp.eq.s32.totalorder %s153, 0
    %s156 = sadd.s32 %s155, 1
    %s157 = scalar_select %p154, %s155, %s156
    %p160 = pneg %p154
    %p161 = scmp.eq.s32.totalorder %s11, 3
    %p162 = por %p160, %p161
    %p163 = scmp.ne.s32.totalorder %s155, %s158
    %p164 = scmp.eq.s32.totalorder %s11, 0
    %p165 = por %p163, %p164
    %p166 = scmp.ne.s32.totalorder %s155, %s158
    %p167 = scmp.eq.s32.totalorder %s16, 3
    %p168 = por %p166, %p167
    %p169 = scmp.ne.s32.totalorder %s158, %s159
    %p170 = scmp.eq.s32.totalorder %s16, 0
    %p171 = por %p169, %p170
    %p172 = scmp.ne.s32.totalorder %s158, %s159
    %p173 = scmp.eq.s32.totalorder %s17, 3
    %p174 = por %p172, %p173
    %p176 = scmp.ne.s32.totalorder %s159, %s175
    %p177 = scmp.eq.s32.totalorder %s17, 0
    %p178 = por %p176, %p177
    %p179 = scmp.le.s32.totalorder 1, %s11
    %p180 = scmp.lt.s32.totalorder %s11, 5
    %p181 = pnand %p179, %p180
    %p182 = pneg %p181
    // Predicated region
    $region9: #{_lambda_.7} parent=5 // pred_check
      _
    $region10: #{_lambda_.7} parent=5 // pred_check_branch
      %184 = sbr.rel (%p181) target = $region12
    $region11: #{_lambda_.7} parent=5 // pred_region
      %s185 = ssub.s32 %s11, 1
      // Predicated region
      $region13: #{_lambda_.7} parent=11 // pred_check
        %p186 = pneg %p70
      $region14: #{_lambda_.7} parent=11 // pred_check_branch
        %188 = sbr.rel (%p186) target = $region16
      $region15: #{_lambda_.7} parent=11 // pred_region
        _
      $region16: #{_lambda_.7} parent=11 // pred_fallthru
        _
      // Predicated region
      $region17: #{_lambda_.7} parent=11 // pred_check
        %p189 = pneg %p143
      $region18: #{_lambda_.7} parent=11 // pred_check_branch
        %191 = sbr.rel (%p189) target = $region20
      $region19: #{_lambda_.7} parent=11 // pred_region
        _
      $region20: #{_lambda_.7} parent=11 // pred_fallthru
        _
    $region12: #{_lambda_.7} parent=5 // pred_fallthru
      _
    %p192 = scmp.lt.s32.totalorder %s11, 4
    // Predicated region
    $region21: #{_lambda_.7} parent=5 // pred_check
      %p193 = pneg %p192
    $region22: #{_lambda_.7} parent=5 // pred_check_branch
      %195 = sbr.rel (%p193) target = $region24
    $region23: #{_lambda_.7} parent=5 // pred_region
      // Predicated region
      $region25: #{_lambda_.7} parent=23 // pred_check
        %p196 = pneg %p43
      $region26: #{_lambda_.7} parent=23 // pred_check_branch
        %198 = sbr.rel (%p196) target = $region28
      $region27: #{_lambda_.7} parent=23 // pred_region
        %p199 = scmp.lt.s32.totalorder %s18, 1
        %s200 = scalar_select %p199, %s18, 1
        %s201 = smul.addr %s200, 32
        %s202 = smul.addr %s201, 8
        %s203 = scalar_lea.vmem %s0, %s202
      $region28: #{_lambda_.7} parent=23 // pred_fallthru
        _
      // Predicated region
      $region29: #{_lambda_.7} parent=23 // pred_check
        %p204 = pneg %p90
      $region30: #{_lambda_.7} parent=23 // pred_check_branch
        %206 = sbr.rel (%p204) target = $region32
      $region31: #{_lambda_.7} parent=23 // pred_region
        %p207 = scmp.lt.s32.totalorder %s18, 1
        %s208 = scalar_select %p207, %s18, 1
        %s209 = scalar_lea.vmem %s2, %s208
      $region32: #{_lambda_.7} parent=23 // pred_fallthru
        _
      // Predicated region
      $region33: #{_lambda_.7} parent=23 // pred_check
        %p210 = pneg %p116
      $region34: #{_lambda_.7} parent=23 // pred_check_branch
        %212 = sbr.rel (%p210) target = $region36
      $region35: #{_lambda_.7} parent=23 // pred_region
        %p213 = scmp.lt.s32.totalorder %s18, 1
        %s214 = scalar_select %p213, %s18, 1
        %s215 = scalar_lea.vmem %s3, %s214
      $region36: #{_lambda_.7} parent=23 // pred_fallthru
        _
    $region24: #{_lambda_.7} parent=5 // pred_fallthru
      _
    %p216 = scmp.le.s32.totalorder 1, %s11
    %p217 = scmp.lt.s32.totalorder %s11, 5
    %p218 = pnand %p216, %p217
    %p219 = pneg %p218
    // Predicated region
    $region37: #{_lambda_.7} parent=5 // pred_check
      _
    $region38: #{_lambda_.7} parent=5 // pred_check_branch
      %221 = sbr.rel (%p218) target = $region40
    $region39: #{_lambda_.7} parent=5 // pred_region
      %s222 = ssub.s32 %s11, 1
      %p223 = scmp.lt.s32.totalorder %s20, 1
      %s224 = scalar_select %p223, %s20, 1
      %s225 = smul.addr %s224, 32
      %s226 = smul.addr %s225, 8
      %s227 = scalar_lea.vmem %s0, %s226
      %p228 = pneg %p49
      %p229 = pneg %p46
      %p230 = pneg %p70
      %p231 = pneg %p67
      %p232 = scmp.lt.s32.totalorder %s20, 1
      %s233 = scalar_select %p232, %s20, 1
      %s234 = scalar_lea.vmem %s2, %s233
      %p235 = pneg %p96
      %p236 = pneg %p93
      %p237 = scmp.lt.s32.totalorder %s20, 1
      %s238 = scalar_select %p237, %s20, 1
      %s239 = scalar_lea.vmem %s3, %s238
      %p240 = pneg %p122
      %p241 = pneg %p119
      %p242 = pneg %p143
      %p243 = pneg %p140
      %p244 = pneg %p171
      %p245 = pneg %p168
      %s246 = smul.u32 8, %s21
      %p247 = scmp.lt.s32.totalorder %s20, 1
      %s248 = scalar_select %p247, %s20, 1
      %p249 = scmp.lt.s32.totalorder %s246, 15
      %s250 = scalar_select %p249, %s246, 15
      %s251 = smul.addr %s250, 2
      %s252 = smul.addr %s248, 32
      %s253 = sadd.s32 %s251, %s252
      %s254 = smul.addr %s253, 8
      %s255 = scalar_lea.vmem %s5, %s254
      %p256 = scmp.lt.s32.totalorder %s20, 1
      %s257 = scalar_select %p256, %s20, 1
      %s258 = smul.addr %s257, 32
      %s259 = smul.addr %s258, 8
      %s260 = scalar_lea.vmem %s0, %s259
      %p261 = scmp.lt.s32.totalorder %s20, 1
      %s262 = scalar_select %p261, %s20, 1
      %s263 = scalar_lea.vmem %s2, %s262
      %p264 = scmp.lt.s32.totalorder %s20, 1
      %s265 = scalar_select %p264, %s20, 1
      %s266 = scalar_lea.vmem %s3, %s265
      %s267 = smul.u32 8, %s21
      %p268 = scmp.lt.s32.totalorder %s20, 1
      %s269 = scalar_select %p268, %s20, 1
      %p270 = scmp.lt.s32.totalorder %s267, 15
      %s271 = scalar_select %p270, %s267, 15
      %s272 = smul.addr %s271, 2
      %s273 = smul.addr %s269, 32
      %s274 = sadd.s32 %s272, %s273
      %s275 = smul.addr %s274, 8
      %s276 = scalar_lea.vmem %s5, %s275
      %s277 = smul.u32 8, %s21
      %p279 = scmp.eq.s32.totalorder %s21, 0
      // Predicated region
      $region41: #{_lambda_.7} parent=39 // pred_check
        %p280 = pneg %p279
      $region42: #{_lambda_.7} parent=39 // pred_check_branch
        %282 = sbr.rel (%p280) target = $region44
      $region43: #{_lambda_.7} parent=39 // pred_region
        %vm283 = vcmask 60416
        %284 = vst.msk [vmem:[#allocation2] sm:$0xf] %vm283, 0
        %285 = vst.msk [vmem:[#allocation2 + $0x4] sm:$0xf] %vm283, 0
        %vm286 = vcmask 57344
        %287 = vst.msk [vmem:[#allocation2 + $0x8] sm:$0x1] %vm286, 0
        %288 = vst.msk [vmem:[#allocation2 + $0xc] sm:$0xf] %vm283, 0
        %289 = vst.msk [vmem:[#allocation2 + $0x10] sm:$0xf] %vm283, 0
        %290 = vst.msk [vmem:[#allocation2 + $0x14] sm:$0x1] %vm286, 0
        %291 = vst.msk [vmem:[#allocation2 + $0x18] sm:$0xf] %vm283, 0
        %292 = vst.msk [vmem:[#allocation2 + $0x1c] sm:$0xf] %vm283, 0
        %293 = vst.msk [vmem:[#allocation2 + $0x20] sm:$0x1] %vm286, 0
        %294 = vst.msk [vmem:[#allocation2 + $0x24] sm:$0xf] %vm283, 0
        %295 = vst.msk [vmem:[#allocation2 + $0x28] sm:$0xf] %vm283, 0
        %296 = vst.msk [vmem:[#allocation2 + $0x2c] sm:$0x1] %vm286, 0
        %297 = vst.msk [vmem:[#allocation2 + $0x30] sm:$0xf] %vm283, 0
        %298 = vst.msk [vmem:[#allocation2 + $0x34] sm:$0xf] %vm283, 0
        %299 = vst.msk [vmem:[#allocation2 + $0x38] sm:$0x1] %vm286, 0
        %300 = vst.msk [vmem:[#allocation2 + $0x3c] sm:$0xf] %vm283, 0
        %301 = vst.msk [vmem:[#allocation2 + $0x40] sm:$0xf] %vm283, 0
        %302 = vst.msk [vmem:[#allocation2 + $0x44] sm:$0x1] %vm286, 0
        %303 = vst.msk [vmem:[#allocation2 + $0x48] sm:$0xf] %vm283, 0
        %304 = vst.msk [vmem:[#allocation2 + $0x4c] sm:$0xf] %vm283, 0
        %305 = vst.msk [vmem:[#allocation2 + $0x50] sm:$0x1] %vm286, 0
        %306 = vst.msk [vmem:[#allocation2 + $0x54] sm:$0xf] %vm283, 0
        %307 = vst.msk [vmem:[#allocation2 + $0x58] sm:$0xf] %vm283, 0
        %308 = vst.msk [vmem:[#allocation2 + $0x5c] sm:$0x1] %vm286, 0
        %309 = vst.msk [vmem:[#allocation2 + $0x60] sm:$0xf] %vm283, 0
        %310 = vst.msk [vmem:[#allocation2 + $0x64] sm:$0xf] %vm283, 0
        %311 = vst.msk [vmem:[#allocation2 + $0x68] sm:$0x1] %vm286, 0
        %312 = vst.msk [vmem:[#allocation2 + $0x6c] sm:$0xf] %vm283, 0
        %313 = vst.msk [vmem:[#allocation2 + $0x70] sm:$0xf] %vm283, 0
        %314 = vst.msk [vmem:[#allocation2 + $0x74] sm:$0x1] %vm286, 0
        %315 = vst.msk [vmem:[#allocation2 + $0x78] sm:$0xf] %vm283, 0
        %316 = vst.msk [vmem:[#allocation2 + $0x7c] sm:$0xf] %vm283, 0
        %317 = vst.msk [vmem:[#allocation2 + $0x80] sm:$0x1] %vm286, 0
        %318 = vst.msk [vmem:[#allocation2 + $0x84] sm:$0xf] %vm283, 0
        %319 = vst.msk [vmem:[#allocation2 + $0x88] sm:$0xf] %vm283, 0
        %320 = vst.msk [vmem:[#allocation2 + $0x8c] sm:$0x1] %vm286, 0
        %321 = vst.msk [vmem:[#allocation2 + $0x90] sm:$0xf] %vm283, 0
        %322 = vst.msk [vmem:[#allocation2 + $0x94] sm:$0xf] %vm283, 0
        %323 = vst.msk [vmem:[#allocation2 + $0x98] sm:$0x1] %vm286, 0
        %324 = vst.msk [vmem:[#allocation2 + $0x9c] sm:$0xf] %vm283, 0
        %325 = vst.msk [vmem:[#allocation2 + $0xa0] sm:$0xf] %vm283, 0
        %326 = vst.msk [vmem:[#allocation2 + $0xa4] sm:$0x1] %vm286, 0
        %327 = vst.msk [vmem:[#allocation2 + $0xa8] sm:$0xf] %vm283, 0
        %328 = vst.msk [vmem:[#allocation2 + $0xac] sm:$0xf] %vm283, 0
        %329 = vst.msk [vmem:[#allocation2 + $0xb0] sm:$0x1] %vm286, 0
        %330 = vst.msk [vmem:[#allocation2 + $0xb4] sm:$0xf] %vm283, 0
        %331 = vst.msk [vmem:[#allocation2 + $0xb8] sm:$0xf] %vm283, 0
        %332 = vst.msk [vmem:[#allocation2 + $0xbc] sm:$0x1] %vm286, 0
        %333 = vst.msk [vmem:[#allocation2 + $0xc0] sm:$0xf] %vm283, 0
        %334 = vst.msk [vmem:[#allocation2 + $0xc4] sm:$0xf] %vm283, 0
        %335 = vst.msk [vmem:[#allocation2 + $0xc8] sm:$0x1] %vm286, 0
        %336 = vst.msk [vmem:[#allocation2 + $0xcc] sm:$0xf] %vm283, 0
        %337 = vst.msk [vmem:[#allocation2 + $0xd0] sm:$0xf] %vm283, 0
        %338 = vst.msk [vmem:[#allocation2 + $0xd4] sm:$0x1] %vm286, 0
        %v339 = vld [vmem:[%s260] sm:$0xff]
        %v340 = vld [vmem:[%s260 + $0x8] sm:$0xff]
        %v341 = vld [vmem:[%s260 + $0x10] sm:$0xff]
        %v342 = vld [vmem:[%s260 + $0x18] sm:$0xff]
        %v343 = vld [vmem:[%s260 + $0x20] sm:$0xff]
        %v344 = vld [vmem:[%s260 + $0x28] sm:$0xff]
        %v345 = vld [vmem:[%s260 + $0x30] sm:$0xff]
        %v346 = vld [vmem:[%s260 + $0x38] sm:$0xff]
        %v347 = vld [vmem:[%s260 + $0x40] sm:$0xff]
        %v348 = vld [vmem:[%s260 + $0x48] sm:$0xff]
        %v349 = vld [vmem:[%s260 + $0x50] sm:$0xff]
        %v350 = vld [vmem:[%s260 + $0x58] sm:$0xff]
        %v351 = vld [vmem:[%s260 + $0x60] sm:$0xff]
        %v352 = vld [vmem:[%s260 + $0x68] sm:$0xff]
        %v353 = vld [vmem:[%s260 + $0x70] sm:$0xff]
        %v354 = vld [vmem:[%s260 + $0x78] sm:$0xff]
        %v355 = vld [vmem:[%s260 + $0x80] sm:$0xff]
        %v356 = vld [vmem:[%s260 + $0x88] sm:$0xff]
        %v357 = vld [vmem:[%s260 + $0x90] sm:$0xff]
        %v358 = vld [vmem:[%s260 + $0x98] sm:$0xff]
        %v359 = vld [vmem:[%s260 + $0xa0] sm:$0xff]
        %v360 = vld [vmem:[%s260 + $0xa8] sm:$0xff]
        %v361 = vld [vmem:[%s260 + $0xb0] sm:$0xff]
        %v362 = vld [vmem:[%s260 + $0xb8] sm:$0xff]
        %v363 = vld [vmem:[%s260 + $0xc0] sm:$0xff]
        %v364 = vld [vmem:[%s260 + $0xc8] sm:$0xff]
        %v365 = vld [vmem:[%s260 + $0xd0] sm:$0xff]
        %v366 = vld [vmem:[%s260 + $0xd8] sm:$0xff]
        %v367 = vld [vmem:[%s260 + $0xe0] sm:$0xff]
        %v368 = vld [vmem:[%s260 + $0xe8] sm:$0xff]
        %v369 = vld [vmem:[%s260 + $0xf0] sm:$0xff]
        %v370 = vld [vmem:[%s260 + $0xf8] sm:$0xff]
        %v371 = vld [vmem:[%s263] sm:$0x1]
        %v373 = vlaneseq
        %v374 = vshrl.u32 %v373, 7
        %v375 = vsub.s32 0, %v374
        %v376 = vrot.slane %v371, %v375
        %v378 = vmul.f32 %v339, %v376
        %v379 = vmul.f32 %v340, %v376
        %v380 = vmul.f32 %v341, %v376
        %v381 = vmul.f32 %v342, %v376
        %v382 = vmul.f32 %v343, %v376
        %v383 = vmul.f32 %v344, %v376
        %v384 = vmul.f32 %v345, %v376
        %v385 = vmul.f32 %v346, %v376
        %v386 = vmul.f32 %v347, %v376
        %v387 = vmul.f32 %v348, %v376
        %v388 = vmul.f32 %v349, %v376
        %v389 = vmul.f32 %v350, %v376
        %v390 = vmul.f32 %v351, %v376
        %v391 = vmul.f32 %v352, %v376
        %v392 = vmul.f32 %v353, %v376
        %v393 = vmul.f32 %v354, %v376
        %v394 = vmul.f32 %v355, %v376
        %v395 = vmul.f32 %v356, %v376
        %v396 = vmul.f32 %v357, %v376
        %v397 = vmul.f32 %v358, %v376
        %v398 = vmul.f32 %v359, %v376
        %v399 = vmul.f32 %v360, %v376
        %v400 = vmul.f32 %v361, %v376
        %v401 = vmul.f32 %v362, %v376
        %v402 = vmul.f32 %v363, %v376
        %v403 = vmul.f32 %v364, %v376
        %v404 = vmul.f32 %v365, %v376
        %v405 = vmul.f32 %v366, %v376
        %v406 = vmul.f32 %v367, %v376
        %v407 = vmul.f32 %v368, %v376
        %v408 = vmul.f32 %v369, %v376
        %v409 = vmul.f32 %v370, %v376
        %v410 = vpack.c.bf16 %v379, %v378
        %v411 = vpack.c.bf16 %v381, %v380
        %v412 = vpack.c.bf16 %v383, %v382
        %v413 = vpack.c.bf16 %v385, %v384
        %v414 = vpack.c.bf16 %v387, %v386
        %v415 = vpack.c.bf16 %v389, %v388
        %v416 = vpack.c.bf16 %v391, %v390
        %v417 = vpack.c.bf16 %v393, %v392
        %v418 = vpack.c.bf16 %v395, %v394
        %v419 = vpack.c.bf16 %v397, %v396
        %v420 = vpack.c.bf16 %v399, %v398
        %v421 = vpack.c.bf16 %v401, %v400
        %v422 = vpack.c.bf16 %v403, %v402
        %v423 = vpack.c.bf16 %v405, %v404
        %v424 = vpack.c.bf16 %v407, %v406
        %v425 = vpack.c.bf16 %v409, %v408
        %v442 = vunpack.c.l.b16 %v410
        %v443 = vunpack.c.h.b16 %v410
        %v444 = vunpack.c.l.b16 %v411
        %v445 = vunpack.c.h.b16 %v411
        %v446 = vunpack.c.l.b16 %v412
        %v447 = vunpack.c.h.b16 %v412
        %v448 = vunpack.c.l.b16 %v413
        %v449 = vunpack.c.h.b16 %v413
        %v450 = vunpack.c.l.b16 %v414
        %v451 = vunpack.c.h.b16 %v414
        %v452 = vunpack.c.l.b16 %v415
        %v453 = vunpack.c.h.b16 %v415
        %v454 = vunpack.c.l.b16 %v416
        %v455 = vunpack.c.h.b16 %v416
        %v456 = vunpack.c.l.b16 %v417
        %v457 = vunpack.c.h.b16 %v417
        %v458 = vunpack.c.l.b16 %v418
        %v459 = vunpack.c.h.b16 %v418
        %v460 = vunpack.c.l.b16 %v419
        %v461 = vunpack.c.h.b16 %v419
        %v462 = vunpack.c.l.b16 %v420
        %v463 = vunpack.c.h.b16 %v420
        %v464 = vunpack.c.l.b16 %v421
        %v465 = vunpack.c.h.b16 %v421
        %v466 = vunpack.c.l.b16 %v422
        %v467 = vunpack.c.h.b16 %v422
        %v468 = vunpack.c.l.b16 %v423
        %v469 = vunpack.c.h.b16 %v423
        %v470 = vunpack.c.l.b16 %v424
        %v471 = vunpack.c.h.b16 %v424
        %v472 = vunpack.c.l.b16 %v425
        %v473 = vunpack.c.h.b16 %v425
        %v474 = vpack.c.b16 %v442, %v442
        %v475 = vpack.c.b16 %v443, %v443
        %v476 = vpack.c.b16 %v444, %v444
        %v477 = vpack.c.b16 %v445, %v445
        %v478 = vpack.c.b16 %v446, %v446
        %v479 = vpack.c.b16 %v447, %v447
        %v480 = vpack.c.b16 %v448, %v448
        %v481 = vpack.c.b16 %v449, %v449
        %v482 = vpack.c.b16 %v450, %v450
        %v483 = vpack.c.b16 %v451, %v451
        %v484 = vpack.c.b16 %v452, %v452
        %v485 = vpack.c.b16 %v453, %v453
        %v486 = vpack.c.b16 %v454, %v454
        %v487 = vpack.c.b16 %v455, %v455
        %v488 = vpack.c.b16 %v456, %v456
        %v489 = vpack.c.b16 %v457, %v457
        %v490 = vpack.c.b16 %v458, %v458
        %v491 = vpack.c.b16 %v459, %v459
        %v492 = vpack.c.b16 %v460, %v460
        %v493 = vpack.c.b16 %v461, %v461
        %v494 = vpack.c.b16 %v462, %v462
        %v495 = vpack.c.b16 %v463, %v463
        %v496 = vpack.c.b16 %v464, %v464
        %v497 = vpack.c.b16 %v465, %v465
        %v498 = vpack.c.b16 %v466, %v466
        %v499 = vpack.c.b16 %v467, %v467
        %v500 = vpack.c.b16 %v468, %v468
        %v501 = vpack.c.b16 %v469, %v469
        %v502 = vpack.c.b16 %v470, %v470
        %v503 = vpack.c.b16 %v471, %v471
        %v504 = vpack.c.b16 %v472, %v472
        %v505 = vpack.c.b16 %v473, %v473
        %vm506 = vsmask.f32 256
        %vm507 = vsmask.f32 4368
        %vm508 = vmor %vm506, %vm507
        %v510 = vshrl.u32 %v474, 16
        %v512 = vrot.slane %v510, 7
        %v513 = vshll.u32 %v474, 16
        %v515 = vor.u32 %v512, %v513
        %v516 = vrot.slane %v512, 4
        %v518 = vshrl.u32 %v475, 16
        %v520 = vrot.slane %v518, 7
        %v521 = vshll.u32 %v475, 16
        %v523 = vor.u32 %v520, %v521
        %v524 = vsel %vm508, %v516, %v523
        %v525 = vrot.slane %v520, 4
        %v527 = vshrl.u32 %v476, 16
        %v529 = vrot.slane %v527, 7
        %v530 = vshll.u32 %v476, 16
        %v532 = vor.u32 %v529, %v530
        %v533 = vrot.slane %v529, 4
        %v535 = vshrl.u32 %v477, 16
        %v537 = vrot.slane %v535, 7
        %v538 = vshll.u32 %v477, 16
        %v540 = vor.u32 %v537, %v538
        %v541 = vsel %vm508, %v533, %v540
        %v542 = vrot.slane %v537, 4
        %v544 = vshrl.u32 %v478, 16
        %v546 = vrot.slane %v544, 7
        %v547 = vshll.u32 %v478, 16
        %v549 = vor.u32 %v546, %v547
        %v550 = vrot.slane %v546, 4
        %v552 = vshrl.u32 %v479, 16
        %v554 = vrot.slane %v552, 7
        %v555 = vshll.u32 %v479, 16
        %v557 = vor.u32 %v554, %v555
        %v558 = vsel %vm508, %v550, %v557
        %v559 = vrot.slane %v554, 4
        %v561 = vshrl.u32 %v480, 16
        %v563 = vrot.slane %v561, 7
        %v564 = vshll.u32 %v480, 16
        %v566 = vor.u32 %v563, %v564
        %v567 = vrot.slane %v563, 4
        %v569 = vshrl.u32 %v481, 16
        %v571 = vrot.slane %v569, 7
        %v572 = vshll.u32 %v481, 16
        %v574 = vor.u32 %v571, %v572
        %v575 = vsel %vm508, %v567, %v574
        %v576 = vrot.slane %v571, 4
        %v578 = vshrl.u32 %v482, 16
        %v580 = vrot.slane %v578, 7
        %v581 = vshll.u32 %v482, 16
        %v583 = vor.u32 %v580, %v581
        %v584 = vrot.slane %v580, 4
        %v586 = vshrl.u32 %v483, 16
        %v588 = vrot.slane %v586, 7
        %v589 = vshll.u32 %v483, 16
        %v591 = vor.u32 %v588, %v589
        %v592 = vsel %vm508, %v584, %v591
        %v593 = vrot.slane %v588, 4
        %v595 = vshrl.u32 %v484, 16
        %v597 = vrot.slane %v595, 7
        %v598 = vshll.u32 %v484, 16
        %v600 = vor.u32 %v597, %v598
        %v601 = vrot.slane %v597, 4
        %v603 = vshrl.u32 %v485, 16
        %v605 = vrot.slane %v603, 7
        %v606 = vshll.u32 %v485, 16
        %v608 = vor.u32 %v605, %v606
        %v609 = vsel %vm508, %v601, %v608
        %v610 = vrot.slane %v605, 4
        %v612 = vshrl.u32 %v486, 16
        %v614 = vrot.slane %v612, 7
        %v615 = vshll.u32 %v486, 16
        %v617 = vor.u32 %v614, %v615
        %v618 = vrot.slane %v614, 4
        %v620 = vshrl.u32 %v487, 16
        %v622 = vrot.slane %v620, 7
        %v623 = vshll.u32 %v487, 16
        %v625 = vor.u32 %v622, %v623
        %v626 = vsel %vm508, %v618, %v625
        %v627 = vrot.slane %v622, 4
        %v629 = vshrl.u32 %v488, 16
        %v631 = vrot.slane %v629, 7
        %v632 = vshll.u32 %v488, 16
        %v634 = vor.u32 %v631, %v632
        %v635 = vrot.slane %v631, 4
        %v637 = vshrl.u32 %v489, 16
        %v639 = vrot.slane %v637, 7
        %v640 = vshll.u32 %v489, 16
        %v642 = vor.u32 %v639, %v640
        %v643 = vsel %vm508, %v635, %v642
        %v644 = vrot.slane %v639, 4
        %v646 = vshrl.u32 %v490, 16
        %v648 = vrot.slane %v646, 7
        %v649 = vshll.u32 %v490, 16
        %v651 = vor.u32 %v648, %v649
        %v652 = vrot.slane %v648, 4
        %v654 = vshrl.u32 %v491, 16
        %v656 = vrot.slane %v654, 7
        %v657 = vshll.u32 %v491, 16
        %v659 = vor.u32 %v656, %v657
        %v660 = vsel %vm508, %v652, %v659
        %v661 = vrot.slane %v656, 4
        %v663 = vshrl.u32 %v492, 16
        %v665 = vrot.slane %v663, 7
        %v666 = vshll.u32 %v492, 16
        %v668 = vor.u32 %v665, %v666
        %v669 = vrot.slane %v665, 4
        %v671 = vshrl.u32 %v493, 16
        %v673 = vrot.slane %v671, 7
        %v674 = vshll.u32 %v493, 16
        %v676 = vor.u32 %v673, %v674
        %v677 = vsel %vm508, %v669, %v676
        %v678 = vrot.slane %v673, 4
        %v680 = vshrl.u32 %v494, 16
        %v682 = vrot.slane %v680, 7
        %v683 = vshll.u32 %v494, 16
        %v685 = vor.u32 %v682, %v683
        %v686 = vrot.slane %v682, 4
        %v688 = vshrl.u32 %v495, 16
        %v690 = vrot.slane %v688, 7
        %v691 = vshll.u32 %v495, 16
        %v693 = vor.u32 %v690, %v691
        %v694 = vsel %vm508, %v686, %v693
        %v695 = vrot.slane %v690, 4
        %v697 = vshrl.u32 %v496, 16
        %v699 = vrot.slane %v697, 7
        %v700 = vshll.u32 %v496, 16
        %v702 = vor.u32 %v699, %v700
        %v703 = vrot.slane %v699, 4
        %v705 = vshrl.u32 %v497, 16
        %v707 = vrot.slane %v705, 7
        %v708 = vshll.u32 %v497, 16
        %v710 = vor.u32 %v707, %v708
        %v711 = vsel %vm508, %v703, %v710
        %v712 = vrot.slane %v707, 4
        %v714 = vshrl.u32 %v498, 16
        %v716 = vrot.slane %v714, 7
        %v717 = vshll.u32 %v498, 16
        %v719 = vor.u32 %v716, %v717
        %v720 = vrot.slane %v716, 4
        %v722 = vshrl.u32 %v499, 16
        %v724 = vrot.slane %v722, 7
        %v725 = vshll.u32 %v499, 16
        %v727 = vor.u32 %v724, %v725
        %v728 = vsel %vm508, %v720, %v727
        %v729 = vrot.slane %v724, 4
        %v731 = vshrl.u32 %v500, 16
        %v733 = vrot.slane %v731, 7
        %v734 = vshll.u32 %v500, 16
        %v736 = vor.u32 %v733, %v734
        %v737 = vrot.slane %v733, 4
        %v739 = vshrl.u32 %v501, 16
        %v741 = vrot.slane %v739, 7
        %v742 = vshll.u32 %v501, 16
        %v744 = vor.u32 %v741, %v742
        %v745 = vsel %vm508, %v737, %v744
        %v746 = vrot.slane %v741, 4
        %v748 = vshrl.u32 %v502, 16
        %v750 = vrot.slane %v748, 7
        %v751 = vshll.u32 %v502, 16
        %v753 = vor.u32 %v750, %v751
        %v754 = vrot.slane %v750, 4
        %v756 = vshrl.u32 %v503, 16
        %v758 = vrot.slane %v756, 7
        %v759 = vshll.u32 %v503, 16
        %v761 = vor.u32 %v758, %v759
        %v762 = vsel %vm508, %v754, %v761
        %v763 = vrot.slane %v758, 4
        %v765 = vshrl.u32 %v504, 16
        %v767 = vrot.slane %v765, 7
        %v768 = vshll.u32 %v504, 16
        %v770 = vor.u32 %v767, %v768
        %v771 = vrot.slane %v767, 4
        %v773 = vshrl.u32 %v505, 16
        %v775 = vrot.slane %v773, 7
        %v776 = vshll.u32 %v505, 16
        %v778 = vor.u32 %v775, %v776
        %v779 = vsel %vm508, %v771, %v778
        %v780 = vrot.slane %v775, 4
        %s829 = scalar_lea.vmem [#allocation2], 12
        %vm830 = vcmask 60416
        %vm831 = vsmask.f32 7938
        %vm832 = vmand %vm830, %vm831
        %v833 = vld [vmem:[%s829] sm:$0xf]
        %v834 = vsel %vm832, %v515, %v833
        %835 = vst [vmem:[%s829] sm:$0xf] %v834
        %836 = vst.msk [vmem:[%s829 + $0x4] sm:$0xf] %vm283, %v524
        %vm837 = vcmask 57344
        %vm838 = vmand %vm837, %vm506
        %v839 = vld [vmem:[%s829 + $0x8] sm:$0x1]
        %v840 = vsel %vm838, %v525, %v839
        %841 = vst [vmem:[%s829 + $0x8] sm:$0x1] %v840
        %v842 = vld [vmem:[%s829 + $0xc] sm:$0xf]
        %v843 = vsel %vm832, %v532, %v842
        %844 = vst [vmem:[%s829 + $0xc] sm:$0xf] %v843
        %845 = vst.msk [vmem:[%s829 + $0x10] sm:$0xf] %vm283, %v541
        %v846 = vld [vmem:[%s829 + $0x14] sm:$0x1]
        %v847 = vsel %vm838, %v542, %v846
        %848 = vst [vmem:[%s829 + $0x14] sm:$0x1] %v847
        %v849 = vld [vmem:[%s829 + $0x18] sm:$0xf]
        %v850 = vsel %vm832, %v549, %v849
        %851 = vst [vmem:[%s829 + $0x18] sm:$0xf] %v850
        %852 = vst.msk [vmem:[%s829 + $0x1c] sm:$0xf] %vm283, %v558
        %v853 = vld [vmem:[%s829 + $0x20] sm:$0x1]
        %v854 = vsel %vm838, %v559, %v853
        %855 = vst [vmem:[%s829 + $0x20] sm:$0x1] %v854
        %v856 = vld [vmem:[%s829 + $0x24] sm:$0xf]
        %v857 = vsel %vm832, %v566, %v856
        %858 = vst [vmem:[%s829 + $0x24] sm:$0xf] %v857
        %859 = vst.msk [vmem:[%s829 + $0x28] sm:$0xf] %vm283, %v575
        %v860 = vld [vmem:[%s829 + $0x2c] sm:$0x1]
        %v861 = vsel %vm838, %v576, %v860
        %862 = vst [vmem:[%s829 + $0x2c] sm:$0x1] %v861
        %v863 = vld [vmem:[%s829 + $0x30] sm:$0xf]
        %v864 = vsel %vm832, %v583, %v863
        %865 = vst [vmem:[%s829 + $0x30] sm:$0xf] %v864
        %866 = vst.msk [vmem:[%s829 + $0x34] sm:$0xf] %vm283, %v592
        %v867 = vld [vmem:[%s829 + $0x38] sm:$0x1]
        %v868 = vsel %vm838, %v593, %v867
        %869 = vst [vmem:[%s829 + $0x38] sm:$0x1] %v868
        %v870 = vld [vmem:[%s829 + $0x3c] sm:$0xf]
        %v871 = vsel %vm832, %v600, %v870
        %872 = vst [vmem:[%s829 + $0x3c] sm:$0xf] %v871
        %873 = vst.msk [vmem:[%s829 + $0x40] sm:$0xf] %vm283, %v609
        %v874 = vld [vmem:[%s829 + $0x44] sm:$0x1]
        %v875 = vsel %vm838, %v610, %v874
        %876 = vst [vmem:[%s829 + $0x44] sm:$0x1] %v875
        %v877 = vld [vmem:[%s829 + $0x48] sm:$0xf]
        %v878 = vsel %vm832, %v617, %v877
        %879 = vst [vmem:[%s829 + $0x48] sm:$0xf] %v878
        %880 = vst.msk [vmem:[%s829 + $0x4c] sm:$0xf] %vm283, %v626
        %v881 = vld [vmem:[%s829 + $0x50] sm:$0x1]
        %v882 = vsel %vm838, %v627, %v881
        %883 = vst [vmem:[%s829 + $0x50] sm:$0x1] %v882
        %v884 = vld [vmem:[%s829 + $0x54] sm:$0xf]
        %v885 = vsel %vm832, %v634, %v884
        %886 = vst [vmem:[%s829 + $0x54] sm:$0xf] %v885
        %887 = vst.msk [vmem:[%s829 + $0x58] sm:$0xf] %vm283, %v643
        %v888 = vld [vmem:[%s829 + $0x5c] sm:$0x1]
        %v889 = vsel %vm838, %v644, %v888
        %890 = vst [vmem:[%s829 + $0x5c] sm:$0x1] %v889
        %v891 = vld [vmem:[%s829 + $0x60] sm:$0xf]
        %v892 = vsel %vm832, %v651, %v891
        %893 = vst [vmem:[%s829 + $0x60] sm:$0xf] %v892
        %894 = vst.msk [vmem:[%s829 + $0x64] sm:$0xf] %vm283, %v660
        %v895 = vld [vmem:[%s829 + $0x68] sm:$0x1]
        %v896 = vsel %vm838, %v661, %v895
        %897 = vst [vmem:[%s829 + $0x68] sm:$0x1] %v896
        %v898 = vld [vmem:[%s829 + $0x6c] sm:$0xf]
        %v899 = vsel %vm832, %v668, %v898
        %900 = vst [vmem:[%s829 + $0x6c] sm:$0xf] %v899
        %901 = vst.msk [vmem:[%s829 + $0x70] sm:$0xf] %vm283, %v677
        %v902 = vld [vmem:[%s829 + $0x74] sm:$0x1]
        %v903 = vsel %vm838, %v678, %v902
        %904 = vst [vmem:[%s829 + $0x74] sm:$0x1] %v903
        %v905 = vld [vmem:[%s829 + $0x78] sm:$0xf]
        %v906 = vsel %vm832, %v685, %v905
        %907 = vst [vmem:[%s829 + $0x78] sm:$0xf] %v906
        %908 = vst.msk [vmem:[%s829 + $0x7c] sm:$0xf] %vm283, %v694
        %v909 = vld [vmem:[%s829 + $0x80] sm:$0x1]
        %v910 = vsel %vm838, %v695, %v909
        %911 = vst [vmem:[%s829 + $0x80] sm:$0x1] %v910
        %v912 = vld [vmem:[%s829 + $0x84] sm:$0xf]
        %v913 = vsel %vm832, %v702, %v912
        %914 = vst [vmem:[%s829 + $0x84] sm:$0xf] %v913
        %915 = vst.msk [vmem:[%s829 + $0x88] sm:$0xf] %vm283, %v711
        %v916 = vld [vmem:[%s829 + $0x8c] sm:$0x1]
        %v917 = vsel %vm838, %v712, %v916
        %918 = vst [vmem:[%s829 + $0x8c] sm:$0x1] %v917
        %v919 = vld [vmem:[%s829 + $0x90] sm:$0xf]
        %v920 = vsel %vm832, %v719, %v919
        %921 = vst [vmem:[%s829 + $0x90] sm:$0xf] %v920
        %922 = vst.msk [vmem:[%s829 + $0x94] sm:$0xf] %vm283, %v728
        %v923 = vld [vmem:[%s829 + $0x98] sm:$0x1]
        %v924 = vsel %vm838, %v729, %v923
        %925 = vst [vmem:[%s829 + $0x98] sm:$0x1] %v924
        %v926 = vld [vmem:[%s829 + $0x9c] sm:$0xf]
        %v927 = vsel %vm832, %v736, %v926
        %928 = vst [vmem:[%s829 + $0x9c] sm:$0xf] %v927
        %929 = vst.msk [vmem:[%s829 + $0xa0] sm:$0xf] %vm283, %v745
        %v930 = vld [vmem:[%s829 + $0xa4] sm:$0x1]
        %v931 = vsel %vm838, %v746, %v930
        %932 = vst [vmem:[%s829 + $0xa4] sm:$0x1] %v931
        %v933 = vld [vmem:[%s829 + $0xa8] sm:$0xf]
        %v934 = vsel %vm832, %v753, %v933
        %935 = vst [vmem:[%s829 + $0xa8] sm:$0xf] %v934
        %936 = vst.msk [vmem:[%s829 + $0xac] sm:$0xf] %vm283, %v762
        %v937 = vld [vmem:[%s829 + $0xb0] sm:$0x1]
        %v938 = vsel %vm838, %v763, %v937
        %939 = vst [vmem:[%s829 + $0xb0] sm:$0x1] %v938
        %v940 = vld [vmem:[%s829 + $0xb4] sm:$0xf]
        %v941 = vsel %vm832, %v770, %v940
        %942 = vst [vmem:[%s829 + $0xb4] sm:$0xf] %v941
        %943 = vst.msk [vmem:[%s829 + $0xb8] sm:$0xf] %vm283, %v779
        %v944 = vld [vmem:[%s829 + $0xbc] sm:$0x1]
        %v945 = vsel %vm838, %v780, %v944
        %946 = vst [vmem:[%s829 + $0xbc] sm:$0x1] %v945
      $region44: #{_lambda_.7} parent=39 // pred_fallthru
        _
      %s947 = smul.u32 %s21, 8
      %s948 = smul.u32 %s947, 3
      %s949 = smul.addr %s948, 4
      %s950 = scalar_lea.vmem [#allocation2], %s949
      %v951 = vld [vmem:[%s950] sm:$0xf]
      %v952 = vld [vmem:[%s950 + $0x4] sm:$0xf]
      %v953 = vld [vmem:[%s950 + $0xc] sm:$0xf]
      %v954 = vld [vmem:[%s950 + $0x10] sm:$0xf]
      %v955 = vld [vmem:[%s950 + $0x18] sm:$0xf]
      %v956 = vld [vmem:[%s950 + $0x1c] sm:$0xf]
      %v957 = vld [vmem:[%s950 + $0x24] sm:$0xf]
      %v958 = vld [vmem:[%s950 + $0x28] sm:$0xf]
      %v959 = vld [vmem:[%s950 + $0x30] sm:$0xf]
      %v960 = vld [vmem:[%s950 + $0x34] sm:$0xf]
      %v961 = vld [vmem:[%s950 + $0x3c] sm:$0xf]
      %v962 = vld [vmem:[%s950 + $0x40] sm:$0xf]
      %v963 = vld [vmem:[%s950 + $0x48] sm:$0xf]
      %v964 = vld [vmem:[%s950 + $0x4c] sm:$0xf]
      %v965 = vld [vmem:[%s950 + $0x54] sm:$0xf]
      %v966 = vld [vmem:[%s950 + $0x58] sm:$0xf]
      %v967 = vld [vmem:[%s1] sm:$0xf]
      %v968 = vld [vmem:[%s950 + $0x8] sm:$0x1]
      %v969 = vld [vmem:[%s950 + $0x14] sm:$0x1]
      %v970 = vld [vmem:[%s950 + $0x20] sm:$0x1]
      %v971 = vld [vmem:[%s950 + $0x2c] sm:$0x1]
      %v972 = vld [vmem:[%s950 + $0x38] sm:$0x1]
      %v973 = vld [vmem:[%s950 + $0x44] sm:$0x1]
      %v974 = vld [vmem:[%s950 + $0x50] sm:$0x1]
      %v975 = vld [vmem:[%s950 + $0x5c] sm:$0x1]
      %vm976 = vsmask.f32 3328
      %vm977 = vsmask.f32 7440
      %vm978 = vmor %vm976, %vm977
      %v980 = vshrl.u32 %v951, 16
      %v982 = vrot.slane %v980, 4
      %v983 = vshll.u32 %v951, 16
      %v985 = vrot.slane %v983, 5
      %v986 = vor.u32 %v982, %v985
      %v987 = vrot.slane %v986, 4
      %v989 = vshll.u32 %v952, 16
      %v991 = vrot.slane %v989, 5
      %v992 = vsel %vm978, %v987, %v991
      %v993 = vshrl.u32 %v952, 16
      %v995 = vrot.slane %v993, 4
      %v996 = vor.u32 %v995, %v991
      %v997 = vrot.slane %v996, 4
      %v999 = vshll.u32 %v968, 16
      %v1001 = vrot.slane %v999, 5
      %v1002 = vsel %vm978, %v997, %v1001
      %v1004 = vshrl.u32 %v953, 16
      %v1006 = vrot.slane %v1004, 4
      %v1007 = vshll.u32 %v953, 16
      %v1009 = vrot.slane %v1007, 5
      %v1010 = vor.u32 %v1006, %v1009
      %v1011 = vrot.slane %v1010, 4
      %v1013 = vshll.u32 %v954, 16
      %v1015 = vrot.slane %v1013, 5
      %v1016 = vsel %vm978, %v1011, %v1015
      %v1017 = vshrl.u32 %v954, 16
      %v1019 = vrot.slane %v1017, 4
      %v1020 = vor.u32 %v1019, %v1015
      %v1021 = vrot.slane %v1020, 4
      %v1023 = vshll.u32 %v969, 16
      %v1025 = vrot.slane %v1023, 5
      %v1026 = vsel %vm978, %v1021, %v1025
      %v1028 = vshrl.u32 %v955, 16
      %v1030 = vrot.slane %v1028, 4
      %v1031 = vshll.u32 %v955, 16
      %v1033 = vrot.slane %v1031, 5
      %v1034 = vor.u32 %v1030, %v1033
      %v1035 = vrot.slane %v1034, 4
      %v1037 = vshll.u32 %v956, 16
      %v1039 = vrot.slane %v1037, 5
      %v1040 = vsel %vm978, %v1035, %v1039
      %v1041 = vshrl.u32 %v956, 16
      %v1043 = vrot.slane %v1041, 4
      %v1044 = vor.u32 %v1043, %v1039
      %v1045 = vrot.slane %v1044, 4
      %v1047 = vshll.u32 %v970, 16
      %v1049 = vrot.slane %v1047, 5
      %v1050 = vsel %vm978, %v1045, %v1049
      %v1052 = vshrl.u32 %v957, 16
      %v1054 = vrot.slane %v1052, 4
      %v1055 = vshll.u32 %v957, 16
      %v1057 = vrot.slane %v1055, 5
      %v1058 = vor.u32 %v1054, %v1057
      %v1059 = vrot.slane %v1058, 4
      %v1061 = vshll.u32 %v958, 16
      %v1063 = vrot.slane %v1061, 5
      %v1064 = vsel %vm978, %v1059, %v1063
      %v1065 = vshrl.u32 %v958, 16
      %v1067 = vrot.slane %v1065, 4
      %v1068 = vor.u32 %v1067, %v1063
      %v1069 = vrot.slane %v1068, 4
      %v1071 = vshll.u32 %v971, 16
      %v1073 = vrot.slane %v1071, 5
      %v1074 = vsel %vm978, %v1069, %v1073
      %v1076 = vshrl.u32 %v959, 16
      %v1078 = vrot.slane %v1076, 4
      %v1079 = vshll.u32 %v959, 16
      %v1081 = vrot.slane %v1079, 5
      %v1082 = vor.u32 %v1078, %v1081
      %v1083 = vrot.slane %v1082, 4
      %v1085 = vshll.u32 %v960, 16
      %v1087 = vrot.slane %v1085, 5
      %v1088 = vsel %vm978, %v1083, %v1087
      %v1089 = vshrl.u32 %v960, 16
      %v1091 = vrot.slane %v1089, 4
      %v1092 = vor.u32 %v1091, %v1087
      %v1093 = vrot.slane %v1092, 4
      %v1095 = vshll.u32 %v972, 16
      %v1097 = vrot.slane %v1095, 5
      %v1098 = vsel %vm978, %v1093, %v1097
      %v1100 = vshrl.u32 %v961, 16
      %v1102 = vrot.slane %v1100, 4
      %v1103 = vshll.u32 %v961, 16
      %v1105 = vrot.slane %v1103, 5
      %v1106 = vor.u32 %v1102, %v1105
      %v1107 = vrot.slane %v1106, 4
      %v1109 = vshll.u32 %v962, 16
      %v1111 = vrot.slane %v1109, 5
      %v1112 = vsel %vm978, %v1107, %v1111
      %v1113 = vshrl.u32 %v962, 16
      %v1115 = vrot.slane %v1113, 4
      %v1116 = vor.u32 %v1115, %v1111
      %v1117 = vrot.slane %v1116, 4
      %v1119 = vshll.u32 %v973, 16
      %v1121 = vrot.slane %v1119, 5
      %v1122 = vsel %vm978, %v1117, %v1121
      %v1124 = vshrl.u32 %v963, 16
      %v1126 = vrot.slane %v1124, 4
      %v1127 = vshll.u32 %v963, 16
      %v1129 = vrot.slane %v1127, 5
      %v1130 = vor.u32 %v1126, %v1129
      %v1131 = vrot.slane %v1130, 4
      %v1133 = vshll.u32 %v964, 16
      %v1135 = vrot.slane %v1133, 5
      %v1136 = vsel %vm978, %v1131, %v1135
      %v1137 = vshrl.u32 %v964, 16
      %v1139 = vrot.slane %v1137, 4
      %v1140 = vor.u32 %v1139, %v1135
      %v1141 = vrot.slane %v1140, 4
      %v1143 = vshll.u32 %v974, 16
      %v1145 = vrot.slane %v1143, 5
      %v1146 = vsel %vm978, %v1141, %v1145
      %v1148 = vshrl.u32 %v965, 16
      %v1150 = vrot.slane %v1148, 4
      %v1151 = vshll.u32 %v965, 16
      %v1153 = vrot.slane %v1151, 5
      %v1154 = vor.u32 %v1150, %v1153
      %v1155 = vrot.slane %v1154, 4
      %v1157 = vshll.u32 %v966, 16
      %v1159 = vrot.slane %v1157, 5
      %v1160 = vsel %vm978, %v1155, %v1159
      %v1161 = vshrl.u32 %v966, 16
      %v1163 = vrot.slane %v1161, 4
      %v1164 = vor.u32 %v1163, %v1159
      %v1165 = vrot.slane %v1164, 4
      %v1167 = vshll.u32 %v975, 16
      %v1169 = vrot.slane %v1167, 5
      %v1170 = vsel %vm978, %v1165, %v1169
      %s1171 = scalar_lea.vmem %s1, 4
      %v1172 = vld [vmem:[%s1171] sm:$0xf]
      %v1173 = vunpack.c.l.b16 %v992
      %v1174 = vunpack.c.l.b16 %v1002
      %v1175 = vunpack.c.l.b16 %v1016
      %v1176 = vunpack.c.l.b16 %v1026
      %v1177 = vunpack.c.l.b16 %v1040
      %v1178 = vunpack.c.l.b16 %v1050
      %v1179 = vunpack.c.l.b16 %v1064
      %v1180 = vunpack.c.l.b16 %v1074
      %v1181 = vunpack.c.l.b16 %v1088
      %v1182 = vunpack.c.l.b16 %v1098
      %v1183 = vunpack.c.l.b16 %v1112
      %v1184 = vunpack.c.l.b16 %v1122
      %v1185 = vunpack.c.l.b16 %v1136
      %v1186 = vunpack.c.l.b16 %v1146
      %v1187 = vunpack.c.l.b16 %v1160
      %v1188 = vunpack.c.l.b16 %v1170
      %v1189 = vpack.c.b16 %v1174, %v1173
      %v1190 = vpack.c.b16 %v1176, %v1175
      %v1191 = vpack.c.b16 %v1178, %v1177
      %v1192 = vpack.c.b16 %v1180, %v1179
      %v1193 = vpack.c.b16 %v1182, %v1181
      %v1194 = vpack.c.b16 %v1184, %v1183
      %v1195 = vpack.c.b16 %v1186, %v1185
      %v1196 = vpack.c.b16 %v1188, %v1187
      %vm1197 = vcmask 64512
      %v1199 = vsel %vm1197, %v1189, 0
      %v1202 = vsel %vm1197, %v1190, 0
      %v1205 = vsel %vm1197, %v1191, 0
      %v1208 = vsel %vm1197, %v1192, 0
      %v1211 = vsel %vm1197, %v1193, 0
      %v1214 = vsel %vm1197, %v1194, 0
      %v1217 = vsel %vm1197, %v1195, 0
      %v1220 = vsel %vm1197, %v1196, 0
      %vm1222 = vcmask 1043456
      %v1224 = vsel %vm1222, %v1172, 0
      %1226 = vmatprep.subr.bf16.mxu0 0
      %1227 = vmatpush1.bf16.msra.mxu0 0
      %1228 = vmatprep.subr.bf16.mxu0 0
      %1229 = vmatpush1.bf16.msra.mxu0 0
      %1230 = vmatprep.subr.bf16.mxu0 0
      %1231 = vmatpush1.bf16.msra.mxu0 0
      %1232 = vmatprep.subr.bf16.mxu0 0
      %1233 = vmatpush1.bf16.msra.mxu0 0
      %1234 = vmatprep.subr.bf16.mxu0 0
      %1235 = vmatpush1.bf16.msra.mxu0 0
      %1236 = vmatprep.subr.bf16.mxu0 0
      %1237 = vmatpush1.bf16.msra.mxu0 0
      %1238 = vmatprep.subr.bf16.mxu0 0
      %1239 = vmatpush1.bf16.msra.mxu0 0
      %1240 = vmatprep.subr.bf16.mxu0 0
      %1241 = vmatpush1.bf16.msra.mxu0 %v1224
      %1242 = vmatprep.subr.bf16.mxu0 0
      %1243 = vmatpush2.bf16.msra.mxu0 0
      %1244 = vmatprep.subr.bf16.mxu0 0
      %1245 = vmatpush2.bf16.msra.mxu0 0
      %1246 = vmatprep.subr.bf16.mxu0 0
      %1247 = vmatpush2.bf16.msra.mxu0 0
      %1248 = vmatprep.subr.bf16.mxu0 0
      %1249 = vmatpush2.bf16.msra.mxu0 0
      %1250 = vmatprep.subr.bf16.mxu0 0
      %1251 = vmatpush2.bf16.msra.mxu0 0
      %1252 = vmatprep.subr.bf16.mxu0 0
      %1253 = vmatpush2.bf16.msra.mxu0 0
      %1254 = vmatprep.subr.bf16.mxu0 0
      %1255 = vmatpush2.bf16.msra.mxu0 0
      %1256 = vmatprep.subr.bf16.mxu0 0
      %1257 = vmatpush2.bf16.msra.mxu0 0
      %1258 = vmatprep.mubr.bf16.mxu0 0
      %1259 = vmatmul.mubr.bf16.gmra.mxu0 %v1199
      %v1260 = vpop.f32.mrf.mxu0
      %v1261 = vadd.f32 0.0, %v1260
      %v1262 = vpop.f32.mrf.mxu0
      %v1263 = vpop.f32.mrf.mxu0
      %v1264 = vadd.f32 0.0, %v1263
      %v1265 = vpop.f32.mrf.mxu0
      %1266 = vmatprep.mubr.bf16.mxu0 0
      %1267 = vmatmul.mubr.bf16.gmra.mxu0 %v1202
      %v1268 = vpop.f32.mrf.mxu0
      %v1269 = vadd.f32 0.0, %v1268
      %v1270 = vpop.f32.mrf.mxu0
      %v1271 = vpop.f32.mrf.mxu0
      %v1272 = vadd.f32 0.0, %v1271
      %v1273 = vpop.f32.mrf.mxu0
      %1274 = vmatprep.mubr.bf16.mxu0 0
      %1275 = vmatmul.mubr.bf16.gmra.mxu0 %v1205
      %v1276 = vpop.f32.mrf.mxu0
      %v1277 = vadd.f32 0.0, %v1276
      %v1278 = vpop.f32.mrf.mxu0
      %v1279 = vpop.f32.mrf.mxu0
      %v1280 = vadd.f32 0.0, %v1279
      %v1281 = vpop.f32.mrf.mxu0
      %1282 = vmatprep.mubr.bf16.mxu0 0
      %1283 = vmatmul.mubr.bf16.gmra.mxu0 %v1208
      %v1284 = vpop.f32.mrf.mxu0
      %v1285 = vadd.f32 0.0, %v1284
      %v1286 = vpop.f32.mrf.mxu0
      %v1287 = vpop.f32.mrf.mxu0
      %v1288 = vadd.f32 0.0, %v1287
      %v1289 = vpop.f32.mrf.mxu0
      %1290 = vmatprep.mubr.bf16.mxu0 0
      %1291 = vmatmul.mubr.bf16.gmra.mxu0 %v1211
      %v1292 = vpop.f32.mrf.mxu0
      %v1293 = vadd.f32 0.0, %v1292
      %v1294 = vpop.f32.mrf.mxu0
      %v1295 = vpop.f32.mrf.mxu0
      %v1296 = vadd.f32 0.0, %v1295
      %v1297 = vpop.f32.mrf.mxu0
      %1298 = vmatprep.mubr.bf16.mxu0 0
      %1299 = vmatmul.mubr.bf16.gmra.mxu0 %v1214
      %v1300 = vpop.f32.mrf.mxu0
      %v1301 = vadd.f32 0.0, %v1300
      %v1302 = vpop.f32.mrf.mxu0
      %v1303 = vpop.f32.mrf.mxu0
      %v1304 = vadd.f32 0.0, %v1303
      %v1305 = vpop.f32.mrf.mxu0
      %1306 = vmatprep.mubr.bf16.mxu0 0
      %1307 = vmatmul.mubr.bf16.gmra.mxu0 %v1217
      %v1308 = vpop.f32.mrf.mxu0
      %v1309 = vadd.f32 0.0, %v1308
      %v1310 = vpop.f32.mrf.mxu0
      %v1311 = vpop.f32.mrf.mxu0
      %v1312 = vadd.f32 0.0, %v1311
      %v1313 = vpop.f32.mrf.mxu0
      %1314 = vmatprep.mubr.bf16.mxu0 0
      %1315 = vmatmul.mubr.bf16.gmra.mxu0 %v1220
      %v1316 = vpop.f32.mrf.mxu0
      %v1317 = vadd.f32 0.0, %v1316
      %v1318 = vpop.f32.mrf.mxu0
      %v1319 = vpop.f32.mrf.mxu0
      %v1320 = vadd.f32 0.0, %v1319
      %v1321 = vpop.f32.mrf.mxu0
      %1322 = vdwg.mxu0
      %v1339 = vunpack.c.l.b16 %v951
      %v1340 = vunpack.c.l.b16 %v952
      %v1341 = vunpack.c.l.b16 %v953
      %v1342 = vunpack.c.l.b16 %v954
      %v1343 = vunpack.c.l.b16 %v955
      %v1344 = vunpack.c.l.b16 %v956
      %v1345 = vunpack.c.l.b16 %v957
      %v1346 = vunpack.c.l.b16 %v958
      %v1347 = vunpack.c.l.b16 %v959
      %v1348 = vunpack.c.l.b16 %v960
      %v1349 = vunpack.c.l.b16 %v961
      %v1350 = vunpack.c.l.b16 %v962
      %v1351 = vunpack.c.l.b16 %v963
      %v1352 = vunpack.c.l.b16 %v964
      %v1353 = vunpack.c.l.b16 %v965
      %v1354 = vunpack.c.l.b16 %v966
      %v1355 = vpack.c.b16 %v1340, %v1339
      %v1356 = vpack.c.b16 %v1342, %v1341
      %v1357 = vpack.c.b16 %v1344, %v1343
      %v1358 = vpack.c.b16 %v1346, %v1345
      %v1359 = vpack.c.b16 %v1348, %v1347
      %v1360 = vpack.c.b16 %v1350, %v1349
      %v1361 = vpack.c.b16 %v1352, %v1351
      %v1362 = vpack.c.b16 %v1354, %v1353
      %v1364 = vsel %vm1197, %v1355, 0
      %v1367 = vsel %vm1197, %v1356, 0
      %v1370 = vsel %vm1197, %v1357, 0
      %v1373 = vsel %vm1197, %v1358, 0
      %v1376 = vsel %vm1197, %v1359, 0
      %v1379 = vsel %vm1197, %v1360, 0
      %v1382 = vsel %vm1197, %v1361, 0
      %v1385 = vsel %vm1197, %v1362, 0
      %v1388 = vsel %vm1222, %v967, 0
      %1390 = vmatprep.subr.bf16.mxu0 0
      %1391 = vmatpush1.bf16.msra.mxu0 0
      %1392 = vmatprep.subr.bf16.mxu0 0
      %1393 = vmatpush1.bf16.msra.mxu0 0
      %1394 = vmatprep.subr.bf16.mxu0 0
      %1395 = vmatpush1.bf16.msra.mxu0 0
      %1396 = vmatprep.subr.bf16.mxu0 0
      %1397 = vmatpush1.bf16.msra.mxu0 0
      %1398 = vmatprep.subr.bf16.mxu0 0
      %1399 = vmatpush1.bf16.msra.mxu0 0
      %1400 = vmatprep.subr.bf16.mxu0 0
      %1401 = vmatpush1.bf16.msra.mxu0 0
      %1402 = vmatprep.subr.bf16.mxu0 0
      %1403 = vmatpush1.bf16.msra.mxu0 0
      %1404 = vmatprep.subr.bf16.mxu0 0
      %1405 = vmatpush1.bf16.msra.mxu0 %v1388
      %1406 = vmatprep.subr.bf16.mxu0 0
      %1407 = vmatpush2.bf16.msra.mxu0 0
      %1408 = vmatprep.subr.bf16.mxu0 0
      %1409 = vmatpush2.bf16.msra.mxu0 0
      %1410 = vmatprep.subr.bf16.mxu0 0
      %1411 = vmatpush2.bf16.msra.mxu0 0
      %1412 = vmatprep.subr.bf16.mxu0 0
      %1413 = vmatpush2.bf16.msra.mxu0 0
      %1414 = vmatprep.subr.bf16.mxu0 0
      %1415 = vmatpush2.bf16.msra.mxu0 0
      %1416 = vmatprep.subr.bf16.mxu0 0
      %1417 = vmatpush2.bf16.msra.mxu0 0
      %1418 = vmatprep.subr.bf16.mxu0 0
      %1419 = vmatpush2.bf16.msra.mxu0 0
      %1420 = vmatprep.subr.bf16.mxu0 0
      %1421 = vmatpush2.bf16.msra.mxu0 0
      %1422 = vmatprep.mubr.bf16.mxu0 0
      %1423 = vmatmul.mubr.bf16.gmra.mxu0 %v1364
      %v1424 = vpop.f32.mrf.mxu0
      %v1425 = vadd.f32 %v1261, %v1424
      %v1426 = vpop.f32.mrf.mxu0
      %v1427 = vpop.f32.mrf.mxu0
      %v1428 = vadd.f32 %v1264, %v1427
      %v1429 = vpop.f32.mrf.mxu0
      %1430 = vmatprep.mubr.bf16.mxu0 0
      %1431 = vmatmul.mubr.bf16.gmra.mxu0 %v1367
      %v1432 = vpop.f32.mrf.mxu0
      %v1433 = vadd.f32 %v1269, %v1432
      %v1434 = vpop.f32.mrf.mxu0
      %v1435 = vpop.f32.mrf.mxu0
      %v1436 = vadd.f32 %v1272, %v1435
      %v1437 = vpop.f32.mrf.mxu0
      %1438 = vmatprep.mubr.bf16.mxu0 0
      %1439 = vmatmul.mubr.bf16.gmra.mxu0 %v1370
      %v1440 = vpop.f32.mrf.mxu0
      %v1441 = vadd.f32 %v1277, %v1440
      %v1442 = vpop.f32.mrf.mxu0
      %v1443 = vpop.f32.mrf.mxu0
      %v1444 = vadd.f32 %v1280, %v1443
      %v1445 = vpop.f32.mrf.mxu0
      %1446 = vmatprep.mubr.bf16.mxu0 0
      %1447 = vmatmul.mubr.bf16.gmra.mxu0 %v1373
      %v1448 = vpop.f32.mrf.mxu0
      %v1449 = vadd.f32 %v1285, %v1448
      %v1450 = vpop.f32.mrf.mxu0
      %v1451 = vpop.f32.mrf.mxu0
      %v1452 = vadd.f32 %v1288, %v1451
      %v1453 = vpop.f32.mrf.mxu0
      %1454 = vmatprep.mubr.bf16.mxu0 0
      %1455 = vmatmul.mubr.bf16.gmra.mxu0 %v1376
      %v1456 = vpop.f32.mrf.mxu0
      %v1457 = vadd.f32 %v1293, %v1456
      %v1458 = vpop.f32.mrf.mxu0
      %v1459 = vpop.f32.mrf.mxu0
      %v1460 = vadd.f32 %v1296, %v1459
      %v1461 = vpop.f32.mrf.mxu0
      %1462 = vmatprep.mubr.bf16.mxu0 0
      %1463 = vmatmul.mubr.bf16.gmra.mxu0 %v1379
      %v1464 = vpop.f32.mrf.mxu0
      %v1465 = vadd.f32 %v1301, %v1464
      %v1466 = vpop.f32.mrf.mxu0
      %v1467 = vpop.f32.mrf.mxu0
      %v1468 = vadd.f32 %v1304, %v1467
      %v1469 = vpop.f32.mrf.mxu0
      %1470 = vmatprep.mubr.bf16.mxu0 0
      %1471 = vmatmul.mubr.bf16.gmra.mxu0 %v1382
      %v1472 = vpop.f32.mrf.mxu0
      %v1473 = vadd.f32 %v1309, %v1472
      %v1474 = vpop.f32.mrf.mxu0
      %v1475 = vpop.f32.mrf.mxu0
      %v1476 = vadd.f32 %v1312, %v1475
      %v1477 = vpop.f32.mrf.mxu0
      %1478 = vmatprep.mubr.bf16.mxu0 0
      %1479 = vmatmul.mubr.bf16.gmra.mxu0 %v1385
      %v1480 = vpop.f32.mrf.mxu0
      %v1481 = vadd.f32 %v1317, %v1480
      %v1482 = vpop.f32.mrf.mxu0
      %v1483 = vpop.f32.mrf.mxu0
      %v1484 = vadd.f32 %v1320, %v1483
      %v1485 = vpop.f32.mrf.mxu0
      %1486 = vdwg.mxu0
      %v1487 = vld [vmem:[%s950] sm:$0xe]
      %v1488 = vld [vmem:[%s950 + $0xc] sm:$0xe]
      %v1489 = vld [vmem:[%s950 + $0x18] sm:$0xe]
      %v1490 = vld [vmem:[%s950 + $0x24] sm:$0xe]
      %v1491 = vld [vmem:[%s950 + $0x30] sm:$0xe]
      %v1492 = vld [vmem:[%s950 + $0x3c] sm:$0xe]
      %v1493 = vld [vmem:[%s950 + $0x48] sm:$0xe]
      %v1494 = vld [vmem:[%s950 + $0x54] sm:$0xe]
      %vm1511 = vcmask 1042432
      %vm1512 = vcmask 1046532
      %vm1513 = vmor %vm1511, %vm1512
      %v1514 = vrot.slane %v1487, 5
      %v1515 = vrot.slane %v1514, 4
      %v1516 = vrot.slane %v952, 5
      %v1517 = vsel %vm1513, %v1515, %v1516
      %v1518 = vrot.slane %v1516, 4
      %v1519 = vrot.slane %v968, 5
      %v1520 = vsel %vm1513, %v1518, %v1519
      %v1521 = vrot.slane %v1488, 5
      %v1522 = vrot.slane %v1521, 4
      %v1523 = vrot.slane %v954, 5
      %v1524 = vsel %vm1513, %v1522, %v1523
      %v1525 = vrot.slane %v1523, 4
      %v1526 = vrot.slane %v969, 5
      %v1527 = vsel %vm1513, %v1525, %v1526
      %v1528 = vrot.slane %v1489, 5
      %v1529 = vrot.slane %v1528, 4
      %v1530 = vrot.slane %v956, 5
      %v1531 = vsel %vm1513, %v1529, %v1530
      %v1532 = vrot.slane %v1530, 4
      %v1533 = vrot.slane %v970, 5
      %v1534 = vsel %vm1513, %v1532, %v1533
      %v1535 = vrot.slane %v1490, 5
      %v1536 = vrot.slane %v1535, 4
      %v1537 = vrot.slane %v958, 5
      %v1538 = vsel %vm1513, %v1536, %v1537
      %v1539 = vrot.slane %v1537, 4
      %v1540 = vrot.slane %v971, 5
      %v1541 = vsel %vm1513, %v1539, %v1540
      %v1542 = vrot.slane %v1491, 5
      %v1543 = vrot.slane %v1542, 4
      %v1544 = vrot.slane %v960, 5
      %v1545 = vsel %vm1513, %v1543, %v1544
      %v1546 = vrot.slane %v1544, 4
      %v1547 = vrot.slane %v972, 5
      %v1548 = vsel %vm1513, %v1546, %v1547
      %v1549 = vrot.slane %v1492, 5
      %v1550 = vrot.slane %v1549, 4
      %v1551 = vrot.slane %v962, 5
      %v1552 = vsel %vm1513, %v1550, %v1551
      %v1553 = vrot.slane %v1551, 4
      %v1554 = vrot.slane %v973, 5
      %v1555 = vsel %vm1513, %v1553, %v1554
      %v1556 = vrot.slane %v1493, 5
      %v1557 = vrot.slane %v1556, 4
      %v1558 = vrot.slane %v964, 5
      %v1559 = vsel %vm1513, %v1557, %v1558
      %v1560 = vrot.slane %v1558, 4
      %v1561 = vrot.slane %v974, 5
      %v1562 = vsel %vm1513, %v1560, %v1561
      %v1563 = vrot.slane %v1494, 5
      %v1564 = vrot.slane %v1563, 4
      %v1565 = vrot.slane %v966, 5
      %v1566 = vsel %vm1513, %v1564, %v1565
      %v1567 = vrot.slane %v1565, 4
      %v1568 = vrot.slane %v975, 5
      %v1569 = vsel %vm1513, %v1567, %v1568
      %s1570 = scalar_lea.vmem %s1, 8
      %v1571 = vld [vmem:[%s1570] sm:$0xf]
      %v1572 = vunpack.c.l.b16 %v1517
      %v1573 = vunpack.c.l.b16 %v1520
      %v1574 = vunpack.c.l.b16 %v1524
      %v1575 = vunpack.c.l.b16 %v1527
      %v1576 = vunpack.c.l.b16 %v1531
      %v1577 = vunpack.c.l.b16 %v1534
      %v1578 = vunpack.c.l.b16 %v1538
      %v1579 = vunpack.c.l.b16 %v1541
      %v1580 = vunpack.c.l.b16 %v1545
      %v1581 = vunpack.c.l.b16 %v1548
      %v1582 = vunpack.c.l.b16 %v1552
      %v1583 = vunpack.c.l.b16 %v1555
      %v1584 = vunpack.c.l.b16 %v1559
      %v1585 = vunpack.c.l.b16 %v1562
      %v1586 = vunpack.c.l.b16 %v1566
      %v1587 = vunpack.c.l.b16 %v1569
      %v1588 = vpack.c.b16 %v1573, %v1572
      %v1589 = vpack.c.b16 %v1575, %v1574
      %v1590 = vpack.c.b16 %v1577, %v1576
      %v1591 = vpack.c.b16 %v1579, %v1578
      %v1592 = vpack.c.b16 %v1581, %v1580
      %v1593 = vpack.c.b16 %v1583, %v1582
      %v1594 = vpack.c.b16 %v1585, %v1584
      %v1595 = vpack.c.b16 %v1587, %v1586
      %v1597 = vsel %vm1197, %v1588, 0
      %v1600 = vsel %vm1197, %v1589, 0
      %v1603 = vsel %vm1197, %v1590, 0
      %v1606 = vsel %vm1197, %v1591, 0
      %v1609 = vsel %vm1197, %v1592, 0
      %v1612 = vsel %vm1197, %v1593, 0
      %v1615 = vsel %vm1197, %v1594, 0
      %v1618 = vsel %vm1197, %v1595, 0
      %v1621 = vsel %vm1222, %v1571, 0
      %1623 = vmatprep.subr.bf16.mxu0 0
      %1624 = vmatpush1.bf16.msra.mxu0 0
      %1625 = vmatprep.subr.bf16.mxu0 0
      %1626 = vmatpush1.bf16.msra.mxu0 0
      %1627 = vmatprep.subr.bf16.mxu0 0
      %1628 = vmatpush1.bf16.msra.mxu0 0
      %1629 = vmatprep.subr.bf16.mxu0 0
      %1630 = vmatpush1.bf16.msra.mxu0 0
      %1631 = vmatprep.subr.bf16.mxu0 0
      %1632 = vmatpush1.bf16.msra.mxu0 0
      %1633 = vmatprep.subr.bf16.mxu0 0
      %1634 = vmatpush1.bf16.msra.mxu0 0
      %1635 = vmatprep.subr.bf16.mxu0 0
      %1636 = vmatpush1.bf16.msra.mxu0 0
      %1637 = vmatprep.subr.bf16.mxu0 0
      %1638 = vmatpush1.bf16.msra.mxu0 %v1621
      %1639 = vmatprep.subr.bf16.mxu0 0
      %1640 = vmatpush2.bf16.msra.mxu0 0
      %1641 = vmatprep.subr.bf16.mxu0 0
      %1642 = vmatpush2.bf16.msra.mxu0 0
      %1643 = vmatprep.subr.bf16.mxu0 0
      %1644 = vmatpush2.bf16.msra.mxu0 0
      %1645 = vmatprep.subr.bf16.mxu0 0
      %1646 = vmatpush2.bf16.msra.mxu0 0
      %1647 = vmatprep.subr.bf16.mxu0 0
      %1648 = vmatpush2.bf16.msra.mxu0 0
      %1649 = vmatprep.subr.bf16.mxu0 0
      %1650 = vmatpush2.bf16.msra.mxu0 0
      %1651 = vmatprep.subr.bf16.mxu0 0
      %1652 = vmatpush2.bf16.msra.mxu0 0
      %1653 = vmatprep.subr.bf16.mxu0 0
      %1654 = vmatpush2.bf16.msra.mxu0 0
      %1655 = vmatprep.mubr.bf16.mxu0 0
      %1656 = vmatmul.mubr.bf16.gmra.mxu0 %v1597
      %v1657 = vpop.f32.mrf.mxu0
      %v1658 = vadd.f32 0.0, %v1657
      %v1659 = vpop.f32.mrf.mxu0
      %v1660 = vpop.f32.mrf.mxu0
      %v1661 = vadd.f32 0.0, %v1660
      %v1662 = vpop.f32.mrf.mxu0
      %1663 = vmatprep.mubr.bf16.mxu0 0
      %1664 = vmatmul.mubr.bf16.gmra.mxu0 %v1600
      %v1665 = vpop.f32.mrf.mxu0
      %v1666 = vadd.f32 0.0, %v1665
      %v1667 = vpop.f32.mrf.mxu0
      %v1668 = vpop.f32.mrf.mxu0
      %v1669 = vadd.f32 0.0, %v1668
      %v1670 = vpop.f32.mrf.mxu0
      %1671 = vmatprep.mubr.bf16.mxu0 0
      %1672 = vmatmul.mubr.bf16.gmra.mxu0 %v1603
      %v1673 = vpop.f32.mrf.mxu0
      %v1674 = vadd.f32 0.0, %v1673
      %v1675 = vpop.f32.mrf.mxu0
      %v1676 = vpop.f32.mrf.mxu0
      %v1677 = vadd.f32 0.0, %v1676
      %v1678 = vpop.f32.mrf.mxu0
      %1679 = vmatprep.mubr.bf16.mxu0 0
      %1680 = vmatmul.mubr.bf16.gmra.mxu0 %v1606
      %v1681 = vpop.f32.mrf.mxu0
      %v1682 = vadd.f32 0.0, %v1681
      %v1683 = vpop.f32.mrf.mxu0
      %v1684 = vpop.f32.mrf.mxu0
      %v1685 = vadd.f32 0.0, %v1684
      %v1686 = vpop.f32.mrf.mxu0
      %1687 = vmatprep.mubr.bf16.mxu0 0
      %1688 = vmatmul.mubr.bf16.gmra.mxu0 %v1609
      %v1689 = vpop.f32.mrf.mxu0
      %v1690 = vadd.f32 0.0, %v1689
      %v1691 = vpop.f32.mrf.mxu0
      %v1692 = vpop.f32.mrf.mxu0
      %v1693 = vadd.f32 0.0, %v1692
      %v1694 = vpop.f32.mrf.mxu0
      %1695 = vmatprep.mubr.bf16.mxu0 0
      %1696 = vmatmul.mubr.bf16.gmra.mxu0 %v1612
      %v1697 = vpop.f32.mrf.mxu0
      %v1698 = vadd.f32 0.0, %v1697
      %v1699 = vpop.f32.mrf.mxu0
      %v1700 = vpop.f32.mrf.mxu0
      %v1701 = vadd.f32 0.0, %v1700
      %v1702 = vpop.f32.mrf.mxu0
      %1703 = vmatprep.mubr.bf16.mxu0 0
      %1704 = vmatmul.mubr.bf16.gmra.mxu0 %v1615
      %v1705 = vpop.f32.mrf.mxu0
      %v1706 = vadd.f32 0.0, %v1705
      %v1707 = vpop.f32.mrf.mxu0
      %v1708 = vpop.f32.mrf.mxu0
      %v1709 = vadd.f32 0.0, %v1708
      %v1710 = vpop.f32.mrf.mxu0
      %1711 = vmatprep.mubr.bf16.mxu0 0
      %1712 = vmatmul.mubr.bf16.gmra.mxu0 %v1618
      %v1713 = vpop.f32.mrf.mxu0
      %v1714 = vadd.f32 0.0, %v1713
      %v1715 = vpop.f32.mrf.mxu0
      %v1716 = vpop.f32.mrf.mxu0
      %v1717 = vadd.f32 0.0, %v1716
      %v1718 = vpop.f32.mrf.mxu0
      %1719 = vdwg.mxu0
      %v1720 = vadd.f32 %v1425, %v1658
      %v1721 = vadd.f32 %v1428, %v1661
      %v1722 = vadd.f32 %v1433, %v1666
      %v1723 = vadd.f32 %v1436, %v1669
      %v1724 = vadd.f32 %v1441, %v1674
      %v1725 = vadd.f32 %v1444, %v1677
      %v1726 = vadd.f32 %v1449, %v1682
      %v1727 = vadd.f32 %v1452, %v1685
      %v1728 = vadd.f32 %v1457, %v1690
      %v1729 = vadd.f32 %v1460, %v1693
      %v1730 = vadd.f32 %v1465, %v1698
      %v1731 = vadd.f32 %v1468, %v1701
      %v1732 = vadd.f32 %v1473, %v1706
      %v1733 = vadd.f32 %v1476, %v1709
      %v1734 = vadd.f32 %v1481, %v1714
      %v1735 = vadd.f32 %v1484, %v1717
      %s1736 = sadd.s32 %s947, 1
      %s1737 = smul.u32 %s1736, 3
      %s1738 = smul.addr %s1737, 4
      %s1739 = scalar_lea.vmem [#allocation2], %s1738
      %v1740 = vld [vmem:[%s1739] sm:$0xf]
      %v1741 = vld [vmem:[%s1739 + $0x4] sm:$0xf]
      %v1742 = vld [vmem:[%s1739 + $0xc] sm:$0xf]
      %v1743 = vld [vmem:[%s1739 + $0x10] sm:$0xf]
      %v1744 = vld [vmem:[%s1739 + $0x18] sm:$0xf]
      %v1745 = vld [vmem:[%s1739 + $0x1c] sm:$0xf]
      %v1746 = vld [vmem:[%s1739 + $0x24] sm:$0xf]
      %v1747 = vld [vmem:[%s1739 + $0x28] sm:$0xf]
      %v1748 = vld [vmem:[%s1739 + $0x30] sm:$0xf]
      %v1749 = vld [vmem:[%s1739 + $0x34] sm:$0xf]
      %v1750 = vld [vmem:[%s1739 + $0x3c] sm:$0xf]
      %v1751 = vld [vmem:[%s1739 + $0x40] sm:$0xf]
      %v1752 = vld [vmem:[%s1739 + $0x48] sm:$0xf]
      %v1753 = vld [vmem:[%s1739 + $0x4c] sm:$0xf]
      %v1754 = vld [vmem:[%s1739 + $0x54] sm:$0xf]
      %v1755 = vld [vmem:[%s1739 + $0x58] sm:$0xf]
      %s1756 = scalar_lea.vmem %s1, 12
      %v1757 = vld [vmem:[%s1756] sm:$0xf]
      %v1774 = vunpack.c.l.b16 %v1740
      %v1775 = vunpack.c.l.b16 %v1741
      %v1776 = vunpack.c.l.b16 %v1742
      %v1777 = vunpack.c.l.b16 %v1743
      %v1778 = vunpack.c.l.b16 %v1744
      %v1779 = vunpack.c.l.b16 %v1745
      %v1780 = vunpack.c.l.b16 %v1746
      %v1781 = vunpack.c.l.b16 %v1747
      %v1782 = vunpack.c.l.b16 %v1748
      %v1783 = vunpack.c.l.b16 %v1749
      %v1784 = vunpack.c.l.b16 %v1750
      %v1785 = vunpack.c.l.b16 %v1751
      %v1786 = vunpack.c.l.b16 %v1752
      %v1787 = vunpack.c.l.b16 %v1753
      %v1788 = vunpack.c.l.b16 %v1754
      %v1789 = vunpack.c.l.b16 %v1755
      %v1790 = vpack.c.b16 %v1775, %v1774
      %v1791 = vpack.c.b16 %v1777, %v1776
      %v1792 = vpack.c.b16 %v1779, %v1778
      %v1793 = vpack.c.b16 %v1781, %v1780
      %v1794 = vpack.c.b16 %v1783, %v1782
      %v1795 = vpack.c.b16 %v1785, %v1784
      %v1796 = vpack.c.b16 %v1787, %v1786
      %v1797 = vpack.c.b16 %v1789, %v1788
      %v1799 = vsel %vm1197, %v1790, 0
      %v1802 = vsel %vm1197, %v1791, 0
      %v1805 = vsel %vm1197, %v1792, 0
      %v1808 = vsel %vm1197, %v1793, 0
      %v1811 = vsel %vm1197, %v1794, 0
      %v1814 = vsel %vm1197, %v1795, 0
      %v1817 = vsel %vm1197, %v1796, 0
      %v1820 = vsel %vm1197, %v1797, 0
      %v1823 = vsel %vm1222, %v1757, 0
      %1825 = vmatprep.subr.bf16.mxu0 0
      %1826 = vmatpush1.bf16.msra.mxu0 0
      %1827 = vmatprep.subr.bf16.mxu0 0
      %1828 = vmatpush1.bf16.msra.mxu0 0
      %1829 = vmatprep.subr.bf16.mxu0 0
      %1830 = vmatpush1.bf16.msra.mxu0 0
      %1831 = vmatprep.subr.bf16.mxu0 0
      %1832 = vmatpush1.bf16.msra.mxu0 0
      %1833 = vmatprep.subr.bf16.mxu0 0
      %1834 = vmatpush1.bf16.msra.mxu0 0
      %1835 = vmatprep.subr.bf16.mxu0 0
      %1836 = vmatpush1.bf16.msra.mxu0 0
      %1837 = vmatprep.subr.bf16.mxu0 0
      %1838 = vmatpush1.bf16.msra.mxu0 0
      %1839 = vmatprep.subr.bf16.mxu0 0
      %1840 = vmatpush1.bf16.msra.mxu0 %v1823
      %1841 = vmatprep.subr.bf16.mxu0 0
      %1842 = vmatpush2.bf16.msra.mxu0 0
      %1843 = vmatprep.subr.bf16.mxu0 0
      %1844 = vmatpush2.bf16.msra.mxu0 0
      %1845 = vmatprep.subr.bf16.mxu0 0
      %1846 = vmatpush2.bf16.msra.mxu0 0
      %1847 = vmatprep.subr.bf16.mxu0 0
      %1848 = vmatpush2.bf16.msra.mxu0 0
      %1849 = vmatprep.subr.bf16.mxu0 0
      %1850 = vmatpush2.bf16.msra.mxu0 0
      %1851 = vmatprep.subr.bf16.mxu0 0
      %1852 = vmatpush2.bf16.msra.mxu0 0
      %1853 = vmatprep.subr.bf16.mxu0 0
      %1854 = vmatpush2.bf16.msra.mxu0 0
      %1855 = vmatprep.subr.bf16.mxu0 0
      %1856 = vmatpush2.bf16.msra.mxu0 0
      %1857 = vmatprep.mubr.bf16.mxu0 0
      %1858 = vmatmul.mubr.bf16.gmra.mxu0 %v1799
      %v1859 = vpop.f32.mrf.mxu0
      %v1860 = vadd.f32 0.0, %v1859
      %v1861 = vpop.f32.mrf.mxu0
      %v1862 = vpop.f32.mrf.mxu0
      %v1863 = vadd.f32 0.0, %v1862
      %v1864 = vpop.f32.mrf.mxu0
      %1865 = vmatprep.mubr.bf16.mxu0 0
      %1866 = vmatmul.mubr.bf16.gmra.mxu0 %v1802
      %v1867 = vpop.f32.mrf.mxu0
      %v1868 = vadd.f32 0.0, %v1867
      %v1869 = vpop.f32.mrf.mxu0
      %v1870 = vpop.f32.mrf.mxu0
      %v1871 = vadd.f32 0.0, %v1870
      %v1872 = vpop.f32.mrf.mxu0
      %1873 = vmatprep.mubr.bf16.mxu0 0
      %1874 = vmatmul.mubr.bf16.gmra.mxu0 %v1805
      %v1875 = vpop.f32.mrf.mxu0
      %v1876 = vadd.f32 0.0, %v1875
      %v1877 = vpop.f32.mrf.mxu0
      %v1878 = vpop.f32.mrf.mxu0
      %v1879 = vadd.f32 0.0, %v1878
      %v1880 = vpop.f32.mrf.mxu0
      %1881 = vmatprep.mubr.bf16.mxu0 0
      %1882 = vmatmul.mubr.bf16.gmra.mxu0 %v1808
      %v1883 = vpop.f32.mrf.mxu0
      %v1884 = vadd.f32 0.0, %v1883
      %v1885 = vpop.f32.mrf.mxu0
      %v1886 = vpop.f32.mrf.mxu0
      %v1887 = vadd.f32 0.0, %v1886
      %v1888 = vpop.f32.mrf.mxu0
      %1889 = vmatprep.mubr.bf16.mxu0 0
      %1890 = vmatmul.mubr.bf16.gmra.mxu0 %v1811
      %v1891 = vpop.f32.mrf.mxu0
      %v1892 = vadd.f32 0.0, %v1891
      %v1893 = vpop.f32.mrf.mxu0
      %v1894 = vpop.f32.mrf.mxu0
      %v1895 = vadd.f32 0.0, %v1894
      %v1896 = vpop.f32.mrf.mxu0
      %1897 = vmatprep.mubr.bf16.mxu0 0
      %1898 = vmatmul.mubr.bf16.gmra.mxu0 %v1814
      %v1899 = vpop.f32.mrf.mxu0
      %v1900 = vadd.f32 0.0, %v1899
      %v1901 = vpop.f32.mrf.mxu0
      %v1902 = vpop.f32.mrf.mxu0
      %v1903 = vadd.f32 0.0, %v1902
      %v1904 = vpop.f32.mrf.mxu0
      %1905 = vmatprep.mubr.bf16.mxu0 0
      %1906 = vmatmul.mubr.bf16.gmra.mxu0 %v1817
      %v1907 = vpop.f32.mrf.mxu0
      %v1908 = vadd.f32 0.0, %v1907
      %v1909 = vpop.f32.mrf.mxu0
      %v1910 = vpop.f32.mrf.mxu0
      %v1911 = vadd.f32 0.0, %v1910
      %v1912 = vpop.f32.mrf.mxu0
      %1913 = vmatprep.mubr.bf16.mxu0 0
      %1914 = vmatmul.mubr.bf16.gmra.mxu0 %v1820
      %v1915 = vpop.f32.mrf.mxu0
      %v1916 = vadd.f32 0.0, %v1915
      %v1917 = vpop.f32.mrf.mxu0
      %v1918 = vpop.f32.mrf.mxu0
      %v1919 = vadd.f32 0.0, %v1918
      %v1920 = vpop.f32.mrf.mxu0
      %1921 = vdwg.mxu0
      %v1922 = vadd.f32 %v1720, %v1860
      %v1923 = vadd.f32 %v1721, %v1863
      %v1924 = vadd.f32 %v1722, %v1868
      %v1925 = vadd.f32 %v1723, %v1871
      %v1926 = vadd.f32 %v1724, %v1876
      %v1927 = vadd.f32 %v1725, %v1879
      %v1928 = vadd.f32 %v1726, %v1884
      %v1929 = vadd.f32 %v1727, %v1887
      %v1930 = vadd.f32 %v1728, %v1892
      %v1931 = vadd.f32 %v1729, %v1895
      %v1932 = vadd.f32 %v1730, %v1900
      %v1933 = vadd.f32 %v1731, %v1903
      %v1934 = vadd.f32 %v1732, %v1908
      %v1935 = vadd.f32 %v1733, %v1911
      %v1936 = vadd.f32 %v1734, %v1916
      %v1937 = vadd.f32 %v1735, %v1919
      %v1938 = vld [vmem:[%s1739] sm:$0xf]
      %v1939 = vld [vmem:[%s1739 + $0x4] sm:$0xf]
      %v1940 = vld [vmem:[%s1739 + $0x8] sm:$0x1]
      %v1941 = vld [vmem:[%s1739 + $0xc] sm:$0xf]
      %v1942 = vld [vmem:[%s1739 + $0x10] sm:$0xf]
      %v1943 = vld [vmem:[%s1739 + $0x14] sm:$0x1]
      %v1944 = vld [vmem:[%s1739 + $0x18] sm:$0xf]
      %v1945 = vld [vmem:[%s1739 + $0x1c] sm:$0xf]
      %v1946 = vld [vmem:[%s1739 + $0x20] sm:$0x1]
      %v1947 = vld [vmem:[%s1739 + $0x24] sm:$0xf]
      %v1948 = vld [vmem:[%s1739 + $0x28] sm:$0xf]
      %v1949 = vld [vmem:[%s1739 + $0x2c] sm:$0x1]
      %v1950 = vld [vmem:[%s1739 + $0x30] sm:$0xf]
      %v1951 = vld [vmem:[%s1739 + $0x34] sm:$0xf]
      %v1952 = vld [vmem:[%s1739 + $0x38] sm:$0x1]
      %v1953 = vld [vmem:[%s1739 + $0x3c] sm:$0xf]
      %v1954 = vld [vmem:[%s1739 + $0x40] sm:$0xf]
      %v1955 = vld [vmem:[%s1739 + $0x44] sm:$0x1]
      %v1956 = vld [vmem:[%s1739 + $0x48] sm:$0xf]
      %v1957 = vld [vmem:[%s1739 + $0x4c] sm:$0xf]
      %v1958 = vld [vmem:[%s1739 + $0x50] sm:$0x1]
      %v1959 = vld [vmem:[%s1739 + $0x54] sm:$0xf]
      %v1960 = vld [vmem:[%s1739 + $0x58] sm:$0xf]
      %v1961 = vld [vmem:[%s1739 + $0x5c] sm:$0x1]
      %v1963 = vshrl.u32 %v1938, 16
      %v1965 = vrot.slane %v1963, 4
      %v1966 = vshll.u32 %v1938, 16
      %v1968 = vrot.slane %v1966, 5
      %v1969 = vor.u32 %v1965, %v1968
      %v1970 = vrot.slane %v1969, 4
      %v1972 = vshll.u32 %v1939, 16
      %v1974 = vrot.slane %v1972, 5
      %v1975 = vsel %vm978, %v1970, %v1974
      %v1976 = vshrl.u32 %v1939, 16
      %v1978 = vrot.slane %v1976, 4
      %v1979 = vor.u32 %v1978, %v1974
      %v1980 = vrot.slane %v1979, 4
      %v1982 = vshll.u32 %v1940, 16
      %v1984 = vrot.slane %v1982, 5
      %v1985 = vsel %vm978, %v1980, %v1984
      %v1987 = vshrl.u32 %v1941, 16
      %v1989 = vrot.slane %v1987, 4
      %v1990 = vshll.u32 %v1941, 16
      %v1992 = vrot.slane %v1990, 5
      %v1993 = vor.u32 %v1989, %v1992
      %v1994 = vrot.slane %v1993, 4
      %v1996 = vshll.u32 %v1942, 16
      %v1998 = vrot.slane %v1996, 5
      %v1999 = vsel %vm978, %v1994, %v1998
      %v2000 = vshrl.u32 %v1942, 16
      %v2002 = vrot.slane %v2000, 4
      %v2003 = vor.u32 %v2002, %v1998
      %v2004 = vrot.slane %v2003, 4
      %v2006 = vshll.u32 %v1943, 16
      %v2008 = vrot.slane %v2006, 5
      %v2009 = vsel %vm978, %v2004, %v2008
      %v2011 = vshrl.u32 %v1944, 16
      %v2013 = vrot.slane %v2011, 4
      %v2014 = vshll.u32 %v1944, 16
      %v2016 = vrot.slane %v2014, 5
      %v2017 = vor.u32 %v2013, %v2016
      %v2018 = vrot.slane %v2017, 4
      %v2020 = vshll.u32 %v1945, 16
      %v2022 = vrot.slane %v2020, 5
      %v2023 = vsel %vm978, %v2018, %v2022
      %v2024 = vshrl.u32 %v1945, 16
      %v2026 = vrot.slane %v2024, 4
      %v2027 = vor.u32 %v2026, %v2022
      %v2028 = vrot.slane %v2027, 4
      %v2030 = vshll.u32 %v1946, 16
      %v2032 = vrot.slane %v2030, 5
      %v2033 = vsel %vm978, %v2028, %v2032
      %v2035 = vshrl.u32 %v1947, 16
      %v2037 = vrot.slane %v2035, 4
      %v2038 = vshll.u32 %v1947, 16
      %v2040 = vrot.slane %v2038, 5
      %v2041 = vor.u32 %v2037, %v2040
      %v2042 = vrot.slane %v2041, 4
      %v2044 = vshll.u32 %v1948, 16
      %v2046 = vrot.slane %v2044, 5
      %v2047 = vsel %vm978, %v2042, %v2046
      %v2048 = vshrl.u32 %v1948, 16
      %v2050 = vrot.slane %v2048, 4
      %v2051 = vor.u32 %v2050, %v2046
      %v2052 = vrot.slane %v2051, 4
      %v2054 = vshll.u32 %v1949, 16
      %v2056 = vrot.slane %v2054, 5
      %v2057 = vsel %vm978, %v2052, %v2056
      %v2059 = vshrl.u32 %v1950, 16
      %v2061 = vrot.slane %v2059, 4
      %v2062 = vshll.u32 %v1950, 16
      %v2064 = vrot.slane %v2062, 5
      %v2065 = vor.u32 %v2061, %v2064
      %v2066 = vrot.slane %v2065, 4
      %v2068 = vshll.u32 %v1951, 16
      %v2070 = vrot.slane %v2068, 5
      %v2071 = vsel %vm978, %v2066, %v2070
      %v2072 = vshrl.u32 %v1951, 16
      %v2074 = vrot.slane %v2072, 4
      %v2075 = vor.u32 %v2074, %v2070
      %v2076 = vrot.slane %v2075, 4
      %v2078 = vshll.u32 %v1952, 16
      %v2080 = vrot.slane %v2078, 5
      %v2081 = vsel %vm978, %v2076, %v2080
      %v2083 = vshrl.u32 %v1953, 16
      %v2085 = vrot.slane %v2083, 4
      %v2086 = vshll.u32 %v1953, 16
      %v2088 = vrot.slane %v2086, 5
      %v2089 = vor.u32 %v2085, %v2088
      %v2090 = vrot.slane %v2089, 4
      %v2092 = vshll.u32 %v1954, 16
      %v2094 = vrot.slane %v2092, 5
      %v2095 = vsel %vm978, %v2090, %v2094
      %v2096 = vshrl.u32 %v1954, 16
      %v2098 = vrot.slane %v2096, 4
      %v2099 = vor.u32 %v2098, %v2094
      %v2100 = vrot.slane %v2099, 4
      %v2102 = vshll.u32 %v1955, 16
      %v2104 = vrot.slane %v2102, 5
      %v2105 = vsel %vm978, %v2100, %v2104
      %v2107 = vshrl.u32 %v1956, 16
      %v2109 = vrot.slane %v2107, 4
      %v2110 = vshll.u32 %v1956, 16
      %v2112 = vrot.slane %v2110, 5
      %v2113 = vor.u32 %v2109, %v2112
      %v2114 = vrot.slane %v2113, 4
      %v2116 = vshll.u32 %v1957, 16
      %v2118 = vrot.slane %v2116, 5
      %v2119 = vsel %vm978, %v2114, %v2118
      %v2120 = vshrl.u32 %v1957, 16
      %v2122 = vrot.slane %v2120, 4
      %v2123 = vor.u32 %v2122, %v2118
      %v2124 = vrot.slane %v2123, 4
      %v2126 = vshll.u32 %v1958, 16
      %v2128 = vrot.slane %v2126, 5
      %v2129 = vsel %vm978, %v2124, %v2128
      %v2131 = vshrl.u32 %v1959, 16
      %v2133 = vrot.slane %v2131, 4
      %v2134 = vshll.u32 %v1959, 16
      %v2136 = vrot.slane %v2134, 5
      %v2137 = vor.u32 %v2133, %v2136
      %v2138 = vrot.slane %v2137, 4
      %v2140 = vshll.u32 %v1960, 16
      %v2142 = vrot.slane %v2140, 5
      %v2143 = vsel %vm978, %v2138, %v2142
      %v2144 = vshrl.u32 %v1960, 16
      %v2146 = vrot.slane %v2144, 4
      %v2147 = vor.u32 %v2146, %v2142
      %v2148 = vrot.slane %v2147, 4
      %v2150 = vshll.u32 %v1961, 16
      %v2152 = vrot.slane %v2150, 5
      %v2153 = vsel %vm978, %v2148, %v2152
      %s2154 = scalar_lea.vmem %s1, 16
      %v2155 = vld [vmem:[%s2154] sm:$0xf]
      %v2156 = vunpack.c.l.b16 %v1975
      %v2157 = vunpack.c.l.b16 %v1985
      %v2158 = vunpack.c.l.b16 %v1999
      %v2159 = vunpack.c.l.b16 %v2009
      %v2160 = vunpack.c.l.b16 %v2023
      %v2161 = vunpack.c.l.b16 %v2033
      %v2162 = vunpack.c.l.b16 %v2047
      %v2163 = vunpack.c.l.b16 %v2057
      %v2164 = vunpack.c.l.b16 %v2071
      %v2165 = vunpack.c.l.b16 %v2081
      %v2166 = vunpack.c.l.b16 %v2095
      %v2167 = vunpack.c.l.b16 %v2105
      %v2168 = vunpack.c.l.b16 %v2119
      %v2169 = vunpack.c.l.b16 %v2129
      %v2170 = vunpack.c.l.b16 %v2143
      %v2171 = vunpack.c.l.b16 %v2153
      %v2172 = vpack.c.b16 %v2157, %v2156
      %v2173 = vpack.c.b16 %v2159, %v2158
      %v2174 = vpack.c.b16 %v2161, %v2160
      %v2175 = vpack.c.b16 %v2163, %v2162
      %v2176 = vpack.c.b16 %v2165, %v2164
      %v2177 = vpack.c.b16 %v2167, %v2166
      %v2178 = vpack.c.b16 %v2169, %v2168
      %v2179 = vpack.c.b16 %v2171, %v2170
      %v2181 = vsel %vm1197, %v2172, 0
      %v2184 = vsel %vm1197, %v2173, 0
      %v2187 = vsel %vm1197, %v2174, 0
      %v2190 = vsel %vm1197, %v2175, 0
      %v2193 = vsel %vm1197, %v2176, 0
      %v2196 = vsel %vm1197, %v2177, 0
      %v2199 = vsel %vm1197, %v2178, 0
      %v2202 = vsel %vm1197, %v2179, 0
      %v2205 = vsel %vm1222, %v2155, 0
      %2207 = vmatprep.subr.bf16.mxu0 0
      %2208 = vmatpush1.bf16.msra.mxu0 0
      %2209 = vmatprep.subr.bf16.mxu0 0
      %2210 = vmatpush1.bf16.msra.mxu0 0
      %2211 = vmatprep.subr.bf16.mxu0 0
      %2212 = vmatpush1.bf16.msra.mxu0 0
      %2213 = vmatprep.subr.bf16.mxu0 0
      %2214 = vmatpush1.bf16.msra.mxu0 0
      %2215 = vmatprep.subr.bf16.mxu0 0
      %2216 = vmatpush1.bf16.msra.mxu0 0
      %2217 = vmatprep.subr.bf16.mxu0 0
      %2218 = vmatpush1.bf16.msra.mxu0 0
      %2219 = vmatprep.subr.bf16.mxu0 0
      %2220 = vmatpush1.bf16.msra.mxu0 0
      %2221 = vmatprep.subr.bf16.mxu0 0
      %2222 = vmatpush1.bf16.msra.mxu0 %v2205
      %2223 = vmatprep.subr.bf16.mxu0 0
      %2224 = vmatpush2.bf16.msra.mxu0 0
      %2225 = vmatprep.subr.bf16.mxu0 0
      %2226 = vmatpush2.bf16.msra.mxu0 0
      %2227 = vmatprep.subr.bf16.mxu0 0
      %2228 = vmatpush2.bf16.msra.mxu0 0
      %2229 = vmatprep.subr.bf16.mxu0 0
      %2230 = vmatpush2.bf16.msra.mxu0 0
      %2231 = vmatprep.subr.bf16.mxu0 0
      %2232 = vmatpush2.bf16.msra.mxu0 0
      %2233 = vmatprep.subr.bf16.mxu0 0
      %2234 = vmatpush2.bf16.msra.mxu0 0
      %2235 = vmatprep.subr.bf16.mxu0 0
      %2236 = vmatpush2.bf16.msra.mxu0 0
      %2237 = vmatprep.subr.bf16.mxu0 0
      %2238 = vmatpush2.bf16.msra.mxu0 0
      %2239 = vmatprep.mubr.bf16.mxu0 0
      %2240 = vmatmul.mubr.bf16.gmra.mxu0 %v2181
      %v2241 = vpop.f32.mrf.mxu0
      %v2242 = vadd.f32 0.0, %v2241
      %v2243 = vpop.f32.mrf.mxu0
      %v2244 = vpop.f32.mrf.mxu0
      %v2245 = vadd.f32 0.0, %v2244
      %v2246 = vpop.f32.mrf.mxu0
      %2247 = vmatprep.mubr.bf16.mxu0 0
      %2248 = vmatmul.mubr.bf16.gmra.mxu0 %v2184
      %v2249 = vpop.f32.mrf.mxu0
      %v2250 = vadd.f32 0.0, %v2249
      %v2251 = vpop.f32.mrf.mxu0
      %v2252 = vpop.f32.mrf.mxu0
      %v2253 = vadd.f32 0.0, %v2252
      %v2254 = vpop.f32.mrf.mxu0
      %2255 = vmatprep.mubr.bf16.mxu0 0
      %2256 = vmatmul.mubr.bf16.gmra.mxu0 %v2187
      %v2257 = vpop.f32.mrf.mxu0
      %v2258 = vadd.f32 0.0, %v2257
      %v2259 = vpop.f32.mrf.mxu0
      %v2260 = vpop.f32.mrf.mxu0
      %v2261 = vadd.f32 0.0, %v2260
      %v2262 = vpop.f32.mrf.mxu0
      %2263 = vmatprep.mubr.bf16.mxu0 0
      %2264 = vmatmul.mubr.bf16.gmra.mxu0 %v2190
      %v2265 = vpop.f32.mrf.mxu0
      %v2266 = vadd.f32 0.0, %v2265
      %v2267 = vpop.f32.mrf.mxu0
      %v2268 = vpop.f32.mrf.mxu0
      %v2269 = vadd.f32 0.0, %v2268
      %v2270 = vpop.f32.mrf.mxu0
      %2271 = vmatprep.mubr.bf16.mxu0 0
      %2272 = vmatmul.mubr.bf16.gmra.mxu0 %v2193
      %v2273 = vpop.f32.mrf.mxu0
      %v2274 = vadd.f32 0.0, %v2273
      %v2275 = vpop.f32.mrf.mxu0
      %v2276 = vpop.f32.mrf.mxu0
      %v2277 = vadd.f32 0.0, %v2276
      %v2278 = vpop.f32.mrf.mxu0
      %2279 = vmatprep.mubr.bf16.mxu0 0
      %2280 = vmatmul.mubr.bf16.gmra.mxu0 %v2196
      %v2281 = vpop.f32.mrf.mxu0
      %v2282 = vadd.f32 0.0, %v2281
      %v2283 = vpop.f32.mrf.mxu0
      %v2284 = vpop.f32.mrf.mxu0
      %v2285 = vadd.f32 0.0, %v2284
      %v2286 = vpop.f32.mrf.mxu0
      %2287 = vmatprep.mubr.bf16.mxu0 0
      %2288 = vmatmul.mubr.bf16.gmra.mxu0 %v2199
      %v2289 = vpop.f32.mrf.mxu0
      %v2290 = vadd.f32 0.0, %v2289
      %v2291 = vpop.f32.mrf.mxu0
      %v2292 = vpop.f32.mrf.mxu0
      %v2293 = vadd.f32 0.0, %v2292
      %v2294 = vpop.f32.mrf.mxu0
      %2295 = vmatprep.mubr.bf16.mxu0 0
      %2296 = vmatmul.mubr.bf16.gmra.mxu0 %v2202
      %v2297 = vpop.f32.mrf.mxu0
      %v2298 = vadd.f32 0.0, %v2297
      %v2299 = vpop.f32.mrf.mxu0
      %v2300 = vpop.f32.mrf.mxu0
      %v2301 = vadd.f32 0.0, %v2300
      %v2302 = vpop.f32.mrf.mxu0
      %2303 = vdwg.mxu0
      %v2304 = vadd.f32 %v1922, %v2242
      %v2305 = vadd.f32 %v1923, %v2245
      %v2306 = vadd.f32 %v1924, %v2250
      %v2307 = vadd.f32 %v1925, %v2253
      %v2308 = vadd.f32 %v1926, %v2258
      %v2309 = vadd.f32 %v1927, %v2261
      %v2310 = vadd.f32 %v1928, %v2266
      %v2311 = vadd.f32 %v1929, %v2269
      %v2312 = vadd.f32 %v1930, %v2274
      %v2313 = vadd.f32 %v1931, %v2277
      %v2314 = vadd.f32 %v1932, %v2282
      %v2315 = vadd.f32 %v1933, %v2285
      %v2316 = vadd.f32 %v1934, %v2290
      %v2317 = vadd.f32 %v1935, %v2293
      %v2318 = vadd.f32 %v1936, %v2298
      %v2319 = vadd.f32 %v1937, %v2301
      %v2320 = vld [vmem:[%s1739] sm:$0xe]
      %v2321 = vld [vmem:[%s1739 + $0xc] sm:$0xe]
      %v2322 = vld [vmem:[%s1739 + $0x18] sm:$0xe]
      %v2323 = vld [vmem:[%s1739 + $0x24] sm:$0xe]
      %v2324 = vld [vmem:[%s1739 + $0x30] sm:$0xe]
      %v2325 = vld [vmem:[%s1739 + $0x3c] sm:$0xe]
      %v2326 = vld [vmem:[%s1739 + $0x48] sm:$0xe]
      %v2327 = vld [vmem:[%s1739 + $0x54] sm:$0xe]
      %v2352 = vrot.slane %v2320, 5
      %v2353 = vrot.slane %v2352, 4
      %v2354 = vrot.slane %v1939, 5
      %v2355 = vsel %vm1513, %v2353, %v2354
      %v2356 = vrot.slane %v2354, 4
      %v2357 = vrot.slane %v1940, 5
      %v2358 = vsel %vm1513, %v2356, %v2357
      %v2359 = vrot.slane %v2321, 5
      %v2360 = vrot.slane %v2359, 4
      %v2361 = vrot.slane %v1942, 5
      %v2362 = vsel %vm1513, %v2360, %v2361
      %v2363 = vrot.slane %v2361, 4
      %v2364 = vrot.slane %v1943, 5
      %v2365 = vsel %vm1513, %v2363, %v2364
      %v2366 = vrot.slane %v2322, 5
      %v2367 = vrot.slane %v2366, 4
      %v2368 = vrot.slane %v1945, 5
      %v2369 = vsel %vm1513, %v2367, %v2368
      %v2370 = vrot.slane %v2368, 4
      %v2371 = vrot.slane %v1946, 5
      %v2372 = vsel %vm1513, %v2370, %v2371
      %v2373 = vrot.slane %v2323, 5
      %v2374 = vrot.slane %v2373, 4
      %v2375 = vrot.slane %v1948, 5
      %v2376 = vsel %vm1513, %v2374, %v2375
      %v2377 = vrot.slane %v2375, 4
      %v2378 = vrot.slane %v1949, 5
      %v2379 = vsel %vm1513, %v2377, %v2378
      %v2380 = vrot.slane %v2324, 5
      %v2381 = vrot.slane %v2380, 4
      %v2382 = vrot.slane %v1951, 5
      %v2383 = vsel %vm1513, %v2381, %v2382
      %v2384 = vrot.slane %v2382, 4
      %v2385 = vrot.slane %v1952, 5
      %v2386 = vsel %vm1513, %v2384, %v2385
      %v2387 = vrot.slane %v2325, 5
      %v2388 = vrot.slane %v2387, 4
      %v2389 = vrot.slane %v1954, 5
      %v2390 = vsel %vm1513, %v2388, %v2389
      %v2391 = vrot.slane %v2389, 4
      %v2392 = vrot.slane %v1955, 5
      %v2393 = vsel %vm1513, %v2391, %v2392
      %v2394 = vrot.slane %v2326, 5
      %v2395 = vrot.slane %v2394, 4
      %v2396 = vrot.slane %v1957, 5
      %v2397 = vsel %vm1513, %v2395, %v2396
      %v2398 = vrot.slane %v2396, 4
      %v2399 = vrot.slane %v1958, 5
      %v2400 = vsel %vm1513, %v2398, %v2399
      %v2401 = vrot.slane %v2327, 5
      %v2402 = vrot.slane %v2401, 4
      %v2403 = vrot.slane %v1960, 5
      %v2404 = vsel %vm1513, %v2402, %v2403
      %v2405 = vrot.slane %v2403, 4
      %v2406 = vrot.slane %v1961, 5
      %v2407 = vsel %vm1513, %v2405, %v2406
      %s2408 = scalar_lea.vmem %s1, 20
      %v2409 = vld [vmem:[%s2408] sm:$0xf]
      %v2410 = vunpack.c.l.b16 %v2355
      %v2411 = vunpack.c.l.b16 %v2358
      %v2412 = vunpack.c.l.b16 %v2362
      %v2413 = vunpack.c.l.b16 %v2365
      %v2414 = vunpack.c.l.b16 %v2369
      %v2415 = vunpack.c.l.b16 %v2372
      %v2416 = vunpack.c.l.b16 %v2376
      %v2417 = vunpack.c.l.b16 %v2379
      %v2418 = vunpack.c.l.b16 %v2383
      %v2419 = vunpack.c.l.b16 %v2386
      %v2420 = vunpack.c.l.b16 %v2390
      %v2421 = vunpack.c.l.b16 %v2393
      %v2422 = vunpack.c.l.b16 %v2397
      %v2423 = vunpack.c.l.b16 %v2400
      %v2424 = vunpack.c.l.b16 %v2404
      %v2425 = vunpack.c.l.b16 %v2407
      %v2426 = vpack.c.b16 %v2411, %v2410
      %v2427 = vpack.c.b16 %v2413, %v2412
      %v2428 = vpack.c.b16 %v2415, %v2414
      %v2429 = vpack.c.b16 %v2417, %v2416
      %v2430 = vpack.c.b16 %v2419, %v2418
      %v2431 = vpack.c.b16 %v2421, %v2420
      %v2432 = vpack.c.b16 %v2423, %v2422
      %v2433 = vpack.c.b16 %v2425, %v2424
      %v2435 = vsel %vm1197, %v2426, 0
      %v2438 = vsel %vm1197, %v2427, 0
      %v2441 = vsel %vm1197, %v2428, 0
      %v2444 = vsel %vm1197, %v2429, 0
      %v2447 = vsel %vm1197, %v2430, 0
      %v2450 = vsel %vm1197, %v2431, 0
      %v2453 = vsel %vm1197, %v2432, 0
      %v2456 = vsel %vm1197, %v2433, 0
      %v2459 = vsel %vm1222, %v2409, 0
      %2461 = vmatprep.subr.bf16.mxu0 0
      %2462 = vmatpush1.bf16.msra.mxu0 0
      %2463 = vmatprep.subr.bf16.mxu0 0
      %2464 = vmatpush1.bf16.msra.mxu0 0
      %2465 = vmatprep.subr.bf16.mxu0 0
      %2466 = vmatpush1.bf16.msra.mxu0 0
      %2467 = vmatprep.subr.bf16.mxu0 0
      %2468 = vmatpush1.bf16.msra.mxu0 0
      %2469 = vmatprep.subr.bf16.mxu0 0
      %2470 = vmatpush1.bf16.msra.mxu0 0
      %2471 = vmatprep.subr.bf16.mxu0 0
      %2472 = vmatpush1.bf16.msra.mxu0 0
      %2473 = vmatprep.subr.bf16.mxu0 0
      %2474 = vmatpush1.bf16.msra.mxu0 0
      %2475 = vmatprep.subr.bf16.mxu0 0
      %2476 = vmatpush1.bf16.msra.mxu0 %v2459
      %2477 = vmatprep.subr.bf16.mxu0 0
      %2478 = vmatpush2.bf16.msra.mxu0 0
      %2479 = vmatprep.subr.bf16.mxu0 0
      %2480 = vmatpush2.bf16.msra.mxu0 0
      %2481 = vmatprep.subr.bf16.mxu0 0
      %2482 = vmatpush2.bf16.msra.mxu0 0
      %2483 = vmatprep.subr.bf16.mxu0 0
      %2484 = vmatpush2.bf16.msra.mxu0 0
      %2485 = vmatprep.subr.bf16.mxu0 0
      %2486 = vmatpush2.bf16.msra.mxu0 0
      %2487 = vmatprep.subr.bf16.mxu0 0
      %2488 = vmatpush2.bf16.msra.mxu0 0
      %2489 = vmatprep.subr.bf16.mxu0 0
      %2490 = vmatpush2.bf16.msra.mxu0 0
      %2491 = vmatprep.subr.bf16.mxu0 0
      %2492 = vmatpush2.bf16.msra.mxu0 0
      %2493 = vmatprep.mubr.bf16.mxu0 0
      %2494 = vmatmul.mubr.bf16.gmra.mxu0 %v2435
      %v2495 = vpop.f32.mrf.mxu0
      %v2496 = vadd.f32 0.0, %v2495
      %v2497 = vpop.f32.mrf.mxu0
      %v2498 = vpop.f32.mrf.mxu0
      %v2499 = vadd.f32 0.0, %v2498
      %v2500 = vpop.f32.mrf.mxu0
      %2501 = vmatprep.mubr.bf16.mxu0 0
      %2502 = vmatmul.mubr.bf16.gmra.mxu0 %v2438
      %v2503 = vpop.f32.mrf.mxu0
      %v2504 = vadd.f32 0.0, %v2503
      %v2505 = vpop.f32.mrf.mxu0
      %v2506 = vpop.f32.mrf.mxu0
      %v2507 = vadd.f32 0.0, %v2506
      %v2508 = vpop.f32.mrf.mxu0
      %2509 = vmatprep.mubr.bf16.mxu0 0
      %2510 = vmatmul.mubr.bf16.gmra.mxu0 %v2441
      %v2511 = vpop.f32.mrf.mxu0
      %v2512 = vadd.f32 0.0, %v2511
      %v2513 = vpop.f32.mrf.mxu0
      %v2514 = vpop.f32.mrf.mxu0
      %v2515 = vadd.f32 0.0, %v2514
      %v2516 = vpop.f32.mrf.mxu0
      %2517 = vmatprep.mubr.bf16.mxu0 0
      %2518 = vmatmul.mubr.bf16.gmra.mxu0 %v2444
      %v2519 = vpop.f32.mrf.mxu0
      %v2520 = vadd.f32 0.0, %v2519
      %v2521 = vpop.f32.mrf.mxu0
      %v2522 = vpop.f32.mrf.mxu0
      %v2523 = vadd.f32 0.0, %v2522
      %v2524 = vpop.f32.mrf.mxu0
      %2525 = vmatprep.mubr.bf16.mxu0 0
      %2526 = vmatmul.mubr.bf16.gmra.mxu0 %v2447
      %v2527 = vpop.f32.mrf.mxu0
      %v2528 = vadd.f32 0.0, %v2527
      %v2529 = vpop.f32.mrf.mxu0
      %v2530 = vpop.f32.mrf.mxu0
      %v2531 = vadd.f32 0.0, %v2530
      %v2532 = vpop.f32.mrf.mxu0
      %2533 = vmatprep.mubr.bf16.mxu0 0
      %2534 = vmatmul.mubr.bf16.gmra.mxu0 %v2450
      %v2535 = vpop.f32.mrf.mxu0
      %v2536 = vadd.f32 0.0, %v2535
      %v2537 = vpop.f32.mrf.mxu0
      %v2538 = vpop.f32.mrf.mxu0
      %v2539 = vadd.f32 0.0, %v2538
      %v2540 = vpop.f32.mrf.mxu0
      %2541 = vmatprep.mubr.bf16.mxu0 0
      %2542 = vmatmul.mubr.bf16.gmra.mxu0 %v2453
      %v2543 = vpop.f32.mrf.mxu0
      %v2544 = vadd.f32 0.0, %v2543
      %v2545 = vpop.f32.mrf.mxu0
      %v2546 = vpop.f32.mrf.mxu0
      %v2547 = vadd.f32 0.0, %v2546
      %v2548 = vpop.f32.mrf.mxu0
      %2549 = vmatprep.mubr.bf16.mxu0 0
      %2550 = vmatmul.mubr.bf16.gmra.mxu0 %v2456
      %v2551 = vpop.f32.mrf.mxu0
      %v2552 = vadd.f32 0.0, %v2551
      %v2553 = vpop.f32.mrf.mxu0
      %v2554 = vpop.f32.mrf.mxu0
      %v2555 = vadd.f32 0.0, %v2554
      %v2556 = vpop.f32.mrf.mxu0
      %2557 = vdwg.mxu0
      %v2558 = vadd.f32 %v2304, %v2496
      %v2559 = vadd.f32 %v2305, %v2499
      %v2560 = vadd.f32 %v2306, %v2504
      %v2561 = vadd.f32 %v2307, %v2507
      %v2562 = vadd.f32 %v2308, %v2512
      %v2563 = vadd.f32 %v2309, %v2515
      %v2564 = vadd.f32 %v2310, %v2520
      %v2565 = vadd.f32 %v2311, %v2523
      %v2566 = vadd.f32 %v2312, %v2528
      %v2567 = vadd.f32 %v2313, %v2531
      %v2568 = vadd.f32 %v2314, %v2536
      %v2569 = vadd.f32 %v2315, %v2539
      %v2570 = vadd.f32 %v2316, %v2544
      %v2571 = vadd.f32 %v2317, %v2547
      %v2572 = vadd.f32 %v2318, %v2552
      %v2573 = vadd.f32 %v2319, %v2555
      %s2574 = sadd.s32 %s947, 2
      %s2575 = smul.u32 %s2574, 3
      %s2576 = smul.addr %s2575, 4
      %s2577 = scalar_lea.vmem [#allocation2], %s2576
      %v2578 = vld [vmem:[%s2577] sm:$0xf]
      %v2579 = vld [vmem:[%s2577 + $0x4] sm:$0xf]
      %v2580 = vld [vmem:[%s2577 + $0xc] sm:$0xf]
      %v2581 = vld [vmem:[%s2577 + $0x10] sm:$0xf]
      %v2582 = vld [vmem:[%s2577 + $0x18] sm:$0xf]
      %v2583 = vld [vmem:[%s2577 + $0x1c] sm:$0xf]
      %v2584 = vld [vmem:[%s2577 + $0x24] sm:$0xf]
      %v2585 = vld [vmem:[%s2577 + $0x28] sm:$0xf]
      %v2586 = vld [vmem:[%s2577 + $0x30] sm:$0xf]
      %v2587 = vld [vmem:[%s2577 + $0x34] sm:$0xf]
      %v2588 = vld [vmem:[%s2577 + $0x3c] sm:$0xf]
      %v2589 = vld [vmem:[%s2577 + $0x40] sm:$0xf]
      %v2590 = vld [vmem:[%s2577 + $0x48] sm:$0xf]
      %v2591 = vld [vmem:[%s2577 + $0x4c] sm:$0xf]
      %v2592 = vld [vmem:[%s2577 + $0x54] sm:$0xf]
      %v2593 = vld [vmem:[%s2577 + $0x58] sm:$0xf]
      %s2594 = scalar_lea.vmem %s1, 24
      %v2595 = vld [vmem:[%s2594] sm:$0xf]
      %v2612 = vunpack.c.l.b16 %v2578
      %v2613 = vunpack.c.l.b16 %v2579
      %v2614 = vunpack.c.l.b16 %v2580
      %v2615 = vunpack.c.l.b16 %v2581
      %v2616 = vunpack.c.l.b16 %v2582
      %v2617 = vunpack.c.l.b16 %v2583
      %v2618 = vunpack.c.l.b16 %v2584
      %v2619 = vunpack.c.l.b16 %v2585
      %v2620 = vunpack.c.l.b16 %v2586
      %v2621 = vunpack.c.l.b16 %v2587
      %v2622 = vunpack.c.l.b16 %v2588
      %v2623 = vunpack.c.l.b16 %v2589
      %v2624 = vunpack.c.l.b16 %v2590
      %v2625 = vunpack.c.l.b16 %v2591
      %v2626 = vunpack.c.l.b16 %v2592
      %v2627 = vunpack.c.l.b16 %v2593
      %v2628 = vpack.c.b16 %v2613, %v2612
      %v2629 = vpack.c.b16 %v2615, %v2614
      %v2630 = vpack.c.b16 %v2617, %v2616
      %v2631 = vpack.c.b16 %v2619, %v2618
      %v2632 = vpack.c.b16 %v2621, %v2620
      %v2633 = vpack.c.b16 %v2623, %v2622
      %v2634 = vpack.c.b16 %v2625, %v2624
      %v2635 = vpack.c.b16 %v2627, %v2626
      %v2637 = vsel %vm1197, %v2628, 0
      %v2640 = vsel %vm1197, %v2629, 0
      %v2643 = vsel %vm1197, %v2630, 0
      %v2646 = vsel %vm1197, %v2631, 0
      %v2649 = vsel %vm1197, %v2632, 0
      %v2652 = vsel %vm1197, %v2633, 0
      %v2655 = vsel %vm1197, %v2634, 0
      %v2658 = vsel %vm1197, %v2635, 0
      %v2661 = vsel %vm1222, %v2595, 0
      %2663 = vmatprep.subr.bf16.mxu0 0
      %2664 = vmatpush1.bf16.msra.mxu0 0
      %2665 = vmatprep.subr.bf16.mxu0 0
      %2666 = vmatpush1.bf16.msra.mxu0 0
      %2667 = vmatprep.subr.bf16.mxu0 0
      %2668 = vmatpush1.bf16.msra.mxu0 0
      %2669 = vmatprep.subr.bf16.mxu0 0
      %2670 = vmatpush1.bf16.msra.mxu0 0
      %2671 = vmatprep.subr.bf16.mxu0 0
      %2672 = vmatpush1.bf16.msra.mxu0 0
      %2673 = vmatprep.subr.bf16.mxu0 0
      %2674 = vmatpush1.bf16.msra.mxu0 0
      %2675 = vmatprep.subr.bf16.mxu0 0
      %2676 = vmatpush1.bf16.msra.mxu0 0
      %2677 = vmatprep.subr.bf16.mxu0 0
      %2678 = vmatpush1.bf16.msra.mxu0 %v2661
      %2679 = vmatprep.subr.bf16.mxu0 0
      %2680 = vmatpush2.bf16.msra.mxu0 0
      %2681 = vmatprep.subr.bf16.mxu0 0
      %2682 = vmatpush2.bf16.msra.mxu0 0
      %2683 = vmatprep.subr.bf16.mxu0 0
      %2684 = vmatpush2.bf16.msra.mxu0 0
      %2685 = vmatprep.subr.bf16.mxu0 0
      %2686 = vmatpush2.bf16.msra.mxu0 0
      %2687 = vmatprep.subr.bf16.mxu0 0
      %2688 = vmatpush2.bf16.msra.mxu0 0
      %2689 = vmatprep.subr.bf16.mxu0 0
      %2690 = vmatpush2.bf16.msra.mxu0 0
      %2691 = vmatprep.subr.bf16.mxu0 0
      %2692 = vmatpush2.bf16.msra.mxu0 0
      %2693 = vmatprep.subr.bf16.mxu0 0
      %2694 = vmatpush2.bf16.msra.mxu0 0
      %2695 = vmatprep.mubr.bf16.mxu0 0
      %2696 = vmatmul.mubr.bf16.gmra.mxu0 %v2637
      %v2697 = vpop.f32.mrf.mxu0
      %v2698 = vadd.f32 0.0, %v2697
      %v2699 = vpop.f32.mrf.mxu0
      %v2700 = vpop.f32.mrf.mxu0
      %v2701 = vadd.f32 0.0, %v2700
      %v2702 = vpop.f32.mrf.mxu0
      %2703 = vmatprep.mubr.bf16.mxu0 0
      %2704 = vmatmul.mubr.bf16.gmra.mxu0 %v2640
      %v2705 = vpop.f32.mrf.mxu0
      %v2706 = vadd.f32 0.0, %v2705
      %v2707 = vpop.f32.mrf.mxu0
      %v2708 = vpop.f32.mrf.mxu0
      %v2709 = vadd.f32 0.0, %v2708
      %v2710 = vpop.f32.mrf.mxu0
      %2711 = vmatprep.mubr.bf16.mxu0 0
      %2712 = vmatmul.mubr.bf16.gmra.mxu0 %v2643
      %v2713 = vpop.f32.mrf.mxu0
      %v2714 = vadd.f32 0.0, %v2713
      %v2715 = vpop.f32.mrf.mxu0
      %v2716 = vpop.f32.mrf.mxu0
      %v2717 = vadd.f32 0.0, %v2716
      %v2718 = vpop.f32.mrf.mxu0
      %2719 = vmatprep.mubr.bf16.mxu0 0
      %2720 = vmatmul.mubr.bf16.gmra.mxu0 %v2646
      %v2721 = vpop.f32.mrf.mxu0
      %v2722 = vadd.f32 0.0, %v2721
      %v2723 = vpop.f32.mrf.mxu0
      %v2724 = vpop.f32.mrf.mxu0
      %v2725 = vadd.f32 0.0, %v2724
      %v2726 = vpop.f32.mrf.mxu0
      %2727 = vmatprep.mubr.bf16.mxu0 0
      %2728 = vmatmul.mubr.bf16.gmra.mxu0 %v2649
      %v2729 = vpop.f32.mrf.mxu0
      %v2730 = vadd.f32 0.0, %v2729
      %v2731 = vpop.f32.mrf.mxu0
      %v2732 = vpop.f32.mrf.mxu0
      %v2733 = vadd.f32 0.0, %v2732
      %v2734 = vpop.f32.mrf.mxu0
      %2735 = vmatprep.mubr.bf16.mxu0 0
      %2736 = vmatmul.mubr.bf16.gmra.mxu0 %v2652
      %v2737 = vpop.f32.mrf.mxu0
      %v2738 = vadd.f32 0.0, %v2737
      %v2739 = vpop.f32.mrf.mxu0
      %v2740 = vpop.f32.mrf.mxu0
      %v2741 = vadd.f32 0.0, %v2740
      %v2742 = vpop.f32.mrf.mxu0
      %2743 = vmatprep.mubr.bf16.mxu0 0
      %2744 = vmatmul.mubr.bf16.gmra.mxu0 %v2655
      %v2745 = vpop.f32.mrf.mxu0
      %v2746 = vadd.f32 0.0, %v2745
      %v2747 = vpop.f32.mrf.mxu0
      %v2748 = vpop.f32.mrf.mxu0
      %v2749 = vadd.f32 0.0, %v2748
      %v2750 = vpop.f32.mrf.mxu0
      %2751 = vmatprep.mubr.bf16.mxu0 0
      %2752 = vmatmul.mubr.bf16.gmra.mxu0 %v2658
      %v2753 = vpop.f32.mrf.mxu0
      %v2754 = vadd.f32 0.0, %v2753
      %v2755 = vpop.f32.mrf.mxu0
      %v2756 = vpop.f32.mrf.mxu0
      %v2757 = vadd.f32 0.0, %v2756
      %v2758 = vpop.f32.mrf.mxu0
      %2759 = vdwg.mxu0
      %v2760 = vadd.f32 %v2558, %v2698
      %v2761 = vadd.f32 %v2559, %v2701
      %v2762 = vadd.f32 %v2560, %v2706
      %v2763 = vadd.f32 %v2561, %v2709
      %v2764 = vadd.f32 %v2562, %v2714
      %v2765 = vadd.f32 %v2563, %v2717
      %v2766 = vadd.f32 %v2564, %v2722
      %v2767 = vadd.f32 %v2565, %v2725
      %v2768 = vadd.f32 %v2566, %v2730
      %v2769 = vadd.f32 %v2567, %v2733
      %v2770 = vadd.f32 %v2568, %v2738
      %v2771 = vadd.f32 %v2569, %v2741
      %v2772 = vadd.f32 %v2570, %v2746
      %v2773 = vadd.f32 %v2571, %v2749
      %v2774 = vadd.f32 %v2572, %v2754
      %v2775 = vadd.f32 %v2573, %v2757
      %v2776 = vld [vmem:[%s2577] sm:$0xf]
      %v2777 = vld [vmem:[%s2577 + $0x4] sm:$0xf]
      %v2778 = vld [vmem:[%s2577 + $0x8] sm:$0x1]
      %v2779 = vld [vmem:[%s2577 + $0xc] sm:$0xf]
      %v2780 = vld [vmem:[%s2577 + $0x10] sm:$0xf]
      %v2781 = vld [vmem:[%s2577 + $0x14] sm:$0x1]
      %v2782 = vld [vmem:[%s2577 + $0x18] sm:$0xf]
      %v2783 = vld [vmem:[%s2577 + $0x1c] sm:$0xf]
      %v2784 = vld [vmem:[%s2577 + $0x20] sm:$0x1]
      %v2785 = vld [vmem:[%s2577 + $0x24] sm:$0xf]
      %v2786 = vld [vmem:[%s2577 + $0x28] sm:$0xf]
      %v2787 = vld [vmem:[%s2577 + $0x2c] sm:$0x1]
      %v2788 = vld [vmem:[%s2577 + $0x30] sm:$0xf]
      %v2789 = vld [vmem:[%s2577 + $0x34] sm:$0xf]
      %v2790 = vld [vmem:[%s2577 + $0x38] sm:$0x1]
      %v2791 = vld [vmem:[%s2577 + $0x3c] sm:$0xf]
      %v2792 = vld [vmem:[%s2577 + $0x40] sm:$0xf]
      %v2793 = vld [vmem:[%s2577 + $0x44] sm:$0x1]
      %v2794 = vld [vmem:[%s2577 + $0x48] sm:$0xf]
      %v2795 = vld [vmem:[%s2577 + $0x4c] sm:$0xf]
      %v2796 = vld [vmem:[%s2577 + $0x50] sm:$0x1]
      %v2797 = vld [vmem:[%s2577 + $0x54] sm:$0xf]
      %v2798 = vld [vmem:[%s2577 + $0x58] sm:$0xf]
      %v2799 = vld [vmem:[%s2577 + $0x5c] sm:$0x1]
      %v2801 = vshrl.u32 %v2776, 16
      %v2803 = vrot.slane %v2801, 4
      %v2804 = vshll.u32 %v2776, 16
      %v2806 = vrot.slane %v2804, 5
      %v2807 = vor.u32 %v2803, %v2806
      %v2808 = vrot.slane %v2807, 4
      %v2810 = vshll.u32 %v2777, 16
      %v2812 = vrot.slane %v2810, 5
      %v2813 = vsel %vm978, %v2808, %v2812
      %v2814 = vshrl.u32 %v2777, 16
      %v2816 = vrot.slane %v2814, 4
      %v2817 = vor.u32 %v2816, %v2812
      %v2818 = vrot.slane %v2817, 4
      %v2820 = vshll.u32 %v2778, 16
      %v2822 = vrot.slane %v2820, 5
      %v2823 = vsel %vm978, %v2818, %v2822
      %v2825 = vshrl.u32 %v2779, 16
      %v2827 = vrot.slane %v2825, 4
      %v2828 = vshll.u32 %v2779, 16
      %v2830 = vrot.slane %v2828, 5
      %v2831 = vor.u32 %v2827, %v2830
      %v2832 = vrot.slane %v2831, 4
      %v2834 = vshll.u32 %v2780, 16
      %v2836 = vrot.slane %v2834, 5
      %v2837 = vsel %vm978, %v2832, %v2836
      %v2838 = vshrl.u32 %v2780, 16
      %v2840 = vrot.slane %v2838, 4
      %v2841 = vor.u32 %v2840, %v2836
      %v2842 = vrot.slane %v2841, 4
      %v2844 = vshll.u32 %v2781, 16
      %v2846 = vrot.slane %v2844, 5
      %v2847 = vsel %vm978, %v2842, %v2846
      %v2849 = vshrl.u32 %v2782, 16
      %v2851 = vrot.slane %v2849, 4
      %v2852 = vshll.u32 %v2782, 16
      %v2854 = vrot.slane %v2852, 5
      %v2855 = vor.u32 %v2851, %v2854
      %v2856 = vrot.slane %v2855, 4
      %v2858 = vshll.u32 %v2783, 16
      %v2860 = vrot.slane %v2858, 5
      %v2861 = vsel %vm978, %v2856, %v2860
      %v2862 = vshrl.u32 %v2783, 16
      %v2864 = vrot.slane %v2862, 4
      %v2865 = vor.u32 %v2864, %v2860
      %v2866 = vrot.slane %v2865, 4
      %v2868 = vshll.u32 %v2784, 16
      %v2870 = vrot.slane %v2868, 5
      %v2871 = vsel %vm978, %v2866, %v2870
      %v2873 = vshrl.u32 %v2785, 16
      %v2875 = vrot.slane %v2873, 4
      %v2876 = vshll.u32 %v2785, 16
      %v2878 = vrot.slane %v2876, 5
      %v2879 = vor.u32 %v2875, %v2878
      %v2880 = vrot.slane %v2879, 4
      %v2882 = vshll.u32 %v2786, 16
      %v2884 = vrot.slane %v2882, 5
      %v2885 = vsel %vm978, %v2880, %v2884
      %v2886 = vshrl.u32 %v2786, 16
      %v2888 = vrot.slane %v2886, 4
      %v2889 = vor.u32 %v2888, %v2884
      %v2890 = vrot.slane %v2889, 4
      %v2892 = vshll.u32 %v2787, 16
      %v2894 = vrot.slane %v2892, 5
      %v2895 = vsel %vm978, %v2890, %v2894
      %v2897 = vshrl.u32 %v2788, 16
      %v2899 = vrot.slane %v2897, 4
      %v2900 = vshll.u32 %v2788, 16
      %v2902 = vrot.slane %v2900, 5
      %v2903 = vor.u32 %v2899, %v2902
      %v2904 = vrot.slane %v2903, 4
      %v2906 = vshll.u32 %v2789, 16
      %v2908 = vrot.slane %v2906, 5
      %v2909 = vsel %vm978, %v2904, %v2908
      %v2910 = vshrl.u32 %v2789, 16
      %v2912 = vrot.slane %v2910, 4
      %v2913 = vor.u32 %v2912, %v2908
      %v2914 = vrot.slane %v2913, 4
      %v2916 = vshll.u32 %v2790, 16
      %v2918 = vrot.slane %v2916, 5
      %v2919 = vsel %vm978, %v2914, %v2918
      %v2921 = vshrl.u32 %v2791, 16
      %v2923 = vrot.slane %v2921, 4
      %v2924 = vshll.u32 %v2791, 16
      %v2926 = vrot.slane %v2924, 5
      %v2927 = vor.u32 %v2923, %v2926
      %v2928 = vrot.slane %v2927, 4
      %v2930 = vshll.u32 %v2792, 16
      %v2932 = vrot.slane %v2930, 5
      %v2933 = vsel %vm978, %v2928, %v2932
      %v2934 = vshrl.u32 %v2792, 16
      %v2936 = vrot.slane %v2934, 4
      %v2937 = vor.u32 %v2936, %v2932
      %v2938 = vrot.slane %v2937, 4
      %v2940 = vshll.u32 %v2793, 16
      %v2942 = vrot.slane %v2940, 5
      %v2943 = vsel %vm978, %v2938, %v2942
      %v2945 = vshrl.u32 %v2794, 16
      %v2947 = vrot.slane %v2945, 4
      %v2948 = vshll.u32 %v2794, 16
      %v2950 = vrot.slane %v2948, 5
      %v2951 = vor.u32 %v2947, %v2950
      %v2952 = vrot.slane %v2951, 4
      %v2954 = vshll.u32 %v2795, 16
      %v2956 = vrot.slane %v2954, 5
      %v2957 = vsel %vm978, %v2952, %v2956
      %v2958 = vshrl.u32 %v2795, 16
      %v2960 = vrot.slane %v2958, 4
      %v2961 = vor.u32 %v2960, %v2956
      %v2962 = vrot.slane %v2961, 4
      %v2964 = vshll.u32 %v2796, 16
      %v2966 = vrot.slane %v2964, 5
      %v2967 = vsel %vm978, %v2962, %v2966
      %v2969 = vshrl.u32 %v2797, 16
      %v2971 = vrot.slane %v2969, 4
      %v2972 = vshll.u32 %v2797, 16
      %v2974 = vrot.slane %v2972, 5
      %v2975 = vor.u32 %v2971, %v2974
      %v2976 = vrot.slane %v2975, 4
      %v2978 = vshll.u32 %v2798, 16
      %v2980 = vrot.slane %v2978, 5
      %v2981 = vsel %vm978, %v2976, %v2980
      %v2982 = vshrl.u32 %v2798, 16
      %v2984 = vrot.slane %v2982, 4
      %v2985 = vor.u32 %v2984, %v2980
      %v2986 = vrot.slane %v2985, 4
      %v2988 = vshll.u32 %v2799, 16
      %v2990 = vrot.slane %v2988, 5
      %v2991 = vsel %vm978, %v2986, %v2990
      %s2992 = scalar_lea.vmem %s1, 28
      %v2993 = vld [vmem:[%s2992] sm:$0xf]
      %v2994 = vunpack.c.l.b16 %v2813
      %v2995 = vunpack.c.l.b16 %v2823
      %v2996 = vunpack.c.l.b16 %v2837
      %v2997 = vunpack.c.l.b16 %v2847
      %v2998 = vunpack.c.l.b16 %v2861
      %v2999 = vunpack.c.l.b16 %v2871
      %v3000 = vunpack.c.l.b16 %v2885
      %v3001 = vunpack.c.l.b16 %v2895
      %v3002 = vunpack.c.l.b16 %v2909
      %v3003 = vunpack.c.l.b16 %v2919
      %v3004 = vunpack.c.l.b16 %v2933
      %v3005 = vunpack.c.l.b16 %v2943
      %v3006 = vunpack.c.l.b16 %v2957
      %v3007 = vunpack.c.l.b16 %v2967
      %v3008 = vunpack.c.l.b16 %v2981
      %v3009 = vunpack.c.l.b16 %v2991
      %v3010 = vpack.c.b16 %v2995, %v2994
      %v3011 = vpack.c.b16 %v2997, %v2996
      %v3012 = vpack.c.b16 %v2999, %v2998
      %v3013 = vpack.c.b16 %v3001, %v3000
      %v3014 = vpack.c.b16 %v3003, %v3002
      %v3015 = vpack.c.b16 %v3005, %v3004
      %v3016 = vpack.c.b16 %v3007, %v3006
      %v3017 = vpack.c.b16 %v3009, %v3008
      %v3019 = vsel %vm1197, %v3010, 0
      %v3022 = vsel %vm1197, %v3011, 0
      %v3025 = vsel %vm1197, %v3012, 0
      %v3028 = vsel %vm1197, %v3013, 0
      %v3031 = vsel %vm1197, %v3014, 0
      %v3034 = vsel %vm1197, %v3015, 0
      %v3037 = vsel %vm1197, %v3016, 0
      %v3040 = vsel %vm1197, %v3017, 0
      %v3043 = vsel %vm1222, %v2993, 0
      %3045 = vmatprep.subr.bf16.mxu0 0
      %3046 = vmatpush1.bf16.msra.mxu0 0
      %3047 = vmatprep.subr.bf16.mxu0 0
      %3048 = vmatpush1.bf16.msra.mxu0 0
      %3049 = vmatprep.subr.bf16.mxu0 0
      %3050 = vmatpush1.bf16.msra.mxu0 0
      %3051 = vmatprep.subr.bf16.mxu0 0
      %3052 = vmatpush1.bf16.msra.mxu0 0
      %3053 = vmatprep.subr.bf16.mxu0 0
      %3054 = vmatpush1.bf16.msra.mxu0 0
      %3055 = vmatprep.subr.bf16.mxu0 0
      %3056 = vmatpush1.bf16.msra.mxu0 0
      %3057 = vmatprep.subr.bf16.mxu0 0
      %3058 = vmatpush1.bf16.msra.mxu0 0
      %3059 = vmatprep.subr.bf16.mxu0 0
      %3060 = vmatpush1.bf16.msra.mxu0 %v3043
      %3061 = vmatprep.subr.bf16.mxu0 0
      %3062 = vmatpush2.bf16.msra.mxu0 0
      %3063 = vmatprep.subr.bf16.mxu0 0
      %3064 = vmatpush2.bf16.msra.mxu0 0
      %3065 = vmatprep.subr.bf16.mxu0 0
      %3066 = vmatpush2.bf16.msra.mxu0 0
      %3067 = vmatprep.subr.bf16.mxu0 0
      %3068 = vmatpush2.bf16.msra.mxu0 0
      %3069 = vmatprep.subr.bf16.mxu0 0
      %3070 = vmatpush2.bf16.msra.mxu0 0
      %3071 = vmatprep.subr.bf16.mxu0 0
      %3072 = vmatpush2.bf16.msra.mxu0 0
      %3073 = vmatprep.subr.bf16.mxu0 0
      %3074 = vmatpush2.bf16.msra.mxu0 0
      %3075 = vmatprep.subr.bf16.mxu0 0
      %3076 = vmatpush2.bf16.msra.mxu0 0
      %3077 = vmatprep.mubr.bf16.mxu0 0
      %3078 = vmatmul.mubr.bf16.gmra.mxu0 %v3019
      %v3079 = vpop.f32.mrf.mxu0
      %v3080 = vadd.f32 0.0, %v3079
      %v3081 = vpop.f32.mrf.mxu0
      %v3082 = vpop.f32.mrf.mxu0
      %v3083 = vadd.f32 0.0, %v3082
      %v3084 = vpop.f32.mrf.mxu0
      %3085 = vmatprep.mubr.bf16.mxu0 0
      %3086 = vmatmul.mubr.bf16.gmra.mxu0 %v3022
      %v3087 = vpop.f32.mrf.mxu0
      %v3088 = vadd.f32 0.0, %v3087
      %v3089 = vpop.f32.mrf.mxu0
      %v3090 = vpop.f32.mrf.mxu0
      %v3091 = vadd.f32 0.0, %v3090
      %v3092 = vpop.f32.mrf.mxu0
      %3093 = vmatprep.mubr.bf16.mxu0 0
      %3094 = vmatmul.mubr.bf16.gmra.mxu0 %v3025
      %v3095 = vpop.f32.mrf.mxu0
      %v3096 = vadd.f32 0.0, %v3095
      %v3097 = vpop.f32.mrf.mxu0
      %v3098 = vpop.f32.mrf.mxu0
      %v3099 = vadd.f32 0.0, %v3098
      %v3100 = vpop.f32.mrf.mxu0
      %3101 = vmatprep.mubr.bf16.mxu0 0
      %3102 = vmatmul.mubr.bf16.gmra.mxu0 %v3028
      %v3103 = vpop.f32.mrf.mxu0
      %v3104 = vadd.f32 0.0, %v3103
      %v3105 = vpop.f32.mrf.mxu0
      %v3106 = vpop.f32.mrf.mxu0
      %v3107 = vadd.f32 0.0, %v3106
      %v3108 = vpop.f32.mrf.mxu0
      %3109 = vmatprep.mubr.bf16.mxu0 0
      %3110 = vmatmul.mubr.bf16.gmra.mxu0 %v3031
      %v3111 = vpop.f32.mrf.mxu0
      %v3112 = vadd.f32 0.0, %v3111
      %v3113 = vpop.f32.mrf.mxu0
      %v3114 = vpop.f32.mrf.mxu0
      %v3115 = vadd.f32 0.0, %v3114
      %v3116 = vpop.f32.mrf.mxu0
      %3117 = vmatprep.mubr.bf16.mxu0 0
      %3118 = vmatmul.mubr.bf16.gmra.mxu0 %v3034
      %v3119 = vpop.f32.mrf.mxu0
      %v3120 = vadd.f32 0.0, %v3119
      %v3121 = vpop.f32.mrf.mxu0
      %v3122 = vpop.f32.mrf.mxu0
      %v3123 = vadd.f32 0.0, %v3122
      %v3124 = vpop.f32.mrf.mxu0
      %3125 = vmatprep.mubr.bf16.mxu0 0
      %3126 = vmatmul.mubr.bf16.gmra.mxu0 %v3037
      %v3127 = vpop.f32.mrf.mxu0
      %v3128 = vadd.f32 0.0, %v3127
      %v3129 = vpop.f32.mrf.mxu0
      %v3130 = vpop.f32.mrf.mxu0
      %v3131 = vadd.f32 0.0, %v3130
      %v3132 = vpop.f32.mrf.mxu0
      %3133 = vmatprep.mubr.bf16.mxu0 0
      %3134 = vmatmul.mubr.bf16.gmra.mxu0 %v3040
      %v3135 = vpop.f32.mrf.mxu0
      %v3136 = vadd.f32 0.0, %v3135
      %v3137 = vpop.f32.mrf.mxu0
      %v3138 = vpop.f32.mrf.mxu0
      %v3139 = vadd.f32 0.0, %v3138
      %v3140 = vpop.f32.mrf.mxu0
      %3141 = vdwg.mxu0
      %v3142 = vadd.f32 %v2760, %v3080
      %v3143 = vadd.f32 %v2761, %v3083
      %v3144 = vadd.f32 %v2762, %v3088
      %v3145 = vadd.f32 %v2763, %v3091
      %v3146 = vadd.f32 %v2764, %v3096
      %v3147 = vadd.f32 %v2765, %v3099
      %v3148 = vadd.f32 %v2766, %v3104
      %v3149 = vadd.f32 %v2767, %v3107
      %v3150 = vadd.f32 %v2768, %v3112
      %v3151 = vadd.f32 %v2769, %v3115
      %v3152 = vadd.f32 %v2770, %v3120
      %v3153 = vadd.f32 %v2771, %v3123
      %v3154 = vadd.f32 %v2772, %v3128
      %v3155 = vadd.f32 %v2773, %v3131
      %v3156 = vadd.f32 %v2774, %v3136
      %v3157 = vadd.f32 %v2775, %v3139
      %v3158 = vld [vmem:[%s2577] sm:$0xe]
      %v3159 = vld [vmem:[%s2577 + $0xc] sm:$0xe]
      %v3160 = vld [vmem:[%s2577 + $0x18] sm:$0xe]
      %v3161 = vld [vmem:[%s2577 + $0x24] sm:$0xe]
      %v3162 = vld [vmem:[%s2577 + $0x30] sm:$0xe]
      %v3163 = vld [vmem:[%s2577 + $0x3c] sm:$0xe]
      %v3164 = vld [vmem:[%s2577 + $0x48] sm:$0xe]
      %v3165 = vld [vmem:[%s2577 + $0x54] sm:$0xe]
      %v3190 = vrot.slane %v3158, 5
      %v3191 = vrot.slane %v3190, 4
      %v3192 = vrot.slane %v2777, 5
      %v3193 = vsel %vm1513, %v3191, %v3192
      %v3194 = vrot.slane %v3192, 4
      %v3195 = vrot.slane %v2778, 5
      %v3196 = vsel %vm1513, %v3194, %v3195
      %v3197 = vrot.slane %v3159, 5
      %v3198 = vrot.slane %v3197, 4
      %v3199 = vrot.slane %v2780, 5
      %v3200 = vsel %vm1513, %v3198, %v3199
      %v3201 = vrot.slane %v3199, 4
      %v3202 = vrot.slane %v2781, 5
      %v3203 = vsel %vm1513, %v3201, %v3202
      %v3204 = vrot.slane %v3160, 5
      %v3205 = vrot.slane %v3204, 4
      %v3206 = vrot.slane %v2783, 5
      %v3207 = vsel %vm1513, %v3205, %v3206
      %v3208 = vrot.slane %v3206, 4
      %v3209 = vrot.slane %v2784, 5
      %v3210 = vsel %vm1513, %v3208, %v3209
      %v3211 = vrot.slane %v3161, 5
      %v3212 = vrot.slane %v3211, 4
      %v3213 = vrot.slane %v2786, 5
      %v3214 = vsel %vm1513, %v3212, %v3213
      %v3215 = vrot.slane %v3213, 4
      %v3216 = vrot.slane %v2787, 5
      %v3217 = vsel %vm1513, %v3215, %v3216
      %v3218 = vrot.slane %v3162, 5
      %v3219 = vrot.slane %v3218, 4
      %v3220 = vrot.slane %v2789, 5
      %v3221 = vsel %vm1513, %v3219, %v3220
      %v3222 = vrot.slane %v3220, 4
      %v3223 = vrot.slane %v2790, 5
      %v3224 = vsel %vm1513, %v3222, %v3223
      %v3225 = vrot.slane %v3163, 5
      %v3226 = vrot.slane %v3225, 4
      %v3227 = vrot.slane %v2792, 5
      %v3228 = vsel %vm1513, %v3226, %v3227
      %v3229 = vrot.slane %v3227, 4
      %v3230 = vrot.slane %v2793, 5
      %v3231 = vsel %vm1513, %v3229, %v3230
      %v3232 = vrot.slane %v3164, 5
      %v3233 = vrot.slane %v3232, 4
      %v3234 = vrot.slane %v2795, 5
      %v3235 = vsel %vm1513, %v3233, %v3234
      %v3236 = vrot.slane %v3234, 4
      %v3237 = vrot.slane %v2796, 5
      %v3238 = vsel %vm1513, %v3236, %v3237
      %v3239 = vrot.slane %v3165, 5
      %v3240 = vrot.slane %v3239, 4
      %v3241 = vrot.slane %v2798, 5
      %v3242 = vsel %vm1513, %v3240, %v3241
      %v3243 = vrot.slane %v3241, 4
      %v3244 = vrot.slane %v2799, 5
      %v3245 = vsel %vm1513, %v3243, %v3244
      %s3246 = scalar_lea.vmem %s1, 32
      %v3247 = vld [vmem:[%s3246] sm:$0xf]
      %v3248 = vunpack.c.l.b16 %v3193
      %v3249 = vunpack.c.l.b16 %v3196
      %v3250 = vunpack.c.l.b16 %v3200
      %v3251 = vunpack.c.l.b16 %v3203
      %v3252 = vunpack.c.l.b16 %v3207
      %v3253 = vunpack.c.l.b16 %v3210
      %v3254 = vunpack.c.l.b16 %v3214
      %v3255 = vunpack.c.l.b16 %v3217
      %v3256 = vunpack.c.l.b16 %v3221
      %v3257 = vunpack.c.l.b16 %v3224
      %v3258 = vunpack.c.l.b16 %v3228
      %v3259 = vunpack.c.l.b16 %v3231
      %v3260 = vunpack.c.l.b16 %v3235
      %v3261 = vunpack.c.l.b16 %v3238
      %v3262 = vunpack.c.l.b16 %v3242
      %v3263 = vunpack.c.l.b16 %v3245
      %v3264 = vpack.c.b16 %v3249, %v3248
      %v3265 = vpack.c.b16 %v3251, %v3250
      %v3266 = vpack.c.b16 %v3253, %v3252
      %v3267 = vpack.c.b16 %v3255, %v3254
      %v3268 = vpack.c.b16 %v3257, %v3256
      %v3269 = vpack.c.b16 %v3259, %v3258
      %v3270 = vpack.c.b16 %v3261, %v3260
      %v3271 = vpack.c.b16 %v3263, %v3262
      %v3273 = vsel %vm1197, %v3264, 0
      %v3276 = vsel %vm1197, %v3265, 0
      %v3279 = vsel %vm1197, %v3266, 0
      %v3282 = vsel %vm1197, %v3267, 0
      %v3285 = vsel %vm1197, %v3268, 0
      %v3288 = vsel %vm1197, %v3269, 0
      %v3291 = vsel %vm1197, %v3270, 0
      %v3294 = vsel %vm1197, %v3271, 0
      %v3297 = vsel %vm1222, %v3247, 0
      %3299 = vmatprep.subr.bf16.mxu0 0
      %3300 = vmatpush1.bf16.msra.mxu0 0
      %3301 = vmatprep.subr.bf16.mxu0 0
      %3302 = vmatpush1.bf16.msra.mxu0 0
      %3303 = vmatprep.subr.bf16.mxu0 0
      %3304 = vmatpush1.bf16.msra.mxu0 0
      %3305 = vmatprep.subr.bf16.mxu0 0
      %3306 = vmatpush1.bf16.msra.mxu0 0
      %3307 = vmatprep.subr.bf16.mxu0 0
      %3308 = vmatpush1.bf16.msra.mxu0 0
      %3309 = vmatprep.subr.bf16.mxu0 0
      %3310 = vmatpush1.bf16.msra.mxu0 0
      %3311 = vmatprep.subr.bf16.mxu0 0
      %3312 = vmatpush1.bf16.msra.mxu0 0
      %3313 = vmatprep.subr.bf16.mxu0 0
      %3314 = vmatpush1.bf16.msra.mxu0 %v3297
      %3315 = vmatprep.subr.bf16.mxu0 0
      %3316 = vmatpush2.bf16.msra.mxu0 0
      %3317 = vmatprep.subr.bf16.mxu0 0
      %3318 = vmatpush2.bf16.msra.mxu0 0
      %3319 = vmatprep.subr.bf16.mxu0 0
      %3320 = vmatpush2.bf16.msra.mxu0 0
      %3321 = vmatprep.subr.bf16.mxu0 0
      %3322 = vmatpush2.bf16.msra.mxu0 0
      %3323 = vmatprep.subr.bf16.mxu0 0
      %3324 = vmatpush2.bf16.msra.mxu0 0
      %3325 = vmatprep.subr.bf16.mxu0 0
      %3326 = vmatpush2.bf16.msra.mxu0 0
      %3327 = vmatprep.subr.bf16.mxu0 0
      %3328 = vmatpush2.bf16.msra.mxu0 0
      %3329 = vmatprep.subr.bf16.mxu0 0
      %3330 = vmatpush2.bf16.msra.mxu0 0
      %3331 = vmatprep.mubr.bf16.mxu0 0
      %3332 = vmatmul.mubr.bf16.gmra.mxu0 %v3273
      %v3333 = vpop.f32.mrf.mxu0
      %v3334 = vadd.f32 0.0, %v3333
      %v3335 = vpop.f32.mrf.mxu0
      %v3336 = vpop.f32.mrf.mxu0
      %v3337 = vadd.f32 0.0, %v3336
      %v3338 = vpop.f32.mrf.mxu0
      %3339 = vmatprep.mubr.bf16.mxu0 0
      %3340 = vmatmul.mubr.bf16.gmra.mxu0 %v3276
      %v3341 = vpop.f32.mrf.mxu0
      %v3342 = vadd.f32 0.0, %v3341
      %v3343 = vpop.f32.mrf.mxu0
      %v3344 = vpop.f32.mrf.mxu0
      %v3345 = vadd.f32 0.0, %v3344
      %v3346 = vpop.f32.mrf.mxu0
      %3347 = vmatprep.mubr.bf16.mxu0 0
      %3348 = vmatmul.mubr.bf16.gmra.mxu0 %v3279
      %v3349 = vpop.f32.mrf.mxu0
      %v3350 = vadd.f32 0.0, %v3349
      %v3351 = vpop.f32.mrf.mxu0
      %v3352 = vpop.f32.mrf.mxu0
      %v3353 = vadd.f32 0.0, %v3352
      %v3354 = vpop.f32.mrf.mxu0
      %3355 = vmatprep.mubr.bf16.mxu0 0
      %3356 = vmatmul.mubr.bf16.gmra.mxu0 %v3282
      %v3357 = vpop.f32.mrf.mxu0
      %v3358 = vadd.f32 0.0, %v3357
      %v3359 = vpop.f32.mrf.mxu0
      %v3360 = vpop.f32.mrf.mxu0
      %v3361 = vadd.f32 0.0, %v3360
      %v3362 = vpop.f32.mrf.mxu0
      %3363 = vmatprep.mubr.bf16.mxu0 0
      %3364 = vmatmul.mubr.bf16.gmra.mxu0 %v3285
      %v3365 = vpop.f32.mrf.mxu0
      %v3366 = vadd.f32 0.0, %v3365
      %v3367 = vpop.f32.mrf.mxu0
      %v3368 = vpop.f32.mrf.mxu0
      %v3369 = vadd.f32 0.0, %v3368
      %v3370 = vpop.f32.mrf.mxu0
      %3371 = vmatprep.mubr.bf16.mxu0 0
      %3372 = vmatmul.mubr.bf16.gmra.mxu0 %v3288
      %v3373 = vpop.f32.mrf.mxu0
      %v3374 = vadd.f32 0.0, %v3373
      %v3375 = vpop.f32.mrf.mxu0
      %v3376 = vpop.f32.mrf.mxu0
      %v3377 = vadd.f32 0.0, %v3376
      %v3378 = vpop.f32.mrf.mxu0
      %3379 = vmatprep.mubr.bf16.mxu0 0
      %3380 = vmatmul.mubr.bf16.gmra.mxu0 %v3291
      %v3381 = vpop.f32.mrf.mxu0
      %v3382 = vadd.f32 0.0, %v3381
      %v3383 = vpop.f32.mrf.mxu0
      %v3384 = vpop.f32.mrf.mxu0
      %v3385 = vadd.f32 0.0, %v3384
      %v3386 = vpop.f32.mrf.mxu0
      %3387 = vmatprep.mubr.bf16.mxu0 0
      %3388 = vmatmul.mubr.bf16.gmra.mxu0 %v3294
      %v3389 = vpop.f32.mrf.mxu0
      %v3390 = vadd.f32 0.0, %v3389
      %v3391 = vpop.f32.mrf.mxu0
      %v3392 = vpop.f32.mrf.mxu0
      %v3393 = vadd.f32 0.0, %v3392
      %v3394 = vpop.f32.mrf.mxu0
      %3395 = vdwg.mxu0
      %v3396 = vadd.f32 %v3142, %v3334
      %v3397 = vadd.f32 %v3143, %v3337
      %v3398 = vadd.f32 %v3144, %v3342
      %v3399 = vadd.f32 %v3145, %v3345
      %v3400 = vadd.f32 %v3146, %v3350
      %v3401 = vadd.f32 %v3147, %v3353
      %v3402 = vadd.f32 %v3148, %v3358
      %v3403 = vadd.f32 %v3149, %v3361
      %v3404 = vadd.f32 %v3150, %v3366
      %v3405 = vadd.f32 %v3151, %v3369
      %v3406 = vadd.f32 %v3152, %v3374
      %v3407 = vadd.f32 %v3153, %v3377
      %v3408 = vadd.f32 %v3154, %v3382
      %v3409 = vadd.f32 %v3155, %v3385
      %v3410 = vadd.f32 %v3156, %v3390
      %v3411 = vadd.f32 %v3157, %v3393
      %v3412 = vld [vmem:[%s266] sm:$0x1]
      %v3414 = vlaneseq
      %v3415 = vshrl.u32 %v3414, 7
      %v3416 = vsub.s32 0, %v3415
      %v3417 = vrot.slane %v3412, %v3416
      %v3419 = vmul.f32 %v3396, %v3417
      %v3420 = vmul.f32 %v3397, %v3417
      %v3421 = vmul.f32 %v3398, %v3417
      %v3422 = vmul.f32 %v3399, %v3417
      %v3423 = vmul.f32 %v3400, %v3417
      %v3424 = vmul.f32 %v3401, %v3417
      %v3425 = vmul.f32 %v3402, %v3417
      %v3426 = vmul.f32 %v3403, %v3417
      %v3427 = vmul.f32 %v3404, %v3417
      %v3428 = vmul.f32 %v3405, %v3417
      %v3429 = vmul.f32 %v3406, %v3417
      %v3430 = vmul.f32 %v3407, %v3417
      %v3431 = vmul.f32 %v3408, %v3417
      %v3432 = vmul.f32 %v3409, %v3417
      %v3433 = vmul.f32 %v3410, %v3417
      %v3434 = vmul.f32 %v3411, %v3417
      %v3435 = vld [vmem:[%s4] sm:$0x1]
      %v3437 = vlaneseq
      %v3438 = vshrl.u32 %v3437, 7
      %v3439 = vsub.s32 0, %v3438
      %v3440 = vrot.slane %v3435, %v3439
      %v3442 = vadd.f32 %v3419, %v3440
      %v3443 = vadd.f32 %v3420, %v3440
      %v3444 = vadd.f32 %v3421, %v3440
      %v3445 = vadd.f32 %v3422, %v3440
      %v3446 = vadd.f32 %v3423, %v3440
      %v3447 = vadd.f32 %v3424, %v3440
      %v3448 = vadd.f32 %v3425, %v3440
      %v3449 = vadd.f32 %v3426, %v3440
      %v3450 = vadd.f32 %v3427, %v3440
      %v3451 = vadd.f32 %v3428, %v3440
      %v3452 = vadd.f32 %v3429, %v3440
      %v3453 = vadd.f32 %v3430, %v3440
      %v3454 = vadd.f32 %v3431, %v3440
      %v3455 = vadd.f32 %v3432, %v3440
      %v3456 = vadd.f32 %v3433, %v3440
      %v3457 = vadd.f32 %v3434, %v3440
      %vm3458 = vcmp.ge.f32.partialorder %v3442, 0.0
      %vm3459 = vcmp.ge.f32.partialorder %v3443, 0.0
      %vm3460 = vcmp.ge.f32.partialorder %v3444, 0.0
      %vm3461 = vcmp.ge.f32.partialorder %v3445, 0.0
      %vm3462 = vcmp.ge.f32.partialorder %v3446, 0.0
      %vm3463 = vcmp.ge.f32.partialorder %v3447, 0.0
      %vm3464 = vcmp.ge.f32.partialorder %v3448, 0.0
      %vm3465 = vcmp.ge.f32.partialorder %v3449, 0.0
      %vm3466 = vcmp.ge.f32.partialorder %v3450, 0.0
      %vm3467 = vcmp.ge.f32.partialorder %v3451, 0.0
      %vm3468 = vcmp.ge.f32.partialorder %v3452, 0.0
      %vm3469 = vcmp.ge.f32.partialorder %v3453, 0.0
      %vm3470 = vcmp.ge.f32.partialorder %v3454, 0.0
      %vm3471 = vcmp.ge.f32.partialorder %v3455, 0.0
      %vm3472 = vcmp.ge.f32.partialorder %v3456, 0.0
      %vm3473 = vcmp.ge.f32.partialorder %v3457, 0.0
      %v3474 = vmul.f32 %v3442, 0.2
      %v3475 = vmul.f32 %v3443, 0.2
      %v3476 = vmul.f32 %v3444, 0.2
      %v3477 = vmul.f32 %v3445, 0.2
      %v3478 = vmul.f32 %v3446, 0.2
      %v3479 = vmul.f32 %v3447, 0.2
      %v3480 = vmul.f32 %v3448, 0.2
      %v3481 = vmul.f32 %v3449, 0.2
      %v3482 = vmul.f32 %v3450, 0.2
      %v3483 = vmul.f32 %v3451, 0.2
      %v3484 = vmul.f32 %v3452, 0.2
      %v3485 = vmul.f32 %v3453, 0.2
      %v3486 = vmul.f32 %v3454, 0.2
      %v3487 = vmul.f32 %v3455, 0.2
      %v3488 = vmul.f32 %v3456, 0.2
      %v3489 = vmul.f32 %v3457, 0.2
      %v3490 = vsel %vm3458, %v3442, %v3474
      %v3491 = vsel %vm3459, %v3443, %v3475
      %v3492 = vsel %vm3460, %v3444, %v3476
      %v3493 = vsel %vm3461, %v3445, %v3477
      %v3494 = vsel %vm3462, %v3446, %v3478
      %v3495 = vsel %vm3463, %v3447, %v3479
      %v3496 = vsel %vm3464, %v3448, %v3480
      %v3497 = vsel %vm3465, %v3449, %v3481
      %v3498 = vsel %vm3466, %v3450, %v3482
      %v3499 = vsel %vm3467, %v3451, %v3483
      %v3500 = vsel %vm3468, %v3452, %v3484
      %v3501 = vsel %vm3469, %v3453, %v3485
      %v3502 = vsel %vm3470, %v3454, %v3486
      %v3503 = vsel %vm3471, %v3455, %v3487
      %v3504 = vsel %vm3472, %v3456, %v3488
      %v3505 = vsel %vm3473, %v3457, %v3489
      %3506 = vst.msk [vmem:[%s276] sm:$0xff] %vm1197, %v3490
      %3507 = vst.msk [vmem:[%s276 + $0x8] sm:$0xff] %vm1197, %v3491
      %3508 = vst.msk [vmem:[%s276 + $0x10] sm:$0xff] %vm1197, %v3492
      %3509 = vst.msk [vmem:[%s276 + $0x18] sm:$0xff] %vm1197, %v3493
      %3510 = vst.msk [vmem:[%s276 + $0x20] sm:$0xff] %vm1197, %v3494
      %3511 = vst.msk [vmem:[%s276 + $0x28] sm:$0xff] %vm1197, %v3495
      %3512 = vst.msk [vmem:[%s276 + $0x30] sm:$0xff] %vm1197, %v3496
      %3513 = vst.msk [vmem:[%s276 + $0x38] sm:$0xff] %vm1197, %v3497
      %3514 = vst.msk [vmem:[%s276 + $0x40] sm:$0xff] %vm1197, %v3498
      %3515 = vst.msk [vmem:[%s276 + $0x48] sm:$0xff] %vm1197, %v3499
      %3516 = vst.msk [vmem:[%s276 + $0x50] sm:$0xff] %vm1197, %v3500
      %3517 = vst.msk [vmem:[%s276 + $0x58] sm:$0xff] %vm1197, %v3501
      %3518 = vst.msk [vmem:[%s276 + $0x60] sm:$0xff] %vm1197, %v3502
      %3519 = vst.msk [vmem:[%s276 + $0x68] sm:$0xff] %vm1197, %v3503
      %3520 = vst.msk [vmem:[%s276 + $0x70] sm:$0xff] %vm1197, %v3504
      %3521 = vst.msk [vmem:[%s276 + $0x78] sm:$0xff] %vm1197, %v3505
      %s3522 = smul.u32 8, %s21
      %p3523 = scmp.lt.s32.totalorder %s20, 1
      %s3524 = scalar_select %p3523, %s20, 1
      %p3525 = scmp.lt.s32.totalorder %s3522, 15
      %s3526 = scalar_select %p3525, %s3522, 15
      %s3527 = smul.addr %s3526, 2
      %s3528 = smul.addr %s3524, 32
      %s3529 = sadd.s32 %s3527, %s3528
      %s3530 = smul.addr %s3529, 8
      %s3531 = scalar_lea.vmem %s5, %s3530
      // Predicated region
      $region45: #{_lambda_.7} parent=39 // pred_check
        %p3532 = pneg %p168
      $region46: #{_lambda_.7} parent=39 // pred_check_branch
        %3534 = sbr.rel (%p3532) target = $region48
      $region47: #{_lambda_.7} parent=39 // pred_region
        %s3535 = smul.u32 8, %s21
      $region48: #{_lambda_.7} parent=39 // pred_fallthru
        _
    $region40: #{_lambda_.7} parent=5 // pred_fallthru
      _
    %p3536 = scmp.le.s32.totalorder 2, %s11
    // Predicated region
    $region49: #{_lambda_.7} parent=5 // pred_check
      %p3537 = pneg %p3536
    $region50: #{_lambda_.7} parent=5 // pred_check_branch
      %3539 = sbr.rel (%p3537) target = $region52
    $region51: #{_lambda_.7} parent=5 // pred_region
      %s3540 = ssub.s32 %s11, 2
      // Predicated region
      $region53: #{_lambda_.7} parent=51 // pred_check
        %p3541 = pneg %p174
      $region54: #{_lambda_.7} parent=51 // pred_check_branch
        %3543 = sbr.rel (%p3541) target = $region56
      $region55: #{_lambda_.7} parent=51 // pred_region
        %s3544 = smul.u32 8, %s23
        %p3545 = scmp.lt.s32.totalorder %s22, 1
        %s3546 = scalar_select %p3545, %s22, 1
        %p3547 = scmp.lt.s32.totalorder %s3544, 15
        %s3548 = scalar_select %p3547, %s3544, 15
        %s3549 = smul.addr %s3548, 2
        %s3550 = smul.addr %s3546, 32
        %s3551 = sadd.s32 %s3549, %s3550
        %s3552 = smul.addr %s3551, 8
        %s3553 = scalar_lea.vmem %s5, %s3552
      $region56: #{_lambda_.7} parent=51 // pred_fallthru
        _
    $region52: #{_lambda_.7} parent=5 // pred_fallthru
      _
  $region6: #{_lambda_.7} parent=0 // loop_footer
    %s15 = sadd.s32 1, %s11
  $region7: #{_lambda_.7} parent=0 // loop_footer_branch
    %10 = sbr.rel target = $region3
  $region8: #{_lambda_.7} parent=0 // loop_exit
    _

</llo_original>
